<compile_context>
chip_gen: v7x
topology: tpu7x:2x2x1
jax: 0.10.0
libtpu: 0.0.40
codegen_flags: <defaults>
</compile_context>

<pallas_src>
import functools

import numpy as np
import jax
import jax.numpy as jnp
from jax import lax
from jax.experimental import pallas as pl
from jax.experimental.pallas import tpu as pltpu

EPS = 1e-5
NEG = float(np.finfo(np.float32).min)   # -inf stand-in for maxpool padding


# ---------------------------------------------------------------------------
# In-kernel helpers (operate on VMEM-resident values / refs)
# ---------------------------------------------------------------------------
def _conv3x3(x, w_ref, b_ref, j, xcat_ref, relu):
    """3x3 / stride 1 / pad 1 conv on an (H, W*C) f32 slab as ONE MXU matmul.

    w_ref[j]: (3*WC, WC) bf16 weight with the three kernel-row bands stacked
    (kw taps + W-boundary zero padding baked in).  The operand is staged as
    [x(h-1) | x(h) | x(h+1)] in a VMEM scratch whose boundary rows are
    pre-zeroed, so the H-boundary padding costs no matmul.
    """
    H, WC = x.shape
    xcat_ref[:, WC:2 * WC] = x                         # centre band
    xcat_ref[1:H, 0:WC] = x[:H - 1, :]                 # h-1 band (row 0 stays 0)
    xcat_ref[:H - 1, 2 * WC:3 * WC] = x[1:, :]         # h+1 band (row H-1 stays 0)
    y = jnp.dot(xcat_ref[...].astype(jnp.bfloat16), w_ref[j],
                preferred_element_type=jnp.float32) + b_ref[j]
    return jnp.maximum(y, 0.0) if relu else y


def _basic_block(x, w_ref, b_ref, i, xcat_ref):
    """torchvision BasicBlock: conv-bn-relu-conv-bn + identity, relu."""
    h = _conv3x3(x, w_ref, b_ref, 2 * i, xcat_ref, relu=True)
    y = _conv3x3(h, w_ref, b_ref, 2 * i + 1, xcat_ref, relu=False) + x
    return jnp.maximum(y, 0.0)


def _maxpool_3x3_s2_p1(x, pc_ref, pr_ref, ps_ref, channels):
    """MaxPool2d(3, 2, 1) on an (H, W*C) slab -> (H/2, (W/2)*C).

    Column taps: one matmul against the merged selection pc_ref (WC, 3*WoC),
    then lane-slice + max (w=-1 masked to NEG).  Row taps: the column-max is
    stored into a NEG-padded scratch and three unit-stride row windows are
    maxed; the stride-2 row downsample is one tiny matmul against pr_ref.
    """
    H, WC = x.shape
    WoC = pc_ref.shape[1] // 3
    cols = jnp.dot(x.astype(jnp.bfloat16), pc_ref[...],
                   preferred_element_type=jnp.float32)
    cl = cols[:, 0:WoC]              # w = 2*wo - 1
    cc = cols[:, WoC:2 * WoC]        # w = 2*wo
    cr = cols[:, 2 * WoC:3 * WoC]    # w = 2*wo + 1
    lane = lax.broadcasted_iota(jnp.int32, (H, WoC), 1)
    cl = jnp.where(lane >= channels, cl, NEG)          # w = -1 padding
    cm = jnp.maximum(jnp.maximum(cc, cr), cl)
    ps_ref[1:H + 1, :] = cm                            # rows 0 / H+1 stay NEG
    b = jnp.maximum(jnp.maximum(ps_ref[0:H, :], cm), ps_ref[2:H + 2, :])
    return jnp.dot(pr_ref[...], b.astype(jnp.bfloat16),
                   preferred_element_type=jnp.float32)


def _dec_stage(skip, lo, wt_ref, bt_ref, ip_ref, wd_ref, bd_ref,
               w_ref, b_ref, blk_i, cat_ref, xcat_ref):
    """dec: trans(lo) -> cat([skip, up]) conv1x1+BN+ReLU -> BasicBlock."""
    lob = lo.astype(jnp.bfloat16)
    # ConvTranspose2d(k=2, s=2) + BN + ReLU: one matmul per output-row parity.
    up_e = jnp.maximum(
        jnp.dot(lob, wt_ref[0], preferred_element_type=jnp.float32) + bt_ref[...], 0.0)
    up_o = jnp.maximum(
        jnp.dot(lob, wt_ref[1], preferred_element_type=jnp.float32) + bt_ref[...], 0.0)
    # Even/odd row interleave via two tiny 0/1 matmuls (kept matmul-based for
    # robustness; a strided sublane store would move this to the VPU/XLU).
    up = (jnp.dot(ip_ref[0], up_e.astype(jnp.bfloat16),
                  preferred_element_type=jnp.float32)
          + jnp.dot(ip_ref[1], up_o.astype(jnp.bfloat16),
                    preferred_element_type=jnp.float32))
    # conv1x1 on cat([skip, up], channel): stage the lane-concat, one matmul.
    H, WC = skip.shape
    cat_ref[:, 0:WC] = skip
    cat_ref[:, WC:2 * WC] = up
    y = jnp.maximum(
        jnp.dot(cat_ref[...].astype(jnp.bfloat16), wd_ref[...],
                preferred_element_type=jnp.float32) + bd_ref[...], 0.0)
    return _basic_block(y, w_ref, b_ref, blk_i, xcat_ref)


# ---------------------------------------------------------------------------
# The single fused kernel (grid over batch; one image per grid step)
# ---------------------------------------------------------------------------
def _attention2_kernel(x_ref, wl1, bl1, wl2, bl2, wl3, bl3,
                       pc1, pr1, pc2, pr2,
                       wt2, bt2, ip2, wd2, bd2,
                       wt1, bt1, ip1, wd1, bd1,
                       o_ref,
                       xcat1, xcat2, xcat3, cat2, cat1, ps1, ps2,
                       *, channels):
    # Per grid step: zero the conv-band boundary rows and NEG-fill the maxpool
    # H-padding rows.  These rows are never overwritten afterwards.
    for xr in (xcat1, xcat2, xcat3):
        Hx, W3 = xr.shape
        WCx = W3 // 3
        xr[0:1, 0:WCx] = jnp.zeros((1, WCx), xr.dtype)
        xr[Hx - 1:Hx, 2 * WCx:3 * WCx] = jnp.zeros((1, WCx), xr.dtype)
    for psr in (ps1, ps2):
        Hp, Wp = psr.shape
        psr[0:1, :] = jnp.full((1, Wp), NEG, psr.dtype)
        psr[Hp - 1:Hp, :] = jnp.full((1, Wp), NEG, psr.dtype)

    x = x_ref[0]
    # trunking: BasicBlock x2
    trunk = _basic_block(x, wl1, bl1, 0, xcat1)
    trunk = _basic_block(trunk, wl1, bl1, 1, xcat1)
    # enc
    x1 = _basic_block(x, wl1, bl1, 2, xcat1)
    p1 = _maxpool_3x3_s2_p1(x1, pc1, pr1, ps1, channels)
    x2 = _basic_block(p1, wl2, bl2, 0, xcat2)
    p2 = _maxpool_3x3_s2_p1(x2, pc2, pr2, ps2, channels)
    x3 = _basic_block(p2, wl3, bl3, 0, xcat3)
    x3 = _basic_block(x3, wl3, bl3, 1, xcat3)
    # dec: the reference applies _dec1 / _trans at both levels
    d2 = _dec_stage(x2, x3, wt2, bt2, ip2, wd2, bd2, wl2, bl2, 1, cat2, xcat2)
    d1 = _dec_stage(x1, d2, wt1, bt1, ip1, wd1, bd1, wl1, bl1, 3, cat1, xcat1)
    # masking fused with the attention product: (1 + sigmoid(dec)) * trunk
    o_ref[0] = (1.0 + jax.nn.sigmoid(d1)) * trunk


# ---------------------------------------------------------------------------
# pallas_call wrapper
# ---------------------------------------------------------------------------
def _const_spec(arr):
    nd = arr.ndim
    return pl.BlockSpec(arr.shape, lambda n, _nd=nd: (0,) * _nd)


_WEIGHT_KEYS = ("wl1", "bl1", "wl2", "bl2", "wl3", "bl3",
                "pc1", "pr1", "pc2", "pr2",
                "wt2", "bt2", "ip2", "wd2", "bd2",
                "wt1", "bt1", "ip1", "wd1", "bd1")


@functools.partial(jax.jit, static_argnums=2)
def attention2_forward(params, x_slab, channels):
    N, H, WC = x_slab.shape
    H2, H3, WC2, WC3 = H // 2, H // 4, WC // 2, WC // 4
    weights = [params[k] for k in _WEIGHT_KEYS]
    in_specs = [pl.BlockSpec((1, H, WC), lambda n: (n, 0, 0))]
    in_specs += [_const_spec(w) for w in weights]

    # Advisory cost hint: the kernel is latency-bound at these shapes.
    flops = 2 * N * (8 * H * 3 * WC * WC + 4 * H2 * 3 * WC2 * WC2
                     + 4 * H3 * 3 * WC3 * WC3 + 4 * H * WC * WC)
    bytes_accessed = int(sum(int(np.prod(w.shape)) * w.dtype.itemsize
                             for w in weights) + 2 * N * H * WC * 4)

    return pl.pallas_call(
        functools.partial(_attention2_kernel, channels=channels),
        out_shape=jax.ShapeDtypeStruct((N, H, WC), jnp.float32),
        grid=(N,),
        in_specs=in_specs,
        out_specs=pl.BlockSpec((1, H, WC), lambda n: (n, 0, 0)),
        scratch_shapes=[
            pltpu.VMEM((H, 3 * WC), jnp.float32),      # xcat1 (L1 conv operand)
            pltpu.VMEM((H2, 3 * WC2), jnp.float32),    # xcat2 (L2 conv operand)
            pltpu.VMEM((H3, 3 * WC3), jnp.float32),    # xcat3 (L3 conv operand)
            pltpu.VMEM((H2, 2 * WC2), jnp.float32),    # cat2  ([skip|up] @ L2)
            pltpu.VMEM((H, 2 * WC), jnp.float32),      # cat1  ([skip|up] @ L1)
            pltpu.VMEM((H + 2, WC2), jnp.float32),     # ps1   (NEG-padded pool rows)
            pltpu.VMEM((H2 + 2, WC3), jnp.float32),    # ps2
        ],
        compiler_params=pltpu.CompilerParams(dimension_semantics=("parallel",)),
        cost_estimate=pl.CostEstimate(flops=int(flops),
                                      transcendentals=int(N * H * WC),
                                      bytes_accessed=bytes_accessed),
    )(x_slab, *weights)


# ---------------------------------------------------------------------------
# Parameter construction (host-side, one-time): fold BN, band / stack weights
# ---------------------------------------------------------------------------
def bn_fold(gamma, beta, mean=0.0, var=1.0):
    scale = gamma / np.sqrt(var + EPS)
    bias = beta - mean * scale
    return scale.astype(np.float32), bias.astype(np.float32)


def kaiming_conv(key, cout, cin, kh, kw):
    # kaiming_normal_(mode='fan_out', nonlinearity='relu')
    fan_out = cout * kh * kw
    std = (2.0 / fan_out) ** 0.5
    return jax.random.normal(key, (cout, cin, kh, kw), jnp.float32) * std


def conv3x3_folded(wconv, scale, W):
    """(Cout,Cin,3,3) + BN scale -> (3*W*Cin, W*Cout) band-folded matrix."""
    cout, cin = wconv.shape[:2]
    wl = np.asarray(wconv) * scale[:, None, None, None]
    B = np.zeros((3, W * cin, W * cout), np.float32)
    for kh in range(3):
        for kw in range(3):
            tap = wl[:, :, kh, kw].T                   # (Cin, Cout)
            for w in range(W):
                wi = w + kw - 1
                if 0 <= wi < W:
                    B[kh, wi * cin:(wi + 1) * cin, w * cout:(w + 1) * cout] = tap
    return B.reshape(3 * W * cin, W * cout)


def stack_blocks(raws, W):
    """List of raw BasicBlocks -> stacked bf16 weights / f32 bias rows."""
    C = int(raws[0]["w1"].shape[0])
    s1, b1 = bn_fold(np.ones(C, np.float32), np.zeros(C, np.float32))
    # Attention2.__init__ zero-initialises bn2.weight of every BasicBlock.
    s2, b2 = bn_fold(np.zeros(C, np.float32), np.zeros(C, np.float32))
    ws, bs = [], []
    for r in raws:
        ws.append(conv3x3_folded(r["w1"], s1, W))
        bs.append(np.tile(b1, W).reshape(1, W * C))
        ws.append(conv3x3_folded(r["w2"], s2, W))
        bs.append(np.tile(b2, W).reshape(1, W * C))
    return (jnp.asarray(np.stack(ws), jnp.bfloat16),
            jnp.asarray(np.stack(bs), jnp.float32))


def pool_weights(H, W, C):
    """Merged column-tap selection (W*C, 3*Wo*C) + even-row select (Ho, H)."""
    Ho, Wo = H // 2, W // 2
    Cm = np.zeros((3, W * C, Wo * C), np.float32)
    eye = np.eye(C, dtype=np.float32)
    for wo in range(Wo):
        for k, dw in enumerate((-1, 0, 1)):
            w = 2 * wo + dw
            if 0 <= w < W:
                Cm[k, w * C:(w + 1) * C, wo * C:(wo + 1) * C] = eye
    R = np.zeros((Ho, H), np.float32)
    for ho in range(Ho):
        R[ho, 2 * ho] = 1.0
    return (jnp.asarray(np.concatenate([Cm[0], Cm[1], Cm[2]], axis=1), jnp.bfloat16),
            jnp.asarray(R, jnp.bfloat16))


def compile_trans(raw, Hs, Ws):
    """ConvTranspose2d(C,C,k=2,s=2)+BN+ReLU in slab form (input Hs x Ws)."""
    cin, cout = raw["wt"].shape[:2]
    s, b = bn_fold(np.ones(cout, np.float32), np.zeros(cout, np.float32))
    wt = np.asarray(raw["wt"])
    bt = np.asarray(raw["bt"])
    B = np.zeros((2, Ws * cin, 2 * Ws * cout), np.float32)
    for kh in range(2):
        for kw in range(2):
            tap = (wt[:, :, kh, kw] * s[None, :]).astype(np.float32)  # (Cin, Cout)
            for w in range(Ws):
                B[kh, w * cin:(w + 1) * cin,
                  (2 * w + kw) * cout:(2 * w + kw + 1) * cout] = tap
    bias = s * bt + b
    P = np.zeros((2, 2 * Hs, Hs), np.float32)
    for h in range(Hs):
        P[0, 2 * h, h] = 1.0
        P[1, 2 * h + 1, h] = 1.0
    return (jnp.asarray(B, jnp.bfloat16),
            jnp.asarray(np.tile(bias, 2 * Ws).reshape(1, 2 * Ws * cout), jnp.float32),
            jnp.asarray(P, jnp.bfloat16))


def compile_dec1x1(raw_wc, W):
    """conv1x1(2C->C)+BN on the lane-concat [skip | up] slab at width W."""
    C = int(raw_wc.shape[0])
    s, b = bn_fold(np.ones(C, np.float32), np.zeros(C, np.float32))
    wc = np.asarray(raw_wc)[:, :, 0, 0]                 # (C, 2C)
    m = (wc * s[:, None]).T.astype(np.float32)          # (2C, C)
    Bs = np.zeros((W * C, W * C), np.float32)
    Bu = np.zeros((W * C, W * C), np.float32)
    for w in range(W):
        Bs[w * C:(w + 1) * C, w * C:(w + 1) * C] = m[:C]
        Bu[w * C:(w + 1) * C, w * C:(w + 1) * C] = m[C:]
    return (jnp.asarray(np.concatenate([Bs, Bu], axis=0), jnp.bfloat16),
            jnp.asarray(np.tile(b, W).reshape(1, W * C), jnp.float32))


def make_attention2_params(key, C, H, W):
    keys = jax.random.split(key, 9)

    def raw_block(k):
        k1, k2 = jax.random.split(k)
        return dict(w1=kaiming_conv(k1, C, C, 3, 3), w2=kaiming_conv(k2, C, C, 3, 3))

    trunk1, trunk2 = raw_block(keys[0]), raw_block(keys[1])
    enc1, enc2 = raw_block(keys[2]), raw_block(keys[3])
    enc3a, enc3b = raw_block(keys[4]), raw_block(keys[5])
    dec1 = dict(wc=kaiming_conv(keys[6], C, 2 * C, 1, 1), block=raw_block(keys[7]))
    # `_dec2` exists in the PyTorch module but dec() never uses it; omitted.
    kt1, kt2 = jax.random.split(keys[8])
    bound = 1.0 / np.sqrt(C * 2 * 2)
    trans = dict(wt=jax.random.uniform(kt1, (C, C, 2, 2), jnp.float32, -bound, bound),
                 bt=jax.random.uniform(kt2, (C,), jnp.float32, -bound, bound))

    H2, W2, H3, W3 = H // 2, W // 2, H // 4, W // 4
    # _dec1 / _trans weights are shared across levels (as in the reference);
    # they are simply re-banded for each spatial width.
    wl1, bl1 = stack_blocks([trunk1, trunk2, enc1, dec1["block"]], W)
    wl2, bl2 = stack_blocks([enc2, dec1["block"]], W2)
    wl3, bl3 = stack_blocks([enc3a, enc3b], W3)
    pc1, pr1 = pool_weights(H, W, C)
    pc2, pr2 = pool_weights(H2, W2, C)
    wt2, bt2, ip2 = compile_trans(trans, H3, W3)     # level 3 -> level 2
    wt1, bt1, ip1 = compile_trans(trans, H2, W2)     # level 2 -> level 1
    wd2, bd2 = compile_dec1x1(dec1["wc"], W2)
    wd1, bd1 = compile_dec1x1(dec1["wc"], W)
    return dict(wl1=wl1, bl1=bl1, wl2=wl2, bl2=bl2, wl3=wl3, bl3=bl3,
                pc1=pc1, pr1=pr1, pc2=pc2, pr2=pr2,
                wt2=wt2, bt2=bt2, ip2=ip2, wd2=wd2, bd2=bd2,
                wt1=wt1, bt1=bt1, ip1=ip1, wd1=wd1, bd1=bd1)


if __name__ == "__main__":
    key = jax.random.PRNGKey(0)
    k_param, k_x = jax.random.split(key)

    B, C, H, W = 2, 8, 16, 16          # PyTorch-style NCHW input shape
    params = make_attention2_params(k_param, C, H, W)

    x_nchw = jax.random.normal(k_x, (B, C, H, W), jnp.float32)
    # boundary: NCHW -> lane-dense (N, H, W*C) slab (W*C = 128 lanes at L1)
    x_slab = jnp.transpose(x_nchw, (0, 2, 3, 1)).reshape(B, H, W * C)

    out_slab = attention2_forward(params, x_slab, C)
    out = jax.block_until_ready(out_slab).reshape(B, H, W, C)   # NHWC

    assert out.shape == (B, H, W, C) and out.dtype == jnp.float32
    assert bool(jnp.all(jnp.isfinite(out)))
    print("KERNEL_OK")
</pallas_src>

<mosaic_0001>
module attributes {stable_mosaic.version = 11 : i64} {
  func.func @_attention2_kernel(%arg0: i32, %arg1: memref<1x16x128xf32, #tpu.memory_space<vmem>>, %arg2: memref<8x384x128xbf16, #tpu.memory_space<vmem>>, %arg3: memref<8x1x128xf32, #tpu.memory_space<vmem>>, %arg4: memref<4x192x64xbf16, #tpu.memory_space<vmem>>, %arg5: memref<4x1x64xf32, #tpu.memory_space<vmem>>, %arg6: memref<4x96x32xbf16, #tpu.memory_space<vmem>>, %arg7: memref<4x1x32xf32, #tpu.memory_space<vmem>>, %arg8: memref<128x192xbf16, #tpu.memory_space<vmem>>, %arg9: memref<8x16xbf16, #tpu.memory_space<vmem>>, %arg10: memref<64x96xbf16, #tpu.memory_space<vmem>>, %arg11: memref<4x8xbf16, #tpu.memory_space<vmem>>, %arg12: memref<2x32x64xbf16, #tpu.memory_space<vmem>>, %arg13: memref<1x64xf32, #tpu.memory_space<vmem>>, %arg14: memref<2x8x4xbf16, #tpu.memory_space<vmem>>, %arg15: memref<128x64xbf16, #tpu.memory_space<vmem>>, %arg16: memref<1x64xf32, #tpu.memory_space<vmem>>, %arg17: memref<2x64x128xbf16, #tpu.memory_space<vmem>>, %arg18: memref<1x128xf32, #tpu.memory_space<vmem>>, %arg19: memref<2x16x8xbf16, #tpu.memory_space<vmem>>, %arg20: memref<256x128xbf16, #tpu.memory_space<vmem>>, %arg21: memref<1x128xf32, #tpu.memory_space<vmem>>, %arg22: memref<1x16x128xf32, #tpu.memory_space<vmem>>, %arg23: memref<16x384xf32, #tpu.memory_space<vmem>>, %arg24: memref<8x192xf32, #tpu.memory_space<vmem>>, %arg25: memref<4x96xf32, #tpu.memory_space<vmem>>, %arg26: memref<8x128xf32, #tpu.memory_space<vmem>>, %arg27: memref<16x256xf32, #tpu.memory_space<vmem>>, %arg28: memref<18x64xf32, #tpu.memory_space<vmem>>, %arg29: memref<10x32xf32, #tpu.memory_space<vmem>>) attributes {dimension_semantics = [#tpu.dimension_semantics<parallel>], iteration_bounds = array<i64: 2>, scalar_prefetch = 0 : i64, scratch_operands = 7 : i64, tpu.core_type = #tpu.core_type<tc>, window_params = [{transform_indices = @transform_0, window_bounds = array<i64: 1, 16, 128>}, {pipeline_mode = #tpu.pipeline_mode<synchronous>, transform_indices = @transform_1, window_bounds = array<i64: 8, 384, 128>}, {pipeline_mode = #tpu.pipeline_mode<synchronous>, transform_indices = @transform_2, window_bounds = array<i64: 8, 1, 128>}, {pipeline_mode = #tpu.pipeline_mode<synchronous>, transform_indices = @transform_3, window_bounds = array<i64: 4, 192, 64>}, {pipeline_mode = #tpu.pipeline_mode<synchronous>, transform_indices = @transform_4, window_bounds = array<i64: 4, 1, 64>}, {pipeline_mode = #tpu.pipeline_mode<synchronous>, transform_indices = @transform_5, window_bounds = array<i64: 4, 96, 32>}, {pipeline_mode = #tpu.pipeline_mode<synchronous>, transform_indices = @transform_6, window_bounds = array<i64: 4, 1, 32>}, {pipeline_mode = #tpu.pipeline_mode<synchronous>, transform_indices = @transform_7, window_bounds = array<i64: 128, 192>}, {pipeline_mode = #tpu.pipeline_mode<synchronous>, transform_indices = @transform_8, window_bounds = array<i64: 8, 16>}, {pipeline_mode = #tpu.pipeline_mode<synchronous>, transform_indices = @transform_9, window_bounds = array<i64: 64, 96>}, {pipeline_mode = #tpu.pipeline_mode<synchronous>, transform_indices = @transform_10, window_bounds = array<i64: 4, 8>}, {pipeline_mode = #tpu.pipeline_mode<synchronous>, transform_indices = @transform_11, window_bounds = array<i64: 2, 32, 64>}, {pipeline_mode = #tpu.pipeline_mode<synchronous>, transform_indices = @transform_12, window_bounds = array<i64: 1, 64>}, {pipeline_mode = #tpu.pipeline_mode<synchronous>, transform_indices = @transform_13, window_bounds = array<i64: 2, 8, 4>}, {pipeline_mode = #tpu.pipeline_mode<synchronous>, transform_indices = @transform_14, window_bounds = array<i64: 128, 64>}, {pipeline_mode = #tpu.pipeline_mode<synchronous>, transform_indices = @transform_15, window_bounds = array<i64: 1, 64>}, {pipeline_mode = #tpu.pipeline_mode<synchronous>, transform_indices = @transform_16, window_bounds = array<i64: 2, 64, 128>}, {pipeline_mode = #tpu.pipeline_mode<synchronous>, transform_indices = @transform_17, window_bounds = array<i64: 1, 128>}, {pipeline_mode = #tpu.pipeline_mode<synchronous>, transform_indices = @transform_18, window_bounds = array<i64: 2, 16, 8>}, {pipeline_mode = #tpu.pipeline_mode<synchronous>, transform_indices = @transform_19, window_bounds = array<i64: 256, 128>}, {pipeline_mode = #tpu.pipeline_mode<synchronous>, transform_indices = @transform_20, window_bounds = array<i64: 1, 128>}, {transform_indices = @transform_21, window_bounds = array<i64: 1, 16, 128>}]} {
    %cst = arith.constant 0.000000e+00 : f32
    %0 = vector.broadcast %cst : f32 to vector<1x128xf32>
    %c0 = arith.constant 0 : index
    %c0_0 = arith.constant 0 : index
    %1 = vector.load %arg23[%c0, %c0_0] : memref<16x384xf32, #tpu.memory_space<vmem>>, vector<1x128xf32>
    tpu.vector_store %arg23[%c0, %c0_0], %0 {strides = array<i32>} : memref<16x384xf32, #tpu.memory_space<vmem>>, vector<1x128xf32>,
    %cst_1 = arith.constant 0.000000e+00 : f32
    %2 = vector.broadcast %cst_1 : f32 to vector<1x128xf32>
    %c15 = arith.constant 15 : index
    %c256 = arith.constant 256 : index
    %3 = vector.load %arg23[%c15, %c256] : memref<16x384xf32, #tpu.memory_space<vmem>>, vector<1x128xf32>
    tpu.vector_store %arg23[%c15, %c256], %2 {strides = array<i32>} : memref<16x384xf32, #tpu.memory_space<vmem>>, vector<1x128xf32>,
    %cst_2 = arith.constant 0.000000e+00 : f32
    %4 = vector.broadcast %cst_2 : f32 to vector<1x64xf32>
    %c0_3 = arith.constant 0 : index
    %c0_4 = arith.constant 0 : index
    %5 = vector.load %arg24[%c0_3, %c0_4] : memref<8x192xf32, #tpu.memory_space<vmem>>, vector<1x64xf32>
    tpu.vector_store %arg24[%c0_3, %c0_4], %4 {strides = array<i32>} : memref<8x192xf32, #tpu.memory_space<vmem>>, vector<1x64xf32>,
    %cst_5 = arith.constant 0.000000e+00 : f32
    %6 = vector.broadcast %cst_5 : f32 to vector<1x64xf32>
    %c7 = arith.constant 7 : index
    %c128 = arith.constant 128 : index
    %7 = vector.load %arg24[%c7, %c128] : memref<8x192xf32, #tpu.memory_space<vmem>>, vector<1x64xf32>
    tpu.vector_store %arg24[%c7, %c128], %6 {strides = array<i32>} : memref<8x192xf32, #tpu.memory_space<vmem>>, vector<1x64xf32>,
    %cst_6 = arith.constant 0.000000e+00 : f32
    %8 = vector.broadcast %cst_6 : f32 to vector<1x32xf32>
    %c0_7 = arith.constant 0 : index
    %c0_8 = arith.constant 0 : index
    %9 = vector.load %arg25[%c0_7, %c0_8] : memref<4x96xf32, #tpu.memory_space<vmem>>, vector<1x32xf32>
    tpu.vector_store %arg25[%c0_7, %c0_8], %8 {strides = array<i32>} : memref<4x96xf32, #tpu.memory_space<vmem>>, vector<1x32xf32>,
    %cst_9 = arith.constant 0.000000e+00 : f32
    %10 = vector.broadcast %cst_9 : f32 to vector<1x32xf32>
    %c3 = arith.constant 3 : index
    %c64 = arith.constant 64 : index
    %11 = vector.load %arg25[%c3, %c64] : memref<4x96xf32, #tpu.memory_space<vmem>>, vector<1x32xf32>
    tpu.vector_store %arg25[%c3, %c64], %10 {strides = array<i32>} : memref<4x96xf32, #tpu.memory_space<vmem>>, vector<1x32xf32>,
    %cst_10 = arith.constant -3.40282347E+38 : f32
    %12 = vector.broadcast %cst_10 : f32 to vector<1x64xf32>
    %c0_11 = arith.constant 0 : index
    %c0_12 = arith.constant 0 : index
    %13 = vector.load %arg28[%c0_11, %c0_12] : memref<18x64xf32, #tpu.memory_space<vmem>>, vector<1x64xf32>
    tpu.vector_store %arg28[%c0_11, %c0_12], %12 {strides = array<i32>} : memref<18x64xf32, #tpu.memory_space<vmem>>, vector<1x64xf32>,
    %cst_13 = arith.constant -3.40282347E+38 : f32
    %14 = vector.broadcast %cst_13 : f32 to vector<1x64xf32>
    %c17 = arith.constant 17 : index
    %c0_14 = arith.constant 0 : index
    %15 = vector.load %arg28[%c17, %c0_14] : memref<18x64xf32, #tpu.memory_space<vmem>>, vector<1x64xf32>
    tpu.vector_store %arg28[%c17, %c0_14], %14 {strides = array<i32>} : memref<18x64xf32, #tpu.memory_space<vmem>>, vector<1x64xf32>,
    %cst_15 = arith.constant -3.40282347E+38 : f32
    %16 = vector.broadcast %cst_15 : f32 to vector<1x32xf32>
    %c0_16 = arith.constant 0 : index
    %c0_17 = arith.constant 0 : index
    %17 = vector.load %arg29[%c0_16, %c0_17] : memref<10x32xf32, #tpu.memory_space<vmem>>, vector<1x32xf32>
    tpu.vector_store %arg29[%c0_16, %c0_17], %16 {strides = array<i32>} : memref<10x32xf32, #tpu.memory_space<vmem>>, vector<1x32xf32>,
    %cst_18 = arith.constant -3.40282347E+38 : f32
    %18 = vector.broadcast %cst_18 : f32 to vector<1x32xf32>
    %c9 = arith.constant 9 : index
    %c0_19 = arith.constant 0 : index
    %19 = vector.load %arg29[%c9, %c0_19] : memref<10x32xf32, #tpu.memory_space<vmem>>, vector<1x32xf32>
    tpu.vector_store %arg29[%c9, %c0_19], %18 {strides = array<i32>} : memref<10x32xf32, #tpu.memory_space<vmem>>, vector<1x32xf32>,
    %c0_20 = arith.constant 0 : index
    %c0_21 = arith.constant 0 : index
    %c0_22 = arith.constant 0 : index
    %20 = vector.load %arg1[%c0_20, %c0_21, %c0_22] : memref<1x16x128xf32, #tpu.memory_space<vmem>>, vector<1x16x128xf32>
    %21 = vector.shape_cast %20 : vector<1x16x128xf32> to vector<16x128xf32>
    %c0_23 = arith.constant 0 : index
    %c128_24 = arith.constant 128 : index
    %22 = vector.load %arg23[%c0_23, %c128_24] : memref<16x384xf32, #tpu.memory_space<vmem>>, vector<16x128xf32>
    tpu.vector_store %arg23[%c0_23, %c128_24], %21 {strides = array<i32>} : memref<16x384xf32, #tpu.memory_space<vmem>>, vector<16x128xf32>,
    %23 = vector.extract_strided_slice %21 {offsets = [0, 0], sizes = [15, 128], strides = [1, 1]} : vector<16x128xf32> to vector<15x128xf32>
    %c1 = arith.constant 1 : index
    %c0_25 = arith.constant 0 : index
    %24 = vector.load %arg23[%c1, %c0_25] : memref<16x384xf32, #tpu.memory_space<vmem>>, vector<15x128xf32>
    tpu.vector_store %arg23[%c1, %c0_25], %23 {strides = array<i32>} : memref<16x384xf32, #tpu.memory_space<vmem>>, vector<15x128xf32>,
    %25 = vector.extract_strided_slice %21 {offsets = [1, 0], sizes = [15, 128], strides = [1, 1]} : vector<16x128xf32> to vector<15x128xf32>
    %c0_26 = arith.constant 0 : index
    %c256_27 = arith.constant 256 : index
    %26 = vector.load %arg23[%c0_26, %c256_27] : memref<16x384xf32, #tpu.memory_space<vmem>>, vector<15x128xf32>
    tpu.vector_store %arg23[%c0_26, %c256_27], %25 {strides = array<i32>} : memref<16x384xf32, #tpu.memory_space<vmem>>, vector<15x128xf32>,
    %c0_28 = arith.constant 0 : index
    %c0_29 = arith.constant 0 : index
    %27 = vector.load %arg23[%c0_28, %c0_29] : memref<16x384xf32, #tpu.memory_space<vmem>>, vector<16x384xf32>
    %28 = arith.truncf %27 : vector<16x384xf32> to vector<16x384xbf16>
    %c0_30 = arith.constant 0 : index
    %c0_31 = arith.constant 0 : index
    %c0_32 = arith.constant 0 : index
    %29 = vector.load %arg2[%c0_30, %c0_31, %c0_32] : memref<8x384x128xbf16, #tpu.memory_space<vmem>>, vector<1x384x128xbf16>
    %30 = vector.shape_cast %29 : vector<1x384x128xbf16> to vector<384x128xbf16>
    %cst_33 = arith.constant dense<0.000000e+00> : vector<16x128xf32>
    %31 = tpu.matmul %28, %30, %cst_33 {dimension_numbers = #tpu.dot_dimension_numbers<[1], [0], [0], [1], [0, 0, 1, 1], [], []>} : vector<16x384xbf16>, vector<384x128xbf16>, vector<16x128xf32> -> vector<16x128xf32>
    %c0_34 = arith.constant 0 : index
    %c0_35 = arith.constant 0 : index
    %c0_36 = arith.constant 0 : index
    %32 = vector.load %arg3[%c0_34, %c0_35, %c0_36] : memref<8x1x128xf32, #tpu.memory_space<vmem>>, vector<1x1x128xf32>
    %33 = vector.shape_cast %32 : vector<1x1x128xf32> to vector<1x128xf32>
    %34 = vector.broadcast %33 : vector<1x128xf32> to vector<16x128xf32>
    %35 = arith.addf %31, %34 : vector<16x128xf32>
    %cst_37 = arith.constant 0.000000e+00 : f32
    %36 = vector.broadcast %cst_37 : f32 to vector<16x128xf32>
    %37 = arith.maximumf %35, %36 : vector<16x128xf32>
    %c0_38 = arith.constant 0 : index
    %c128_39 = arith.constant 128 : index
    %38 = vector.load %arg23[%c0_38, %c128_39] : memref<16x384xf32, #tpu.memory_space<vmem>>, vector<16x128xf32>
    tpu.vector_store %arg23[%c0_38, %c128_39], %37 {strides = array<i32>} : memref<16x384xf32, #tpu.memory_space<vmem>>, vector<16x128xf32>,
    %39 = vector.extract_strided_slice %37 {offsets = [0, 0], sizes = [15, 128], strides = [1, 1]} : vector<16x128xf32> to vector<15x128xf32>
    %c1_40 = arith.constant 1 : index
    %c0_41 = arith.constant 0 : index
    %40 = vector.load %arg23[%c1_40, %c0_41] : memref<16x384xf32, #tpu.memory_space<vmem>>, vector<15x128xf32>
    tpu.vector_store %arg23[%c1_40, %c0_41], %39 {strides = array<i32>} : memref<16x384xf32, #tpu.memory_space<vmem>>, vector<15x128xf32>,
    %41 = vector.extract_strided_slice %37 {offsets = [1, 0], sizes = [15, 128], strides = [1, 1]} : vector<16x128xf32> to vector<15x128xf32>
    %c0_42 = arith.constant 0 : index
    %c256_43 = arith.constant 256 : index
    %42 = vector.load %arg23[%c0_42, %c256_43] : memref<16x384xf32, #tpu.memory_space<vmem>>, vector<15x128xf32>
    tpu.vector_store %arg23[%c0_42, %c256_43], %41 {strides = array<i32>} : memref<16x384xf32, #tpu.memory_space<vmem>>, vector<15x128xf32>,
    %c0_44 = arith.constant 0 : index
    %c0_45 = arith.constant 0 : index
    %43 = vector.load %arg23[%c0_44, %c0_45] : memref<16x384xf32, #tpu.memory_space<vmem>>, vector<16x384xf32>
    %44 = arith.truncf %43 : vector<16x384xf32> to vector<16x384xbf16>
    %c1_46 = arith.constant 1 : index
    %c0_47 = arith.constant 0 : index
    %c0_48 = arith.constant 0 : index
    %45 = vector.load %arg2[%c1_46, %c0_47, %c0_48] : memref<8x384x128xbf16, #tpu.memory_space<vmem>>, vector<1x384x128xbf16>
    %46 = vector.shape_cast %45 : vector<1x384x128xbf16> to vector<384x128xbf16>
    %cst_49 = arith.constant dense<0.000000e+00> : vector<16x128xf32>
    %47 = tpu.matmul %44, %46, %cst_49 {dimension_numbers = #tpu.dot_dimension_numbers<[1], [0], [0], [1], [0, 0, 1, 1], [], []>} : vector<16x384xbf16>, vector<384x128xbf16>, vector<16x128xf32> -> vector<16x128xf32>
    %c1_50 = arith.constant 1 : index
    %c0_51 = arith.constant 0 : index
    %c0_52 = arith.constant 0 : index
    %48 = vector.load %arg3[%c1_50, %c0_51, %c0_52] : memref<8x1x128xf32, #tpu.memory_space<vmem>>, vector<1x1x128xf32>
    %49 = vector.shape_cast %48 : vector<1x1x128xf32> to vector<1x128xf32>
    %50 = vector.broadcast %49 : vector<1x128xf32> to vector<16x128xf32>
    %51 = arith.addf %47, %50 : vector<16x128xf32>
    %52 = arith.addf %51, %21 : vector<16x128xf32>
    %cst_53 = arith.constant 0.000000e+00 : f32
    %53 = vector.broadcast %cst_53 : f32 to vector<16x128xf32>
    %54 = arith.maximumf %52, %53 : vector<16x128xf32>
    %c0_54 = arith.constant 0 : index
    %c128_55 = arith.constant 128 : index
    %55 = vector.load %arg23[%c0_54, %c128_55] : memref<16x384xf32, #tpu.memory_space<vmem>>, vector<16x128xf32>
    tpu.vector_store %arg23[%c0_54, %c128_55], %54 {strides = array<i32>} : memref<16x384xf32, #tpu.memory_space<vmem>>, vector<16x128xf32>,
    %56 = vector.extract_strided_slice %54 {offsets = [0, 0], sizes = [15, 128], strides = [1, 1]} : vector<16x128xf32> to vector<15x128xf32>
    %c1_56 = arith.constant 1 : index
    %c0_57 = arith.constant 0 : index
    %57 = vector.load %arg23[%c1_56, %c0_57] : memref<16x384xf32, #tpu.memory_space<vmem>>, vector<15x128xf32>
    tpu.vector_store %arg23[%c1_56, %c0_57], %56 {strides = array<i32>} : memref<16x384xf32, #tpu.memory_space<vmem>>, vector<15x128xf32>,
    %58 = vector.extract_strided_slice %54 {offsets = [1, 0], sizes = [15, 128], strides = [1, 1]} : vector<16x128xf32> to vector<15x128xf32>
    %c0_58 = arith.constant 0 : index
    %c256_59 = arith.constant 256 : index
    %59 = vector.load %arg23[%c0_58, %c256_59] : memref<16x384xf32, #tpu.memory_space<vmem>>, vector<15x128xf32>
    tpu.vector_store %arg23[%c0_58, %c256_59], %58 {strides = array<i32>} : memref<16x384xf32, #tpu.memory_space<vmem>>, vector<15x128xf32>,
    %c0_60 = arith.constant 0 : index
    %c0_61 = arith.constant 0 : index
    %60 = vector.load %arg23[%c0_60, %c0_61] : memref<16x384xf32, #tpu.memory_space<vmem>>, vector<16x384xf32>
    %61 = arith.truncf %60 : vector<16x384xf32> to vector<16x384xbf16>
    %c2 = arith.constant 2 : index
    %c0_62 = arith.constant 0 : index
    %c0_63 = arith.constant 0 : index
    %62 = vector.load %arg2[%c2, %c0_62, %c0_63] : memref<8x384x128xbf16, #tpu.memory_space<vmem>>, vector<1x384x128xbf16>
    %63 = vector.shape_cast %62 : vector<1x384x128xbf16> to vector<384x128xbf16>
    %cst_64 = arith.constant dense<0.000000e+00> : vector<16x128xf32>
    %64 = tpu.matmul %61, %63, %cst_64 {dimension_numbers = #tpu.dot_dimension_numbers<[1], [0], [0], [1], [0, 0, 1, 1], [], []>} : vector<16x384xbf16>, vector<384x128xbf16>, vector<16x128xf32> -> vector<16x128xf32>
    %c2_65 = arith.constant 2 : index
    %c0_66 = arith.constant 0 : index
    %c0_67 = arith.constant 0 : index
    %65 = vector.load %arg3[%c2_65, %c0_66, %c0_67] : memref<8x1x128xf32, #tpu.memory_space<vmem>>, vector<1x1x128xf32>
    %66 = vector.shape_cast %65 : vector<1x1x128xf32> to vector<1x128xf32>
    %67 = vector.broadcast %66 : vector<1x128xf32> to vector<16x128xf32>
    %68 = arith.addf %64, %67 : vector<16x128xf32>
    %cst_68 = arith.constant 0.000000e+00 : f32
    %69 = vector.broadcast %cst_68 : f32 to vector<16x128xf32>
    %70 = arith.maximumf %68, %69 : vector<16x128xf32>
    %c0_69 = arith.constant 0 : index
    %c128_70 = arith.constant 128 : index
    %71 = vector.load %arg23[%c0_69, %c128_70] : memref<16x384xf32, #tpu.memory_space<vmem>>, vector<16x128xf32>
    tpu.vector_store %arg23[%c0_69, %c128_70], %70 {strides = array<i32>} : memref<16x384xf32, #tpu.memory_space<vmem>>, vector<16x128xf32>,
    %72 = vector.extract_strided_slice %70 {offsets = [0, 0], sizes = [15, 128], strides = [1, 1]} : vector<16x128xf32> to vector<15x128xf32>
    %c1_71 = arith.constant 1 : index
    %c0_72 = arith.constant 0 : index
    %73 = vector.load %arg23[%c1_71, %c0_72] : memref<16x384xf32, #tpu.memory_space<vmem>>, vector<15x128xf32>
    tpu.vector_store %arg23[%c1_71, %c0_72], %72 {strides = array<i32>} : memref<16x384xf32, #tpu.memory_space<vmem>>, vector<15x128xf32>,
    %74 = vector.extract_strided_slice %70 {offsets = [1, 0], sizes = [15, 128], strides = [1, 1]} : vector<16x128xf32> to vector<15x128xf32>
    %c0_73 = arith.constant 0 : index
    %c256_74 = arith.constant 256 : index
    %75 = vector.load %arg23[%c0_73, %c256_74] : memref<16x384xf32, #tpu.memory_space<vmem>>, vector<15x128xf32>
    tpu.vector_store %arg23[%c0_73, %c256_74], %74 {strides = array<i32>} : memref<16x384xf32, #tpu.memory_space<vmem>>, vector<15x128xf32>,
    %c0_75 = arith.constant 0 : index
    %c0_76 = arith.constant 0 : index
    %76 = vector.load %arg23[%c0_75, %c0_76] : memref<16x384xf32, #tpu.memory_space<vmem>>, vector<16x384xf32>
    %77 = arith.truncf %76 : vector<16x384xf32> to vector<16x384xbf16>
    %c3_77 = arith.constant 3 : index
    %c0_78 = arith.constant 0 : index
    %c0_79 = arith.constant 0 : index
    %78 = vector.load %arg2[%c3_77, %c0_78, %c0_79] : memref<8x384x128xbf16, #tpu.memory_space<vmem>>, vector<1x384x128xbf16>
    %79 = vector.shape_cast %78 : vector<1x384x128xbf16> to vector<384x128xbf16>
    %cst_80 = arith.constant dense<0.000000e+00> : vector<16x128xf32>
    %80 = tpu.matmul %77, %79, %cst_80 {dimension_numbers = #tpu.dot_dimension_numbers<[1], [0], [0], [1], [0, 0, 1, 1], [], []>} : vector<16x384xbf16>, vector<384x128xbf16>, vector<16x128xf32> -> vector<16x128xf32>
    %c3_81 = arith.constant 3 : index
    %c0_82 = arith.constant 0 : index
    %c0_83 = arith.constant 0 : index
    %81 = vector.load %arg3[%c3_81, %c0_82, %c0_83] : memref<8x1x128xf32, #tpu.memory_space<vmem>>, vector<1x1x128xf32>
    %82 = vector.shape_cast %81 : vector<1x1x128xf32> to vector<1x128xf32>
    %83 = vector.broadcast %82 : vector<1x128xf32> to vector<16x128xf32>
    %84 = arith.addf %80, %83 : vector<16x128xf32>
    %85 = arith.addf %84, %54 : vector<16x128xf32>
    %cst_84 = arith.constant 0.000000e+00 : f32
    %86 = vector.broadcast %cst_84 : f32 to vector<16x128xf32>
    %87 = arith.maximumf %85, %86 : vector<16x128xf32>
    %c0_85 = arith.constant 0 : index
    %c128_86 = arith.constant 128 : index
    %88 = vector.load %arg23[%c0_85, %c128_86] : memref<16x384xf32, #tpu.memory_space<vmem>>, vector<16x128xf32>
    tpu.vector_store %arg23[%c0_85, %c128_86], %21 {strides = array<i32>} : memref<16x384xf32, #tpu.memory_space<vmem>>, vector<16x128xf32>,
    %89 = vector.extract_strided_slice %21 {offsets = [0, 0], sizes = [15, 128], strides = [1, 1]} : vector<16x128xf32> to vector<15x128xf32>
    %c1_87 = arith.constant 1 : index
    %c0_88 = arith.constant 0 : index
    %90 = vector.load %arg23[%c1_87, %c0_88] : memref<16x384xf32, #tpu.memory_space<vmem>>, vector<15x128xf32>
    tpu.vector_store %arg23[%c1_87, %c0_88], %89 {strides = array<i32>} : memref<16x384xf32, #tpu.memory_space<vmem>>, vector<15x128xf32>,
    %91 = vector.extract_strided_slice %21 {offsets = [1, 0], sizes = [15, 128], strides = [1, 1]} : vector<16x128xf32> to vector<15x128xf32>
    %c0_89 = arith.constant 0 : index
    %c256_90 = arith.constant 256 : index
    %92 = vector.load %arg23[%c0_89, %c256_90] : memref<16x384xf32, #tpu.memory_space<vmem>>, vector<15x128xf32>
    tpu.vector_store %arg23[%c0_89, %c256_90], %91 {strides = array<i32>} : memref<16x384xf32, #tpu.memory_space<vmem>>, vector<15x128xf32>,
    %c0_91 = arith.constant 0 : index
    %c0_92 = arith.constant 0 : index
    %93 = vector.load %arg23[%c0_91, %c0_92] : memref<16x384xf32, #tpu.memory_space<vmem>>, vector<16x384xf32>
    %94 = arith.truncf %93 : vector<16x384xf32> to vector<16x384xbf16>
    %c4 = arith.constant 4 : index
    %c0_93 = arith.constant 0 : index
    %c0_94 = arith.constant 0 : index
    %95 = vector.load %arg2[%c4, %c0_93, %c0_94] : memref<8x384x128xbf16, #tpu.memory_space<vmem>>, vector<1x384x128xbf16>
    %96 = vector.shape_cast %95 : vector<1x384x128xbf16> to vector<384x128xbf16>
    %cst_95 = arith.constant dense<0.000000e+00> : vector<16x128xf32>
    %97 = tpu.matmul %94, %96, %cst_95 {dimension_numbers = #tpu.dot_dimension_numbers<[1], [0], [0], [1], [0, 0, 1, 1], [], []>} : vector<16x384xbf16>, vector<384x128xbf16>, vector<16x128xf32> -> vector<16x128xf32>
    %c4_96 = arith.constant 4 : index
    %c0_97 = arith.constant 0 : index
    %c0_98 = arith.constant 0 : index
    %98 = vector.load %arg3[%c4_96, %c0_97, %c0_98] : memref<8x1x128xf32, #tpu.memory_space<vmem>>, vector<1x1x128xf32>
    %99 = vector.shape_cast %98 : vector<1x1x128xf32> to vector<1x128xf32>
    %100 = vector.broadcast %99 : vector<1x128xf32> to vector<16x128xf32>
    %101 = arith.addf %97, %100 : vector<16x128xf32>
    %cst_99 = arith.constant 0.000000e+00 : f32
    %102 = vector.broadcast %cst_99 : f32 to vector<16x128xf32>
    %103 = arith.maximumf %101, %102 : vector<16x128xf32>
    %c0_100 = arith.constant 0 : index
    %c128_101 = arith.constant 128 : index
    %104 = vector.load %arg23[%c0_100, %c128_101] : memref<16x384xf32, #tpu.memory_space<vmem>>, vector<16x128xf32>
    tpu.vector_store %arg23[%c0_100, %c128_101], %103 {strides = array<i32>} : memref<16x384xf32, #tpu.memory_space<vmem>>, vector<16x128xf32>,
    %105 = vector.extract_strided_slice %103 {offsets = [0, 0], sizes = [15, 128], strides = [1, 1]} : vector<16x128xf32> to vector<15x128xf32>
    %c1_102 = arith.constant 1 : index
    %c0_103 = arith.constant 0 : index
    %106 = vector.load %arg23[%c1_102, %c0_103] : memref<16x384xf32, #tpu.memory_space<vmem>>, vector<15x128xf32>
    tpu.vector_store %arg23[%c1_102, %c0_103], %105 {strides = array<i32>} : memref<16x384xf32, #tpu.memory_space<vmem>>, vector<15x128xf32>,
    %107 = vector.extract_strided_slice %103 {offsets = [1, 0], sizes = [15, 128], strides = [1, 1]} : vector<16x128xf32> to vector<15x128xf32>
    %c0_104 = arith.constant 0 : index
    %c256_105 = arith.constant 256 : index
    %108 = vector.load %arg23[%c0_104, %c256_105] : memref<16x384xf32, #tpu.memory_space<vmem>>, vector<15x128xf32>
    tpu.vector_store %arg23[%c0_104, %c256_105], %107 {strides = array<i32>} : memref<16x384xf32, #tpu.memory_space<vmem>>, vector<15x128xf32>,
    %c0_106 = arith.constant 0 : index
    %c0_107 = arith.constant 0 : index
    %109 = vector.load %arg23[%c0_106, %c0_107] : memref<16x384xf32, #tpu.memory_space<vmem>>, vector<16x384xf32>
    %110 = arith.truncf %109 : vector<16x384xf32> to vector<16x384xbf16>
    %c5 = arith.constant 5 : index
    %c0_108 = arith.constant 0 : index
    %c0_109 = arith.constant 0 : index
    %111 = vector.load %arg2[%c5, %c0_108, %c0_109] : memref<8x384x128xbf16, #tpu.memory_space<vmem>>, vector<1x384x128xbf16>
    %112 = vector.shape_cast %111 : vector<1x384x128xbf16> to vector<384x128xbf16>
    %cst_110 = arith.constant dense<0.000000e+00> : vector<16x128xf32>
    %113 = tpu.matmul %110, %112, %cst_110 {dimension_numbers = #tpu.dot_dimension_numbers<[1], [0], [0], [1], [0, 0, 1, 1], [], []>} : vector<16x384xbf16>, vector<384x128xbf16>, vector<16x128xf32> -> vector<16x128xf32>
    %c5_111 = arith.constant 5 : index
    %c0_112 = arith.constant 0 : index
    %c0_113 = arith.constant 0 : index
    %114 = vector.load %arg3[%c5_111, %c0_112, %c0_113] : memref<8x1x128xf32, #tpu.memory_space<vmem>>, vector<1x1x128xf32>
    %115 = vector.shape_cast %114 : vector<1x1x128xf32> to vector<1x128xf32>
    %116 = vector.broadcast %115 : vector<1x128xf32> to vector<16x128xf32>
    %117 = arith.addf %113, %116 : vector<16x128xf32>
    %118 = arith.addf %117, %21 : vector<16x128xf32>
    %cst_114 = arith.constant 0.000000e+00 : f32
    %119 = vector.broadcast %cst_114 : f32 to vector<16x128xf32>
    %120 = arith.maximumf %118, %119 : vector<16x128xf32>
    %121 = arith.truncf %120 : vector<16x128xf32> to vector<16x128xbf16>
    %c0_115 = arith.constant 0 : index
    %c0_116 = arith.constant 0 : index
    %122 = vector.load %arg8[%c0_115, %c0_116] : memref<128x192xbf16, #tpu.memory_space<vmem>>, vector<128x192xbf16>
    %cst_117 = arith.constant dense<0.000000e+00> : vector<16x192xf32>
    %123 = tpu.matmul %121, %122, %cst_117 {dimension_numbers = #tpu.dot_dimension_numbers<[1], [0], [0], [1], [0, 0, 1, 1], [], []>} : vector<16x128xbf16>, vector<128x192xbf16>, vector<16x192xf32> -> vector<16x192xf32>
    %124 = vector.extract_strided_slice %123 {offsets = [0, 0], sizes = [16, 64], strides = [1, 1]} : vector<16x192xf32> to vector<16x64xf32>
    %125 = vector.extract_strided_slice %123 {offsets = [0, 64], sizes = [16, 64], strides = [1, 1]} : vector<16x192xf32> to vector<16x64xf32>
    %126 = vector.extract_strided_slice %123 {offsets = [0, 128], sizes = [16, 64], strides = [1, 1]} : vector<16x192xf32> to vector<16x64xf32>
    %127 = tpu.iota {dimensions = array<i32: 1>} : vector<16x64xi32>
    %c8_i32 = arith.constant 8 : i32
    %128 = vector.broadcast %c8_i32 : i32 to vector<16x64xi32>
    %129 = arith.cmpi sge, %127, %128 : vector<16x64xi32>
    %cst_118 = arith.constant -3.40282347E+38 : f32
    %130 = vector.broadcast %cst_118 : f32 to vector<16x64xf32>
    %131 = arith.select %129, %124, %130 : vector<16x64xi1>, vector<16x64xf32>
    %132 = arith.maximumf %125, %126 : vector<16x64xf32>
    %133 = arith.maximumf %132, %131 : vector<16x64xf32>
    %c1_119 = arith.constant 1 : index
    %c0_120 = arith.constant 0 : index
    %134 = vector.load %arg28[%c1_119, %c0_120] : memref<18x64xf32, #tpu.memory_space<vmem>>, vector<16x64xf32>
    tpu.vector_store %arg28[%c1_119, %c0_120], %133 {strides = array<i32>} : memref<18x64xf32, #tpu.memory_space<vmem>>, vector<16x64xf32>,
    %c0_121 = arith.constant 0 : index
    %c0_122 = arith.constant 0 : index
    %135 = vector.load %arg28[%c0_121, %c0_122] : memref<18x64xf32, #tpu.memory_space<vmem>>, vector<16x64xf32>
    %136 = arith.maximumf %135, %133 : vector<16x64xf32>
    %c2_123 = arith.constant 2 : index
    %c0_124 = arith.constant 0 : index
    %137 = vector.load %arg28[%c2_123, %c0_124] : memref<18x64xf32, #tpu.memory_space<vmem>>, vector<16x64xf32>
    %138 = arith.maximumf %136, %137 : vector<16x64xf32>
    %c0_125 = arith.constant 0 : index
    %c0_126 = arith.constant 0 : index
    %139 = vector.load %arg9[%c0_125, %c0_126] : memref<8x16xbf16, #tpu.memory_space<vmem>>, vector<8x16xbf16>
    %140 = arith.truncf %138 : vector<16x64xf32> to vector<16x64xbf16>
    %cst_127 = arith.constant dense<0.000000e+00> : vector<8x64xf32>
    %141 = tpu.matmul %139, %140, %cst_127 {dimension_numbers = #tpu.dot_dimension_numbers<[1], [0], [0], [1], [0, 0, 1, 1], [], []>} : vector<8x16xbf16>, vector<16x64xbf16>, vector<8x64xf32> -> vector<8x64xf32>
    %c0_128 = arith.constant 0 : index
    %c64_129 = arith.constant 64 : index
    %142 = vector.load %arg24[%c0_128, %c64_129] : memref<8x192xf32, #tpu.memory_space<vmem>>, vector<8x64xf32>
    tpu.vector_store %arg24[%c0_128, %c64_129], %141 {strides = array<i32>} : memref<8x192xf32, #tpu.memory_space<vmem>>, vector<8x64xf32>,
    %143 = vector.extract_strided_slice %141 {offsets = [0, 0], sizes = [7, 64], strides = [1, 1]} : vector<8x64xf32> to vector<7x64xf32>
    %c1_130 = arith.constant 1 : index
    %c0_131 = arith.constant 0 : index
    %144 = vector.load %arg24[%c1_130, %c0_131] : memref<8x192xf32, #tpu.memory_space<vmem>>, vector<7x64xf32>
    tpu.vector_store %arg24[%c1_130, %c0_131], %143 {strides = array<i32>} : memref<8x192xf32, #tpu.memory_space<vmem>>, vector<7x64xf32>,
    %145 = vector.extract_strided_slice %141 {offsets = [1, 0], sizes = [7, 64], strides = [1, 1]} : vector<8x64xf32> to vector<7x64xf32>
    %c0_132 = arith.constant 0 : index
    %c128_133 = arith.constant 128 : index
    %146 = vector.load %arg24[%c0_132, %c128_133] : memref<8x192xf32, #tpu.memory_space<vmem>>, vector<7x64xf32>
    tpu.vector_store %arg24[%c0_132, %c128_133], %145 {strides = array<i32>} : memref<8x192xf32, #tpu.memory_space<vmem>>, vector<7x64xf32>,
    %c0_134 = arith.constant 0 : index
    %c0_135 = arith.constant 0 : index
    %147 = vector.load %arg24[%c0_134, %c0_135] : memref<8x192xf32, #tpu.memory_space<vmem>>, vector<8x192xf32>
    %148 = arith.truncf %147 : vector<8x192xf32> to vector<8x192xbf16>
    %c0_136 = arith.constant 0 : index
    %c0_137 = arith.constant 0 : index
    %c0_138 = arith.constant 0 : index
    %149 = vector.load %arg4[%c0_136, %c0_137, %c0_138] : memref<4x192x64xbf16, #tpu.memory_space<vmem>>, vector<1x192x64xbf16>
    %150 = vector.shape_cast %149 : vector<1x192x64xbf16> to vector<192x64xbf16>
    %cst_139 = arith.constant dense<0.000000e+00> : vector<8x64xf32>
    %151 = tpu.matmul %148, %150, %cst_139 {dimension_numbers = #tpu.dot_dimension_numbers<[1], [0], [0], [1], [0, 0, 1, 1], [], []>} : vector<8x192xbf16>, vector<192x64xbf16>, vector<8x64xf32> -> vector<8x64xf32>
    %c0_140 = arith.constant 0 : index
    %c0_141 = arith.constant 0 : index
    %c0_142 = arith.constant 0 : index
    %152 = vector.load %arg5[%c0_140, %c0_141, %c0_142] : memref<4x1x64xf32, #tpu.memory_space<vmem>>, vector<1x1x64xf32>
    %153 = vector.shape_cast %152 : vector<1x1x64xf32> to vector<1x64xf32>
    %154 = vector.broadcast %153 : vector<1x64xf32> to vector<8x64xf32>
    %155 = arith.addf %151, %154 : vector<8x64xf32>
    %cst_143 = arith.constant 0.000000e+00 : f32
    %156 = vector.broadcast %cst_143 : f32 to vector<8x64xf32>
    %157 = arith.maximumf %155, %156 : vector<8x64xf32>
    %c0_144 = arith.constant 0 : index
    %c64_145 = arith.constant 64 : index
    %158 = vector.load %arg24[%c0_144, %c64_145] : memref<8x192xf32, #tpu.memory_space<vmem>>, vector<8x64xf32>
    tpu.vector_store %arg24[%c0_144, %c64_145], %157 {strides = array<i32>} : memref<8x192xf32, #tpu.memory_space<vmem>>, vector<8x64xf32>,
    %159 = vector.extract_strided_slice %157 {offsets = [0, 0], sizes = [7, 64], strides = [1, 1]} : vector<8x64xf32> to vector<7x64xf32>
    %c1_146 = arith.constant 1 : index
    %c0_147 = arith.constant 0 : index
    %160 = vector.load %arg24[%c1_146, %c0_147] : memref<8x192xf32, #tpu.memory_space<vmem>>, vector<7x64xf32>
    tpu.vector_store %arg24[%c1_146, %c0_147], %159 {strides = array<i32>} : memref<8x192xf32, #tpu.memory_space<vmem>>, vector<7x64xf32>,
    %161 = vector.extract_strided_slice %157 {offsets = [1, 0], sizes = [7, 64], strides = [1, 1]} : vector<8x64xf32> to vector<7x64xf32>
    %c0_148 = arith.constant 0 : index
    %c128_149 = arith.constant 128 : index
    %162 = vector.load %arg24[%c0_148, %c128_149] : memref<8x192xf32, #tpu.memory_space<vmem>>, vector<7x64xf32>
    tpu.vector_store %arg24[%c0_148, %c128_149], %161 {strides = array<i32>} : memref<8x192xf32, #tpu.memory_space<vmem>>, vector<7x64xf32>,
    %c0_150 = arith.constant 0 : index
    %c0_151 = arith.constant 0 : index
    %163 = vector.load %arg24[%c0_150, %c0_151] : memref<8x192xf32, #tpu.memory_space<vmem>>, vector<8x192xf32>
    %164 = arith.truncf %163 : vector<8x192xf32> to vector<8x192xbf16>
    %c1_152 = arith.constant 1 : index
    %c0_153 = arith.constant 0 : index
    %c0_154 = arith.constant 0 : index
    %165 = vector.load %arg4[%c1_152, %c0_153, %c0_154] : memref<4x192x64xbf16, #tpu.memory_space<vmem>>, vector<1x192x64xbf16>
    %166 = vector.shape_cast %165 : vector<1x192x64xbf16> to vector<192x64xbf16>
    %cst_155 = arith.constant dense<0.000000e+00> : vector<8x64xf32>
    %167 = tpu.matmul %164, %166, %cst_155 {dimension_numbers = #tpu.dot_dimension_numbers<[1], [0], [0], [1], [0, 0, 1, 1], [], []>} : vector<8x192xbf16>, vector<192x64xbf16>, vector<8x64xf32> -> vector<8x64xf32>
    %c1_156 = arith.constant 1 : index
    %c0_157 = arith.constant 0 : index
    %c0_158 = arith.constant 0 : index
    %168 = vector.load %arg5[%c1_156, %c0_157, %c0_158] : memref<4x1x64xf32, #tpu.memory_space<vmem>>, vector<1x1x64xf32>
    %169 = vector.shape_cast %168 : vector<1x1x64xf32> to vector<1x64xf32>
    %170 = vector.broadcast %169 : vector<1x64xf32> to vector<8x64xf32>
    %171 = arith.addf %167, %170 : vector<8x64xf32>
    %172 = arith.addf %171, %141 : vector<8x64xf32>
    %cst_159 = arith.constant 0.000000e+00 : f32
    %173 = vector.broadcast %cst_159 : f32 to vector<8x64xf32>
    %174 = arith.maximumf %172, %173 : vector<8x64xf32>
    %175 = arith.truncf %174 : vector<8x64xf32> to vector<8x64xbf16>
    %c0_160 = arith.constant 0 : index
    %c0_161 = arith.constant 0 : index
    %176 = vector.load %arg10[%c0_160, %c0_161] : memref<64x96xbf16, #tpu.memory_space<vmem>>, vector<64x96xbf16>
    %cst_162 = arith.constant dense<0.000000e+00> : vector<8x96xf32>
    %177 = tpu.matmul %175, %176, %cst_162 {dimension_numbers = #tpu.dot_dimension_numbers<[1], [0], [0], [1], [0, 0, 1, 1], [], []>} : vector<8x64xbf16>, vector<64x96xbf16>, vector<8x96xf32> -> vector<8x96xf32>
    %178 = vector.extract_strided_slice %177 {offsets = [0, 0], sizes = [8, 32], strides = [1, 1]} : vector<8x96xf32> to vector<8x32xf32>
    %179 = vector.extract_strided_slice %177 {offsets = [0, 32], sizes = [8, 32], strides = [1, 1]} : vector<8x96xf32> to vector<8x32xf32>
    %180 = vector.extract_strided_slice %177 {offsets = [0, 64], sizes = [8, 32], strides = [1, 1]} : vector<8x96xf32> to vector<8x32xf32>
    %181 = tpu.iota {dimensions = array<i32: 1>} : vector<8x32xi32>
    %c8_i32_163 = arith.constant 8 : i32
    %182 = vector.broadcast %c8_i32_163 : i32 to vector<8x32xi32>
    %183 = arith.cmpi sge, %181, %182 : vector<8x32xi32>
    %cst_164 = arith.constant -3.40282347E+38 : f32
    %184 = vector.broadcast %cst_164 : f32 to vector<8x32xf32>
    %185 = arith.select %183, %178, %184 : vector<8x32xi1>, vector<8x32xf32>
    %186 = arith.maximumf %179, %180 : vector<8x32xf32>
    %187 = arith.maximumf %186, %185 : vector<8x32xf32>
    %c1_165 = arith.constant 1 : index
    %c0_166 = arith.constant 0 : index
    %188 = vector.load %arg29[%c1_165, %c0_166] : memref<10x32xf32, #tpu.memory_space<vmem>>, vector<8x32xf32>
    tpu.vector_store %arg29[%c1_165, %c0_166], %187 {strides = array<i32>} : memref<10x32xf32, #tpu.memory_space<vmem>>, vector<8x32xf32>,
    %c0_167 = arith.constant 0 : index
    %c0_168 = arith.constant 0 : index
    %189 = vector.load %arg29[%c0_167, %c0_168] : memref<10x32xf32, #tpu.memory_space<vmem>>, vector<8x32xf32>
    %190 = arith.maximumf %189, %187 : vector<8x32xf32>
    %c2_169 = arith.constant 2 : index
    %c0_170 = arith.constant 0 : index
    %191 = vector.load %arg29[%c2_169, %c0_170] : memref<10x32xf32, #tpu.memory_space<vmem>>, vector<8x32xf32>
    %192 = arith.maximumf %190, %191 : vector<8x32xf32>
    %c0_171 = arith.constant 0 : index
    %c0_172 = arith.constant 0 : index
    %193 = vector.load %arg11[%c0_171, %c0_172] : memref<4x8xbf16, #tpu.memory_space<vmem>>, vector<4x8xbf16>
    %194 = arith.truncf %192 : vector<8x32xf32> to vector<8x32xbf16>
    %cst_173 = arith.constant dense<0.000000e+00> : vector<4x32xf32>
    %195 = tpu.matmul %193, %194, %cst_173 {dimension_numbers = #tpu.dot_dimension_numbers<[1], [0], [0], [1], [0, 0, 1, 1], [], []>} : vector<4x8xbf16>, vector<8x32xbf16>, vector<4x32xf32> -> vector<4x32xf32>
    %c0_174 = arith.constant 0 : index
    %c32 = arith.constant 32 : index
    %196 = vector.load %arg25[%c0_174, %c32] : memref<4x96xf32, #tpu.memory_space<vmem>>, vector<4x32xf32>
    tpu.vector_store %arg25[%c0_174, %c32], %195 {strides = array<i32>} : memref<4x96xf32, #tpu.memory_space<vmem>>, vector<4x32xf32>,
    %197 = vector.extract_strided_slice %195 {offsets = [0, 0], sizes = [3, 32], strides = [1, 1]} : vector<4x32xf32> to vector<3x32xf32>
    %c1_175 = arith.constant 1 : index
    %c0_176 = arith.constant 0 : index
    %198 = vector.load %arg25[%c1_175, %c0_176] : memref<4x96xf32, #tpu.memory_space<vmem>>, vector<3x32xf32>
    tpu.vector_store %arg25[%c1_175, %c0_176], %197 {strides = array<i32>} : memref<4x96xf32, #tpu.memory_space<vmem>>, vector<3x32xf32>,
    %199 = vector.extract_strided_slice %195 {offsets = [1, 0], sizes = [3, 32], strides = [1, 1]} : vector<4x32xf32> to vector<3x32xf32>
    %c0_177 = arith.constant 0 : index
    %c64_178 = arith.constant 64 : index
    %200 = vector.load %arg25[%c0_177, %c64_178] : memref<4x96xf32, #tpu.memory_space<vmem>>, vector<3x32xf32>
    tpu.vector_store %arg25[%c0_177, %c64_178], %199 {strides = array<i32>} : memref<4x96xf32, #tpu.memory_space<vmem>>, vector<3x32xf32>,
    %c0_179 = arith.constant 0 : index
    %c0_180 = arith.constant 0 : index
    %201 = vector.load %arg25[%c0_179, %c0_180] : memref<4x96xf32, #tpu.memory_space<vmem>>, vector<4x96xf32>
    %202 = arith.truncf %201 : vector<4x96xf32> to vector<4x96xbf16>
    %c0_181 = arith.constant 0 : index
    %c0_182 = arith.constant 0 : index
    %c0_183 = arith.constant 0 : index
    %203 = vector.load %arg6[%c0_181, %c0_182, %c0_183] : memref<4x96x32xbf16, #tpu.memory_space<vmem>>, vector<1x96x32xbf16>
    %204 = vector.shape_cast %203 : vector<1x96x32xbf16> to vector<96x32xbf16>
    %cst_184 = arith.constant dense<0.000000e+00> : vector<4x32xf32>
    %205 = tpu.matmul %202, %204, %cst_184 {dimension_numbers = #tpu.dot_dimension_numbers<[1], [0], [0], [1], [0, 0, 1, 1], [], []>} : vector<4x96xbf16>, vector<96x32xbf16>, vector<4x32xf32> -> vector<4x32xf32>
    %c0_185 = arith.constant 0 : index
    %c0_186 = arith.constant 0 : index
    %c0_187 = arith.constant 0 : index
    %206 = vector.load %arg7[%c0_185, %c0_186, %c0_187] : memref<4x1x32xf32, #tpu.memory_space<vmem>>, vector<1x1x32xf32>
    %207 = vector.shape_cast %206 : vector<1x1x32xf32> to vector<1x32xf32>
    %208 = vector.broadcast %207 : vector<1x32xf32> to vector<4x32xf32>
    %209 = arith.addf %205, %208 : vector<4x32xf32>
    %cst_188 = arith.constant 0.000000e+00 : f32
    %210 = vector.broadcast %cst_188 : f32 to vector<4x32xf32>
    %211 = arith.maximumf %209, %210 : vector<4x32xf32>
    %c0_189 = arith.constant 0 : index
    %c32_190 = arith.constant 32 : index
    %212 = vector.load %arg25[%c0_189, %c32_190] : memref<4x96xf32, #tpu.memory_space<vmem>>, vector<4x32xf32>
    tpu.vector_store %arg25[%c0_189, %c32_190], %211 {strides = array<i32>} : memref<4x96xf32, #tpu.memory_space<vmem>>, vector<4x32xf32>,
    %213 = vector.extract_strided_slice %211 {offsets = [0, 0], sizes = [3, 32], strides = [1, 1]} : vector<4x32xf32> to vector<3x32xf32>
    %c1_191 = arith.constant 1 : index
    %c0_192 = arith.constant 0 : index
    %214 = vector.load %arg25[%c1_191, %c0_192] : memref<4x96xf32, #tpu.memory_space<vmem>>, vector<3x32xf32>
    tpu.vector_store %arg25[%c1_191, %c0_192], %213 {strides = array<i32>} : memref<4x96xf32, #tpu.memory_space<vmem>>, vector<3x32xf32>,
    %215 = vector.extract_strided_slice %211 {offsets = [1, 0], sizes = [3, 32], strides = [1, 1]} : vector<4x32xf32> to vector<3x32xf32>
    %c0_193 = arith.constant 0 : index
    %c64_194 = arith.constant 64 : index
    %216 = vector.load %arg25[%c0_193, %c64_194] : memref<4x96xf32, #tpu.memory_space<vmem>>, vector<3x32xf32>
    tpu.vector_store %arg25[%c0_193, %c64_194], %215 {strides = array<i32>} : memref<4x96xf32, #tpu.memory_space<vmem>>, vector<3x32xf32>,
    %c0_195 = arith.constant 0 : index
    %c0_196 = arith.constant 0 : index
    %217 = vector.load %arg25[%c0_195, %c0_196] : memref<4x96xf32, #tpu.memory_space<vmem>>, vector<4x96xf32>
    %218 = arith.truncf %217 : vector<4x96xf32> to vector<4x96xbf16>
    %c1_197 = arith.constant 1 : index
    %c0_198 = arith.constant 0 : index
    %c0_199 = arith.constant 0 : index
    %219 = vector.load %arg6[%c1_197, %c0_198, %c0_199] : memref<4x96x32xbf16, #tpu.memory_space<vmem>>, vector<1x96x32xbf16>
    %220 = vector.shape_cast %219 : vector<1x96x32xbf16> to vector<96x32xbf16>
    %cst_200 = arith.constant dense<0.000000e+00> : vector<4x32xf32>
    %221 = tpu.matmul %218, %220, %cst_200 {dimension_numbers = #tpu.dot_dimension_numbers<[1], [0], [0], [1], [0, 0, 1, 1], [], []>} : vector<4x96xbf16>, vector<96x32xbf16>, vector<4x32xf32> -> vector<4x32xf32>
    %c1_201 = arith.constant 1 : index
    %c0_202 = arith.constant 0 : index
    %c0_203 = arith.constant 0 : index
    %222 = vector.load %arg7[%c1_201, %c0_202, %c0_203] : memref<4x1x32xf32, #tpu.memory_space<vmem>>, vector<1x1x32xf32>
    %223 = vector.shape_cast %222 : vector<1x1x32xf32> to vector<1x32xf32>
    %224 = vector.broadcast %223 : vector<1x32xf32> to vector<4x32xf32>
    %225 = arith.addf %221, %224 : vector<4x32xf32>
    %226 = arith.addf %225, %195 : vector<4x32xf32>
    %cst_204 = arith.constant 0.000000e+00 : f32
    %227 = vector.broadcast %cst_204 : f32 to vector<4x32xf32>
    %228 = arith.maximumf %226, %227 : vector<4x32xf32>
    %c0_205 = arith.constant 0 : index
    %c32_206 = arith.constant 32 : index
    %229 = vector.load %arg25[%c0_205, %c32_206] : memref<4x96xf32, #tpu.memory_space<vmem>>, vector<4x32xf32>
    tpu.vector_store %arg25[%c0_205, %c32_206], %228 {strides = array<i32>} : memref<4x96xf32, #tpu.memory_space<vmem>>, vector<4x32xf32>,
    %230 = vector.extract_strided_slice %228 {offsets = [0, 0], sizes = [3, 32], strides = [1, 1]} : vector<4x32xf32> to vector<3x32xf32>
    %c1_207 = arith.constant 1 : index
    %c0_208 = arith.constant 0 : index
    %231 = vector.load %arg25[%c1_207, %c0_208] : memref<4x96xf32, #tpu.memory_space<vmem>>, vector<3x32xf32>
    tpu.vector_store %arg25[%c1_207, %c0_208], %230 {strides = array<i32>} : memref<4x96xf32, #tpu.memory_space<vmem>>, vector<3x32xf32>,
    %232 = vector.extract_strided_slice %228 {offsets = [1, 0], sizes = [3, 32], strides = [1, 1]} : vector<4x32xf32> to vector<3x32xf32>
    %c0_209 = arith.constant 0 : index
    %c64_210 = arith.constant 64 : index
    %233 = vector.load %arg25[%c0_209, %c64_210] : memref<4x96xf32, #tpu.memory_space<vmem>>, vector<3x32xf32>
    tpu.vector_store %arg25[%c0_209, %c64_210], %232 {strides = array<i32>} : memref<4x96xf32, #tpu.memory_space<vmem>>, vector<3x32xf32>,
    %c0_211 = arith.constant 0 : index
    %c0_212 = arith.constant 0 : index
    %234 = vector.load %arg25[%c0_211, %c0_212] : memref<4x96xf32, #tpu.memory_space<vmem>>, vector<4x96xf32>
    %235 = arith.truncf %234 : vector<4x96xf32> to vector<4x96xbf16>
    %c2_213 = arith.constant 2 : index
    %c0_214 = arith.constant 0 : index
    %c0_215 = arith.constant 0 : index
    %236 = vector.load %arg6[%c2_213, %c0_214, %c0_215] : memref<4x96x32xbf16, #tpu.memory_space<vmem>>, vector<1x96x32xbf16>
    %237 = vector.shape_cast %236 : vector<1x96x32xbf16> to vector<96x32xbf16>
    %cst_216 = arith.constant dense<0.000000e+00> : vector<4x32xf32>
    %238 = tpu.matmul %235, %237, %cst_216 {dimension_numbers = #tpu.dot_dimension_numbers<[1], [0], [0], [1], [0, 0, 1, 1], [], []>} : vector<4x96xbf16>, vector<96x32xbf16>, vector<4x32xf32> -> vector<4x32xf32>
    %c2_217 = arith.constant 2 : index
    %c0_218 = arith.constant 0 : index
    %c0_219 = arith.constant 0 : index
    %239 = vector.load %arg7[%c2_217, %c0_218, %c0_219] : memref<4x1x32xf32, #tpu.memory_space<vmem>>, vector<1x1x32xf32>
    %240 = vector.shape_cast %239 : vector<1x1x32xf32> to vector<1x32xf32>
    %241 = vector.broadcast %240 : vector<1x32xf32> to vector<4x32xf32>
    %242 = arith.addf %238, %241 : vector<4x32xf32>
    %cst_220 = arith.constant 0.000000e+00 : f32
    %243 = vector.broadcast %cst_220 : f32 to vector<4x32xf32>
    %244 = arith.maximumf %242, %243 : vector<4x32xf32>
    %c0_221 = arith.constant 0 : index
    %c32_222 = arith.constant 32 : index
    %245 = vector.load %arg25[%c0_221, %c32_222] : memref<4x96xf32, #tpu.memory_space<vmem>>, vector<4x32xf32>
    tpu.vector_store %arg25[%c0_221, %c32_222], %244 {strides = array<i32>} : memref<4x96xf32, #tpu.memory_space<vmem>>, vector<4x32xf32>,
    %246 = vector.extract_strided_slice %244 {offsets = [0, 0], sizes = [3, 32], strides = [1, 1]} : vector<4x32xf32> to vector<3x32xf32>
    %c1_223 = arith.constant 1 : index
    %c0_224 = arith.constant 0 : index
    %247 = vector.load %arg25[%c1_223, %c0_224] : memref<4x96xf32, #tpu.memory_space<vmem>>, vector<3x32xf32>
    tpu.vector_store %arg25[%c1_223, %c0_224], %246 {strides = array<i32>} : memref<4x96xf32, #tpu.memory_space<vmem>>, vector<3x32xf32>,
    %248 = vector.extract_strided_slice %244 {offsets = [1, 0], sizes = [3, 32], strides = [1, 1]} : vector<4x32xf32> to vector<3x32xf32>
    %c0_225 = arith.constant 0 : index
    %c64_226 = arith.constant 64 : index
    %249 = vector.load %arg25[%c0_225, %c64_226] : memref<4x96xf32, #tpu.memory_space<vmem>>, vector<3x32xf32>
    tpu.vector_store %arg25[%c0_225, %c64_226], %248 {strides = array<i32>} : memref<4x96xf32, #tpu.memory_space<vmem>>, vector<3x32xf32>,
    %c0_227 = arith.constant 0 : index
    %c0_228 = arith.constant 0 : index
    %250 = vector.load %arg25[%c0_227, %c0_228] : memref<4x96xf32, #tpu.memory_space<vmem>>, vector<4x96xf32>
    %251 = arith.truncf %250 : vector<4x96xf32> to vector<4x96xbf16>
    %c3_229 = arith.constant 3 : index
    %c0_230 = arith.constant 0 : index
    %c0_231 = arith.constant 0 : index
    %252 = vector.load %arg6[%c3_229, %c0_230, %c0_231] : memref<4x96x32xbf16, #tpu.memory_space<vmem>>, vector<1x96x32xbf16>
    %253 = vector.shape_cast %252 : vector<1x96x32xbf16> to vector<96x32xbf16>
    %cst_232 = arith.constant dense<0.000000e+00> : vector<4x32xf32>
    %254 = tpu.matmul %251, %253, %cst_232 {dimension_numbers = #tpu.dot_dimension_numbers<[1], [0], [0], [1], [0, 0, 1, 1], [], []>} : vector<4x96xbf16>, vector<96x32xbf16>, vector<4x32xf32> -> vector<4x32xf32>
    %c3_233 = arith.constant 3 : index
    %c0_234 = arith.constant 0 : index
    %c0_235 = arith.constant 0 : index
    %255 = vector.load %arg7[%c3_233, %c0_234, %c0_235] : memref<4x1x32xf32, #tpu.memory_space<vmem>>, vector<1x1x32xf32>
    %256 = vector.shape_cast %255 : vector<1x1x32xf32> to vector<1x32xf32>
    %257 = vector.broadcast %256 : vector<1x32xf32> to vector<4x32xf32>
    %258 = arith.addf %254, %257 : vector<4x32xf32>
    %259 = arith.addf %258, %228 : vector<4x32xf32>
    %cst_236 = arith.constant 0.000000e+00 : f32
    %260 = vector.broadcast %cst_236 : f32 to vector<4x32xf32>
    %261 = arith.maximumf %259, %260 : vector<4x32xf32>
    %262 = arith.truncf %261 : vector<4x32xf32> to vector<4x32xbf16>
    %c0_237 = arith.constant 0 : index
    %c0_238 = arith.constant 0 : index
    %c0_239 = arith.constant 0 : index
    %263 = vector.load %arg12[%c0_237, %c0_238, %c0_239] : memref<2x32x64xbf16, #tpu.memory_space<vmem>>, vector<1x32x64xbf16>
    %264 = vector.shape_cast %263 : vector<1x32x64xbf16> to vector<32x64xbf16>
    %cst_240 = arith.constant dense<0.000000e+00> : vector<4x64xf32>
    %265 = tpu.matmul %262, %264, %cst_240 {dimension_numbers = #tpu.dot_dimension_numbers<[1], [0], [0], [1], [0, 0, 1, 1], [], []>} : vector<4x32xbf16>, vector<32x64xbf16>, vector<4x64xf32> -> vector<4x64xf32>
    %c0_241 = arith.constant 0 : index
    %c0_242 = arith.constant 0 : index
    %266 = vector.load %arg13[%c0_241, %c0_242] : memref<1x64xf32, #tpu.memory_space<vmem>>, vector<1x64xf32>
    %267 = vector.broadcast %266 : vector<1x64xf32> to vector<4x64xf32>
    %268 = arith.addf %265, %267 : vector<4x64xf32>
    %cst_243 = arith.constant 0.000000e+00 : f32
    %269 = vector.broadcast %cst_243 : f32 to vector<4x64xf32>
    %270 = arith.maximumf %268, %269 : vector<4x64xf32>
    %c1_244 = arith.constant 1 : index
    %c0_245 = arith.constant 0 : index
    %c0_246 = arith.constant 0 : index
    %271 = vector.load %arg12[%c1_244, %c0_245, %c0_246] : memref<2x32x64xbf16, #tpu.memory_space<vmem>>, vector<1x32x64xbf16>
    %272 = vector.shape_cast %271 : vector<1x32x64xbf16> to vector<32x64xbf16>
    %cst_247 = arith.constant dense<0.000000e+00> : vector<4x64xf32>
    %273 = tpu.matmul %262, %272, %cst_247 {dimension_numbers = #tpu.dot_dimension_numbers<[1], [0], [0], [1], [0, 0, 1, 1], [], []>} : vector<4x32xbf16>, vector<32x64xbf16>, vector<4x64xf32> -> vector<4x64xf32>
    %c0_248 = arith.constant 0 : index
    %c0_249 = arith.constant 0 : index
    %274 = vector.load %arg13[%c0_248, %c0_249] : memref<1x64xf32, #tpu.memory_space<vmem>>, vector<1x64xf32>
    %275 = vector.broadcast %274 : vector<1x64xf32> to vector<4x64xf32>
    %276 = arith.addf %273, %275 : vector<4x64xf32>
    %cst_250 = arith.constant 0.000000e+00 : f32
    %277 = vector.broadcast %cst_250 : f32 to vector<4x64xf32>
    %278 = arith.maximumf %276, %277 : vector<4x64xf32>
    %c0_251 = arith.constant 0 : index
    %c0_252 = arith.constant 0 : index
    %c0_253 = arith.constant 0 : index
    %279 = vector.load %arg14[%c0_251, %c0_252, %c0_253] : memref<2x8x4xbf16, #tpu.memory_space<vmem>>, vector<1x8x4xbf16>
    %280 = vector.shape_cast %279 : vector<1x8x4xbf16> to vector<8x4xbf16>
    %281 = arith.truncf %270 : vector<4x64xf32> to vector<4x64xbf16>
    %cst_254 = arith.constant dense<0.000000e+00> : vector<8x64xf32>
    %282 = tpu.matmul %280, %281, %cst_254 {dimension_numbers = #tpu.dot_dimension_numbers<[1], [0], [0], [1], [0, 0, 1, 1], [], []>} : vector<8x4xbf16>, vector<4x64xbf16>, vector<8x64xf32> -> vector<8x64xf32>
    %c1_255 = arith.constant 1 : index
    %c0_256 = arith.constant 0 : index
    %c0_257 = arith.constant 0 : index
    %283 = vector.load %arg14[%c1_255, %c0_256, %c0_257] : memref<2x8x4xbf16, #tpu.memory_space<vmem>>, vector<1x8x4xbf16>
    %284 = vector.shape_cast %283 : vector<1x8x4xbf16> to vector<8x4xbf16>
    %285 = arith.truncf %278 : vector<4x64xf32> to vector<4x64xbf16>
    %cst_258 = arith.constant dense<0.000000e+00> : vector<8x64xf32>
    %286 = tpu.matmul %284, %285, %cst_258 {dimension_numbers = #tpu.dot_dimension_numbers<[1], [0], [0], [1], [0, 0, 1, 1], [], []>} : vector<8x4xbf16>, vector<4x64xbf16>, vector<8x64xf32> -> vector<8x64xf32>
    %287 = arith.addf %282, %286 : vector<8x64xf32>
    %c0_259 = arith.constant 0 : index
    %c0_260 = arith.constant 0 : index
    %288 = vector.load %arg26[%c0_259, %c0_260] : memref<8x128xf32, #tpu.memory_space<vmem>>, vector<8x64xf32>
    tpu.vector_store %arg26[%c0_259, %c0_260], %174 {strides = array<i32>} : memref<8x128xf32, #tpu.memory_space<vmem>>, vector<8x64xf32>,
    %c0_261 = arith.constant 0 : index
    %c64_262 = arith.constant 64 : index
    %289 = vector.load %arg26[%c0_261, %c64_262] : memref<8x128xf32, #tpu.memory_space<vmem>>, vector<8x64xf32>
    tpu.vector_store %arg26[%c0_261, %c64_262], %287 {strides = array<i32>} : memref<8x128xf32, #tpu.memory_space<vmem>>, vector<8x64xf32>,
    %c0_263 = arith.constant 0 : index
    %c0_264 = arith.constant 0 : index
    %290 = vector.load %arg26[%c0_263, %c0_264] : memref<8x128xf32, #tpu.memory_space<vmem>>, vector<8x128xf32>
    %291 = arith.truncf %290 : vector<8x128xf32> to vector<8x128xbf16>
    %c0_265 = arith.constant 0 : index
    %c0_266 = arith.constant 0 : index
    %292 = vector.load %arg15[%c0_265, %c0_266] : memref<128x64xbf16, #tpu.memory_space<vmem>>, vector<128x64xbf16>
    %cst_267 = arith.constant dense<0.000000e+00> : vector<8x64xf32>
    %293 = tpu.matmul %291, %292, %cst_267 {dimension_numbers = #tpu.dot_dimension_numbers<[1], [0], [0], [1], [0, 0, 1, 1], [], []>} : vector<8x128xbf16>, vector<128x64xbf16>, vector<8x64xf32> -> vector<8x64xf32>
    %c0_268 = arith.constant 0 : index
    %c0_269 = arith.constant 0 : index
    %294 = vector.load %arg16[%c0_268, %c0_269] : memref<1x64xf32, #tpu.memory_space<vmem>>, vector<1x64xf32>
    %295 = vector.broadcast %294 : vector<1x64xf32> to vector<8x64xf32>
    %296 = arith.addf %293, %295 : vector<8x64xf32>
    %cst_270 = arith.constant 0.000000e+00 : f32
    %297 = vector.broadcast %cst_270 : f32 to vector<8x64xf32>
    %298 = arith.maximumf %296, %297 : vector<8x64xf32>
    %c0_271 = arith.constant 0 : index
    %c64_272 = arith.constant 64 : index
    %299 = vector.load %arg24[%c0_271, %c64_272] : memref<8x192xf32, #tpu.memory_space<vmem>>, vector<8x64xf32>
    tpu.vector_store %arg24[%c0_271, %c64_272], %298 {strides = array<i32>} : memref<8x192xf32, #tpu.memory_space<vmem>>, vector<8x64xf32>,
    %300 = vector.extract_strided_slice %298 {offsets = [0, 0], sizes = [7, 64], strides = [1, 1]} : vector<8x64xf32> to vector<7x64xf32>
    %c1_273 = arith.constant 1 : index
    %c0_274 = arith.constant 0 : index
    %301 = vector.load %arg24[%c1_273, %c0_274] : memref<8x192xf32, #tpu.memory_space<vmem>>, vector<7x64xf32>
    tpu.vector_store %arg24[%c1_273, %c0_274], %300 {strides = array<i32>} : memref<8x192xf32, #tpu.memory_space<vmem>>, vector<7x64xf32>,
    %302 = vector.extract_strided_slice %298 {offsets = [1, 0], sizes = [7, 64], strides = [1, 1]} : vector<8x64xf32> to vector<7x64xf32>
    %c0_275 = arith.constant 0 : index
    %c128_276 = arith.constant 128 : index
    %303 = vector.load %arg24[%c0_275, %c128_276] : memref<8x192xf32, #tpu.memory_space<vmem>>, vector<7x64xf32>
    tpu.vector_store %arg24[%c0_275, %c128_276], %302 {strides = array<i32>} : memref<8x192xf32, #tpu.memory_space<vmem>>, vector<7x64xf32>,
    %c0_277 = arith.constant 0 : index
    %c0_278 = arith.constant 0 : index
    %304 = vector.load %arg24[%c0_277, %c0_278] : memref<8x192xf32, #tpu.memory_space<vmem>>, vector<8x192xf32>
    %305 = arith.truncf %304 : vector<8x192xf32> to vector<8x192xbf16>
    %c2_279 = arith.constant 2 : index
    %c0_280 = arith.constant 0 : index
    %c0_281 = arith.constant 0 : index
    %306 = vector.load %arg4[%c2_279, %c0_280, %c0_281] : memref<4x192x64xbf16, #tpu.memory_space<vmem>>, vector<1x192x64xbf16>
    %307 = vector.shape_cast %306 : vector<1x192x64xbf16> to vector<192x64xbf16>
    %cst_282 = arith.constant dense<0.000000e+00> : vector<8x64xf32>
    %308 = tpu.matmul %305, %307, %cst_282 {dimension_numbers = #tpu.dot_dimension_numbers<[1], [0], [0], [1], [0, 0, 1, 1], [], []>} : vector<8x192xbf16>, vector<192x64xbf16>, vector<8x64xf32> -> vector<8x64xf32>
    %c2_283 = arith.constant 2 : index
    %c0_284 = arith.constant 0 : index
    %c0_285 = arith.constant 0 : index
    %309 = vector.load %arg5[%c2_283, %c0_284, %c0_285] : memref<4x1x64xf32, #tpu.memory_space<vmem>>, vector<1x1x64xf32>
    %310 = vector.shape_cast %309 : vector<1x1x64xf32> to vector<1x64xf32>
    %311 = vector.broadcast %310 : vector<1x64xf32> to vector<8x64xf32>
    %312 = arith.addf %308, %311 : vector<8x64xf32>
    %cst_286 = arith.constant 0.000000e+00 : f32
    %313 = vector.broadcast %cst_286 : f32 to vector<8x64xf32>
    %314 = arith.maximumf %312, %313 : vector<8x64xf32>
    %c0_287 = arith.constant 0 : index
    %c64_288 = arith.constant 64 : index
    %315 = vector.load %arg24[%c0_287, %c64_288] : memref<8x192xf32, #tpu.memory_space<vmem>>, vector<8x64xf32>
    tpu.vector_store %arg24[%c0_287, %c64_288], %314 {strides = array<i32>} : memref<8x192xf32, #tpu.memory_space<vmem>>, vector<8x64xf32>,
    %316 = vector.extract_strided_slice %314 {offsets = [0, 0], sizes = [7, 64], strides = [1, 1]} : vector<8x64xf32> to vector<7x64xf32>
    %c1_289 = arith.constant 1 : index
    %c0_290 = arith.constant 0 : index
    %317 = vector.load %arg24[%c1_289, %c0_290] : memref<8x192xf32, #tpu.memory_space<vmem>>, vector<7x64xf32>
    tpu.vector_store %arg24[%c1_289, %c0_290], %316 {strides = array<i32>} : memref<8x192xf32, #tpu.memory_space<vmem>>, vector<7x64xf32>,
    %318 = vector.extract_strided_slice %314 {offsets = [1, 0], sizes = [7, 64], strides = [1, 1]} : vector<8x64xf32> to vector<7x64xf32>
    %c0_291 = arith.constant 0 : index
    %c128_292 = arith.constant 128 : index
    %319 = vector.load %arg24[%c0_291, %c128_292] : memref<8x192xf32, #tpu.memory_space<vmem>>, vector<7x64xf32>
    tpu.vector_store %arg24[%c0_291, %c128_292], %318 {strides = array<i32>} : memref<8x192xf32, #tpu.memory_space<vmem>>, vector<7x64xf32>,
    %c0_293 = arith.constant 0 : index
    %c0_294 = arith.constant 0 : index
    %320 = vector.load %arg24[%c0_293, %c0_294] : memref<8x192xf32, #tpu.memory_space<vmem>>, vector<8x192xf32>
    %321 = arith.truncf %320 : vector<8x192xf32> to vector<8x192xbf16>
    %c3_295 = arith.constant 3 : index
    %c0_296 = arith.constant 0 : index
    %c0_297 = arith.constant 0 : index
    %322 = vector.load %arg4[%c3_295, %c0_296, %c0_297] : memref<4x192x64xbf16, #tpu.memory_space<vmem>>, vector<1x192x64xbf16>
    %323 = vector.shape_cast %322 : vector<1x192x64xbf16> to vector<192x64xbf16>
    %cst_298 = arith.constant dense<0.000000e+00> : vector<8x64xf32>
    %324 = tpu.matmul %321, %323, %cst_298 {dimension_numbers = #tpu.dot_dimension_numbers<[1], [0], [0], [1], [0, 0, 1, 1], [], []>} : vector<8x192xbf16>, vector<192x64xbf16>, vector<8x64xf32> -> vector<8x64xf32>
    %c3_299 = arith.constant 3 : index
    %c0_300 = arith.constant 0 : index
    %c0_301 = arith.constant 0 : index
    %325 = vector.load %arg5[%c3_299, %c0_300, %c0_301] : memref<4x1x64xf32, #tpu.memory_space<vmem>>, vector<1x1x64xf32>
    %326 = vector.shape_cast %325 : vector<1x1x64xf32> to vector<1x64xf32>
    %327 = vector.broadcast %326 : vector<1x64xf32> to vector<8x64xf32>
    %328 = arith.addf %324, %327 : vector<8x64xf32>
    %329 = arith.addf %328, %298 : vector<8x64xf32>
    %cst_302 = arith.constant 0.000000e+00 : f32
    %330 = vector.broadcast %cst_302 : f32 to vector<8x64xf32>
    %331 = arith.maximumf %329, %330 : vector<8x64xf32>
    %332 = arith.truncf %331 : vector<8x64xf32> to vector<8x64xbf16>
    %c0_303 = arith.constant 0 : index
    %c0_304 = arith.constant 0 : index
    %c0_305 = arith.constant 0 : index
    %333 = vector.load %arg17[%c0_303, %c0_304, %c0_305] : memref<2x64x128xbf16, #tpu.memory_space<vmem>>, vector<1x64x128xbf16>
    %334 = vector.shape_cast %333 : vector<1x64x128xbf16> to vector<64x128xbf16>
    %cst_306 = arith.constant dense<0.000000e+00> : vector<8x128xf32>
    %335 = tpu.matmul %332, %334, %cst_306 {dimension_numbers = #tpu.dot_dimension_numbers<[1], [0], [0], [1], [0, 0, 1, 1], [], []>} : vector<8x64xbf16>, vector<64x128xbf16>, vector<8x128xf32> -> vector<8x128xf32>
    %c0_307 = arith.constant 0 : index
    %c0_308 = arith.constant 0 : index
    %336 = vector.load %arg18[%c0_307, %c0_308] : memref<1x128xf32, #tpu.memory_space<vmem>>, vector<1x128xf32>
    %337 = vector.broadcast %336 : vector<1x128xf32> to vector<8x128xf32>
    %338 = arith.addf %335, %337 : vector<8x128xf32>
    %cst_309 = arith.constant 0.000000e+00 : f32
    %339 = vector.broadcast %cst_309 : f32 to vector<8x128xf32>
    %340 = arith.maximumf %338, %339 : vector<8x128xf32>
    %c1_310 = arith.constant 1 : index
    %c0_311 = arith.constant 0 : index
    %c0_312 = arith.constant 0 : index
    %341 = vector.load %arg17[%c1_310, %c0_311, %c0_312] : memref<2x64x128xbf16, #tpu.memory_space<vmem>>, vector<1x64x128xbf16>
    %342 = vector.shape_cast %341 : vector<1x64x128xbf16> to vector<64x128xbf16>
    %cst_313 = arith.constant dense<0.000000e+00> : vector<8x128xf32>
    %343 = tpu.matmul %332, %342, %cst_313 {dimension_numbers = #tpu.dot_dimension_numbers<[1], [0], [0], [1], [0, 0, 1, 1], [], []>} : vector<8x64xbf16>, vector<64x128xbf16>, vector<8x128xf32> -> vector<8x128xf32>
    %c0_314 = arith.constant 0 : index
    %c0_315 = arith.constant 0 : index
    %344 = vector.load %arg18[%c0_314, %c0_315] : memref<1x128xf32, #tpu.memory_space<vmem>>, vector<1x128xf32>
    %345 = vector.broadcast %344 : vector<1x128xf32> to vector<8x128xf32>
    %346 = arith.addf %343, %345 : vector<8x128xf32>
    %cst_316 = arith.constant 0.000000e+00 : f32
    %347 = vector.broadcast %cst_316 : f32 to vector<8x128xf32>
    %348 = arith.maximumf %346, %347 : vector<8x128xf32>
    %c0_317 = arith.constant 0 : index
    %c0_318 = arith.constant 0 : index
    %c0_319 = arith.constant 0 : index
    %349 = vector.load %arg19[%c0_317, %c0_318, %c0_319] : memref<2x16x8xbf16, #tpu.memory_space<vmem>>, vector<1x16x8xbf16>
    %350 = vector.shape_cast %349 : vector<1x16x8xbf16> to vector<16x8xbf16>
    %351 = arith.truncf %340 : vector<8x128xf32> to vector<8x128xbf16>
    %cst_320 = arith.constant dense<0.000000e+00> : vector<16x128xf32>
    %352 = tpu.matmul %350, %351, %cst_320 {dimension_numbers = #tpu.dot_dimension_numbers<[1], [0], [0], [1], [0, 0, 1, 1], [], []>} : vector<16x8xbf16>, vector<8x128xbf16>, vector<16x128xf32> -> vector<16x128xf32>
    %c1_321 = arith.constant 1 : index
    %c0_322 = arith.constant 0 : index
    %c0_323 = arith.constant 0 : index
    %353 = vector.load %arg19[%c1_321, %c0_322, %c0_323] : memref<2x16x8xbf16, #tpu.memory_space<vmem>>, vector<1x16x8xbf16>
    %354 = vector.shape_cast %353 : vector<1x16x8xbf16> to vector<16x8xbf16>
    %355 = arith.truncf %348 : vector<8x128xf32> to vector<8x128xbf16>
    %cst_324 = arith.constant dense<0.000000e+00> : vector<16x128xf32>
    %356 = tpu.matmul %354, %355, %cst_324 {dimension_numbers = #tpu.dot_dimension_numbers<[1], [0], [0], [1], [0, 0, 1, 1], [], []>} : vector<16x8xbf16>, vector<8x128xbf16>, vector<16x128xf32> -> vector<16x128xf32>
    %357 = arith.addf %352, %356 : vector<16x128xf32>
    %c0_325 = arith.constant 0 : index
    %c0_326 = arith.constant 0 : index
    %358 = vector.load %arg27[%c0_325, %c0_326] : memref<16x256xf32, #tpu.memory_space<vmem>>, vector<16x128xf32>
    tpu.vector_store %arg27[%c0_325, %c0_326], %120 {strides = array<i32>} : memref<16x256xf32, #tpu.memory_space<vmem>>, vector<16x128xf32>,
    %c0_327 = arith.constant 0 : index
    %c128_328 = arith.constant 128 : index
    %359 = vector.load %arg27[%c0_327, %c128_328] : memref<16x256xf32, #tpu.memory_space<vmem>>, vector<16x128xf32>
    tpu.vector_store %arg27[%c0_327, %c128_328], %357 {strides = array<i32>} : memref<16x256xf32, #tpu.memory_space<vmem>>, vector<16x128xf32>,
    %c0_329 = arith.constant 0 : index
    %c0_330 = arith.constant 0 : index
    %360 = vector.load %arg27[%c0_329, %c0_330] : memref<16x256xf32, #tpu.memory_space<vmem>>, vector<16x256xf32>
    %361 = arith.truncf %360 : vector<16x256xf32> to vector<16x256xbf16>
    %c0_331 = arith.constant 0 : index
    %c0_332 = arith.constant 0 : index
    %362 = vector.load %arg20[%c0_331, %c0_332] : memref<256x128xbf16, #tpu.memory_space<vmem>>, vector<256x128xbf16>
    %cst_333 = arith.constant dense<0.000000e+00> : vector<16x128xf32>
    %363 = tpu.matmul %361, %362, %cst_333 {dimension_numbers = #tpu.dot_dimension_numbers<[1], [0], [0], [1], [0, 0, 1, 1], [], []>} : vector<16x256xbf16>, vector<256x128xbf16>, vector<16x128xf32> -> vector<16x128xf32>
    %c0_334 = arith.constant 0 : index
    %c0_335 = arith.constant 0 : index
    %364 = vector.load %arg21[%c0_334, %c0_335] : memref<1x128xf32, #tpu.memory_space<vmem>>, vector<1x128xf32>
    %365 = vector.broadcast %364 : vector<1x128xf32> to vector<16x128xf32>
    %366 = arith.addf %363, %365 : vector<16x128xf32>
    %cst_336 = arith.constant 0.000000e+00 : f32
    %367 = vector.broadcast %cst_336 : f32 to vector<16x128xf32>
    %368 = arith.maximumf %366, %367 : vector<16x128xf32>
    %c0_337 = arith.constant 0 : index
    %c128_338 = arith.constant 128 : index
    %369 = vector.load %arg23[%c0_337, %c128_338] : memref<16x384xf32, #tpu.memory_space<vmem>>, vector<16x128xf32>
    tpu.vector_store %arg23[%c0_337, %c128_338], %368 {strides = array<i32>} : memref<16x384xf32, #tpu.memory_space<vmem>>, vector<16x128xf32>,
    %370 = vector.extract_strided_slice %368 {offsets = [0, 0], sizes = [15, 128], strides = [1, 1]} : vector<16x128xf32> to vector<15x128xf32>
    %c1_339 = arith.constant 1 : index
    %c0_340 = arith.constant 0 : index
    %371 = vector.load %arg23[%c1_339, %c0_340] : memref<16x384xf32, #tpu.memory_space<vmem>>, vector<15x128xf32>
    tpu.vector_store %arg23[%c1_339, %c0_340], %370 {strides = array<i32>} : memref<16x384xf32, #tpu.memory_space<vmem>>, vector<15x128xf32>,
    %372 = vector.extract_strided_slice %368 {offsets = [1, 0], sizes = [15, 128], strides = [1, 1]} : vector<16x128xf32> to vector<15x128xf32>
    %c0_341 = arith.constant 0 : index
    %c256_342 = arith.constant 256 : index
    %373 = vector.load %arg23[%c0_341, %c256_342] : memref<16x384xf32, #tpu.memory_space<vmem>>, vector<15x128xf32>
    tpu.vector_store %arg23[%c0_341, %c256_342], %372 {strides = array<i32>} : memref<16x384xf32, #tpu.memory_space<vmem>>, vector<15x128xf32>,
    %c0_343 = arith.constant 0 : index
    %c0_344 = arith.constant 0 : index
    %374 = vector.load %arg23[%c0_343, %c0_344] : memref<16x384xf32, #tpu.memory_space<vmem>>, vector<16x384xf32>
    %375 = arith.truncf %374 : vector<16x384xf32> to vector<16x384xbf16>
    %c6 = arith.constant 6 : index
    %c0_345 = arith.constant 0 : index
    %c0_346 = arith.constant 0 : index
    %376 = vector.load %arg2[%c6, %c0_345, %c0_346] : memref<8x384x128xbf16, #tpu.memory_space<vmem>>, vector<1x384x128xbf16>
    %377 = vector.shape_cast %376 : vector<1x384x128xbf16> to vector<384x128xbf16>
    %cst_347 = arith.constant dense<0.000000e+00> : vector<16x128xf32>
    %378 = tpu.matmul %375, %377, %cst_347 {dimension_numbers = #tpu.dot_dimension_numbers<[1], [0], [0], [1], [0, 0, 1, 1], [], []>} : vector<16x384xbf16>, vector<384x128xbf16>, vector<16x128xf32> -> vector<16x128xf32>
    %c6_348 = arith.constant 6 : index
    %c0_349 = arith.constant 0 : index
    %c0_350 = arith.constant 0 : index
    %379 = vector.load %arg3[%c6_348, %c0_349, %c0_350] : memref<8x1x128xf32, #tpu.memory_space<vmem>>, vector<1x1x128xf32>
    %380 = vector.shape_cast %379 : vector<1x1x128xf32> to vector<1x128xf32>
    %381 = vector.broadcast %380 : vector<1x128xf32> to vector<16x128xf32>
    %382 = arith.addf %378, %381 : vector<16x128xf32>
    %cst_351 = arith.constant 0.000000e+00 : f32
    %383 = vector.broadcast %cst_351 : f32 to vector<16x128xf32>
    %384 = arith.maximumf %382, %383 : vector<16x128xf32>
    %c0_352 = arith.constant 0 : index
    %c128_353 = arith.constant 128 : index
    %385 = vector.load %arg23[%c0_352, %c128_353] : memref<16x384xf32, #tpu.memory_space<vmem>>, vector<16x128xf32>
    tpu.vector_store %arg23[%c0_352, %c128_353], %384 {strides = array<i32>} : memref<16x384xf32, #tpu.memory_space<vmem>>, vector<16x128xf32>,
    %386 = vector.extract_strided_slice %384 {offsets = [0, 0], sizes = [15, 128], strides = [1, 1]} : vector<16x128xf32> to vector<15x128xf32>
    %c1_354 = arith.constant 1 : index
    %c0_355 = arith.constant 0 : index
    %387 = vector.load %arg23[%c1_354, %c0_355] : memref<16x384xf32, #tpu.memory_space<vmem>>, vector<15x128xf32>
    tpu.vector_store %arg23[%c1_354, %c0_355], %386 {strides = array<i32>} : memref<16x384xf32, #tpu.memory_space<vmem>>, vector<15x128xf32>,
    %388 = vector.extract_strided_slice %384 {offsets = [1, 0], sizes = [15, 128], strides = [1, 1]} : vector<16x128xf32> to vector<15x128xf32>
    %c0_356 = arith.constant 0 : index
    %c256_357 = arith.constant 256 : index
    %389 = vector.load %arg23[%c0_356, %c256_357] : memref<16x384xf32, #tpu.memory_space<vmem>>, vector<15x128xf32>
    tpu.vector_store %arg23[%c0_356, %c256_357], %388 {strides = array<i32>} : memref<16x384xf32, #tpu.memory_space<vmem>>, vector<15x128xf32>,
    %c0_358 = arith.constant 0 : index
    %c0_359 = arith.constant 0 : index
    %390 = vector.load %arg23[%c0_358, %c0_359] : memref<16x384xf32, #tpu.memory_space<vmem>>, vector<16x384xf32>
    %391 = arith.truncf %390 : vector<16x384xf32> to vector<16x384xbf16>
    %c7_360 = arith.constant 7 : index
    %c0_361 = arith.constant 0 : index
    %c0_362 = arith.constant 0 : index
    %392 = vector.load %arg2[%c7_360, %c0_361, %c0_362] : memref<8x384x128xbf16, #tpu.memory_space<vmem>>, vector<1x384x128xbf16>
    %393 = vector.shape_cast %392 : vector<1x384x128xbf16> to vector<384x128xbf16>
    %cst_363 = arith.constant dense<0.000000e+00> : vector<16x128xf32>
    %394 = tpu.matmul %391, %393, %cst_363 {dimension_numbers = #tpu.dot_dimension_numbers<[1], [0], [0], [1], [0, 0, 1, 1], [], []>} : vector<16x384xbf16>, vector<384x128xbf16>, vector<16x128xf32> -> vector<16x128xf32>
    %c7_364 = arith.constant 7 : index
    %c0_365 = arith.constant 0 : index
    %c0_366 = arith.constant 0 : index
    %395 = vector.load %arg3[%c7_364, %c0_365, %c0_366] : memref<8x1x128xf32, #tpu.memory_space<vmem>>, vector<1x1x128xf32>
    %396 = vector.shape_cast %395 : vector<1x1x128xf32> to vector<1x128xf32>
    %397 = vector.broadcast %396 : vector<1x128xf32> to vector<16x128xf32>
    %398 = arith.addf %394, %397 : vector<16x128xf32>
    %399 = arith.addf %398, %368 : vector<16x128xf32>
    %cst_367 = arith.constant 0.000000e+00 : f32
    %400 = vector.broadcast %cst_367 : f32 to vector<16x128xf32>
    %401 = arith.maximumf %399, %400 : vector<16x128xf32>
    %402 = arith.negf %401 : vector<16x128xf32>
    %403 = math.exp %402 : vector<16x128xf32>
    %cst_368 = arith.constant 1.000000e+00 : f32
    %404 = vector.broadcast %cst_368 : f32 to vector<16x128xf32>
    %405 = arith.addf %404, %403 : vector<16x128xf32>
    %406 = arith.divf %404, %405 : vector<16x128xf32>
    %cst_369 = arith.constant 1.000000e+00 : f32
    %407 = vector.broadcast %cst_369 : f32 to vector<16x128xf32>
    %408 = arith.addf %407, %406 : vector<16x128xf32>
    %409 = arith.mulf %408, %87 : vector<16x128xf32>
    %c0_370 = arith.constant 0 : index
    %c0_371 = arith.constant 0 : index
    %c0_372 = arith.constant 0 : index
    %410 = vector.load %arg22[%c0_370, %c0_371, %c0_372] : memref<1x16x128xf32, #tpu.memory_space<vmem>>, vector<1x16x128xf32>
    %411 = vector.shape_cast %410 : vector<1x16x128xf32> to vector<16x128xf32>
    %412 = vector.shape_cast %409 : vector<16x128xf32> to vector<1x16x128xf32>
    tpu.vector_store %arg22[%c0_370, %c0_371, %c0_372], %412 {strides = array<i32>} : memref<1x16x128xf32, #tpu.memory_space<vmem>>, vector<1x16x128xf32>,
    return
  }
  func.func @transform_0(%arg0: i32) -> (i32, i32, i32) {
    %c0_i32 = arith.constant 0 : i32
    %c0_i32_0 = arith.constant 0 : i32
    %c0_i32_1 = arith.constant 0 : i32
    return %arg0, %c0_i32, %c0_i32_0 : i32, i32, i32
  }
  func.func @transform_1(%arg0: i32) -> (i32, i32, i32) {
    %c0_i32 = arith.constant 0 : i32
    %c0_i32_0 = arith.constant 0 : i32
    %c0_i32_1 = arith.constant 0 : i32
    %c0_i32_2 = arith.constant 0 : i32
    return %c0_i32, %c0_i32_0, %c0_i32_1 : i32, i32, i32
  }
  func.func @transform_2(%arg0: i32) -> (i32, i32, i32) {
    %c0_i32 = arith.constant 0 : i32
    %c0_i32_0 = arith.constant 0 : i32
    %c0_i32_1 = arith.constant 0 : i32
    %c0_i32_2 = arith.constant 0 : i32
    return %c0_i32, %c0_i32_0, %c0_i32_1 : i32, i32, i32
  }
  func.func @transform_3(%arg0: i32) -> (i32, i32, i32) {
    %c0_i32 = arith.constant 0 : i32
    %c0_i32_0 = arith.constant 0 : i32
    %c0_i32_1 = arith.constant 0 : i32
    %c0_i32_2 = arith.constant 0 : i32
    return %c0_i32, %c0_i32_0, %c0_i32_1 : i32, i32, i32
  }
  func.func @transform_4(%arg0: i32) -> (i32, i32, i32) {
    %c0_i32 = arith.constant 0 : i32
    %c0_i32_0 = arith.constant 0 : i32
    %c0_i32_1 = arith.constant 0 : i32
    %c0_i32_2 = arith.constant 0 : i32
    return %c0_i32, %c0_i32_0, %c0_i32_1 : i32, i32, i32
  }
  func.func @transform_5(%arg0: i32) -> (i32, i32, i32) {
    %c0_i32 = arith.constant 0 : i32
    %c0_i32_0 = arith.constant 0 : i32
    %c0_i32_1 = arith.constant 0 : i32
    %c0_i32_2 = arith.constant 0 : i32
    return %c0_i32, %c0_i32_0, %c0_i32_1 : i32, i32, i32
  }
  func.func @transform_6(%arg0: i32) -> (i32, i32, i32) {
    %c0_i32 = arith.constant 0 : i32
    %c0_i32_0 = arith.constant 0 : i32
    %c0_i32_1 = arith.constant 0 : i32
    %c0_i32_2 = arith.constant 0 : i32
    return %c0_i32, %c0_i32_0, %c0_i32_1 : i32, i32, i32
  }
  func.func @transform_7(%arg0: i32) -> (i32, i32) {
    %c0_i32 = arith.constant 0 : i32
    %c0_i32_0 = arith.constant 0 : i32
    %c0_i32_1 = arith.constant 0 : i32
    return %c0_i32, %c0_i32_0 : i32, i32
  }
  func.func @transform_8(%arg0: i32) -> (i32, i32) {
    %c0_i32 = arith.constant 0 : i32
    %c0_i32_0 = arith.constant 0 : i32
    %c0_i32_1 = arith.constant 0 : i32
    return %c0_i32, %c0_i32_0 : i32, i32
  }
  func.func @transform_9(%arg0: i32) -> (i32, i32) {
    %c0_i32 = arith.constant 0 : i32
    %c0_i32_0 = arith.constant 0 : i32
    %c0_i32_1 = arith.constant 0 : i32
    return %c0_i32, %c0_i32_0 : i32, i32
  }
  func.func @transform_10(%arg0: i32) -> (i32, i32) {
    %c0_i32 = arith.constant 0 : i32
    %c0_i32_0 = arith.constant 0 : i32
    %c0_i32_1 = arith.constant 0 : i32
    return %c0_i32, %c0_i32_0 : i32, i32
  }
  func.func @transform_11(%arg0: i32) -> (i32, i32, i32) {
    %c0_i32 = arith.constant 0 : i32
    %c0_i32_0 = arith.constant 0 : i32
    %c0_i32_1 = arith.constant 0 : i32
    %c0_i32_2 = arith.constant 0 : i32
    return %c0_i32, %c0_i32_0, %c0_i32_1 : i32, i32, i32
  }
  func.func @transform_12(%arg0: i32) -> (i32, i32) {
    %c0_i32 = arith.constant 0 : i32
    %c0_i32_0 = arith.constant 0 : i32
    %c0_i32_1 = arith.constant 0 : i32
    return %c0_i32, %c0_i32_0 : i32, i32
  }
  func.func @transform_13(%arg0: i32) -> (i32, i32, i32) {
    %c0_i32 = arith.constant 0 : i32
    %c0_i32_0 = arith.constant 0 : i32
    %c0_i32_1 = arith.constant 0 : i32
    %c0_i32_2 = arith.constant 0 : i32
    return %c0_i32, %c0_i32_0, %c0_i32_1 : i32, i32, i32
  }
  func.func @transform_14(%arg0: i32) -> (i32, i32) {
    %c0_i32 = arith.constant 0 : i32
    %c0_i32_0 = arith.constant 0 : i32
    %c0_i32_1 = arith.constant 0 : i32
    return %c0_i32, %c0_i32_0 : i32, i32
  }
  func.func @transform_15(%arg0: i32) -> (i32, i32) {
    %c0_i32 = arith.constant 0 : i32
    %c0_i32_0 = arith.constant 0 : i32
    %c0_i32_1 = arith.constant 0 : i32
    return %c0_i32, %c0_i32_0 : i32, i32
  }
  func.func @transform_16(%arg0: i32) -> (i32, i32, i32) {
    %c0_i32 = arith.constant 0 : i32
    %c0_i32_0 = arith.constant 0 : i32
    %c0_i32_1 = arith.constant 0 : i32
    %c0_i32_2 = arith.constant 0 : i32
    return %c0_i32, %c0_i32_0, %c0_i32_1 : i32, i32, i32
  }
  func.func @transform_17(%arg0: i32) -> (i32, i32) {
    %c0_i32 = arith.constant 0 : i32
    %c0_i32_0 = arith.constant 0 : i32
    %c0_i32_1 = arith.constant 0 : i32
    return %c0_i32, %c0_i32_0 : i32, i32
  }
  func.func @transform_18(%arg0: i32) -> (i32, i32, i32) {
    %c0_i32 = arith.constant 0 : i32
    %c0_i32_0 = arith.constant 0 : i32
    %c0_i32_1 = arith.constant 0 : i32
    %c0_i32_2 = arith.constant 0 : i32
    return %c0_i32, %c0_i32_0, %c0_i32_1 : i32, i32, i32
  }
  func.func @transform_19(%arg0: i32) -> (i32, i32) {
    %c0_i32 = arith.constant 0 : i32
    %c0_i32_0 = arith.constant 0 : i32
    %c0_i32_1 = arith.constant 0 : i32
    return %c0_i32, %c0_i32_0 : i32, i32
  }
  func.func @transform_20(%arg0: i32) -> (i32, i32) {
    %c0_i32 = arith.constant 0 : i32
    %c0_i32_0 = arith.constant 0 : i32
    %c0_i32_1 = arith.constant 0 : i32
    return %c0_i32, %c0_i32_0 : i32, i32
  }
  func.func @transform_21(%arg0: i32) -> (i32, i32, i32) {
    %c0_i32 = arith.constant 0 : i32
    %c0_i32_0 = arith.constant 0 : i32
    %c0_i32_1 = arith.constant 0 : i32
    return %arg0, %c0_i32, %c0_i32_0 : i32, i32, i32
  }
}

</mosaic_0001>

<llo_original>
// kernel: attention2_forward.1
$region0: #{attention2_forward.1}
  #allocation0 [shape = 'u32[]', space=smem, size = 0x4, offset = 0x4, fixed_abs, tag = 'smem constant byte address 0x4 - core index']
  #allocation1 [shape = 'u32[144,128]{1,0:T(1,128)}', space=vmem, size = 0x12000, scoped, tag = 'internal scratch']
  #allocation2 [shape = 'f32[16,384]{1,0:T(8,128)}', space=vmem, size = 0x6000, scoped, tag = 'scratch operand']
  #allocation3 [shape = 'f32[8,192]{1,0:T(8,128)}', space=vmem, size = 0x2000, scoped, tag = 'scratch operand']
  #allocation4 [shape = 'f32[4,96]{1,0:T(4,128)}', space=vmem, size = 0x800, scoped, tag = 'scratch operand']
  #allocation5 [shape = 'f32[8,128]{1,0:T(8,128)}', space=vmem, size = 0x1000, scoped, tag = 'scratch operand']
  #allocation6 [shape = 'f32[16,256]{1,0:T(8,128)}', space=vmem, size = 0x4000, scoped, tag = 'scratch operand']
  #allocation7 [shape = 'f32[18,64]{1,0:T(8,128)}', space=vmem, size = 0x3000, scoped, tag = 'scratch operand']
  #allocation8 [shape = 'f32[10,32]{1,0:T(8,128)}', space=vmem, size = 0x2000, scoped, tag = 'scratch operand']
  %s0 = inlined_call_operand.vmem [shape: f32[2,16,128], index: 0, kind: input, shape index: {}]
  %s1 = inlined_call_operand.hbm [shape: bf16[8,384,128], index: 1, kind: input, shape index: {}]
  %s2 = inlined_call_operand.vmem [shape: f32[8,1,128], index: 2, kind: input, shape index: {}]
  %s3 = inlined_call_operand.vmem [shape: bf16[4,192,64], index: 3, kind: input, shape index: {}]
  %s4 = inlined_call_operand.vmem [shape: f32[4,1,64], index: 4, kind: input, shape index: {}]
  %s5 = inlined_call_operand.vmem [shape: bf16[4,96,32], index: 5, kind: input, shape index: {}]
  %s6 = inlined_call_operand.vmem [shape: f32[4,1,32], index: 6, kind: input, shape index: {}]
  %s7 = inlined_call_operand.vmem [shape: bf16[128,192], index: 7, kind: input, shape index: {}]
  %s8 = inlined_call_operand.vmem [shape: bf16[8,16], index: 8, kind: input, shape index: {}]
  %s9 = inlined_call_operand.vmem [shape: bf16[64,96], index: 9, kind: input, shape index: {}]
  %s10 = inlined_call_operand.vmem [shape: bf16[4,8], index: 10, kind: input, shape index: {}]
  %s11 = inlined_call_operand.vmem [shape: bf16[2,32,64], index: 11, kind: input, shape index: {}]
  %s12 = inlined_call_operand.vmem [shape: f32[1,64], index: 12, kind: input, shape index: {}]
  %s13 = inlined_call_operand.vmem [shape: bf16[2,8,4], index: 13, kind: input, shape index: {}]
  %s14 = inlined_call_operand.vmem [shape: bf16[128,64], index: 14, kind: input, shape index: {}]
  %s15 = inlined_call_operand.vmem [shape: f32[1,64], index: 15, kind: input, shape index: {}]
  %s16 = inlined_call_operand.vmem [shape: bf16[2,64,128], index: 16, kind: input, shape index: {}]
  %s17 = inlined_call_operand.vmem [shape: f32[1,128], index: 17, kind: input, shape index: {}]
  %s18 = inlined_call_operand.vmem [shape: bf16[2,16,8], index: 18, kind: input, shape index: {}]
  %s19 = inlined_call_operand.vmem [shape: bf16[256,128], index: 19, kind: input, shape index: {}]
  %s20 = inlined_call_operand.vmem [shape: f32[1,128], index: 20, kind: input, shape index: {}]
  %s21 = inlined_call_operand.hbm [shape: f32[2,16,128], index: 21, kind: output, shape index: {}]
  %s22 = sld [smem:[#allocation0]]
  $region121: #{attention2_forward.1} parent=0
    _
  %s24 = ssub.s32 1, %s22
  %s25 = scalar_select 0, %s24, %s22
  $region1: #{attention2_forward.1} parent=0
    #allocation9 [shape = 'u8[786432]{0}', space=vmem, size = 0xc0000, scoped, tag = 'input window, operand 1, single buffered']
    #allocation10 [shape = 's32[2]{0}', space=sflag, size = 0x8, scoped, tag = 'scoped memory for attention2_forward.1']
    #allocation11 [shape = 's32[2]{0}', space=sflag, size = 0x8, scoped, tag = 'scoped memory for attention2_forward.1']
    #allocation12 [shape = 'u8[16384]{0}', space=vmem, size = 0x4000, scoped, tag = 'output window, operand 0']
    %26 = vsyncpa [#allocation10], 0
    %27 = vsyncpa [#allocation11], 0
    %s28 = scalar_lea.sflag [#allocation11], 1
    %29 = vsyncpa %s28, 0
    loop: start=0, step=1, limit=4
    $region2: #{attention2_forward.1} parent=1 // loop_pre_header
      _
    $region3: #{attention2_forward.1} parent=1 // loop_header
      %s31 = sphi 0, %s35
      %p32 = scmp.ge.s32.totalorder %s31, 4
      %s41 = sphi 0, %s43
      %s44 = sphi 0, %s41
      %s45 = sphi 0, %s44
      %s61 = sphi 0, %s45
      %s65 = sphi 0, %s65
      %s67 = sphi 0, %s65
      %s68 = sphi 0, %s67
      %s82 = sphi 0, %s68
      %s86 = sphi 0, %s86
      %s88 = sphi 0, %s86
      %s89 = sphi 0, %s88
      %s103 = sphi 0, %s89
      %s107 = sphi 0, %s107
      %s109 = sphi 0, %s107
      %s110 = sphi 0, %s109
      %s124 = sphi 0, %s110
      %s128 = sphi 0, %s128
      %s130 = sphi 0, %s128
      %s131 = sphi 0, %s130
      %s145 = sphi 0, %s131
      %s149 = sphi 0, %s149
      %s151 = sphi 0, %s149
      %s152 = sphi 0, %s151
      %s166 = sphi 0, %s152
      %s170 = sphi 0, %s170
      %s172 = sphi 0, %s170
      %s173 = sphi 0, %s172
      %s187 = sphi 0, %s173
      %s191 = sphi 0, %s191
      %s193 = sphi 0, %s191
      %s194 = sphi 0, %s193
      %s208 = sphi 0, %s194
      %s212 = sphi 0, %s212
      %s214 = sphi 0, %s212
      %s215 = sphi 0, %s214
      %s229 = sphi 0, %s215
      %s233 = sphi 0, %s233
      %s235 = sphi 0, %s233
      %s236 = sphi 0, %s235
      %s250 = sphi 0, %s236
      %s254 = sphi 0, %s254
      %s256 = sphi 0, %s254
      %s257 = sphi 0, %s256
      %s271 = sphi 0, %s257
      %s275 = sphi 0, %s275
      %s277 = sphi 0, %s275
      %s278 = sphi 0, %s277
      %s292 = sphi 0, %s278
      %s296 = sphi 0, %s296
      %s298 = sphi 0, %s296
      %s299 = sphi 0, %s298
      %s313 = sphi 0, %s299
      %s317 = sphi 0, %s317
      %s319 = sphi 0, %s317
      %s320 = sphi 0, %s319
      %s334 = sphi 0, %s320
      %s338 = sphi 0, %s338
      %s340 = sphi 0, %s338
      %s341 = sphi 0, %s340
      %s355 = sphi 0, %s341
      %s359 = sphi 0, %s359
      %s361 = sphi 0, %s359
      %s362 = sphi 0, %s361
      %s376 = sphi 0, %s362
      %s380 = sphi 0, %s380
      %s382 = sphi 0, %s380
      %s383 = sphi 0, %s382
      %s397 = sphi 0, %s383
      %s401 = sphi 0, %s401
      %s403 = sphi 0, %s401
      %s404 = sphi 0, %s403
      %s418 = sphi 0, %s404
      %s422 = sphi 0, %s422
      %s424 = sphi 0, %s422
      %s425 = sphi 0, %s424
      %s439 = sphi 0, %s425
      %s443 = sphi 0, %s443
      %s445 = sphi 0, %s443
      %s446 = sphi 0, %s445
      %s460 = sphi 0, %s446
      %s464 = sphi 0, %s464
      %s466 = sphi 0, %s464
      %s467 = sphi 0, %s466
      %s481 = sphi 0, %s467
      %s487 = sphi 0, %s489
      %s490 = sphi 0, %s487
      %s491 = sphi 0, %s490
      %s507 = sphi 0, %s491
    $region4: #{attention2_forward.1} parent=1 // loop_header_branch
      %34 = sbr.rel (%p32) target = $region8
    $region5: #{attention2_forward.1} parent=1 // loop_body
      %s36 = ssub.s32 %s31, 1
      %s37 = ssub.s32 %s31, 2
      %s38 = sadd.s32 %s31, 1
      %s39 = ssub.s32 %s31, %s38
      %p40 = scmp.eq.s32.totalorder %s39, 0
      %s42 = sadd.s32 %s41, 1
      %s43 = scalar_select %p40, %s41, %s42
      %p46 = pneg %p40
      %p47 = scmp.eq.s32.totalorder %s31, 1
      %p48 = por %p46, %p47
      %p49 = scmp.ne.s32.totalorder %s41, %s44
      %p50 = scmp.eq.s32.totalorder %s31, 0
      %p51 = por %p49, %p50
      %p52 = scmp.ne.s32.totalorder %s41, %s44
      %p53 = scmp.eq.s32.totalorder %s36, 1
      %p54 = por %p52, %p53
      %p55 = scmp.ne.s32.totalorder %s44, %s45
      %p56 = scmp.eq.s32.totalorder %s36, 0
      %p57 = por %p55, %p56
      %p58 = scmp.ne.s32.totalorder %s44, %s45
      %p59 = scmp.eq.s32.totalorder %s37, 1
      %p60 = por %p58, %p59
      %p62 = scmp.ne.s32.totalorder %s45, %s61
      %p63 = scmp.eq.s32.totalorder %s37, 0
      %p64 = por %p62, %p63
      %s66 = sadd.s32 %s65, 1
      %p69 = scmp.eq.s32.totalorder %s31, 1
      %p70 = scmp.ne.s32.totalorder %s65, %s67
      %p71 = scmp.eq.s32.totalorder %s31, 0
      %p72 = por %p70, %p71
      %p73 = scmp.ne.s32.totalorder %s65, %s67
      %p74 = scmp.eq.s32.totalorder %s36, 1
      %p75 = por %p73, %p74
      %p76 = scmp.ne.s32.totalorder %s67, %s68
      %p77 = scmp.eq.s32.totalorder %s36, 0
      %p78 = por %p76, %p77
      %p79 = scmp.ne.s32.totalorder %s67, %s68
      %p80 = scmp.eq.s32.totalorder %s37, 1
      %p81 = por %p79, %p80
      %p83 = scmp.ne.s32.totalorder %s68, %s82
      %p84 = scmp.eq.s32.totalorder %s37, 0
      %p85 = por %p83, %p84
      %s87 = sadd.s32 %s86, 1
      %p90 = scmp.eq.s32.totalorder %s31, 1
      %p91 = scmp.ne.s32.totalorder %s86, %s88
      %p92 = scmp.eq.s32.totalorder %s31, 0
      %p93 = por %p91, %p92
      %p94 = scmp.ne.s32.totalorder %s86, %s88
      %p95 = scmp.eq.s32.totalorder %s36, 1
      %p96 = por %p94, %p95
      %p97 = scmp.ne.s32.totalorder %s88, %s89
      %p98 = scmp.eq.s32.totalorder %s36, 0
      %p99 = por %p97, %p98
      %p100 = scmp.ne.s32.totalorder %s88, %s89
      %p101 = scmp.eq.s32.totalorder %s37, 1
      %p102 = por %p100, %p101
      %p104 = scmp.ne.s32.totalorder %s89, %s103
      %p105 = scmp.eq.s32.totalorder %s37, 0
      %p106 = por %p104, %p105
      %s108 = sadd.s32 %s107, 1
      %p111 = scmp.eq.s32.totalorder %s31, 1
      %p112 = scmp.ne.s32.totalorder %s107, %s109
      %p113 = scmp.eq.s32.totalorder %s31, 0
      %p114 = por %p112, %p113
      %p115 = scmp.ne.s32.totalorder %s107, %s109
      %p116 = scmp.eq.s32.totalorder %s36, 1
      %p117 = por %p115, %p116
      %p118 = scmp.ne.s32.totalorder %s109, %s110
      %p119 = scmp.eq.s32.totalorder %s36, 0
      %p120 = por %p118, %p119
      %p121 = scmp.ne.s32.totalorder %s109, %s110
      %p122 = scmp.eq.s32.totalorder %s37, 1
      %p123 = por %p121, %p122
      %p125 = scmp.ne.s32.totalorder %s110, %s124
      %p126 = scmp.eq.s32.totalorder %s37, 0
      %p127 = por %p125, %p126
      %s129 = sadd.s32 %s128, 1
      %p132 = scmp.eq.s32.totalorder %s31, 1
      %p133 = scmp.ne.s32.totalorder %s128, %s130
      %p134 = scmp.eq.s32.totalorder %s31, 0
      %p135 = por %p133, %p134
      %p136 = scmp.ne.s32.totalorder %s128, %s130
      %p137 = scmp.eq.s32.totalorder %s36, 1
      %p138 = por %p136, %p137
      %p139 = scmp.ne.s32.totalorder %s130, %s131
      %p140 = scmp.eq.s32.totalorder %s36, 0
      %p141 = por %p139, %p140
      %p142 = scmp.ne.s32.totalorder %s130, %s131
      %p143 = scmp.eq.s32.totalorder %s37, 1
      %p144 = por %p142, %p143
      %p146 = scmp.ne.s32.totalorder %s131, %s145
      %p147 = scmp.eq.s32.totalorder %s37, 0
      %p148 = por %p146, %p147
      %s150 = sadd.s32 %s149, 1
      %p153 = scmp.eq.s32.totalorder %s31, 1
      %p154 = scmp.ne.s32.totalorder %s149, %s151
      %p155 = scmp.eq.s32.totalorder %s31, 0
      %p156 = por %p154, %p155
      %p157 = scmp.ne.s32.totalorder %s149, %s151
      %p158 = scmp.eq.s32.totalorder %s36, 1
      %p159 = por %p157, %p158
      %p160 = scmp.ne.s32.totalorder %s151, %s152
      %p161 = scmp.eq.s32.totalorder %s36, 0
      %p162 = por %p160, %p161
      %p163 = scmp.ne.s32.totalorder %s151, %s152
      %p164 = scmp.eq.s32.totalorder %s37, 1
      %p165 = por %p163, %p164
      %p167 = scmp.ne.s32.totalorder %s152, %s166
      %p168 = scmp.eq.s32.totalorder %s37, 0
      %p169 = por %p167, %p168
      %s171 = sadd.s32 %s170, 1
      %p174 = scmp.eq.s32.totalorder %s31, 1
      %p175 = scmp.ne.s32.totalorder %s170, %s172
      %p176 = scmp.eq.s32.totalorder %s31, 0
      %p177 = por %p175, %p176
      %p178 = scmp.ne.s32.totalorder %s170, %s172
      %p179 = scmp.eq.s32.totalorder %s36, 1
      %p180 = por %p178, %p179
      %p181 = scmp.ne.s32.totalorder %s172, %s173
      %p182 = scmp.eq.s32.totalorder %s36, 0
      %p183 = por %p181, %p182
      %p184 = scmp.ne.s32.totalorder %s172, %s173
      %p185 = scmp.eq.s32.totalorder %s37, 1
      %p186 = por %p184, %p185
      %p188 = scmp.ne.s32.totalorder %s173, %s187
      %p189 = scmp.eq.s32.totalorder %s37, 0
      %p190 = por %p188, %p189
      %s192 = sadd.s32 %s191, 1
      %p195 = scmp.eq.s32.totalorder %s31, 1
      %p196 = scmp.ne.s32.totalorder %s191, %s193
      %p197 = scmp.eq.s32.totalorder %s31, 0
      %p198 = por %p196, %p197
      %p199 = scmp.ne.s32.totalorder %s191, %s193
      %p200 = scmp.eq.s32.totalorder %s36, 1
      %p201 = por %p199, %p200
      %p202 = scmp.ne.s32.totalorder %s193, %s194
      %p203 = scmp.eq.s32.totalorder %s36, 0
      %p204 = por %p202, %p203
      %p205 = scmp.ne.s32.totalorder %s193, %s194
      %p206 = scmp.eq.s32.totalorder %s37, 1
      %p207 = por %p205, %p206
      %p209 = scmp.ne.s32.totalorder %s194, %s208
      %p210 = scmp.eq.s32.totalorder %s37, 0
      %p211 = por %p209, %p210
      %s213 = sadd.s32 %s212, 1
      %p216 = scmp.eq.s32.totalorder %s31, 1
      %p217 = scmp.ne.s32.totalorder %s212, %s214
      %p218 = scmp.eq.s32.totalorder %s31, 0
      %p219 = por %p217, %p218
      %p220 = scmp.ne.s32.totalorder %s212, %s214
      %p221 = scmp.eq.s32.totalorder %s36, 1
      %p222 = por %p220, %p221
      %p223 = scmp.ne.s32.totalorder %s214, %s215
      %p224 = scmp.eq.s32.totalorder %s36, 0
      %p225 = por %p223, %p224
      %p226 = scmp.ne.s32.totalorder %s214, %s215
      %p227 = scmp.eq.s32.totalorder %s37, 1
      %p228 = por %p226, %p227
      %p230 = scmp.ne.s32.totalorder %s215, %s229
      %p231 = scmp.eq.s32.totalorder %s37, 0
      %p232 = por %p230, %p231
      %s234 = sadd.s32 %s233, 1
      %p237 = scmp.eq.s32.totalorder %s31, 1
      %p238 = scmp.ne.s32.totalorder %s233, %s235
      %p239 = scmp.eq.s32.totalorder %s31, 0
      %p240 = por %p238, %p239
      %p241 = scmp.ne.s32.totalorder %s233, %s235
      %p242 = scmp.eq.s32.totalorder %s36, 1
      %p243 = por %p241, %p242
      %p244 = scmp.ne.s32.totalorder %s235, %s236
      %p245 = scmp.eq.s32.totalorder %s36, 0
      %p246 = por %p244, %p245
      %p247 = scmp.ne.s32.totalorder %s235, %s236
      %p248 = scmp.eq.s32.totalorder %s37, 1
      %p249 = por %p247, %p248
      %p251 = scmp.ne.s32.totalorder %s236, %s250
      %p252 = scmp.eq.s32.totalorder %s37, 0
      %p253 = por %p251, %p252
      %s255 = sadd.s32 %s254, 1
      %p258 = scmp.eq.s32.totalorder %s31, 1
      %p259 = scmp.ne.s32.totalorder %s254, %s256
      %p260 = scmp.eq.s32.totalorder %s31, 0
      %p261 = por %p259, %p260
      %p262 = scmp.ne.s32.totalorder %s254, %s256
      %p263 = scmp.eq.s32.totalorder %s36, 1
      %p264 = por %p262, %p263
      %p265 = scmp.ne.s32.totalorder %s256, %s257
      %p266 = scmp.eq.s32.totalorder %s36, 0
      %p267 = por %p265, %p266
      %p268 = scmp.ne.s32.totalorder %s256, %s257
      %p269 = scmp.eq.s32.totalorder %s37, 1
      %p270 = por %p268, %p269
      %p272 = scmp.ne.s32.totalorder %s257, %s271
      %p273 = scmp.eq.s32.totalorder %s37, 0
      %p274 = por %p272, %p273
      %s276 = sadd.s32 %s275, 1
      %p279 = scmp.eq.s32.totalorder %s31, 1
      %p280 = scmp.ne.s32.totalorder %s275, %s277
      %p281 = scmp.eq.s32.totalorder %s31, 0
      %p282 = por %p280, %p281
      %p283 = scmp.ne.s32.totalorder %s275, %s277
      %p284 = scmp.eq.s32.totalorder %s36, 1
      %p285 = por %p283, %p284
      %p286 = scmp.ne.s32.totalorder %s277, %s278
      %p287 = scmp.eq.s32.totalorder %s36, 0
      %p288 = por %p286, %p287
      %p289 = scmp.ne.s32.totalorder %s277, %s278
      %p290 = scmp.eq.s32.totalorder %s37, 1
      %p291 = por %p289, %p290
      %p293 = scmp.ne.s32.totalorder %s278, %s292
      %p294 = scmp.eq.s32.totalorder %s37, 0
      %p295 = por %p293, %p294
      %s297 = sadd.s32 %s296, 1
      %p300 = scmp.eq.s32.totalorder %s31, 1
      %p301 = scmp.ne.s32.totalorder %s296, %s298
      %p302 = scmp.eq.s32.totalorder %s31, 0
      %p303 = por %p301, %p302
      %p304 = scmp.ne.s32.totalorder %s296, %s298
      %p305 = scmp.eq.s32.totalorder %s36, 1
      %p306 = por %p304, %p305
      %p307 = scmp.ne.s32.totalorder %s298, %s299
      %p308 = scmp.eq.s32.totalorder %s36, 0
      %p309 = por %p307, %p308
      %p310 = scmp.ne.s32.totalorder %s298, %s299
      %p311 = scmp.eq.s32.totalorder %s37, 1
      %p312 = por %p310, %p311
      %p314 = scmp.ne.s32.totalorder %s299, %s313
      %p315 = scmp.eq.s32.totalorder %s37, 0
      %p316 = por %p314, %p315
      %s318 = sadd.s32 %s317, 1
      %p321 = scmp.eq.s32.totalorder %s31, 1
      %p322 = scmp.ne.s32.totalorder %s317, %s319
      %p323 = scmp.eq.s32.totalorder %s31, 0
      %p324 = por %p322, %p323
      %p325 = scmp.ne.s32.totalorder %s317, %s319
      %p326 = scmp.eq.s32.totalorder %s36, 1
      %p327 = por %p325, %p326
      %p328 = scmp.ne.s32.totalorder %s319, %s320
      %p329 = scmp.eq.s32.totalorder %s36, 0
      %p330 = por %p328, %p329
      %p331 = scmp.ne.s32.totalorder %s319, %s320
      %p332 = scmp.eq.s32.totalorder %s37, 1
      %p333 = por %p331, %p332
      %p335 = scmp.ne.s32.totalorder %s320, %s334
      %p336 = scmp.eq.s32.totalorder %s37, 0
      %p337 = por %p335, %p336
      %s339 = sadd.s32 %s338, 1
      %p342 = scmp.eq.s32.totalorder %s31, 1
      %p343 = scmp.ne.s32.totalorder %s338, %s340
      %p344 = scmp.eq.s32.totalorder %s31, 0
      %p345 = por %p343, %p344
      %p346 = scmp.ne.s32.totalorder %s338, %s340
      %p347 = scmp.eq.s32.totalorder %s36, 1
      %p348 = por %p346, %p347
      %p349 = scmp.ne.s32.totalorder %s340, %s341
      %p350 = scmp.eq.s32.totalorder %s36, 0
      %p351 = por %p349, %p350
      %p352 = scmp.ne.s32.totalorder %s340, %s341
      %p353 = scmp.eq.s32.totalorder %s37, 1
      %p354 = por %p352, %p353
      %p356 = scmp.ne.s32.totalorder %s341, %s355
      %p357 = scmp.eq.s32.totalorder %s37, 0
      %p358 = por %p356, %p357
      %s360 = sadd.s32 %s359, 1
      %p363 = scmp.eq.s32.totalorder %s31, 1
      %p364 = scmp.ne.s32.totalorder %s359, %s361
      %p365 = scmp.eq.s32.totalorder %s31, 0
      %p366 = por %p364, %p365
      %p367 = scmp.ne.s32.totalorder %s359, %s361
      %p368 = scmp.eq.s32.totalorder %s36, 1
      %p369 = por %p367, %p368
      %p370 = scmp.ne.s32.totalorder %s361, %s362
      %p371 = scmp.eq.s32.totalorder %s36, 0
      %p372 = por %p370, %p371
      %p373 = scmp.ne.s32.totalorder %s361, %s362
      %p374 = scmp.eq.s32.totalorder %s37, 1
      %p375 = por %p373, %p374
      %p377 = scmp.ne.s32.totalorder %s362, %s376
      %p378 = scmp.eq.s32.totalorder %s37, 0
      %p379 = por %p377, %p378
      %s381 = sadd.s32 %s380, 1
      %p384 = scmp.eq.s32.totalorder %s31, 1
      %p385 = scmp.ne.s32.totalorder %s380, %s382
      %p386 = scmp.eq.s32.totalorder %s31, 0
      %p387 = por %p385, %p386
      %p388 = scmp.ne.s32.totalorder %s380, %s382
      %p389 = scmp.eq.s32.totalorder %s36, 1
      %p390 = por %p388, %p389
      %p391 = scmp.ne.s32.totalorder %s382, %s383
      %p392 = scmp.eq.s32.totalorder %s36, 0
      %p393 = por %p391, %p392
      %p394 = scmp.ne.s32.totalorder %s382, %s383
      %p395 = scmp.eq.s32.totalorder %s37, 1
      %p396 = por %p394, %p395
      %p398 = scmp.ne.s32.totalorder %s383, %s397
      %p399 = scmp.eq.s32.totalorder %s37, 0
      %p400 = por %p398, %p399
      %s402 = sadd.s32 %s401, 1
      %p405 = scmp.eq.s32.totalorder %s31, 1
      %p406 = scmp.ne.s32.totalorder %s401, %s403
      %p407 = scmp.eq.s32.totalorder %s31, 0
      %p408 = por %p406, %p407
      %p409 = scmp.ne.s32.totalorder %s401, %s403
      %p410 = scmp.eq.s32.totalorder %s36, 1
      %p411 = por %p409, %p410
      %p412 = scmp.ne.s32.totalorder %s403, %s404
      %p413 = scmp.eq.s32.totalorder %s36, 0
      %p414 = por %p412, %p413
      %p415 = scmp.ne.s32.totalorder %s403, %s404
      %p416 = scmp.eq.s32.totalorder %s37, 1
      %p417 = por %p415, %p416
      %p419 = scmp.ne.s32.totalorder %s404, %s418
      %p420 = scmp.eq.s32.totalorder %s37, 0
      %p421 = por %p419, %p420
      %s423 = sadd.s32 %s422, 1
      %p426 = scmp.eq.s32.totalorder %s31, 1
      %p427 = scmp.ne.s32.totalorder %s422, %s424
      %p428 = scmp.eq.s32.totalorder %s31, 0
      %p429 = por %p427, %p428
      %p430 = scmp.ne.s32.totalorder %s422, %s424
      %p431 = scmp.eq.s32.totalorder %s36, 1
      %p432 = por %p430, %p431
      %p433 = scmp.ne.s32.totalorder %s424, %s425
      %p434 = scmp.eq.s32.totalorder %s36, 0
      %p435 = por %p433, %p434
      %p436 = scmp.ne.s32.totalorder %s424, %s425
      %p437 = scmp.eq.s32.totalorder %s37, 1
      %p438 = por %p436, %p437
      %p440 = scmp.ne.s32.totalorder %s425, %s439
      %p441 = scmp.eq.s32.totalorder %s37, 0
      %p442 = por %p440, %p441
      %s444 = sadd.s32 %s443, 1
      %p447 = scmp.eq.s32.totalorder %s31, 1
      %p448 = scmp.ne.s32.totalorder %s443, %s445
      %p449 = scmp.eq.s32.totalorder %s31, 0
      %p450 = por %p448, %p449
      %p451 = scmp.ne.s32.totalorder %s443, %s445
      %p452 = scmp.eq.s32.totalorder %s36, 1
      %p453 = por %p451, %p452
      %p454 = scmp.ne.s32.totalorder %s445, %s446
      %p455 = scmp.eq.s32.totalorder %s36, 0
      %p456 = por %p454, %p455
      %p457 = scmp.ne.s32.totalorder %s445, %s446
      %p458 = scmp.eq.s32.totalorder %s37, 1
      %p459 = por %p457, %p458
      %p461 = scmp.ne.s32.totalorder %s446, %s460
      %p462 = scmp.eq.s32.totalorder %s37, 0
      %p463 = por %p461, %p462
      %s465 = sadd.s32 %s464, 1
      %p468 = scmp.eq.s32.totalorder %s31, 1
      %p469 = scmp.ne.s32.totalorder %s464, %s466
      %p470 = scmp.eq.s32.totalorder %s31, 0
      %p471 = por %p469, %p470
      %p472 = scmp.ne.s32.totalorder %s464, %s466
      %p473 = scmp.eq.s32.totalorder %s36, 1
      %p474 = por %p472, %p473
      %p475 = scmp.ne.s32.totalorder %s466, %s467
      %p476 = scmp.eq.s32.totalorder %s36, 0
      %p477 = por %p475, %p476
      %p478 = scmp.ne.s32.totalorder %s466, %s467
      %p479 = scmp.eq.s32.totalorder %s37, 1
      %p480 = por %p478, %p479
      %p482 = scmp.ne.s32.totalorder %s467, %s481
      %p483 = scmp.eq.s32.totalorder %s37, 0
      %p484 = por %p482, %p483
      %s485 = ssub.s32 %s31, %s38
      %p486 = scmp.eq.s32.totalorder %s485, 0
      %s488 = sadd.s32 %s487, 1
      %s489 = scalar_select %p486, %s487, %s488
      %p492 = pneg %p486
      %p493 = scmp.eq.s32.totalorder %s31, 1
      %p494 = por %p492, %p493
      %p495 = scmp.ne.s32.totalorder %s487, %s490
      %p496 = scmp.eq.s32.totalorder %s31, 0
      %p497 = por %p495, %p496
      %p498 = scmp.ne.s32.totalorder %s487, %s490
      %p499 = scmp.eq.s32.totalorder %s36, 1
      %p500 = por %p498, %p499
      %p501 = scmp.ne.s32.totalorder %s490, %s491
      %p502 = scmp.eq.s32.totalorder %s36, 0
      %p503 = por %p501, %p502
      %p504 = scmp.ne.s32.totalorder %s490, %s491
      %p505 = scmp.eq.s32.totalorder %s37, 1
      %p506 = por %p504, %p505
      %p508 = scmp.ne.s32.totalorder %s491, %s507
      %p509 = scmp.eq.s32.totalorder %s37, 0
      %p510 = por %p508, %p509
      %p511 = scmp.le.s32.totalorder 1, %s31
      %p512 = scmp.lt.s32.totalorder %s31, 3
      %p513 = pnand %p511, %p512
      %p514 = pneg %p513
      // Predicated region
      $region9: #{attention2_forward.1} parent=5 // pred_check
        _
      $region10: #{attention2_forward.1} parent=5 // pred_check_branch
        %516 = sbr.rel (%p513) target = $region12
      $region11: #{attention2_forward.1} parent=5 // pred_region
        %s517 = ssub.s32 %s31, 1
        // Predicated region
        $region13: #{attention2_forward.1} parent=11 // pred_check
          %p518 = pneg %p78
        $region14: #{attention2_forward.1} parent=11 // pred_check_branch
          %520 = sbr.rel (%p518) target = $region16
        $region15: #{attention2_forward.1} parent=11 // pred_region
          %s522 = ssub.s32 24576, 24576
          %523 = vsyncadd [#allocation10], %s522
          %s524 = sshll.u32 [#allocation9], 4
          %s525 = int_to_ptr.vmem [resolvable:$true] %s524
          %530 = dma.hbm_to_vmem [thread:$0]  %s1, 24576, %s525, [#allocation10], 64, 64, 4
        $region16: #{attention2_forward.1} parent=11 // pred_fallthru
          _
        // Predicated region
        $region17: #{attention2_forward.1} parent=11 // pred_check
          %p531 = pneg %p99
        $region18: #{attention2_forward.1} parent=11 // pred_check_branch
          %533 = sbr.rel (%p531) target = $region20
        $region19: #{attention2_forward.1} parent=11 // pred_region
          _
        $region20: #{attention2_forward.1} parent=11 // pred_fallthru
          _
        // Predicated region
        $region21: #{attention2_forward.1} parent=11 // pred_check
          %p534 = pneg %p120
        $region22: #{attention2_forward.1} parent=11 // pred_check_branch
          %536 = sbr.rel (%p534) target = $region24
        $region23: #{attention2_forward.1} parent=11 // pred_region
          _
        $region24: #{attention2_forward.1} parent=11 // pred_fallthru
          _
        // Predicated region
        $region25: #{attention2_forward.1} parent=11 // pred_check
          %p537 = pneg %p141
        $region26: #{attention2_forward.1} parent=11 // pred_check_branch
          %539 = sbr.rel (%p537) target = $region28
        $region27: #{attention2_forward.1} parent=11 // pred_region
          _
        $region28: #{attention2_forward.1} parent=11 // pred_fallthru
          _
        // Predicated region
        $region29: #{attention2_forward.1} parent=11 // pred_check
          %p540 = pneg %p162
        $region30: #{attention2_forward.1} parent=11 // pred_check_branch
          %542 = sbr.rel (%p540) target = $region32
        $region31: #{attention2_forward.1} parent=11 // pred_region
          _
        $region32: #{attention2_forward.1} parent=11 // pred_fallthru
          _
        // Predicated region
        $region33: #{attention2_forward.1} parent=11 // pred_check
          %p543 = pneg %p183
        $region34: #{attention2_forward.1} parent=11 // pred_check_branch
          %545 = sbr.rel (%p543) target = $region36
        $region35: #{attention2_forward.1} parent=11 // pred_region
          _
        $region36: #{attention2_forward.1} parent=11 // pred_fallthru
          _
        // Predicated region
        $region37: #{attention2_forward.1} parent=11 // pred_check
          %p546 = pneg %p204
        $region38: #{attention2_forward.1} parent=11 // pred_check_branch
          %548 = sbr.rel (%p546) target = $region40
        $region39: #{attention2_forward.1} parent=11 // pred_region
          _
        $region40: #{attention2_forward.1} parent=11 // pred_fallthru
          _
        // Predicated region
        $region41: #{attention2_forward.1} parent=11 // pred_check
          %p549 = pneg %p225
        $region42: #{attention2_forward.1} parent=11 // pred_check_branch
          %551 = sbr.rel (%p549) target = $region44
        $region43: #{attention2_forward.1} parent=11 // pred_region
          _
        $region44: #{attention2_forward.1} parent=11 // pred_fallthru
          _
        // Predicated region
        $region45: #{attention2_forward.1} parent=11 // pred_check
          %p552 = pneg %p246
        $region46: #{attention2_forward.1} parent=11 // pred_check_branch
          %554 = sbr.rel (%p552) target = $region48
        $region47: #{attention2_forward.1} parent=11 // pred_region
          _
        $region48: #{attention2_forward.1} parent=11 // pred_fallthru
          _
        // Predicated region
        $region49: #{attention2_forward.1} parent=11 // pred_check
          %p555 = pneg %p267
        $region50: #{attention2_forward.1} parent=11 // pred_check_branch
          %557 = sbr.rel (%p555) target = $region52
        $region51: #{attention2_forward.1} parent=11 // pred_region
          _
        $region52: #{attention2_forward.1} parent=11 // pred_fallthru
          _
        // Predicated region
        $region53: #{attention2_forward.1} parent=11 // pred_check
          %p558 = pneg %p288
        $region54: #{attention2_forward.1} parent=11 // pred_check_branch
          %560 = sbr.rel (%p558) target = $region56
        $region55: #{attention2_forward.1} parent=11 // pred_region
          _
        $region56: #{attention2_forward.1} parent=11 // pred_fallthru
          _
        // Predicated region
        $region57: #{attention2_forward.1} parent=11 // pred_check
          %p561 = pneg %p309
        $region58: #{attention2_forward.1} parent=11 // pred_check_branch
          %563 = sbr.rel (%p561) target = $region60
        $region59: #{attention2_forward.1} parent=11 // pred_region
          _
        $region60: #{attention2_forward.1} parent=11 // pred_fallthru
          _
        // Predicated region
        $region61: #{attention2_forward.1} parent=11 // pred_check
          %p564 = pneg %p330
        $region62: #{attention2_forward.1} parent=11 // pred_check_branch
          %566 = sbr.rel (%p564) target = $region64
        $region63: #{attention2_forward.1} parent=11 // pred_region
          _
        $region64: #{attention2_forward.1} parent=11 // pred_fallthru
          _
        // Predicated region
        $region65: #{attention2_forward.1} parent=11 // pred_check
          %p567 = pneg %p351
        $region66: #{attention2_forward.1} parent=11 // pred_check_branch
          %569 = sbr.rel (%p567) target = $region68
        $region67: #{attention2_forward.1} parent=11 // pred_region
          _
        $region68: #{attention2_forward.1} parent=11 // pred_fallthru
          _
        // Predicated region
        $region69: #{attention2_forward.1} parent=11 // pred_check
          %p570 = pneg %p372
        $region70: #{attention2_forward.1} parent=11 // pred_check_branch
          %572 = sbr.rel (%p570) target = $region72
        $region71: #{attention2_forward.1} parent=11 // pred_region
          _
        $region72: #{attention2_forward.1} parent=11 // pred_fallthru
          _
        // Predicated region
        $region73: #{attention2_forward.1} parent=11 // pred_check
          %p573 = pneg %p393
        $region74: #{attention2_forward.1} parent=11 // pred_check_branch
          %575 = sbr.rel (%p573) target = $region76
        $region75: #{attention2_forward.1} parent=11 // pred_region
          _
        $region76: #{attention2_forward.1} parent=11 // pred_fallthru
          _
        // Predicated region
        $region77: #{attention2_forward.1} parent=11 // pred_check
          %p576 = pneg %p414
        $region78: #{attention2_forward.1} parent=11 // pred_check_branch
          %578 = sbr.rel (%p576) target = $region80
        $region79: #{attention2_forward.1} parent=11 // pred_region
          _
        $region80: #{attention2_forward.1} parent=11 // pred_fallthru
          _
        // Predicated region
        $region81: #{attention2_forward.1} parent=11 // pred_check
          %p579 = pneg %p435
        $region82: #{attention2_forward.1} parent=11 // pred_check_branch
          %581 = sbr.rel (%p579) target = $region84
        $region83: #{attention2_forward.1} parent=11 // pred_region
          _
        $region84: #{attention2_forward.1} parent=11 // pred_fallthru
          _
        // Predicated region
        $region85: #{attention2_forward.1} parent=11 // pred_check
          %p582 = pneg %p456
        $region86: #{attention2_forward.1} parent=11 // pred_check_branch
          %584 = sbr.rel (%p582) target = $region88
        $region87: #{attention2_forward.1} parent=11 // pred_region
          _
        $region88: #{attention2_forward.1} parent=11 // pred_fallthru
          _
        // Predicated region
        $region89: #{attention2_forward.1} parent=11 // pred_check
          %p585 = pneg %p477
        $region90: #{attention2_forward.1} parent=11 // pred_check_branch
          %587 = sbr.rel (%p585) target = $region92
        $region91: #{attention2_forward.1} parent=11 // pred_region
          _
        $region92: #{attention2_forward.1} parent=11 // pred_fallthru
          _
      $region12: #{attention2_forward.1} parent=5 // pred_fallthru
        _
      %p588 = scmp.lt.s32.totalorder %s31, 2
      // Predicated region
      $region93: #{attention2_forward.1} parent=5 // pred_check
        %p589 = pneg %p588
      $region94: #{attention2_forward.1} parent=5 // pred_check_branch
        %591 = sbr.rel (%p589) target = $region96
      $region95: #{attention2_forward.1} parent=5 // pred_region
        // Predicated region
        $region97: #{attention2_forward.1} parent=95 // pred_check
          %p592 = pneg %p51
        $region98: #{attention2_forward.1} parent=95 // pred_check_branch
          %594 = sbr.rel (%p592) target = $region100
        $region99: #{attention2_forward.1} parent=95 // pred_region
          %p595 = scmp.lt.s32.totalorder %s31, 1
          %s596 = scalar_select %p595, %s31, 1
          %s597 = smul.addr %s596, 2
          %s598 = smul.addr %s597, 8
          %s599 = scalar_lea.vmem %s0, %s598
        $region100: #{attention2_forward.1} parent=95 // pred_fallthru
          _
      $region96: #{attention2_forward.1} parent=5 // pred_fallthru
        _
      %p600 = scmp.le.s32.totalorder 1, %s31
      %p601 = scmp.lt.s32.totalorder %s31, 3
      %p602 = pnand %p600, %p601
      %p603 = pneg %p602
      // Predicated region
      $region101: #{attention2_forward.1} parent=5 // pred_check
        _
      $region102: #{attention2_forward.1} parent=5 // pred_check_branch
        %605 = sbr.rel (%p602) target = $region104
      $region103: #{attention2_forward.1} parent=5 // pred_region
        %s606 = ssub.s32 %s31, 1
        // Predicated region
        $region105: #{attention2_forward.1} parent=103 // pred_check
          %p607 = pneg %p78
        $region106: #{attention2_forward.1} parent=103 // pred_check_branch
          %609 = sbr.rel (%p607) target = $region108
        $region107: #{attention2_forward.1} parent=103 // pred_region
          %610 = dma.done [#allocation10], 24576
        $region108: #{attention2_forward.1} parent=103 // pred_fallthru
          _
        %p611 = scmp.lt.s32.totalorder %s36, 1
        %s612 = scalar_select %p611, %s36, 1
        %s613 = smul.addr %s612, 2
        %s614 = smul.addr %s613, 8
        %s615 = scalar_lea.vmem %s0, %s614
        %p616 = pneg %p57
        %p617 = pneg %p54
        %p618 = pneg %p78
        %p619 = pneg %p75
        %p620 = pneg %p99
        %p621 = pneg %p96
        %p622 = pneg %p120
        %p623 = pneg %p117
        %p624 = pneg %p141
        %p625 = pneg %p138
        %p626 = pneg %p162
        %p627 = pneg %p159
        %p628 = pneg %p183
        %p629 = pneg %p180
        %p630 = pneg %p204
        %p631 = pneg %p201
        %p632 = pneg %p225
        %p633 = pneg %p222
        %p634 = pneg %p246
        %p635 = pneg %p243
        %p636 = pneg %p267
        %p637 = pneg %p264
        %p638 = pneg %p288
        %p639 = pneg %p285
        %p640 = pneg %p309
        %p641 = pneg %p306
        %p642 = pneg %p330
        %p643 = pneg %p327
        %p644 = pneg %p351
        %p645 = pneg %p348
        %p646 = pneg %p372
        %p647 = pneg %p369
        %p648 = pneg %p393
        %p649 = pneg %p390
        %p650 = pneg %p414
        %p651 = pneg %p411
        %p652 = pneg %p435
        %p653 = pneg %p432
        %p654 = pneg %p456
        %p655 = pneg %p453
        %p656 = pneg %p477
        %p657 = pneg %p474
        %p658 = pneg %p503
        %p659 = pneg %p500
        %s660 = sand.u32 %s490, 1
        %s661 = scalar_lea.sflag [#allocation11], %s660
        %s662 = sand.u32 %s490, 1
        %s663 = smul.addr %s662, 16
        %s664 = scalar_lea.vmem [#allocation12], %s663
        %p665 = scmp.lt.s32.totalorder %s36, 1
        %s666 = scalar_select %p665, %s36, 1
        %s667 = smul.addr %s666, 2
        %s668 = smul.addr %s667, 8
        %s669 = scalar_lea.vmem %s0, %s668
        %671 = vst [vmem:[#allocation2] sm:$0x1] 0.0
        %672 = vst [vmem:[#allocation2 + $0x2f] sm:$0x1] 0.0
        %vm673 = vcmask 516096
        %674 = vst.msk [vmem:[#allocation3] sm:$0x1] %vm673, 0.0
        %675 = vst.msk [vmem:[#allocation3 + $0xf] sm:$0x1] %vm673, 0.0
        %vm676 = vcmask 253952
        %677 = vst.msk [vmem:[#allocation4] sm:$0x1] %vm676, 0.0
        %vm678 = vcmask 778752
        %679 = vst.msk [vmem:[#allocation4 + $0x3] sm:$0x1] %vm678, 0.0
        %680 = vst.msk [vmem:[#allocation7] sm:$0x1] %vm673, -3.4028235e+38
        %681 = vst.msk [vmem:[#allocation7 + $0x11] sm:$0x1] %vm673, -3.4028235e+38
        %682 = vst.msk [vmem:[#allocation8] sm:$0x1] %vm676, -3.4028235e+38
        %683 = vst.msk [vmem:[#allocation8 + $0x9] sm:$0x1] %vm676, -3.4028235e+38
        %v684 = vld [vmem:[%s669] sm:$0xff]
        %v685 = vld [vmem:[%s669 + $0x8] sm:$0xff]
        %686 = vst [vmem:[#allocation2 + $0x8] sm:$0xff] %v684
        %687 = vst [vmem:[#allocation2 + $0x20] sm:$0xff] %v685
        %vm690 = vcmask 1040384
        %v691 = vrot.slane %v684, 7
        %v692 = vrot.slane %v685, 7
        %v693 = vsel %vm690, %v691, %v692
        %696 = vst [vmem:[#allocation2] sm:$0xfe] %v691
        %697 = vst [vmem:[#allocation2 + $0x18] sm:$0xff] %v693
        %vm698 = vcmask 1046528
        %v699 = vrot.slane %v684, 1
        %v700 = vrot.slane %v685, 1
        %v701 = vsel %vm698, %v699, %v700
        %704 = vst [vmem:[#allocation2 + $0x10] sm:$0xff] %v701
        %705 = vst [vmem:[#allocation2 + $0x28] sm:$0x7f] %v700
        %v706 = vld [vmem:[#allocation2] sm:$0xff]
        %v707 = vld [vmem:[#allocation2 + $0x8] sm:$0xff]
        %v708 = vld [vmem:[#allocation2 + $0x10] sm:$0xff]
        %v709 = vld [vmem:[#allocation2 + $0x18] sm:$0xff]
        %v710 = vld [vmem:[#allocation2 + $0x20] sm:$0xff]
        %v711 = vld [vmem:[#allocation2 + $0x28] sm:$0xff]
        %v712 = vpack.c.bf16 %v709, %v706
        %v713 = vpack.c.bf16 %v710, %v707
        %v714 = vpack.c.bf16 %v711, %v708
        %v715 = vld [vmem:[#allocation9] sm:$0xf]
        %v716 = vld [vmem:[#allocation9 + $0x4] sm:$0xf]
        %v717 = vld [vmem:[#allocation9 + $0x8] sm:$0xf]
        %v718 = vld [vmem:[#allocation9 + $0xc] sm:$0xf]
        %v719 = vld [vmem:[#allocation9 + $0x10] sm:$0xf]
        %v720 = vld [vmem:[#allocation9 + $0x14] sm:$0xf]
        %v721 = vld [vmem:[#allocation9 + $0x18] sm:$0xf]
        %v722 = vld [vmem:[#allocation9 + $0x1c] sm:$0xf]
        %v723 = vld [vmem:[#allocation9 + $0x20] sm:$0xf]
        %v724 = vld [vmem:[#allocation9 + $0x24] sm:$0xf]
        %v725 = vld [vmem:[#allocation9 + $0x28] sm:$0xf]
        %v726 = vld [vmem:[#allocation9 + $0x2c] sm:$0xf]
        %v727 = vld [vmem:[#allocation9 + $0x30] sm:$0xf]
        %v728 = vld [vmem:[#allocation9 + $0x34] sm:$0xf]
        %v729 = vld [vmem:[#allocation9 + $0x38] sm:$0xf]
        %v730 = vld [vmem:[#allocation9 + $0x3c] sm:$0xf]
        %v731 = vld [vmem:[#allocation9 + $0x40] sm:$0xf]
        %v732 = vld [vmem:[#allocation9 + $0x44] sm:$0xf]
        %v733 = vld [vmem:[#allocation9 + $0x48] sm:$0xf]
        %v734 = vld [vmem:[#allocation9 + $0x4c] sm:$0xf]
        %v735 = vld [vmem:[#allocation9 + $0x50] sm:$0xf]
        %v736 = vld [vmem:[#allocation9 + $0x54] sm:$0xf]
        %v737 = vld [vmem:[#allocation9 + $0x58] sm:$0xf]
        %v738 = vld [vmem:[#allocation9 + $0x5c] sm:$0xf]
        %v739 = vld [vmem:[#allocation9 + $0x60] sm:$0xf]
        %v740 = vld [vmem:[#allocation9 + $0x64] sm:$0xf]
        %v741 = vld [vmem:[#allocation9 + $0x68] sm:$0xf]
        %v742 = vld [vmem:[#allocation9 + $0x6c] sm:$0xf]
        %v743 = vld [vmem:[#allocation9 + $0x70] sm:$0xf]
        %v744 = vld [vmem:[#allocation9 + $0x74] sm:$0xf]
        %v745 = vld [vmem:[#allocation9 + $0x78] sm:$0xf]
        %v746 = vld [vmem:[#allocation9 + $0x7c] sm:$0xf]
        %v747 = vld [vmem:[#allocation9 + $0x80] sm:$0xf]
        %v748 = vld [vmem:[#allocation9 + $0x84] sm:$0xf]
        %v749 = vld [vmem:[#allocation9 + $0x88] sm:$0xf]
        %v750 = vld [vmem:[#allocation9 + $0x8c] sm:$0xf]
        %v751 = vld [vmem:[#allocation9 + $0x90] sm:$0xf]
        %v752 = vld [vmem:[#allocation9 + $0x94] sm:$0xf]
        %v753 = vld [vmem:[#allocation9 + $0x98] sm:$0xf]
        %v754 = vld [vmem:[#allocation9 + $0x9c] sm:$0xf]
        %v755 = vld [vmem:[#allocation9 + $0xa0] sm:$0xf]
        %v756 = vld [vmem:[#allocation9 + $0xa4] sm:$0xf]
        %v757 = vld [vmem:[#allocation9 + $0xa8] sm:$0xf]
        %v758 = vld [vmem:[#allocation9 + $0xac] sm:$0xf]
        %v759 = vld [vmem:[#allocation9 + $0xb0] sm:$0xf]
        %v760 = vld [vmem:[#allocation9 + $0xb4] sm:$0xf]
        %v761 = vld [vmem:[#allocation9 + $0xb8] sm:$0xf]
        %v762 = vld [vmem:[#allocation9 + $0xbc] sm:$0xf]
        %v763 = vld [vmem:[%s2] sm:$0x1]
        %v765 = vlaneseq
        %v766 = vshrl.u32 %v765, 7
        %v767 = vsub.s32 0, %v766
        %v768 = vrot.slane %v763, %v767
        %v818 = vunpack.c.l.b16 %v715
        %v819 = vunpack.c.l.b16 %v716
        %v820 = vunpack.c.l.b16 %v717
        %v821 = vunpack.c.l.b16 %v718
        %v822 = vunpack.c.l.b16 %v719
        %v823 = vunpack.c.l.b16 %v720
        %v824 = vunpack.c.l.b16 %v721
        %v825 = vunpack.c.l.b16 %v722
        %v826 = vunpack.c.l.b16 %v723
        %v827 = vunpack.c.l.b16 %v724
        %v828 = vunpack.c.l.b16 %v725
        %v829 = vunpack.c.l.b16 %v726
        %v830 = vunpack.c.l.b16 %v727
        %v831 = vunpack.c.l.b16 %v728
        %v832 = vunpack.c.l.b16 %v729
        %v833 = vunpack.c.l.b16 %v730
        %v834 = vunpack.c.l.b16 %v731
        %v835 = vunpack.c.l.b16 %v732
        %v836 = vunpack.c.l.b16 %v733
        %v837 = vunpack.c.l.b16 %v734
        %v838 = vunpack.c.l.b16 %v735
        %v839 = vunpack.c.l.b16 %v736
        %v840 = vunpack.c.l.b16 %v737
        %v841 = vunpack.c.l.b16 %v738
        %v842 = vunpack.c.l.b16 %v739
        %v843 = vunpack.c.l.b16 %v740
        %v844 = vunpack.c.l.b16 %v741
        %v845 = vunpack.c.l.b16 %v742
        %v846 = vunpack.c.l.b16 %v743
        %v847 = vunpack.c.l.b16 %v744
        %v848 = vunpack.c.l.b16 %v745
        %v849 = vunpack.c.l.b16 %v746
        %v850 = vunpack.c.l.b16 %v747
        %v851 = vunpack.c.l.b16 %v748
        %v852 = vunpack.c.l.b16 %v749
        %v853 = vunpack.c.l.b16 %v750
        %v854 = vunpack.c.l.b16 %v751
        %v855 = vunpack.c.l.b16 %v752
        %v856 = vunpack.c.l.b16 %v753
        %v857 = vunpack.c.l.b16 %v754
        %v858 = vunpack.c.l.b16 %v755
        %v859 = vunpack.c.l.b16 %v756
        %v860 = vunpack.c.l.b16 %v757
        %v861 = vunpack.c.l.b16 %v758
        %v862 = vunpack.c.l.b16 %v759
        %v863 = vunpack.c.l.b16 %v760
        %v864 = vunpack.c.l.b16 %v761
        %v865 = vunpack.c.l.b16 %v762
        %v866 = vpack.c.b16 %v819, %v818
        %v867 = vpack.c.b16 %v821, %v820
        %v868 = vpack.c.b16 %v823, %v822
        %v869 = vpack.c.b16 %v825, %v824
        %v870 = vpack.c.b16 %v827, %v826
        %v871 = vpack.c.b16 %v829, %v828
        %v872 = vpack.c.b16 %v831, %v830
        %v873 = vpack.c.b16 %v833, %v832
        %v874 = vpack.c.b16 %v835, %v834
        %v875 = vpack.c.b16 %v837, %v836
        %v876 = vpack.c.b16 %v839, %v838
        %v877 = vpack.c.b16 %v841, %v840
        %v878 = vpack.c.b16 %v843, %v842
        %v879 = vpack.c.b16 %v845, %v844
        %v880 = vpack.c.b16 %v847, %v846
        %v881 = vpack.c.b16 %v849, %v848
        %v882 = vpack.c.b16 %v851, %v850
        %v883 = vpack.c.b16 %v853, %v852
        %v884 = vpack.c.b16 %v855, %v854
        %v885 = vpack.c.b16 %v857, %v856
        %v886 = vpack.c.b16 %v859, %v858
        %v887 = vpack.c.b16 %v861, %v860
        %v888 = vpack.c.b16 %v863, %v862
        %v889 = vpack.c.b16 %v865, %v864
        %914 = vmatprep.subr.bf16.mxu0 0
        %915 = vmatpush1.bf16.msra.mxu0 %v866
        %916 = vmatprep.subr.bf16.mxu0 0
        %917 = vmatpush1.bf16.msra.mxu0 %v867
        %918 = vmatprep.subr.bf16.mxu0 0
        %919 = vmatpush1.bf16.msra.mxu0 %v868
        %920 = vmatprep.subr.bf16.mxu0 0
        %921 = vmatpush1.bf16.msra.mxu0 %v869
        %922 = vmatprep.subr.bf16.mxu0 0
        %923 = vmatpush1.bf16.msra.mxu0 %v870
        %924 = vmatprep.subr.bf16.mxu0 0
        %925 = vmatpush1.bf16.msra.mxu0 %v871
        %926 = vmatprep.subr.bf16.mxu0 0
        %927 = vmatpush1.bf16.msra.mxu0 %v872
        %928 = vmatprep.subr.bf16.mxu0 0
        %929 = vmatpush1.bf16.msra.mxu0 %v873
        %930 = vmatprep.subr.bf16.mxu0 0
        %931 = vmatpush1.bf16.msra.mxu0 %v874
        %932 = vmatprep.subr.bf16.mxu0 0
        %933 = vmatpush1.bf16.msra.mxu0 %v875
        %934 = vmatprep.subr.bf16.mxu0 0
        %935 = vmatpush1.bf16.msra.mxu0 %v876
        %936 = vmatprep.subr.bf16.mxu0 0
        %937 = vmatpush1.bf16.msra.mxu0 %v877
        %938 = vmatprep.subr.bf16.mxu0 0
        %939 = vmatpush1.bf16.msra.mxu0 %v878
        %940 = vmatprep.subr.bf16.mxu0 0
        %941 = vmatpush1.bf16.msra.mxu0 %v879
        %942 = vmatprep.subr.bf16.mxu0 0
        %943 = vmatpush1.bf16.msra.mxu0 %v880
        %944 = vmatprep.subr.bf16.mxu0 0
        %945 = vmatpush1.bf16.msra.mxu0 %v881
        %946 = vmatprep.mubr.bf16.mxu0 %v713
        %947 = vmatmul.mubr.bf16.gmra.mrb[0].mxu0 %v712
        %v948 = vpop.f32.mrb[0].mxu0
        %v949 = vadd.f32 %v768, %v948
        %v950 = vpop.f32.mrb[0].mxu0
        %v951 = vpop.f32.mrb[0].mxu0
        %v952 = vadd.f32 %v768, %v951
        %v953 = vpop.f32.mrb[0].mxu0
        %954 = vdwg.mxu0
        %955 = vmatprep.subr.bf16.mxu0 0
        %956 = vmatpush1.bf16.msra.mxu0 %v882
        %957 = vmatprep.subr.bf16.mxu0 0
        %958 = vmatpush1.bf16.msra.mxu0 %v883
        %959 = vmatprep.subr.bf16.mxu0 0
        %960 = vmatpush1.bf16.msra.mxu0 %v884
        %961 = vmatprep.subr.bf16.mxu0 0
        %962 = vmatpush1.bf16.msra.mxu0 %v885
        %963 = vmatprep.subr.bf16.mxu0 0
        %964 = vmatpush1.bf16.msra.mxu0 %v886
        %965 = vmatprep.subr.bf16.mxu0 0
        %966 = vmatpush1.bf16.msra.mxu0 %v887
        %967 = vmatprep.subr.bf16.mxu0 0
        %968 = vmatpush1.bf16.msra.mxu0 %v888
        %969 = vmatprep.subr.bf16.mxu0 0
        %970 = vmatpush1.bf16.msra.mxu0 %v889
        %971 = vmatprep.subr.bf16.mxu0 0
        %972 = vmatpush1.bf16.msra.mxu0 0
        %973 = vmatprep.subr.bf16.mxu0 0
        %974 = vmatpush1.bf16.msra.mxu0 0
        %975 = vmatprep.subr.bf16.mxu0 0
        %976 = vmatpush1.bf16.msra.mxu0 0
        %977 = vmatprep.subr.bf16.mxu0 0
        %978 = vmatpush1.bf16.msra.mxu0 0
        %979 = vmatprep.subr.bf16.mxu0 0
        %980 = vmatpush1.bf16.msra.mxu0 0
        %981 = vmatprep.subr.bf16.mxu0 0
        %982 = vmatpush1.bf16.msra.mxu0 0
        %983 = vmatprep.subr.bf16.mxu0 0
        %984 = vmatpush1.bf16.msra.mxu0 0
        %985 = vmatprep.subr.bf16.mxu0 0
        %986 = vmatpush1.bf16.msra.mxu0 0
        %987 = vmatprep.mubr.bf16.mxu0 0
        %988 = vmatmul.mubr.bf16.gmra.mrb[0].mxu0 %v714
        %v989 = vpop.f32.mrb[0].mxu0
        %v990 = vadd.f32 %v949, %v989
        %v991 = vpop.f32.mrb[0].mxu0
        %v992 = vpop.f32.mrb[0].mxu0
        %v993 = vadd.f32 %v952, %v992
        %v994 = vpop.f32.mrb[0].mxu0
        %995 = vdwg.mxu0
        %v996 = vmax.f32 %v990, 0.0
        %v997 = vmax.f32 %v993, 0.0
        %998 = vst [vmem:[#allocation2 + $0x8] sm:$0xff] %v996
        %999 = vst [vmem:[#allocation2 + $0x20] sm:$0xff] %v997
        %v1002 = vrot.slane %v996, 7
        %v1003 = vrot.slane %v997, 7
        %v1004 = vsel %vm690, %v1002, %v1003
        %1007 = vst [vmem:[#allocation2] sm:$0xfe] %v1002
        %1008 = vst [vmem:[#allocation2 + $0x18] sm:$0xff] %v1004
        %v1009 = vrot.slane %v996, 1
        %v1010 = vrot.slane %v997, 1
        %v1011 = vsel %vm698, %v1009, %v1010
        %1014 = vst [vmem:[#allocation2 + $0x10] sm:$0xff] %v1011
        %1015 = vst [vmem:[#allocation2 + $0x28] sm:$0x7f] %v1010
        %v1016 = vld [vmem:[#allocation2] sm:$0xff]
        %v1017 = vld [vmem:[#allocation2 + $0x8] sm:$0xff]
        %v1018 = vld [vmem:[#allocation2 + $0x10] sm:$0xff]
        %v1019 = vld [vmem:[#allocation2 + $0x18] sm:$0xff]
        %v1020 = vld [vmem:[#allocation2 + $0x20] sm:$0xff]
        %v1021 = vld [vmem:[#allocation2 + $0x28] sm:$0xff]
        %v1022 = vpack.c.bf16 %v1019, %v1016
        %v1023 = vpack.c.bf16 %v1020, %v1017
        %v1024 = vpack.c.bf16 %v1021, %v1018
        %s1025 = scalar_lea.vmem [#allocation9], 192
        %v1026 = vld [vmem:[%s1025] sm:$0xf]
        %v1027 = vld [vmem:[%s1025 + $0x4] sm:$0xf]
        %v1028 = vld [vmem:[%s1025 + $0x8] sm:$0xf]
        %v1029 = vld [vmem:[%s1025 + $0xc] sm:$0xf]
        %v1030 = vld [vmem:[%s1025 + $0x10] sm:$0xf]
        %v1031 = vld [vmem:[%s1025 + $0x14] sm:$0xf]
        %v1032 = vld [vmem:[%s1025 + $0x18] sm:$0xf]
        %v1033 = vld [vmem:[%s1025 + $0x1c] sm:$0xf]
        %v1034 = vld [vmem:[%s1025 + $0x20] sm:$0xf]
        %v1035 = vld [vmem:[%s1025 + $0x24] sm:$0xf]
        %v1036 = vld [vmem:[%s1025 + $0x28] sm:$0xf]
        %v1037 = vld [vmem:[%s1025 + $0x2c] sm:$0xf]
        %v1038 = vld [vmem:[%s1025 + $0x30] sm:$0xf]
        %v1039 = vld [vmem:[%s1025 + $0x34] sm:$0xf]
        %v1040 = vld [vmem:[%s1025 + $0x38] sm:$0xf]
        %v1041 = vld [vmem:[%s1025 + $0x3c] sm:$0xf]
        %v1042 = vld [vmem:[%s1025 + $0x40] sm:$0xf]
        %v1043 = vld [vmem:[%s1025 + $0x44] sm:$0xf]
        %v1044 = vld [vmem:[%s1025 + $0x48] sm:$0xf]
        %v1045 = vld [vmem:[%s1025 + $0x4c] sm:$0xf]
        %v1046 = vld [vmem:[%s1025 + $0x50] sm:$0xf]
        %v1047 = vld [vmem:[%s1025 + $0x54] sm:$0xf]
        %v1048 = vld [vmem:[%s1025 + $0x58] sm:$0xf]
        %v1049 = vld [vmem:[%s1025 + $0x5c] sm:$0xf]
        %v1050 = vld [vmem:[%s1025 + $0x60] sm:$0xf]
        %v1051 = vld [vmem:[%s1025 + $0x64] sm:$0xf]
        %v1052 = vld [vmem:[%s1025 + $0x68] sm:$0xf]
        %v1053 = vld [vmem:[%s1025 + $0x6c] sm:$0xf]
        %v1054 = vld [vmem:[%s1025 + $0x70] sm:$0xf]
        %v1055 = vld [vmem:[%s1025 + $0x74] sm:$0xf]
        %v1056 = vld [vmem:[%s1025 + $0x78] sm:$0xf]
        %v1057 = vld [vmem:[%s1025 + $0x7c] sm:$0xf]
        %v1058 = vld [vmem:[%s1025 + $0x80] sm:$0xf]
        %v1059 = vld [vmem:[%s1025 + $0x84] sm:$0xf]
        %v1060 = vld [vmem:[%s1025 + $0x88] sm:$0xf]
        %v1061 = vld [vmem:[%s1025 + $0x8c] sm:$0xf]
        %v1062 = vld [vmem:[%s1025 + $0x90] sm:$0xf]
        %v1063 = vld [vmem:[%s1025 + $0x94] sm:$0xf]
        %v1064 = vld [vmem:[%s1025 + $0x98] sm:$0xf]
        %v1065 = vld [vmem:[%s1025 + $0x9c] sm:$0xf]
        %v1066 = vld [vmem:[%s1025 + $0xa0] sm:$0xf]
        %v1067 = vld [vmem:[%s1025 + $0xa4] sm:$0xf]
        %v1068 = vld [vmem:[%s1025 + $0xa8] sm:$0xf]
        %v1069 = vld [vmem:[%s1025 + $0xac] sm:$0xf]
        %v1070 = vld [vmem:[%s1025 + $0xb0] sm:$0xf]
        %v1071 = vld [vmem:[%s1025 + $0xb4] sm:$0xf]
        %v1072 = vld [vmem:[%s1025 + $0xb8] sm:$0xf]
        %v1073 = vld [vmem:[%s1025 + $0xbc] sm:$0xf]
        %s1074 = scalar_lea.vmem %s2, 1
        %v1075 = vld [vmem:[%s1074] sm:$0x1]
        %v1077 = vlaneseq
        %v1078 = vshrl.u32 %v1077, 7
        %v1079 = vsub.s32 0, %v1078
        %v1080 = vrot.slane %v1075, %v1079
        %v1130 = vunpack.c.l.b16 %v1026
        %v1131 = vunpack.c.l.b16 %v1027
        %v1132 = vunpack.c.l.b16 %v1028
        %v1133 = vunpack.c.l.b16 %v1029
        %v1134 = vunpack.c.l.b16 %v1030
        %v1135 = vunpack.c.l.b16 %v1031
        %v1136 = vunpack.c.l.b16 %v1032
        %v1137 = vunpack.c.l.b16 %v1033
        %v1138 = vunpack.c.l.b16 %v1034
        %v1139 = vunpack.c.l.b16 %v1035
        %v1140 = vunpack.c.l.b16 %v1036
        %v1141 = vunpack.c.l.b16 %v1037
        %v1142 = vunpack.c.l.b16 %v1038
        %v1143 = vunpack.c.l.b16 %v1039
        %v1144 = vunpack.c.l.b16 %v1040
        %v1145 = vunpack.c.l.b16 %v1041
        %v1146 = vunpack.c.l.b16 %v1042
        %v1147 = vunpack.c.l.b16 %v1043
        %v1148 = vunpack.c.l.b16 %v1044
        %v1149 = vunpack.c.l.b16 %v1045
        %v1150 = vunpack.c.l.b16 %v1046
        %v1151 = vunpack.c.l.b16 %v1047
        %v1152 = vunpack.c.l.b16 %v1048
        %v1153 = vunpack.c.l.b16 %v1049
        %v1154 = vunpack.c.l.b16 %v1050
        %v1155 = vunpack.c.l.b16 %v1051
        %v1156 = vunpack.c.l.b16 %v1052
        %v1157 = vunpack.c.l.b16 %v1053
        %v1158 = vunpack.c.l.b16 %v1054
        %v1159 = vunpack.c.l.b16 %v1055
        %v1160 = vunpack.c.l.b16 %v1056
        %v1161 = vunpack.c.l.b16 %v1057
        %v1162 = vunpack.c.l.b16 %v1058
        %v1163 = vunpack.c.l.b16 %v1059
        %v1164 = vunpack.c.l.b16 %v1060
        %v1165 = vunpack.c.l.b16 %v1061
        %v1166 = vunpack.c.l.b16 %v1062
        %v1167 = vunpack.c.l.b16 %v1063
        %v1168 = vunpack.c.l.b16 %v1064
        %v1169 = vunpack.c.l.b16 %v1065
        %v1170 = vunpack.c.l.b16 %v1066
        %v1171 = vunpack.c.l.b16 %v1067
        %v1172 = vunpack.c.l.b16 %v1068
        %v1173 = vunpack.c.l.b16 %v1069
        %v1174 = vunpack.c.l.b16 %v1070
        %v1175 = vunpack.c.l.b16 %v1071
        %v1176 = vunpack.c.l.b16 %v1072
        %v1177 = vunpack.c.l.b16 %v1073
        %v1178 = vpack.c.b16 %v1131, %v1130
        %v1179 = vpack.c.b16 %v1133, %v1132
        %v1180 = vpack.c.b16 %v1135, %v1134
        %v1181 = vpack.c.b16 %v1137, %v1136
        %v1182 = vpack.c.b16 %v1139, %v1138
        %v1183 = vpack.c.b16 %v1141, %v1140
        %v1184 = vpack.c.b16 %v1143, %v1142
        %v1185 = vpack.c.b16 %v1145, %v1144
        %v1186 = vpack.c.b16 %v1147, %v1146
        %v1187 = vpack.c.b16 %v1149, %v1148
        %v1188 = vpack.c.b16 %v1151, %v1150
        %v1189 = vpack.c.b16 %v1153, %v1152
        %v1190 = vpack.c.b16 %v1155, %v1154
        %v1191 = vpack.c.b16 %v1157, %v1156
        %v1192 = vpack.c.b16 %v1159, %v1158
        %v1193 = vpack.c.b16 %v1161, %v1160
        %v1194 = vpack.c.b16 %v1163, %v1162
        %v1195 = vpack.c.b16 %v1165, %v1164
        %v1196 = vpack.c.b16 %v1167, %v1166
        %v1197 = vpack.c.b16 %v1169, %v1168
        %v1198 = vpack.c.b16 %v1171, %v1170
        %v1199 = vpack.c.b16 %v1173, %v1172
        %v1200 = vpack.c.b16 %v1175, %v1174
        %v1201 = vpack.c.b16 %v1177, %v1176
        %1226 = vmatprep.subr.bf16.mxu0 0
        %1227 = vmatpush1.bf16.msra.mxu0 %v1178
        %1228 = vmatprep.subr.bf16.mxu0 0
        %1229 = vmatpush1.bf16.msra.mxu0 %v1179
        %1230 = vmatprep.subr.bf16.mxu0 0
        %1231 = vmatpush1.bf16.msra.mxu0 %v1180
        %1232 = vmatprep.subr.bf16.mxu0 0
        %1233 = vmatpush1.bf16.msra.mxu0 %v1181
        %1234 = vmatprep.subr.bf16.mxu0 0
        %1235 = vmatpush1.bf16.msra.mxu0 %v1182
        %1236 = vmatprep.subr.bf16.mxu0 0
        %1237 = vmatpush1.bf16.msra.mxu0 %v1183
        %1238 = vmatprep.subr.bf16.mxu0 0
        %1239 = vmatpush1.bf16.msra.mxu0 %v1184
        %1240 = vmatprep.subr.bf16.mxu0 0
        %1241 = vmatpush1.bf16.msra.mxu0 %v1185
        %1242 = vmatprep.subr.bf16.mxu0 0
        %1243 = vmatpush1.bf16.msra.mxu0 %v1186
        %1244 = vmatprep.subr.bf16.mxu0 0
        %1245 = vmatpush1.bf16.msra.mxu0 %v1187
        %1246 = vmatprep.subr.bf16.mxu0 0
        %1247 = vmatpush1.bf16.msra.mxu0 %v1188
        %1248 = vmatprep.subr.bf16.mxu0 0
        %1249 = vmatpush1.bf16.msra.mxu0 %v1189
        %1250 = vmatprep.subr.bf16.mxu0 0
        %1251 = vmatpush1.bf16.msra.mxu0 %v1190
        %1252 = vmatprep.subr.bf16.mxu0 0
        %1253 = vmatpush1.bf16.msra.mxu0 %v1191
        %1254 = vmatprep.subr.bf16.mxu0 0
        %1255 = vmatpush1.bf16.msra.mxu0 %v1192
        %1256 = vmatprep.subr.bf16.mxu0 0
        %1257 = vmatpush1.bf16.msra.mxu0 %v1193
        %1258 = vmatprep.mubr.bf16.mxu0 %v1023
        %1259 = vmatmul.mubr.bf16.gmra.mrb[0].mxu0 %v1022
        %v1260 = vpop.f32.mrb[0].mxu0
        %v1261 = vadd.f32 %v1080, %v1260
        %v1262 = vpop.f32.mrb[0].mxu0
        %v1263 = vpop.f32.mrb[0].mxu0
        %v1264 = vadd.f32 %v1080, %v1263
        %v1265 = vpop.f32.mrb[0].mxu0
        %1266 = vdwg.mxu0
        %1267 = vmatprep.subr.bf16.mxu0 0
        %1268 = vmatpush1.bf16.msra.mxu0 %v1194
        %1269 = vmatprep.subr.bf16.mxu0 0
        %1270 = vmatpush1.bf16.msra.mxu0 %v1195
        %1271 = vmatprep.subr.bf16.mxu0 0
        %1272 = vmatpush1.bf16.msra.mxu0 %v1196
        %1273 = vmatprep.subr.bf16.mxu0 0
        %1274 = vmatpush1.bf16.msra.mxu0 %v1197
        %1275 = vmatprep.subr.bf16.mxu0 0
        %1276 = vmatpush1.bf16.msra.mxu0 %v1198
        %1277 = vmatprep.subr.bf16.mxu0 0
        %1278 = vmatpush1.bf16.msra.mxu0 %v1199
        %1279 = vmatprep.subr.bf16.mxu0 0
        %1280 = vmatpush1.bf16.msra.mxu0 %v1200
        %1281 = vmatprep.subr.bf16.mxu0 0
        %1282 = vmatpush1.bf16.msra.mxu0 %v1201
        %1283 = vmatprep.subr.bf16.mxu0 0
        %1284 = vmatpush1.bf16.msra.mxu0 0
        %1285 = vmatprep.subr.bf16.mxu0 0
        %1286 = vmatpush1.bf16.msra.mxu0 0
        %1287 = vmatprep.subr.bf16.mxu0 0
        %1288 = vmatpush1.bf16.msra.mxu0 0
        %1289 = vmatprep.subr.bf16.mxu0 0
        %1290 = vmatpush1.bf16.msra.mxu0 0
        %1291 = vmatprep.subr.bf16.mxu0 0
        %1292 = vmatpush1.bf16.msra.mxu0 0
        %1293 = vmatprep.subr.bf16.mxu0 0
        %1294 = vmatpush1.bf16.msra.mxu0 0
        %1295 = vmatprep.subr.bf16.mxu0 0
        %1296 = vmatpush1.bf16.msra.mxu0 0
        %1297 = vmatprep.subr.bf16.mxu0 0
        %1298 = vmatpush1.bf16.msra.mxu0 0
        %1299 = vmatprep.mubr.bf16.mxu0 0
        %1300 = vmatmul.mubr.bf16.gmra.mrb[0].mxu0 %v1024
        %v1301 = vpop.f32.mrb[0].mxu0
        %v1302 = vadd.f32 %v1261, %v1301
        %v1303 = vpop.f32.mrb[0].mxu0
        %v1304 = vpop.f32.mrb[0].mxu0
        %v1305 = vadd.f32 %v1264, %v1304
        %v1306 = vpop.f32.mrb[0].mxu0
        %1307 = vdwg.mxu0
        %v1308 = vadd.f32 %v1302, %v684
        %v1309 = vadd.f32 %v1305, %v685
        %v1310 = vmax.f32 %v1308, 0.0
        %v1311 = vmax.f32 %v1309, 0.0
        %1312 = vst [vmem:[#allocation2 + $0x8] sm:$0xff] %v1310
        %1313 = vst [vmem:[#allocation2 + $0x20] sm:$0xff] %v1311
        %v1316 = vrot.slane %v1310, 7
        %v1317 = vrot.slane %v1311, 7
        %v1318 = vsel %vm690, %v1316, %v1317
        %1321 = vst [vmem:[#allocation2] sm:$0xfe] %v1316
        %1322 = vst [vmem:[#allocation2 + $0x18] sm:$0xff] %v1318
        %v1323 = vrot.slane %v1310, 1
        %v1324 = vrot.slane %v1311, 1
        %v1325 = vsel %vm698, %v1323, %v1324
        %1328 = vst [vmem:[#allocation2 + $0x10] sm:$0xff] %v1325
        %1329 = vst [vmem:[#allocation2 + $0x28] sm:$0x7f] %v1324
        %v1330 = vld [vmem:[#allocation2] sm:$0xff]
        %v1331 = vld [vmem:[#allocation2 + $0x8] sm:$0xff]
        %v1332 = vld [vmem:[#allocation2 + $0x10] sm:$0xff]
        %v1333 = vld [vmem:[#allocation2 + $0x18] sm:$0xff]
        %v1334 = vld [vmem:[#allocation2 + $0x20] sm:$0xff]
        %v1335 = vld [vmem:[#allocation2 + $0x28] sm:$0xff]
        %v1336 = vpack.c.bf16 %v1333, %v1330
        %v1337 = vpack.c.bf16 %v1334, %v1331
        %v1338 = vpack.c.bf16 %v1335, %v1332
        %s1339 = scalar_lea.vmem [#allocation9], 384
        %v1340 = vld [vmem:[%s1339] sm:$0xf]
        %v1341 = vld [vmem:[%s1339 + $0x4] sm:$0xf]
        %v1342 = vld [vmem:[%s1339 + $0x8] sm:$0xf]
        %v1343 = vld [vmem:[%s1339 + $0xc] sm:$0xf]
        %v1344 = vld [vmem:[%s1339 + $0x10] sm:$0xf]
        %v1345 = vld [vmem:[%s1339 + $0x14] sm:$0xf]
        %v1346 = vld [vmem:[%s1339 + $0x18] sm:$0xf]
        %v1347 = vld [vmem:[%s1339 + $0x1c] sm:$0xf]
        %v1348 = vld [vmem:[%s1339 + $0x20] sm:$0xf]
        %v1349 = vld [vmem:[%s1339 + $0x24] sm:$0xf]
        %v1350 = vld [vmem:[%s1339 + $0x28] sm:$0xf]
        %v1351 = vld [vmem:[%s1339 + $0x2c] sm:$0xf]
        %v1352 = vld [vmem:[%s1339 + $0x30] sm:$0xf]
        %v1353 = vld [vmem:[%s1339 + $0x34] sm:$0xf]
        %v1354 = vld [vmem:[%s1339 + $0x38] sm:$0xf]
        %v1355 = vld [vmem:[%s1339 + $0x3c] sm:$0xf]
        %v1356 = vld [vmem:[%s1339 + $0x40] sm:$0xf]
        %v1357 = vld [vmem:[%s1339 + $0x44] sm:$0xf]
        %v1358 = vld [vmem:[%s1339 + $0x48] sm:$0xf]
        %v1359 = vld [vmem:[%s1339 + $0x4c] sm:$0xf]
        %v1360 = vld [vmem:[%s1339 + $0x50] sm:$0xf]
        %v1361 = vld [vmem:[%s1339 + $0x54] sm:$0xf]
        %v1362 = vld [vmem:[%s1339 + $0x58] sm:$0xf]
        %v1363 = vld [vmem:[%s1339 + $0x5c] sm:$0xf]
        %v1364 = vld [vmem:[%s1339 + $0x60] sm:$0xf]
        %v1365 = vld [vmem:[%s1339 + $0x64] sm:$0xf]
        %v1366 = vld [vmem:[%s1339 + $0x68] sm:$0xf]
        %v1367 = vld [vmem:[%s1339 + $0x6c] sm:$0xf]
        %v1368 = vld [vmem:[%s1339 + $0x70] sm:$0xf]
        %v1369 = vld [vmem:[%s1339 + $0x74] sm:$0xf]
        %v1370 = vld [vmem:[%s1339 + $0x78] sm:$0xf]
        %v1371 = vld [vmem:[%s1339 + $0x7c] sm:$0xf]
        %v1372 = vld [vmem:[%s1339 + $0x80] sm:$0xf]
        %v1373 = vld [vmem:[%s1339 + $0x84] sm:$0xf]
        %v1374 = vld [vmem:[%s1339 + $0x88] sm:$0xf]
        %v1375 = vld [vmem:[%s1339 + $0x8c] sm:$0xf]
        %v1376 = vld [vmem:[%s1339 + $0x90] sm:$0xf]
        %v1377 = vld [vmem:[%s1339 + $0x94] sm:$0xf]
        %v1378 = vld [vmem:[%s1339 + $0x98] sm:$0xf]
        %v1379 = vld [vmem:[%s1339 + $0x9c] sm:$0xf]
        %v1380 = vld [vmem:[%s1339 + $0xa0] sm:$0xf]
        %v1381 = vld [vmem:[%s1339 + $0xa4] sm:$0xf]
        %v1382 = vld [vmem:[%s1339 + $0xa8] sm:$0xf]
        %v1383 = vld [vmem:[%s1339 + $0xac] sm:$0xf]
        %v1384 = vld [vmem:[%s1339 + $0xb0] sm:$0xf]
        %v1385 = vld [vmem:[%s1339 + $0xb4] sm:$0xf]
        %v1386 = vld [vmem:[%s1339 + $0xb8] sm:$0xf]
        %v1387 = vld [vmem:[%s1339 + $0xbc] sm:$0xf]
        %s1388 = scalar_lea.vmem %s2, 2
        %v1389 = vld [vmem:[%s1388] sm:$0x1]
        %v1391 = vlaneseq
        %v1392 = vshrl.u32 %v1391, 7
        %v1393 = vsub.s32 0, %v1392
        %v1394 = vrot.slane %v1389, %v1393
        %v1444 = vunpack.c.l.b16 %v1340
        %v1445 = vunpack.c.l.b16 %v1341
        %v1446 = vunpack.c.l.b16 %v1342
        %v1447 = vunpack.c.l.b16 %v1343
        %v1448 = vunpack.c.l.b16 %v1344
        %v1449 = vunpack.c.l.b16 %v1345
        %v1450 = vunpack.c.l.b16 %v1346
        %v1451 = vunpack.c.l.b16 %v1347
        %v1452 = vunpack.c.l.b16 %v1348
        %v1453 = vunpack.c.l.b16 %v1349
        %v1454 = vunpack.c.l.b16 %v1350
        %v1455 = vunpack.c.l.b16 %v1351
        %v1456 = vunpack.c.l.b16 %v1352
        %v1457 = vunpack.c.l.b16 %v1353
        %v1458 = vunpack.c.l.b16 %v1354
        %v1459 = vunpack.c.l.b16 %v1355
        %v1460 = vunpack.c.l.b16 %v1356
        %v1461 = vunpack.c.l.b16 %v1357
        %v1462 = vunpack.c.l.b16 %v1358
        %v1463 = vunpack.c.l.b16 %v1359
        %v1464 = vunpack.c.l.b16 %v1360
        %v1465 = vunpack.c.l.b16 %v1361
        %v1466 = vunpack.c.l.b16 %v1362
        %v1467 = vunpack.c.l.b16 %v1363
        %v1468 = vunpack.c.l.b16 %v1364
        %v1469 = vunpack.c.l.b16 %v1365
        %v1470 = vunpack.c.l.b16 %v1366
        %v1471 = vunpack.c.l.b16 %v1367
        %v1472 = vunpack.c.l.b16 %v1368
        %v1473 = vunpack.c.l.b16 %v1369
        %v1474 = vunpack.c.l.b16 %v1370
        %v1475 = vunpack.c.l.b16 %v1371
        %v1476 = vunpack.c.l.b16 %v1372
        %v1477 = vunpack.c.l.b16 %v1373
        %v1478 = vunpack.c.l.b16 %v1374
        %v1479 = vunpack.c.l.b16 %v1375
        %v1480 = vunpack.c.l.b16 %v1376
        %v1481 = vunpack.c.l.b16 %v1377
        %v1482 = vunpack.c.l.b16 %v1378
        %v1483 = vunpack.c.l.b16 %v1379
        %v1484 = vunpack.c.l.b16 %v1380
        %v1485 = vunpack.c.l.b16 %v1381
        %v1486 = vunpack.c.l.b16 %v1382
        %v1487 = vunpack.c.l.b16 %v1383
        %v1488 = vunpack.c.l.b16 %v1384
        %v1489 = vunpack.c.l.b16 %v1385
        %v1490 = vunpack.c.l.b16 %v1386
        %v1491 = vunpack.c.l.b16 %v1387
        %v1492 = vpack.c.b16 %v1445, %v1444
        %v1493 = vpack.c.b16 %v1447, %v1446
        %v1494 = vpack.c.b16 %v1449, %v1448
        %v1495 = vpack.c.b16 %v1451, %v1450
        %v1496 = vpack.c.b16 %v1453, %v1452
        %v1497 = vpack.c.b16 %v1455, %v1454
        %v1498 = vpack.c.b16 %v1457, %v1456
        %v1499 = vpack.c.b16 %v1459, %v1458
        %v1500 = vpack.c.b16 %v1461, %v1460
        %v1501 = vpack.c.b16 %v1463, %v1462
        %v1502 = vpack.c.b16 %v1465, %v1464
        %v1503 = vpack.c.b16 %v1467, %v1466
        %v1504 = vpack.c.b16 %v1469, %v1468
        %v1505 = vpack.c.b16 %v1471, %v1470
        %v1506 = vpack.c.b16 %v1473, %v1472
        %v1507 = vpack.c.b16 %v1475, %v1474
        %v1508 = vpack.c.b16 %v1477, %v1476
        %v1509 = vpack.c.b16 %v1479, %v1478
        %v1510 = vpack.c.b16 %v1481, %v1480
        %v1511 = vpack.c.b16 %v1483, %v1482
        %v1512 = vpack.c.b16 %v1485, %v1484
        %v1513 = vpack.c.b16 %v1487, %v1486
        %v1514 = vpack.c.b16 %v1489, %v1488
        %v1515 = vpack.c.b16 %v1491, %v1490
        %1540 = vmatprep.subr.bf16.mxu0 0
        %1541 = vmatpush1.bf16.msra.mxu0 %v1492
        %1542 = vmatprep.subr.bf16.mxu0 0
        %1543 = vmatpush1.bf16.msra.mxu0 %v1493
        %1544 = vmatprep.subr.bf16.mxu0 0
        %1545 = vmatpush1.bf16.msra.mxu0 %v1494
        %1546 = vmatprep.subr.bf16.mxu0 0
        %1547 = vmatpush1.bf16.msra.mxu0 %v1495
        %1548 = vmatprep.subr.bf16.mxu0 0
        %1549 = vmatpush1.bf16.msra.mxu0 %v1496
        %1550 = vmatprep.subr.bf16.mxu0 0
        %1551 = vmatpush1.bf16.msra.mxu0 %v1497
        %1552 = vmatprep.subr.bf16.mxu0 0
        %1553 = vmatpush1.bf16.msra.mxu0 %v1498
        %1554 = vmatprep.subr.bf16.mxu0 0
        %1555 = vmatpush1.bf16.msra.mxu0 %v1499
        %1556 = vmatprep.subr.bf16.mxu0 0
        %1557 = vmatpush1.bf16.msra.mxu0 %v1500
        %1558 = vmatprep.subr.bf16.mxu0 0
        %1559 = vmatpush1.bf16.msra.mxu0 %v1501
        %1560 = vmatprep.subr.bf16.mxu0 0
        %1561 = vmatpush1.bf16.msra.mxu0 %v1502
        %1562 = vmatprep.subr.bf16.mxu0 0
        %1563 = vmatpush1.bf16.msra.mxu0 %v1503
        %1564 = vmatprep.subr.bf16.mxu0 0
        %1565 = vmatpush1.bf16.msra.mxu0 %v1504
        %1566 = vmatprep.subr.bf16.mxu0 0
        %1567 = vmatpush1.bf16.msra.mxu0 %v1505
        %1568 = vmatprep.subr.bf16.mxu0 0
        %1569 = vmatpush1.bf16.msra.mxu0 %v1506
        %1570 = vmatprep.subr.bf16.mxu0 0
        %1571 = vmatpush1.bf16.msra.mxu0 %v1507
        %1572 = vmatprep.mubr.bf16.mxu0 %v1337
        %1573 = vmatmul.mubr.bf16.gmra.mrb[0].mxu0 %v1336
        %v1574 = vpop.f32.mrb[0].mxu0
        %v1575 = vadd.f32 %v1394, %v1574
        %v1576 = vpop.f32.mrb[0].mxu0
        %v1577 = vpop.f32.mrb[0].mxu0
        %v1578 = vadd.f32 %v1394, %v1577
        %v1579 = vpop.f32.mrb[0].mxu0
        %1580 = vdwg.mxu0
        %1581 = vmatprep.subr.bf16.mxu0 0
        %1582 = vmatpush1.bf16.msra.mxu0 %v1508
        %1583 = vmatprep.subr.bf16.mxu0 0
        %1584 = vmatpush1.bf16.msra.mxu0 %v1509
        %1585 = vmatprep.subr.bf16.mxu0 0
        %1586 = vmatpush1.bf16.msra.mxu0 %v1510
        %1587 = vmatprep.subr.bf16.mxu0 0
        %1588 = vmatpush1.bf16.msra.mxu0 %v1511
        %1589 = vmatprep.subr.bf16.mxu0 0
        %1590 = vmatpush1.bf16.msra.mxu0 %v1512
        %1591 = vmatprep.subr.bf16.mxu0 0
        %1592 = vmatpush1.bf16.msra.mxu0 %v1513
        %1593 = vmatprep.subr.bf16.mxu0 0
        %1594 = vmatpush1.bf16.msra.mxu0 %v1514
        %1595 = vmatprep.subr.bf16.mxu0 0
        %1596 = vmatpush1.bf16.msra.mxu0 %v1515
        %1597 = vmatprep.subr.bf16.mxu0 0
        %1598 = vmatpush1.bf16.msra.mxu0 0
        %1599 = vmatprep.subr.bf16.mxu0 0
        %1600 = vmatpush1.bf16.msra.mxu0 0
        %1601 = vmatprep.subr.bf16.mxu0 0
        %1602 = vmatpush1.bf16.msra.mxu0 0
        %1603 = vmatprep.subr.bf16.mxu0 0
        %1604 = vmatpush1.bf16.msra.mxu0 0
        %1605 = vmatprep.subr.bf16.mxu0 0
        %1606 = vmatpush1.bf16.msra.mxu0 0
        %1607 = vmatprep.subr.bf16.mxu0 0
        %1608 = vmatpush1.bf16.msra.mxu0 0
        %1609 = vmatprep.subr.bf16.mxu0 0
        %1610 = vmatpush1.bf16.msra.mxu0 0
        %1611 = vmatprep.subr.bf16.mxu0 0
        %1612 = vmatpush1.bf16.msra.mxu0 0
        %1613 = vmatprep.mubr.bf16.mxu0 0
        %1614 = vmatmul.mubr.bf16.gmra.mrb[0].mxu0 %v1338
        %v1615 = vpop.f32.mrb[0].mxu0
        %v1616 = vadd.f32 %v1575, %v1615
        %v1617 = vpop.f32.mrb[0].mxu0
        %v1618 = vpop.f32.mrb[0].mxu0
        %v1619 = vadd.f32 %v1578, %v1618
        %v1620 = vpop.f32.mrb[0].mxu0
        %1621 = vdwg.mxu0
        %v1622 = vmax.f32 %v1616, 0.0
        %v1623 = vmax.f32 %v1619, 0.0
        %1624 = vst [vmem:[#allocation2 + $0x8] sm:$0xff] %v1622
        %1625 = vst [vmem:[#allocation2 + $0x20] sm:$0xff] %v1623
        %v1628 = vrot.slane %v1622, 7
        %v1629 = vrot.slane %v1623, 7
        %v1630 = vsel %vm690, %v1628, %v1629
        %1633 = vst [vmem:[#allocation2] sm:$0xfe] %v1628
        %1634 = vst [vmem:[#allocation2 + $0x18] sm:$0xff] %v1630
        %v1635 = vrot.slane %v1622, 1
        %v1636 = vrot.slane %v1623, 1
        %v1637 = vsel %vm698, %v1635, %v1636
        %1640 = vst [vmem:[#allocation2 + $0x10] sm:$0xff] %v1637
        %1641 = vst [vmem:[#allocation2 + $0x28] sm:$0x7f] %v1636
        %v1642 = vld [vmem:[#allocation2] sm:$0xff]
        %v1643 = vld [vmem:[#allocation2 + $0x8] sm:$0xff]
        %v1644 = vld [vmem:[#allocation2 + $0x10] sm:$0xff]
        %v1645 = vld [vmem:[#allocation2 + $0x18] sm:$0xff]
        %v1646 = vld [vmem:[#allocation2 + $0x20] sm:$0xff]
        %v1647 = vld [vmem:[#allocation2 + $0x28] sm:$0xff]
        %v1648 = vpack.c.bf16 %v1645, %v1642
        %v1649 = vpack.c.bf16 %v1646, %v1643
        %v1650 = vpack.c.bf16 %v1647, %v1644
        %s1651 = scalar_lea.vmem [#allocation9], 576
        %v1652 = vld [vmem:[%s1651] sm:$0xf]
        %v1653 = vld [vmem:[%s1651 + $0x4] sm:$0xf]
        %v1654 = vld [vmem:[%s1651 + $0x8] sm:$0xf]
        %v1655 = vld [vmem:[%s1651 + $0xc] sm:$0xf]
        %v1656 = vld [vmem:[%s1651 + $0x10] sm:$0xf]
        %v1657 = vld [vmem:[%s1651 + $0x14] sm:$0xf]
        %v1658 = vld [vmem:[%s1651 + $0x18] sm:$0xf]
        %v1659 = vld [vmem:[%s1651 + $0x1c] sm:$0xf]
        %v1660 = vld [vmem:[%s1651 + $0x20] sm:$0xf]
        %v1661 = vld [vmem:[%s1651 + $0x24] sm:$0xf]
        %v1662 = vld [vmem:[%s1651 + $0x28] sm:$0xf]
        %v1663 = vld [vmem:[%s1651 + $0x2c] sm:$0xf]
        %v1664 = vld [vmem:[%s1651 + $0x30] sm:$0xf]
        %v1665 = vld [vmem:[%s1651 + $0x34] sm:$0xf]
        %v1666 = vld [vmem:[%s1651 + $0x38] sm:$0xf]
        %v1667 = vld [vmem:[%s1651 + $0x3c] sm:$0xf]
        %v1668 = vld [vmem:[%s1651 + $0x40] sm:$0xf]
        %v1669 = vld [vmem:[%s1651 + $0x44] sm:$0xf]
        %v1670 = vld [vmem:[%s1651 + $0x48] sm:$0xf]
        %v1671 = vld [vmem:[%s1651 + $0x4c] sm:$0xf]
        %v1672 = vld [vmem:[%s1651 + $0x50] sm:$0xf]
        %v1673 = vld [vmem:[%s1651 + $0x54] sm:$0xf]
        %v1674 = vld [vmem:[%s1651 + $0x58] sm:$0xf]
        %v1675 = vld [vmem:[%s1651 + $0x5c] sm:$0xf]
        %v1676 = vld [vmem:[%s1651 + $0x60] sm:$0xf]
        %v1677 = vld [vmem:[%s1651 + $0x64] sm:$0xf]
        %v1678 = vld [vmem:[%s1651 + $0x68] sm:$0xf]
        %v1679 = vld [vmem:[%s1651 + $0x6c] sm:$0xf]
        %v1680 = vld [vmem:[%s1651 + $0x70] sm:$0xf]
        %v1681 = vld [vmem:[%s1651 + $0x74] sm:$0xf]
        %v1682 = vld [vmem:[%s1651 + $0x78] sm:$0xf]
        %v1683 = vld [vmem:[%s1651 + $0x7c] sm:$0xf]
        %v1684 = vld [vmem:[%s1651 + $0x80] sm:$0xf]
        %v1685 = vld [vmem:[%s1651 + $0x84] sm:$0xf]
        %v1686 = vld [vmem:[%s1651 + $0x88] sm:$0xf]
        %v1687 = vld [vmem:[%s1651 + $0x8c] sm:$0xf]
        %v1688 = vld [vmem:[%s1651 + $0x90] sm:$0xf]
        %v1689 = vld [vmem:[%s1651 + $0x94] sm:$0xf]
        %v1690 = vld [vmem:[%s1651 + $0x98] sm:$0xf]
        %v1691 = vld [vmem:[%s1651 + $0x9c] sm:$0xf]
        %v1692 = vld [vmem:[%s1651 + $0xa0] sm:$0xf]
        %v1693 = vld [vmem:[%s1651 + $0xa4] sm:$0xf]
        %v1694 = vld [vmem:[%s1651 + $0xa8] sm:$0xf]
        %v1695 = vld [vmem:[%s1651 + $0xac] sm:$0xf]
        %v1696 = vld [vmem:[%s1651 + $0xb0] sm:$0xf]
        %v1697 = vld [vmem:[%s1651 + $0xb4] sm:$0xf]
        %v1698 = vld [vmem:[%s1651 + $0xb8] sm:$0xf]
        %v1699 = vld [vmem:[%s1651 + $0xbc] sm:$0xf]
        %s1700 = scalar_lea.vmem %s2, 3
        %v1701 = vld [vmem:[%s1700] sm:$0x1]
        %v1703 = vlaneseq
        %v1704 = vshrl.u32 %v1703, 7
        %v1705 = vsub.s32 0, %v1704
        %v1706 = vrot.slane %v1701, %v1705
        %v1756 = vunpack.c.l.b16 %v1652
        %v1757 = vunpack.c.l.b16 %v1653
        %v1758 = vunpack.c.l.b16 %v1654
        %v1759 = vunpack.c.l.b16 %v1655
        %v1760 = vunpack.c.l.b16 %v1656
        %v1761 = vunpack.c.l.b16 %v1657
        %v1762 = vunpack.c.l.b16 %v1658
        %v1763 = vunpack.c.l.b16 %v1659
        %v1764 = vunpack.c.l.b16 %v1660
        %v1765 = vunpack.c.l.b16 %v1661
        %v1766 = vunpack.c.l.b16 %v1662
        %v1767 = vunpack.c.l.b16 %v1663
        %v1768 = vunpack.c.l.b16 %v1664
        %v1769 = vunpack.c.l.b16 %v1665
        %v1770 = vunpack.c.l.b16 %v1666
        %v1771 = vunpack.c.l.b16 %v1667
        %v1772 = vunpack.c.l.b16 %v1668
        %v1773 = vunpack.c.l.b16 %v1669
        %v1774 = vunpack.c.l.b16 %v1670
        %v1775 = vunpack.c.l.b16 %v1671
        %v1776 = vunpack.c.l.b16 %v1672
        %v1777 = vunpack.c.l.b16 %v1673
        %v1778 = vunpack.c.l.b16 %v1674
        %v1779 = vunpack.c.l.b16 %v1675
        %v1780 = vunpack.c.l.b16 %v1676
        %v1781 = vunpack.c.l.b16 %v1677
        %v1782 = vunpack.c.l.b16 %v1678
        %v1783 = vunpack.c.l.b16 %v1679
        %v1784 = vunpack.c.l.b16 %v1680
        %v1785 = vunpack.c.l.b16 %v1681
        %v1786 = vunpack.c.l.b16 %v1682
        %v1787 = vunpack.c.l.b16 %v1683
        %v1788 = vunpack.c.l.b16 %v1684
        %v1789 = vunpack.c.l.b16 %v1685
        %v1790 = vunpack.c.l.b16 %v1686
        %v1791 = vunpack.c.l.b16 %v1687
        %v1792 = vunpack.c.l.b16 %v1688
        %v1793 = vunpack.c.l.b16 %v1689
        %v1794 = vunpack.c.l.b16 %v1690
        %v1795 = vunpack.c.l.b16 %v1691
        %v1796 = vunpack.c.l.b16 %v1692
        %v1797 = vunpack.c.l.b16 %v1693
        %v1798 = vunpack.c.l.b16 %v1694
        %v1799 = vunpack.c.l.b16 %v1695
        %v1800 = vunpack.c.l.b16 %v1696
        %v1801 = vunpack.c.l.b16 %v1697
        %v1802 = vunpack.c.l.b16 %v1698
        %v1803 = vunpack.c.l.b16 %v1699
        %v1804 = vpack.c.b16 %v1757, %v1756
        %v1805 = vpack.c.b16 %v1759, %v1758
        %v1806 = vpack.c.b16 %v1761, %v1760
        %v1807 = vpack.c.b16 %v1763, %v1762
        %v1808 = vpack.c.b16 %v1765, %v1764
        %v1809 = vpack.c.b16 %v1767, %v1766
        %v1810 = vpack.c.b16 %v1769, %v1768
        %v1811 = vpack.c.b16 %v1771, %v1770
        %v1812 = vpack.c.b16 %v1773, %v1772
        %v1813 = vpack.c.b16 %v1775, %v1774
        %v1814 = vpack.c.b16 %v1777, %v1776
        %v1815 = vpack.c.b16 %v1779, %v1778
        %v1816 = vpack.c.b16 %v1781, %v1780
        %v1817 = vpack.c.b16 %v1783, %v1782
        %v1818 = vpack.c.b16 %v1785, %v1784
        %v1819 = vpack.c.b16 %v1787, %v1786
        %v1820 = vpack.c.b16 %v1789, %v1788
        %v1821 = vpack.c.b16 %v1791, %v1790
        %v1822 = vpack.c.b16 %v1793, %v1792
        %v1823 = vpack.c.b16 %v1795, %v1794
        %v1824 = vpack.c.b16 %v1797, %v1796
        %v1825 = vpack.c.b16 %v1799, %v1798
        %v1826 = vpack.c.b16 %v1801, %v1800
        %v1827 = vpack.c.b16 %v1803, %v1802
        %1852 = vmatprep.subr.bf16.mxu0 0
        %1853 = vmatpush1.bf16.msra.mxu0 %v1804
        %1854 = vmatprep.subr.bf16.mxu0 0
        %1855 = vmatpush1.bf16.msra.mxu0 %v1805
        %1856 = vmatprep.subr.bf16.mxu0 0
        %1857 = vmatpush1.bf16.msra.mxu0 %v1806
        %1858 = vmatprep.subr.bf16.mxu0 0
        %1859 = vmatpush1.bf16.msra.mxu0 %v1807
        %1860 = vmatprep.subr.bf16.mxu0 0
        %1861 = vmatpush1.bf16.msra.mxu0 %v1808
        %1862 = vmatprep.subr.bf16.mxu0 0
        %1863 = vmatpush1.bf16.msra.mxu0 %v1809
        %1864 = vmatprep.subr.bf16.mxu0 0
        %1865 = vmatpush1.bf16.msra.mxu0 %v1810
        %1866 = vmatprep.subr.bf16.mxu0 0
        %1867 = vmatpush1.bf16.msra.mxu0 %v1811
        %1868 = vmatprep.subr.bf16.mxu0 0
        %1869 = vmatpush1.bf16.msra.mxu0 %v1812
        %1870 = vmatprep.subr.bf16.mxu0 0
        %1871 = vmatpush1.bf16.msra.mxu0 %v1813
        %1872 = vmatprep.subr.bf16.mxu0 0
        %1873 = vmatpush1.bf16.msra.mxu0 %v1814
        %1874 = vmatprep.subr.bf16.mxu0 0
        %1875 = vmatpush1.bf16.msra.mxu0 %v1815
        %1876 = vmatprep.subr.bf16.mxu0 0
        %1877 = vmatpush1.bf16.msra.mxu0 %v1816
        %1878 = vmatprep.subr.bf16.mxu0 0
        %1879 = vmatpush1.bf16.msra.mxu0 %v1817
        %1880 = vmatprep.subr.bf16.mxu0 0
        %1881 = vmatpush1.bf16.msra.mxu0 %v1818
        %1882 = vmatprep.subr.bf16.mxu0 0
        %1883 = vmatpush1.bf16.msra.mxu0 %v1819
        %1884 = vmatprep.mubr.bf16.mxu0 %v1649
        %1885 = vmatmul.mubr.bf16.gmra.mrb[0].mxu0 %v1648
        %v1886 = vpop.f32.mrb[0].mxu0
        %v1887 = vadd.f32 %v1706, %v1886
        %v1888 = vpop.f32.mrb[0].mxu0
        %v1889 = vpop.f32.mrb[0].mxu0
        %v1890 = vadd.f32 %v1706, %v1889
        %v1891 = vpop.f32.mrb[0].mxu0
        %1892 = vdwg.mxu0
        %1893 = vmatprep.subr.bf16.mxu0 0
        %1894 = vmatpush1.bf16.msra.mxu0 %v1820
        %1895 = vmatprep.subr.bf16.mxu0 0
        %1896 = vmatpush1.bf16.msra.mxu0 %v1821
        %1897 = vmatprep.subr.bf16.mxu0 0
        %1898 = vmatpush1.bf16.msra.mxu0 %v1822
        %1899 = vmatprep.subr.bf16.mxu0 0
        %1900 = vmatpush1.bf16.msra.mxu0 %v1823
        %1901 = vmatprep.subr.bf16.mxu0 0
        %1902 = vmatpush1.bf16.msra.mxu0 %v1824
        %1903 = vmatprep.subr.bf16.mxu0 0
        %1904 = vmatpush1.bf16.msra.mxu0 %v1825
        %1905 = vmatprep.subr.bf16.mxu0 0
        %1906 = vmatpush1.bf16.msra.mxu0 %v1826
        %1907 = vmatprep.subr.bf16.mxu0 0
        %1908 = vmatpush1.bf16.msra.mxu0 %v1827
        %1909 = vmatprep.subr.bf16.mxu0 0
        %1910 = vmatpush1.bf16.msra.mxu0 0
        %1911 = vmatprep.subr.bf16.mxu0 0
        %1912 = vmatpush1.bf16.msra.mxu0 0
        %1913 = vmatprep.subr.bf16.mxu0 0
        %1914 = vmatpush1.bf16.msra.mxu0 0
        %1915 = vmatprep.subr.bf16.mxu0 0
        %1916 = vmatpush1.bf16.msra.mxu0 0
        %1917 = vmatprep.subr.bf16.mxu0 0
        %1918 = vmatpush1.bf16.msra.mxu0 0
        %1919 = vmatprep.subr.bf16.mxu0 0
        %1920 = vmatpush1.bf16.msra.mxu0 0
        %1921 = vmatprep.subr.bf16.mxu0 0
        %1922 = vmatpush1.bf16.msra.mxu0 0
        %1923 = vmatprep.subr.bf16.mxu0 0
        %1924 = vmatpush1.bf16.msra.mxu0 0
        %1925 = vmatprep.mubr.bf16.mxu0 0
        %1926 = vmatmul.mubr.bf16.gmra.mrb[0].mxu0 %v1650
        %v1927 = vpop.f32.mrb[0].mxu0
        %v1928 = vadd.f32 %v1887, %v1927
        %v1929 = vpop.f32.mrb[0].mxu0
        %v1930 = vpop.f32.mrb[0].mxu0
        %v1931 = vadd.f32 %v1890, %v1930
        %v1932 = vpop.f32.mrb[0].mxu0
        %1933 = vdwg.mxu0
        %v1934 = vadd.f32 %v1928, %v1310
        %v1935 = vadd.f32 %v1931, %v1311
        %v1936 = vmax.f32 %v1934, 0.0
        %v1937 = vmax.f32 %v1935, 0.0
        %1938 = vst [vmem:[#allocation2 + $0x8] sm:$0xff] %v684
        %1939 = vst [vmem:[#allocation2 + $0x20] sm:$0xff] %v685
        %1940 = vst [vmem:[#allocation2] sm:$0xfe] %v691
        %1941 = vst [vmem:[#allocation2 + $0x18] sm:$0xff] %v693
        %1942 = vst [vmem:[#allocation2 + $0x10] sm:$0xff] %v701
        %1943 = vst [vmem:[#allocation2 + $0x28] sm:$0x7f] %v700
        %v1944 = vld [vmem:[#allocation2] sm:$0xff]
        %v1945 = vld [vmem:[#allocation2 + $0x8] sm:$0xff]
        %v1946 = vld [vmem:[#allocation2 + $0x10] sm:$0xff]
        %v1947 = vld [vmem:[#allocation2 + $0x18] sm:$0xff]
        %v1948 = vld [vmem:[#allocation2 + $0x20] sm:$0xff]
        %v1949 = vld [vmem:[#allocation2 + $0x28] sm:$0xff]
        %v1950 = vpack.c.bf16 %v1947, %v1944
        %v1951 = vpack.c.bf16 %v1948, %v1945
        %v1952 = vpack.c.bf16 %v1949, %v1946
        %s1953 = scalar_lea.vmem [#allocation9], 768
        %v1954 = vld [vmem:[%s1953] sm:$0xf]
        %v1955 = vld [vmem:[%s1953 + $0x4] sm:$0xf]
        %v1956 = vld [vmem:[%s1953 + $0x8] sm:$0xf]
        %v1957 = vld [vmem:[%s1953 + $0xc] sm:$0xf]
        %v1958 = vld [vmem:[%s1953 + $0x10] sm:$0xf]
        %v1959 = vld [vmem:[%s1953 + $0x14] sm:$0xf]
        %v1960 = vld [vmem:[%s1953 + $0x18] sm:$0xf]
        %v1961 = vld [vmem:[%s1953 + $0x1c] sm:$0xf]
        %v1962 = vld [vmem:[%s1953 + $0x20] sm:$0xf]
        %v1963 = vld [vmem:[%s1953 + $0x24] sm:$0xf]
        %v1964 = vld [vmem:[%s1953 + $0x28] sm:$0xf]
        %v1965 = vld [vmem:[%s1953 + $0x2c] sm:$0xf]
        %v1966 = vld [vmem:[%s1953 + $0x30] sm:$0xf]
        %v1967 = vld [vmem:[%s1953 + $0x34] sm:$0xf]
        %v1968 = vld [vmem:[%s1953 + $0x38] sm:$0xf]
        %v1969 = vld [vmem:[%s1953 + $0x3c] sm:$0xf]
        %v1970 = vld [vmem:[%s1953 + $0x40] sm:$0xf]
        %v1971 = vld [vmem:[%s1953 + $0x44] sm:$0xf]
        %v1972 = vld [vmem:[%s1953 + $0x48] sm:$0xf]
        %v1973 = vld [vmem:[%s1953 + $0x4c] sm:$0xf]
        %v1974 = vld [vmem:[%s1953 + $0x50] sm:$0xf]
        %v1975 = vld [vmem:[%s1953 + $0x54] sm:$0xf]
        %v1976 = vld [vmem:[%s1953 + $0x58] sm:$0xf]
        %v1977 = vld [vmem:[%s1953 + $0x5c] sm:$0xf]
        %v1978 = vld [vmem:[%s1953 + $0x60] sm:$0xf]
        %v1979 = vld [vmem:[%s1953 + $0x64] sm:$0xf]
        %v1980 = vld [vmem:[%s1953 + $0x68] sm:$0xf]
        %v1981 = vld [vmem:[%s1953 + $0x6c] sm:$0xf]
        %v1982 = vld [vmem:[%s1953 + $0x70] sm:$0xf]
        %v1983 = vld [vmem:[%s1953 + $0x74] sm:$0xf]
        %v1984 = vld [vmem:[%s1953 + $0x78] sm:$0xf]
        %v1985 = vld [vmem:[%s1953 + $0x7c] sm:$0xf]
        %v1986 = vld [vmem:[%s1953 + $0x80] sm:$0xf]
        %v1987 = vld [vmem:[%s1953 + $0x84] sm:$0xf]
        %v1988 = vld [vmem:[%s1953 + $0x88] sm:$0xf]
        %v1989 = vld [vmem:[%s1953 + $0x8c] sm:$0xf]
        %v1990 = vld [vmem:[%s1953 + $0x90] sm:$0xf]
        %v1991 = vld [vmem:[%s1953 + $0x94] sm:$0xf]
        %v1992 = vld [vmem:[%s1953 + $0x98] sm:$0xf]
        %v1993 = vld [vmem:[%s1953 + $0x9c] sm:$0xf]
        %v1994 = vld [vmem:[%s1953 + $0xa0] sm:$0xf]
        %v1995 = vld [vmem:[%s1953 + $0xa4] sm:$0xf]
        %v1996 = vld [vmem:[%s1953 + $0xa8] sm:$0xf]
        %v1997 = vld [vmem:[%s1953 + $0xac] sm:$0xf]
        %v1998 = vld [vmem:[%s1953 + $0xb0] sm:$0xf]
        %v1999 = vld [vmem:[%s1953 + $0xb4] sm:$0xf]
        %v2000 = vld [vmem:[%s1953 + $0xb8] sm:$0xf]
        %v2001 = vld [vmem:[%s1953 + $0xbc] sm:$0xf]
        %s2002 = scalar_lea.vmem %s2, 4
        %v2003 = vld [vmem:[%s2002] sm:$0x1]
        %v2005 = vlaneseq
        %v2006 = vshrl.u32 %v2005, 7
        %v2007 = vsub.s32 0, %v2006
        %v2008 = vrot.slane %v2003, %v2007
        %v2058 = vunpack.c.l.b16 %v1954
        %v2059 = vunpack.c.l.b16 %v1955
        %v2060 = vunpack.c.l.b16 %v1956
        %v2061 = vunpack.c.l.b16 %v1957
        %v2062 = vunpack.c.l.b16 %v1958
        %v2063 = vunpack.c.l.b16 %v1959
        %v2064 = vunpack.c.l.b16 %v1960
        %v2065 = vunpack.c.l.b16 %v1961
        %v2066 = vunpack.c.l.b16 %v1962
        %v2067 = vunpack.c.l.b16 %v1963
        %v2068 = vunpack.c.l.b16 %v1964
        %v2069 = vunpack.c.l.b16 %v1965
        %v2070 = vunpack.c.l.b16 %v1966
        %v2071 = vunpack.c.l.b16 %v1967
        %v2072 = vunpack.c.l.b16 %v1968
        %v2073 = vunpack.c.l.b16 %v1969
        %v2074 = vunpack.c.l.b16 %v1970
        %v2075 = vunpack.c.l.b16 %v1971
        %v2076 = vunpack.c.l.b16 %v1972
        %v2077 = vunpack.c.l.b16 %v1973
        %v2078 = vunpack.c.l.b16 %v1974
        %v2079 = vunpack.c.l.b16 %v1975
        %v2080 = vunpack.c.l.b16 %v1976
        %v2081 = vunpack.c.l.b16 %v1977
        %v2082 = vunpack.c.l.b16 %v1978
        %v2083 = vunpack.c.l.b16 %v1979
        %v2084 = vunpack.c.l.b16 %v1980
        %v2085 = vunpack.c.l.b16 %v1981
        %v2086 = vunpack.c.l.b16 %v1982
        %v2087 = vunpack.c.l.b16 %v1983
        %v2088 = vunpack.c.l.b16 %v1984
        %v2089 = vunpack.c.l.b16 %v1985
        %v2090 = vunpack.c.l.b16 %v1986
        %v2091 = vunpack.c.l.b16 %v1987
        %v2092 = vunpack.c.l.b16 %v1988
        %v2093 = vunpack.c.l.b16 %v1989
        %v2094 = vunpack.c.l.b16 %v1990
        %v2095 = vunpack.c.l.b16 %v1991
        %v2096 = vunpack.c.l.b16 %v1992
        %v2097 = vunpack.c.l.b16 %v1993
        %v2098 = vunpack.c.l.b16 %v1994
        %v2099 = vunpack.c.l.b16 %v1995
        %v2100 = vunpack.c.l.b16 %v1996
        %v2101 = vunpack.c.l.b16 %v1997
        %v2102 = vunpack.c.l.b16 %v1998
        %v2103 = vunpack.c.l.b16 %v1999
        %v2104 = vunpack.c.l.b16 %v2000
        %v2105 = vunpack.c.l.b16 %v2001
        %v2106 = vpack.c.b16 %v2059, %v2058
        %v2107 = vpack.c.b16 %v2061, %v2060
        %v2108 = vpack.c.b16 %v2063, %v2062
        %v2109 = vpack.c.b16 %v2065, %v2064
        %v2110 = vpack.c.b16 %v2067, %v2066
        %v2111 = vpack.c.b16 %v2069, %v2068
        %v2112 = vpack.c.b16 %v2071, %v2070
        %v2113 = vpack.c.b16 %v2073, %v2072
        %v2114 = vpack.c.b16 %v2075, %v2074
        %v2115 = vpack.c.b16 %v2077, %v2076
        %v2116 = vpack.c.b16 %v2079, %v2078
        %v2117 = vpack.c.b16 %v2081, %v2080
        %v2118 = vpack.c.b16 %v2083, %v2082
        %v2119 = vpack.c.b16 %v2085, %v2084
        %v2120 = vpack.c.b16 %v2087, %v2086
        %v2121 = vpack.c.b16 %v2089, %v2088
        %v2122 = vpack.c.b16 %v2091, %v2090
        %v2123 = vpack.c.b16 %v2093, %v2092
        %v2124 = vpack.c.b16 %v2095, %v2094
        %v2125 = vpack.c.b16 %v2097, %v2096
        %v2126 = vpack.c.b16 %v2099, %v2098
        %v2127 = vpack.c.b16 %v2101, %v2100
        %v2128 = vpack.c.b16 %v2103, %v2102
        %v2129 = vpack.c.b16 %v2105, %v2104
        %2154 = vmatprep.subr.bf16.mxu0 0
        %2155 = vmatpush1.bf16.msra.mxu0 %v2106
        %2156 = vmatprep.subr.bf16.mxu0 0
        %2157 = vmatpush1.bf16.msra.mxu0 %v2107
        %2158 = vmatprep.subr.bf16.mxu0 0
        %2159 = vmatpush1.bf16.msra.mxu0 %v2108
        %2160 = vmatprep.subr.bf16.mxu0 0
        %2161 = vmatpush1.bf16.msra.mxu0 %v2109
        %2162 = vmatprep.subr.bf16.mxu0 0
        %2163 = vmatpush1.bf16.msra.mxu0 %v2110
        %2164 = vmatprep.subr.bf16.mxu0 0
        %2165 = vmatpush1.bf16.msra.mxu0 %v2111
        %2166 = vmatprep.subr.bf16.mxu0 0
        %2167 = vmatpush1.bf16.msra.mxu0 %v2112
        %2168 = vmatprep.subr.bf16.mxu0 0
        %2169 = vmatpush1.bf16.msra.mxu0 %v2113
        %2170 = vmatprep.subr.bf16.mxu0 0
        %2171 = vmatpush1.bf16.msra.mxu0 %v2114
        %2172 = vmatprep.subr.bf16.mxu0 0
        %2173 = vmatpush1.bf16.msra.mxu0 %v2115
        %2174 = vmatprep.subr.bf16.mxu0 0
        %2175 = vmatpush1.bf16.msra.mxu0 %v2116
        %2176 = vmatprep.subr.bf16.mxu0 0
        %2177 = vmatpush1.bf16.msra.mxu0 %v2117
        %2178 = vmatprep.subr.bf16.mxu0 0
        %2179 = vmatpush1.bf16.msra.mxu0 %v2118
        %2180 = vmatprep.subr.bf16.mxu0 0
        %2181 = vmatpush1.bf16.msra.mxu0 %v2119
        %2182 = vmatprep.subr.bf16.mxu0 0
        %2183 = vmatpush1.bf16.msra.mxu0 %v2120
        %2184 = vmatprep.subr.bf16.mxu0 0
        %2185 = vmatpush1.bf16.msra.mxu0 %v2121
        %2186 = vmatprep.mubr.bf16.mxu0 %v1951
        %2187 = vmatmul.mubr.bf16.gmra.mrb[0].mxu0 %v1950
        %v2188 = vpop.f32.mrb[0].mxu0
        %v2189 = vadd.f32 %v2008, %v2188
        %v2190 = vpop.f32.mrb[0].mxu0
        %v2191 = vpop.f32.mrb[0].mxu0
        %v2192 = vadd.f32 %v2008, %v2191
        %v2193 = vpop.f32.mrb[0].mxu0
        %2194 = vdwg.mxu0
        %2195 = vmatprep.subr.bf16.mxu0 0
        %2196 = vmatpush1.bf16.msra.mxu0 %v2122
        %2197 = vmatprep.subr.bf16.mxu0 0
        %2198 = vmatpush1.bf16.msra.mxu0 %v2123
        %2199 = vmatprep.subr.bf16.mxu0 0
        %2200 = vmatpush1.bf16.msra.mxu0 %v2124
        %2201 = vmatprep.subr.bf16.mxu0 0
        %2202 = vmatpush1.bf16.msra.mxu0 %v2125
        %2203 = vmatprep.subr.bf16.mxu0 0
        %2204 = vmatpush1.bf16.msra.mxu0 %v2126
        %2205 = vmatprep.subr.bf16.mxu0 0
        %2206 = vmatpush1.bf16.msra.mxu0 %v2127
        %2207 = vmatprep.subr.bf16.mxu0 0
        %2208 = vmatpush1.bf16.msra.mxu0 %v2128
        %2209 = vmatprep.subr.bf16.mxu0 0
        %2210 = vmatpush1.bf16.msra.mxu0 %v2129
        %2211 = vmatprep.subr.bf16.mxu0 0
        %2212 = vmatpush1.bf16.msra.mxu0 0
        %2213 = vmatprep.subr.bf16.mxu0 0
        %2214 = vmatpush1.bf16.msra.mxu0 0
        %2215 = vmatprep.subr.bf16.mxu0 0
        %2216 = vmatpush1.bf16.msra.mxu0 0
        %2217 = vmatprep.subr.bf16.mxu0 0
        %2218 = vmatpush1.bf16.msra.mxu0 0
        %2219 = vmatprep.subr.bf16.mxu0 0
        %2220 = vmatpush1.bf16.msra.mxu0 0
        %2221 = vmatprep.subr.bf16.mxu0 0
        %2222 = vmatpush1.bf16.msra.mxu0 0
        %2223 = vmatprep.subr.bf16.mxu0 0
        %2224 = vmatpush1.bf16.msra.mxu0 0
        %2225 = vmatprep.subr.bf16.mxu0 0
        %2226 = vmatpush1.bf16.msra.mxu0 0
        %2227 = vmatprep.mubr.bf16.mxu0 0
        %2228 = vmatmul.mubr.bf16.gmra.mrb[0].mxu0 %v1952
        %v2229 = vpop.f32.mrb[0].mxu0
        %v2230 = vadd.f32 %v2189, %v2229
        %v2231 = vpop.f32.mrb[0].mxu0
        %v2232 = vpop.f32.mrb[0].mxu0
        %v2233 = vadd.f32 %v2192, %v2232
        %v2234 = vpop.f32.mrb[0].mxu0
        %2235 = vdwg.mxu0
        %v2236 = vmax.f32 %v2230, 0.0
        %v2237 = vmax.f32 %v2233, 0.0
        %2238 = vst [vmem:[#allocation2 + $0x8] sm:$0xff] %v2236
        %2239 = vst [vmem:[#allocation2 + $0x20] sm:$0xff] %v2237
        %v2242 = vrot.slane %v2236, 7
        %v2243 = vrot.slane %v2237, 7
        %v2244 = vsel %vm690, %v2242, %v2243
        %2247 = vst [vmem:[#allocation2] sm:$0xfe] %v2242
        %2248 = vst [vmem:[#allocation2 + $0x18] sm:$0xff] %v2244
        %v2249 = vrot.slane %v2236, 1
        %v2250 = vrot.slane %v2237, 1
        %v2251 = vsel %vm698, %v2249, %v2250
        %2254 = vst [vmem:[#allocation2 + $0x10] sm:$0xff] %v2251
        %2255 = vst [vmem:[#allocation2 + $0x28] sm:$0x7f] %v2250
        %v2256 = vld [vmem:[#allocation2] sm:$0xff]
        %v2257 = vld [vmem:[#allocation2 + $0x8] sm:$0xff]
        %v2258 = vld [vmem:[#allocation2 + $0x10] sm:$0xff]
        %v2259 = vld [vmem:[#allocation2 + $0x18] sm:$0xff]
        %v2260 = vld [vmem:[#allocation2 + $0x20] sm:$0xff]
        %v2261 = vld [vmem:[#allocation2 + $0x28] sm:$0xff]
        %v2262 = vpack.c.bf16 %v2259, %v2256
        %v2263 = vpack.c.bf16 %v2260, %v2257
        %v2264 = vpack.c.bf16 %v2261, %v2258
        %s2265 = scalar_lea.vmem [#allocation9], 960
        %v2266 = vld [vmem:[%s2265] sm:$0xf]
        %v2267 = vld [vmem:[%s2265 + $0x4] sm:$0xf]
        %v2268 = vld [vmem:[%s2265 + $0x8] sm:$0xf]
        %v2269 = vld [vmem:[%s2265 + $0xc] sm:$0xf]
        %v2270 = vld [vmem:[%s2265 + $0x10] sm:$0xf]
        %v2271 = vld [vmem:[%s2265 + $0x14] sm:$0xf]
        %v2272 = vld [vmem:[%s2265 + $0x18] sm:$0xf]
        %v2273 = vld [vmem:[%s2265 + $0x1c] sm:$0xf]
        %v2274 = vld [vmem:[%s2265 + $0x20] sm:$0xf]
        %v2275 = vld [vmem:[%s2265 + $0x24] sm:$0xf]
        %v2276 = vld [vmem:[%s2265 + $0x28] sm:$0xf]
        %v2277 = vld [vmem:[%s2265 + $0x2c] sm:$0xf]
        %v2278 = vld [vmem:[%s2265 + $0x30] sm:$0xf]
        %v2279 = vld [vmem:[%s2265 + $0x34] sm:$0xf]
        %v2280 = vld [vmem:[%s2265 + $0x38] sm:$0xf]
        %v2281 = vld [vmem:[%s2265 + $0x3c] sm:$0xf]
        %v2282 = vld [vmem:[%s2265 + $0x40] sm:$0xf]
        %v2283 = vld [vmem:[%s2265 + $0x44] sm:$0xf]
        %v2284 = vld [vmem:[%s2265 + $0x48] sm:$0xf]
        %v2285 = vld [vmem:[%s2265 + $0x4c] sm:$0xf]
        %v2286 = vld [vmem:[%s2265 + $0x50] sm:$0xf]
        %v2287 = vld [vmem:[%s2265 + $0x54] sm:$0xf]
        %v2288 = vld [vmem:[%s2265 + $0x58] sm:$0xf]
        %v2289 = vld [vmem:[%s2265 + $0x5c] sm:$0xf]
        %v2290 = vld [vmem:[%s2265 + $0x60] sm:$0xf]
        %v2291 = vld [vmem:[%s2265 + $0x64] sm:$0xf]
        %v2292 = vld [vmem:[%s2265 + $0x68] sm:$0xf]
        %v2293 = vld [vmem:[%s2265 + $0x6c] sm:$0xf]
        %v2294 = vld [vmem:[%s2265 + $0x70] sm:$0xf]
        %v2295 = vld [vmem:[%s2265 + $0x74] sm:$0xf]
        %v2296 = vld [vmem:[%s2265 + $0x78] sm:$0xf]
        %v2297 = vld [vmem:[%s2265 + $0x7c] sm:$0xf]
        %v2298 = vld [vmem:[%s2265 + $0x80] sm:$0xf]
        %v2299 = vld [vmem:[%s2265 + $0x84] sm:$0xf]
        %v2300 = vld [vmem:[%s2265 + $0x88] sm:$0xf]
        %v2301 = vld [vmem:[%s2265 + $0x8c] sm:$0xf]
        %v2302 = vld [vmem:[%s2265 + $0x90] sm:$0xf]
        %v2303 = vld [vmem:[%s2265 + $0x94] sm:$0xf]
        %v2304 = vld [vmem:[%s2265 + $0x98] sm:$0xf]
        %v2305 = vld [vmem:[%s2265 + $0x9c] sm:$0xf]
        %v2306 = vld [vmem:[%s2265 + $0xa0] sm:$0xf]
        %v2307 = vld [vmem:[%s2265 + $0xa4] sm:$0xf]
        %v2308 = vld [vmem:[%s2265 + $0xa8] sm:$0xf]
        %v2309 = vld [vmem:[%s2265 + $0xac] sm:$0xf]
        %v2310 = vld [vmem:[%s2265 + $0xb0] sm:$0xf]
        %v2311 = vld [vmem:[%s2265 + $0xb4] sm:$0xf]
        %v2312 = vld [vmem:[%s2265 + $0xb8] sm:$0xf]
        %v2313 = vld [vmem:[%s2265 + $0xbc] sm:$0xf]
        %s2314 = scalar_lea.vmem %s2, 5
        %v2315 = vld [vmem:[%s2314] sm:$0x1]
        %v2317 = vlaneseq
        %v2318 = vshrl.u32 %v2317, 7
        %v2319 = vsub.s32 0, %v2318
        %v2320 = vrot.slane %v2315, %v2319
        %v2370 = vunpack.c.l.b16 %v2266
        %v2371 = vunpack.c.l.b16 %v2267
        %v2372 = vunpack.c.l.b16 %v2268
        %v2373 = vunpack.c.l.b16 %v2269
        %v2374 = vunpack.c.l.b16 %v2270
        %v2375 = vunpack.c.l.b16 %v2271
        %v2376 = vunpack.c.l.b16 %v2272
        %v2377 = vunpack.c.l.b16 %v2273
        %v2378 = vunpack.c.l.b16 %v2274
        %v2379 = vunpack.c.l.b16 %v2275
        %v2380 = vunpack.c.l.b16 %v2276
        %v2381 = vunpack.c.l.b16 %v2277
        %v2382 = vunpack.c.l.b16 %v2278
        %v2383 = vunpack.c.l.b16 %v2279
        %v2384 = vunpack.c.l.b16 %v2280
        %v2385 = vunpack.c.l.b16 %v2281
        %v2386 = vunpack.c.l.b16 %v2282
        %v2387 = vunpack.c.l.b16 %v2283
        %v2388 = vunpack.c.l.b16 %v2284
        %v2389 = vunpack.c.l.b16 %v2285
        %v2390 = vunpack.c.l.b16 %v2286
        %v2391 = vunpack.c.l.b16 %v2287
        %v2392 = vunpack.c.l.b16 %v2288
        %v2393 = vunpack.c.l.b16 %v2289
        %v2394 = vunpack.c.l.b16 %v2290
        %v2395 = vunpack.c.l.b16 %v2291
        %v2396 = vunpack.c.l.b16 %v2292
        %v2397 = vunpack.c.l.b16 %v2293
        %v2398 = vunpack.c.l.b16 %v2294
        %v2399 = vunpack.c.l.b16 %v2295
        %v2400 = vunpack.c.l.b16 %v2296
        %v2401 = vunpack.c.l.b16 %v2297
        %v2402 = vunpack.c.l.b16 %v2298
        %v2403 = vunpack.c.l.b16 %v2299
        %v2404 = vunpack.c.l.b16 %v2300
        %v2405 = vunpack.c.l.b16 %v2301
        %v2406 = vunpack.c.l.b16 %v2302
        %v2407 = vunpack.c.l.b16 %v2303
        %v2408 = vunpack.c.l.b16 %v2304
        %v2409 = vunpack.c.l.b16 %v2305
        %v2410 = vunpack.c.l.b16 %v2306
        %v2411 = vunpack.c.l.b16 %v2307
        %v2412 = vunpack.c.l.b16 %v2308
        %v2413 = vunpack.c.l.b16 %v2309
        %v2414 = vunpack.c.l.b16 %v2310
        %v2415 = vunpack.c.l.b16 %v2311
        %v2416 = vunpack.c.l.b16 %v2312
        %v2417 = vunpack.c.l.b16 %v2313
        %v2418 = vpack.c.b16 %v2371, %v2370
        %v2419 = vpack.c.b16 %v2373, %v2372
        %v2420 = vpack.c.b16 %v2375, %v2374
        %v2421 = vpack.c.b16 %v2377, %v2376
        %v2422 = vpack.c.b16 %v2379, %v2378
        %v2423 = vpack.c.b16 %v2381, %v2380
        %v2424 = vpack.c.b16 %v2383, %v2382
        %v2425 = vpack.c.b16 %v2385, %v2384
        %v2426 = vpack.c.b16 %v2387, %v2386
        %v2427 = vpack.c.b16 %v2389, %v2388
        %v2428 = vpack.c.b16 %v2391, %v2390
        %v2429 = vpack.c.b16 %v2393, %v2392
        %v2430 = vpack.c.b16 %v2395, %v2394
        %v2431 = vpack.c.b16 %v2397, %v2396
        %v2432 = vpack.c.b16 %v2399, %v2398
        %v2433 = vpack.c.b16 %v2401, %v2400
        %v2434 = vpack.c.b16 %v2403, %v2402
        %v2435 = vpack.c.b16 %v2405, %v2404
        %v2436 = vpack.c.b16 %v2407, %v2406
        %v2437 = vpack.c.b16 %v2409, %v2408
        %v2438 = vpack.c.b16 %v2411, %v2410
        %v2439 = vpack.c.b16 %v2413, %v2412
        %v2440 = vpack.c.b16 %v2415, %v2414
        %v2441 = vpack.c.b16 %v2417, %v2416
        %2466 = vmatprep.subr.bf16.mxu0 0
        %2467 = vmatpush1.bf16.msra.mxu0 %v2418
        %2468 = vmatprep.subr.bf16.mxu0 0
        %2469 = vmatpush1.bf16.msra.mxu0 %v2419
        %2470 = vmatprep.subr.bf16.mxu0 0
        %2471 = vmatpush1.bf16.msra.mxu0 %v2420
        %2472 = vmatprep.subr.bf16.mxu0 0
        %2473 = vmatpush1.bf16.msra.mxu0 %v2421
        %2474 = vmatprep.subr.bf16.mxu0 0
        %2475 = vmatpush1.bf16.msra.mxu0 %v2422
        %2476 = vmatprep.subr.bf16.mxu0 0
        %2477 = vmatpush1.bf16.msra.mxu0 %v2423
        %2478 = vmatprep.subr.bf16.mxu0 0
        %2479 = vmatpush1.bf16.msra.mxu0 %v2424
        %2480 = vmatprep.subr.bf16.mxu0 0
        %2481 = vmatpush1.bf16.msra.mxu0 %v2425
        %2482 = vmatprep.subr.bf16.mxu0 0
        %2483 = vmatpush1.bf16.msra.mxu0 %v2426
        %2484 = vmatprep.subr.bf16.mxu0 0
        %2485 = vmatpush1.bf16.msra.mxu0 %v2427
        %2486 = vmatprep.subr.bf16.mxu0 0
        %2487 = vmatpush1.bf16.msra.mxu0 %v2428
        %2488 = vmatprep.subr.bf16.mxu0 0
        %2489 = vmatpush1.bf16.msra.mxu0 %v2429
        %2490 = vmatprep.subr.bf16.mxu0 0
        %2491 = vmatpush1.bf16.msra.mxu0 %v2430
        %2492 = vmatprep.subr.bf16.mxu0 0
        %2493 = vmatpush1.bf16.msra.mxu0 %v2431
        %2494 = vmatprep.subr.bf16.mxu0 0
        %2495 = vmatpush1.bf16.msra.mxu0 %v2432
        %2496 = vmatprep.subr.bf16.mxu0 0
        %2497 = vmatpush1.bf16.msra.mxu0 %v2433
        %2498 = vmatprep.mubr.bf16.mxu0 %v2263
        %2499 = vmatmul.mubr.bf16.gmra.mrb[0].mxu0 %v2262
        %v2500 = vpop.f32.mrb[0].mxu0
        %v2501 = vadd.f32 %v2320, %v2500
        %v2502 = vpop.f32.mrb[0].mxu0
        %v2503 = vpop.f32.mrb[0].mxu0
        %v2504 = vadd.f32 %v2320, %v2503
        %v2505 = vpop.f32.mrb[0].mxu0
        %2506 = vdwg.mxu0
        %2507 = vmatprep.subr.bf16.mxu0 0
        %2508 = vmatpush1.bf16.msra.mxu0 %v2434
        %2509 = vmatprep.subr.bf16.mxu0 0
        %2510 = vmatpush1.bf16.msra.mxu0 %v2435
        %2511 = vmatprep.subr.bf16.mxu0 0
        %2512 = vmatpush1.bf16.msra.mxu0 %v2436
        %2513 = vmatprep.subr.bf16.mxu0 0
        %2514 = vmatpush1.bf16.msra.mxu0 %v2437
        %2515 = vmatprep.subr.bf16.mxu0 0
        %2516 = vmatpush1.bf16.msra.mxu0 %v2438
        %2517 = vmatprep.subr.bf16.mxu0 0
        %2518 = vmatpush1.bf16.msra.mxu0 %v2439
        %2519 = vmatprep.subr.bf16.mxu0 0
        %2520 = vmatpush1.bf16.msra.mxu0 %v2440
        %2521 = vmatprep.subr.bf16.mxu0 0
        %2522 = vmatpush1.bf16.msra.mxu0 %v2441
        %2523 = vmatprep.subr.bf16.mxu0 0
        %2524 = vmatpush1.bf16.msra.mxu0 0
        %2525 = vmatprep.subr.bf16.mxu0 0
        %2526 = vmatpush1.bf16.msra.mxu0 0
        %2527 = vmatprep.subr.bf16.mxu0 0
        %2528 = vmatpush1.bf16.msra.mxu0 0
        %2529 = vmatprep.subr.bf16.mxu0 0
        %2530 = vmatpush1.bf16.msra.mxu0 0
        %2531 = vmatprep.subr.bf16.mxu0 0
        %2532 = vmatpush1.bf16.msra.mxu0 0
        %2533 = vmatprep.subr.bf16.mxu0 0
        %2534 = vmatpush1.bf16.msra.mxu0 0
        %2535 = vmatprep.subr.bf16.mxu0 0
        %2536 = vmatpush1.bf16.msra.mxu0 0
        %2537 = vmatprep.subr.bf16.mxu0 0
        %2538 = vmatpush1.bf16.msra.mxu0 0
        %2539 = vmatprep.mubr.bf16.mxu0 0
        %2540 = vmatmul.mubr.bf16.gmra.mrb[0].mxu0 %v2264
        %v2541 = vpop.f32.mrb[0].mxu0
        %v2542 = vadd.f32 %v2501, %v2541
        %v2543 = vpop.f32.mrb[0].mxu0
        %v2544 = vpop.f32.mrb[0].mxu0
        %v2545 = vadd.f32 %v2504, %v2544
        %v2546 = vpop.f32.mrb[0].mxu0
        %2547 = vdwg.mxu0
        %v2548 = vadd.f32 %v2542, %v684
        %v2549 = vadd.f32 %v2545, %v685
        %v2550 = vmax.f32 %v2548, 0.0
        %v2551 = vmax.f32 %v2549, 0.0
        %v2552 = vpack.c.bf16 %v2551, %v2550
        %v2553 = vld [vmem:[%s7] sm:$0xff]
        %v2554 = vld [vmem:[%s7 + $0x8] sm:$0xff]
        %v2555 = vld [vmem:[%s7 + $0x10] sm:$0xff]
        %v2556 = vld [vmem:[%s7 + $0x18] sm:$0xff]
        %v2557 = vld [vmem:[%s7 + $0x20] sm:$0xff]
        %v2558 = vld [vmem:[%s7 + $0x28] sm:$0xff]
        %v2559 = vld [vmem:[%s7 + $0x30] sm:$0xff]
        %v2560 = vld [vmem:[%s7 + $0x38] sm:$0xff]
        %v2561 = vld [vmem:[%s7 + $0x40] sm:$0xff]
        %v2562 = vld [vmem:[%s7 + $0x48] sm:$0xff]
        %v2563 = vld [vmem:[%s7 + $0x50] sm:$0xff]
        %v2564 = vld [vmem:[%s7 + $0x58] sm:$0xff]
        %v2565 = vld [vmem:[%s7 + $0x60] sm:$0xff]
        %v2566 = vld [vmem:[%s7 + $0x68] sm:$0xff]
        %v2567 = vld [vmem:[%s7 + $0x70] sm:$0xff]
        %v2568 = vld [vmem:[%s7 + $0x78] sm:$0xff]
        %v2585 = vunpack.c.l.b16 %v2553
        %v2586 = vunpack.c.h.b16 %v2553
        %v2587 = vunpack.c.l.b16 %v2554
        %v2588 = vunpack.c.h.b16 %v2554
        %v2589 = vunpack.c.l.b16 %v2555
        %v2590 = vunpack.c.h.b16 %v2555
        %v2591 = vunpack.c.l.b16 %v2556
        %v2592 = vunpack.c.h.b16 %v2556
        %v2593 = vunpack.c.l.b16 %v2557
        %v2594 = vunpack.c.h.b16 %v2557
        %v2595 = vunpack.c.l.b16 %v2558
        %v2596 = vunpack.c.h.b16 %v2558
        %v2597 = vunpack.c.l.b16 %v2559
        %v2598 = vunpack.c.h.b16 %v2559
        %v2599 = vunpack.c.l.b16 %v2560
        %v2600 = vunpack.c.h.b16 %v2560
        %v2601 = vunpack.c.l.b16 %v2561
        %v2602 = vunpack.c.h.b16 %v2561
        %v2603 = vunpack.c.l.b16 %v2562
        %v2604 = vunpack.c.h.b16 %v2562
        %v2605 = vunpack.c.l.b16 %v2563
        %v2606 = vunpack.c.h.b16 %v2563
        %v2607 = vunpack.c.l.b16 %v2564
        %v2608 = vunpack.c.h.b16 %v2564
        %v2609 = vunpack.c.l.b16 %v2565
        %v2610 = vunpack.c.h.b16 %v2565
        %v2611 = vunpack.c.l.b16 %v2566
        %v2612 = vunpack.c.h.b16 %v2566
        %v2613 = vunpack.c.l.b16 %v2567
        %v2614 = vunpack.c.h.b16 %v2567
        %v2615 = vunpack.c.l.b16 %v2568
        %v2616 = vunpack.c.h.b16 %v2568
        %v2617 = vpack.c.b16 %v2587, %v2585
        %v2618 = vpack.c.b16 %v2588, %v2586
        %v2619 = vpack.c.b16 %v2591, %v2589
        %v2620 = vpack.c.b16 %v2592, %v2590
        %v2621 = vpack.c.b16 %v2595, %v2593
        %v2622 = vpack.c.b16 %v2596, %v2594
        %v2623 = vpack.c.b16 %v2599, %v2597
        %v2624 = vpack.c.b16 %v2600, %v2598
        %v2625 = vpack.c.b16 %v2603, %v2601
        %v2626 = vpack.c.b16 %v2604, %v2602
        %v2627 = vpack.c.b16 %v2607, %v2605
        %v2628 = vpack.c.b16 %v2608, %v2606
        %v2629 = vpack.c.b16 %v2611, %v2609
        %v2630 = vpack.c.b16 %v2612, %v2610
        %v2631 = vpack.c.b16 %v2615, %v2613
        %v2632 = vpack.c.b16 %v2616, %v2614
        %2649 = vmatprep.subr.bf16.mxu0 %v2618
        %2650 = vmatpush1.bf16.msra.mxu0 %v2617
        %2651 = vmatprep.subr.bf16.mxu0 %v2620
        %2652 = vmatpush1.bf16.msra.mxu0 %v2619
        %2653 = vmatprep.subr.bf16.mxu0 %v2622
        %2654 = vmatpush1.bf16.msra.mxu0 %v2621
        %2655 = vmatprep.subr.bf16.mxu0 %v2624
        %2656 = vmatpush1.bf16.msra.mxu0 %v2623
        %2657 = vmatprep.subr.bf16.mxu0 %v2626
        %2658 = vmatpush1.bf16.msra.mxu0 %v2625
        %2659 = vmatprep.subr.bf16.mxu0 %v2628
        %2660 = vmatpush1.bf16.msra.mxu0 %v2627
        %2661 = vmatprep.subr.bf16.mxu0 %v2630
        %2662 = vmatpush1.bf16.msra.mxu0 %v2629
        %2663 = vmatprep.subr.bf16.mxu0 %v2632
        %2664 = vmatpush1.bf16.msra.mxu0 %v2631
        %2665 = vmatprep.subr.bf16.mxu0 0
        %2666 = vmatpush1.bf16.msra.mxu0 0
        %2667 = vmatprep.subr.bf16.mxu0 0
        %2668 = vmatpush1.bf16.msra.mxu0 0
        %2669 = vmatprep.subr.bf16.mxu0 0
        %2670 = vmatpush1.bf16.msra.mxu0 0
        %2671 = vmatprep.subr.bf16.mxu0 0
        %2672 = vmatpush1.bf16.msra.mxu0 0
        %2673 = vmatprep.subr.bf16.mxu0 0
        %2674 = vmatpush1.bf16.msra.mxu0 0
        %2675 = vmatprep.subr.bf16.mxu0 0
        %2676 = vmatpush1.bf16.msra.mxu0 0
        %2677 = vmatprep.subr.bf16.mxu0 0
        %2678 = vmatpush1.bf16.msra.mxu0 0
        %2679 = vmatprep.subr.bf16.mxu0 0
        %2680 = vmatpush1.bf16.msra.mxu0 0
        %2681 = vmatprep.mubr.bf16.mxu0 0
        %2682 = vmatmul.mubr.bf16.gmra.mrb[0].mxu0 %v2552
        %v2683 = vpop.f32.mrb[0].mxu0
        %v2684 = vadd.f32 0.0, %v2683
        %v2685 = vpop.f32.mrb[0].mxu0
        %v2686 = vadd.f32 0.0, %v2685
        %v2687 = vpop.f32.mrb[0].mxu0
        %v2688 = vadd.f32 0.0, %v2687
        %v2689 = vpop.f32.mrb[0].mxu0
        %v2690 = vadd.f32 0.0, %v2689
        %2691 = vdwg.mxu0
        %v2692 = vlaneseq
        %v2693 = vand.u32 %v2692, 127
        %vm2694 = vcmp.ge.s32.totalorder %v2693, 8
        %v2695 = vsel %vm2694, %v2684, -3.4028235e+38
        %v2696 = vsel %vm2694, %v2688, -3.4028235e+38
        %2699 = vrot.lane.b32.xlu0 %v2686, 64
        %v2700 = vpop.permute.xlu0 %2699
        %2701 = vrot.lane.b32.xlu0 %v2690, 64
        %v2702 = vpop.permute.xlu0 %2701
        %v2705 = vmax.f32 %v2684, %v2700
        %v2706 = vmax.f32 %v2688, %v2702
        %2709 = vrot.lane.b32.xlu0 %v2695, 64
        %v2710 = vpop.permute.xlu0 %2709
        %2711 = vrot.lane.b32.xlu0 %v2696, 64
        %v2712 = vpop.permute.xlu0 %2711
        %v2715 = vmax.f32 %v2705, %v2710
        %v2716 = vmax.f32 %v2706, %v2712
        %2719 = vrot.lane.b32.xlu0 %v2715, 64
        %v2720 = vpop.permute.xlu0 %2719
        %2721 = vrot.lane.b32.xlu0 %v2716, 64
        %v2722 = vpop.permute.xlu0 %2721
        %vm2725 = vcmask 523264
        %2726 = vst.msk [vmem:[#allocation7 + $0x1] sm:$0xff] %vm2725, %v2720
        %2727 = vst.msk [vmem:[#allocation7 + $0x9] sm:$0xff] %vm2725, %v2722
        %v2728 = vld [vmem:[#allocation7] sm:$0xff]
        %v2729 = vld [vmem:[#allocation7 + $0x8] sm:$0xff]
        %v2730 = vmax.f32 %v2728, %v2720
        %v2731 = vmax.f32 %v2729, %v2722
        %v2732 = vld [vmem:[#allocation7 + $0x2] sm:$0xff]
        %v2733 = vld [vmem:[#allocation7 + $0xa] sm:$0xff]
        %v2734 = vmax.f32 %v2730, %v2732
        %v2735 = vmax.f32 %v2731, %v2733
        %v2736 = vld [vmem:[%s8] sm:$0xf]
        %v2737 = vpack.c.bf16 %v2735, %v2734
        %vm2738 = vcmask 130048
        %v2740 = vsel %vm2738, %v2736, 0
        %2742 = vmatprep.subr.bf16.mxu0 0
        %2743 = vmatpush1.bf16.msra.mxu0 %v2737
        %2744 = vmatprep.subr.bf16.mxu0 0
        %2745 = vmatpush1.bf16.msra.mxu0 0
        %2746 = vmatprep.subr.bf16.mxu0 0
        %2747 = vmatpush1.bf16.msra.mxu0 0
        %2748 = vmatprep.subr.bf16.mxu0 0
        %2749 = vmatpush1.bf16.msra.mxu0 0
        %2750 = vmatprep.subr.bf16.mxu0 0
        %2751 = vmatpush1.bf16.msra.mxu0 0
        %2752 = vmatprep.subr.bf16.mxu0 0
        %2753 = vmatpush1.bf16.msra.mxu0 0
        %2754 = vmatprep.subr.bf16.mxu0 0
        %2755 = vmatpush1.bf16.msra.mxu0 0
        %2756 = vmatprep.subr.bf16.mxu0 0
        %2757 = vmatpush1.bf16.msra.mxu0 0
        %2758 = vmatprep.subr.bf16.mxu0 0
        %2759 = vmatpush1.bf16.msra.mxu0 0
        %2760 = vmatprep.subr.bf16.mxu0 0
        %2761 = vmatpush1.bf16.msra.mxu0 0
        %2762 = vmatprep.subr.bf16.mxu0 0
        %2763 = vmatpush1.bf16.msra.mxu0 0
        %2764 = vmatprep.subr.bf16.mxu0 0
        %2765 = vmatpush1.bf16.msra.mxu0 0
        %2766 = vmatprep.subr.bf16.mxu0 0
        %2767 = vmatpush1.bf16.msra.mxu0 0
        %2768 = vmatprep.subr.bf16.mxu0 0
        %2769 = vmatpush1.bf16.msra.mxu0 0
        %2770 = vmatprep.subr.bf16.mxu0 0
        %2771 = vmatpush1.bf16.msra.mxu0 0
        %2772 = vmatprep.subr.bf16.mxu0 0
        %2773 = vmatpush1.bf16.msra.mxu0 0
        %2774 = vmatprep.mubr.bf16.mxu0 0
        %2775 = vmatmul.mubr.bf16.gmra.mrb[0].mxu0 %v2740
        %v2776 = vpop.f32.mrb[0].mxu0
        %v2777 = vadd.f32 0.0, %v2776
        %v2778 = vpop.f32.mrb[0].mxu0
        %v2779 = vpop.f32.mrb[0].mxu0
        %v2780 = vpop.f32.mrb[0].mxu0
        %2781 = vdwg.mxu0
        %2783 = vrot.lane.b32.xlu0 %v2777, 64
        %v2784 = vpop.permute.xlu0 %2783
        %vm2786 = vcmask 1048064
        %2787 = vst.msk [vmem:[#allocation3] sm:$0xff] %vm2786, %v2784
        %v2788 = vrot.slane %v2777, 7
        %vm2790 = vcmask 523265
        %2791 = vst.msk [vmem:[#allocation3] sm:$0xfe] %vm2790, %v2788
        %v2792 = vrot.slane %v2777, 1
        %vm2794 = vcmask 522240
        %2795 = vst.msk [vmem:[#allocation3 + $0x8] sm:$0x7f] %vm2794, %v2792
        %v2796 = vld [vmem:[#allocation3] sm:$0xff]
        %v2797 = vld [vmem:[#allocation3 + $0x8] sm:$0xff]
        %v2798 = vpack.c.bf16 %v2796, %v2796
        %v2799 = vpack.c.bf16 %v2797, %v2797
        %v2800 = vld [vmem:[%s3] sm:$0xf]
        %v2801 = vld [vmem:[%s3 + $0x4] sm:$0xf]
        %v2802 = vld [vmem:[%s3 + $0x8] sm:$0xf]
        %v2803 = vld [vmem:[%s3 + $0xc] sm:$0xf]
        %v2804 = vld [vmem:[%s3 + $0x10] sm:$0xf]
        %v2805 = vld [vmem:[%s3 + $0x14] sm:$0xf]
        %v2806 = vld [vmem:[%s3 + $0x18] sm:$0xf]
        %v2807 = vld [vmem:[%s3 + $0x1c] sm:$0xf]
        %v2808 = vld [vmem:[%s3 + $0x20] sm:$0xf]
        %v2809 = vld [vmem:[%s3 + $0x24] sm:$0xf]
        %v2810 = vld [vmem:[%s3 + $0x28] sm:$0xf]
        %v2811 = vld [vmem:[%s3 + $0x2c] sm:$0xf]
        %v2812 = vld [vmem:[%s3 + $0x30] sm:$0xf]
        %v2813 = vld [vmem:[%s3 + $0x34] sm:$0xf]
        %v2814 = vld [vmem:[%s3 + $0x38] sm:$0xf]
        %v2815 = vld [vmem:[%s3 + $0x3c] sm:$0xf]
        %v2816 = vld [vmem:[%s3 + $0x40] sm:$0xf]
        %v2817 = vld [vmem:[%s3 + $0x44] sm:$0xf]
        %v2818 = vld [vmem:[%s3 + $0x48] sm:$0xf]
        %v2819 = vld [vmem:[%s3 + $0x4c] sm:$0xf]
        %v2820 = vld [vmem:[%s3 + $0x50] sm:$0xf]
        %v2821 = vld [vmem:[%s3 + $0x54] sm:$0xf]
        %v2822 = vld [vmem:[%s3 + $0x58] sm:$0xf]
        %v2823 = vld [vmem:[%s3 + $0x5c] sm:$0xf]
        %v2824 = vld [vmem:[%s4] sm:$0x1]
        %v2826 = vlaneseq
        %v2827 = vshrl.u32 %v2826, 7
        %v2828 = vsub.s32 0, %v2827
        %v2829 = vrot.slane %v2824, %v2828
        %v2855 = vunpack.c.l.b16 %v2800
        %v2856 = vunpack.c.l.b16 %v2801
        %v2857 = vunpack.c.l.b16 %v2802
        %v2858 = vunpack.c.l.b16 %v2803
        %v2859 = vunpack.c.l.b16 %v2804
        %v2860 = vunpack.c.l.b16 %v2805
        %v2861 = vunpack.c.l.b16 %v2806
        %v2862 = vunpack.c.l.b16 %v2807
        %v2863 = vunpack.c.l.b16 %v2808
        %v2864 = vunpack.c.l.b16 %v2809
        %v2865 = vunpack.c.l.b16 %v2810
        %v2866 = vunpack.c.l.b16 %v2811
        %v2867 = vunpack.c.l.b16 %v2812
        %v2868 = vunpack.c.l.b16 %v2813
        %v2869 = vunpack.c.l.b16 %v2814
        %v2870 = vunpack.c.l.b16 %v2815
        %v2871 = vunpack.c.l.b16 %v2816
        %v2872 = vunpack.c.l.b16 %v2817
        %v2873 = vunpack.c.l.b16 %v2818
        %v2874 = vunpack.c.l.b16 %v2819
        %v2875 = vunpack.c.l.b16 %v2820
        %v2876 = vunpack.c.l.b16 %v2821
        %v2877 = vunpack.c.l.b16 %v2822
        %v2878 = vunpack.c.l.b16 %v2823
        %v2879 = vpack.c.b16 %v2856, %v2855
        %v2880 = vpack.c.b16 %v2858, %v2857
        %v2881 = vpack.c.b16 %v2860, %v2859
        %v2882 = vpack.c.b16 %v2862, %v2861
        %v2883 = vpack.c.b16 %v2864, %v2863
        %v2884 = vpack.c.b16 %v2866, %v2865
        %v2885 = vpack.c.b16 %v2868, %v2867
        %v2886 = vpack.c.b16 %v2870, %v2869
        %v2887 = vpack.c.b16 %v2872, %v2871
        %v2888 = vpack.c.b16 %v2874, %v2873
        %v2889 = vpack.c.b16 %v2876, %v2875
        %v2890 = vpack.c.b16 %v2878, %v2877
        %v2904 = vsel %vm2725, %v2799, 0
        %2906 = vmatprep.subr.bf16.mxu0 0
        %2907 = vmatpush1.bf16.msra.mxu0 %v2879
        %2908 = vmatprep.subr.bf16.mxu0 0
        %2909 = vmatpush1.bf16.msra.mxu0 %v2880
        %2910 = vmatprep.subr.bf16.mxu0 0
        %2911 = vmatpush1.bf16.msra.mxu0 %v2881
        %2912 = vmatprep.subr.bf16.mxu0 0
        %2913 = vmatpush1.bf16.msra.mxu0 %v2882
        %2914 = vmatprep.subr.bf16.mxu0 0
        %2915 = vmatpush1.bf16.msra.mxu0 %v2883
        %2916 = vmatprep.subr.bf16.mxu0 0
        %2917 = vmatpush1.bf16.msra.mxu0 %v2884
        %2918 = vmatprep.subr.bf16.mxu0 0
        %2919 = vmatpush1.bf16.msra.mxu0 %v2885
        %2920 = vmatprep.subr.bf16.mxu0 0
        %2921 = vmatpush1.bf16.msra.mxu0 %v2886
        %2922 = vmatprep.subr.bf16.mxu0 0
        %2923 = vmatpush1.bf16.msra.mxu0 %v2887
        %2924 = vmatprep.subr.bf16.mxu0 0
        %2925 = vmatpush1.bf16.msra.mxu0 %v2888
        %2926 = vmatprep.subr.bf16.mxu0 0
        %2927 = vmatpush1.bf16.msra.mxu0 %v2889
        %2928 = vmatprep.subr.bf16.mxu0 0
        %2929 = vmatpush1.bf16.msra.mxu0 %v2890
        %2930 = vmatprep.subr.bf16.mxu0 0
        %2931 = vmatpush1.bf16.msra.mxu0 0
        %2932 = vmatprep.subr.bf16.mxu0 0
        %2933 = vmatpush1.bf16.msra.mxu0 0
        %2934 = vmatprep.subr.bf16.mxu0 0
        %2935 = vmatpush1.bf16.msra.mxu0 0
        %2936 = vmatprep.subr.bf16.mxu0 0
        %2937 = vmatpush1.bf16.msra.mxu0 0
        %2938 = vmatprep.mubr.bf16.mxu0 %v2904
        %2939 = vmatmul.mubr.bf16.gmra.mrb[0].mxu0 %v2798
        %v2940 = vpop.f32.mrb[0].mxu0
        %v2941 = vadd.f32 %v2829, %v2940
        %v2942 = vpop.f32.mrb[0].mxu0
        %v2943 = vpop.f32.mrb[0].mxu0
        %v2944 = vpop.f32.mrb[0].mxu0
        %2945 = vdwg.mxu0
        %v2946 = vmax.f32 %v2941, 0.0
        %2948 = vrot.lane.b32.xlu0 %v2946, 64
        %v2949 = vpop.permute.xlu0 %2948
        %2951 = vst.msk [vmem:[#allocation3] sm:$0xff] %vm2786, %v2949
        %v2952 = vrot.slane %v2946, 7
        %2954 = vst.msk [vmem:[#allocation3] sm:$0xfe] %vm2790, %v2952
        %v2955 = vrot.slane %v2946, 1
        %2957 = vst.msk [vmem:[#allocation3 + $0x8] sm:$0x7f] %vm2794, %v2955
        %v2958 = vld [vmem:[#allocation3] sm:$0xff]
        %v2959 = vld [vmem:[#allocation3 + $0x8] sm:$0xff]
        %v2960 = vpack.c.bf16 %v2958, %v2958
        %v2961 = vpack.c.bf16 %v2959, %v2959
        %s2962 = scalar_lea.vmem %s3, 96
        %v2963 = vld [vmem:[%s2962] sm:$0xf]
        %v2964 = vld [vmem:[%s2962 + $0x4] sm:$0xf]
        %v2965 = vld [vmem:[%s2962 + $0x8] sm:$0xf]
        %v2966 = vld [vmem:[%s2962 + $0xc] sm:$0xf]
        %v2967 = vld [vmem:[%s2962 + $0x10] sm:$0xf]
        %v2968 = vld [vmem:[%s2962 + $0x14] sm:$0xf]
        %v2969 = vld [vmem:[%s2962 + $0x18] sm:$0xf]
        %v2970 = vld [vmem:[%s2962 + $0x1c] sm:$0xf]
        %v2971 = vld [vmem:[%s2962 + $0x20] sm:$0xf]
        %v2972 = vld [vmem:[%s2962 + $0x24] sm:$0xf]
        %v2973 = vld [vmem:[%s2962 + $0x28] sm:$0xf]
        %v2974 = vld [vmem:[%s2962 + $0x2c] sm:$0xf]
        %v2975 = vld [vmem:[%s2962 + $0x30] sm:$0xf]
        %v2976 = vld [vmem:[%s2962 + $0x34] sm:$0xf]
        %v2977 = vld [vmem:[%s2962 + $0x38] sm:$0xf]
        %v2978 = vld [vmem:[%s2962 + $0x3c] sm:$0xf]
        %v2979 = vld [vmem:[%s2962 + $0x40] sm:$0xf]
        %v2980 = vld [vmem:[%s2962 + $0x44] sm:$0xf]
        %v2981 = vld [vmem:[%s2962 + $0x48] sm:$0xf]
        %v2982 = vld [vmem:[%s2962 + $0x4c] sm:$0xf]
        %v2983 = vld [vmem:[%s2962 + $0x50] sm:$0xf]
        %v2984 = vld [vmem:[%s2962 + $0x54] sm:$0xf]
        %v2985 = vld [vmem:[%s2962 + $0x58] sm:$0xf]
        %v2986 = vld [vmem:[%s2962 + $0x5c] sm:$0xf]
        %s2987 = scalar_lea.vmem %s4, 1
        %v2988 = vld [vmem:[%s2987] sm:$0x1]
        %v2990 = vlaneseq
        %v2991 = vshrl.u32 %v2990, 7
        %v2992 = vsub.s32 0, %v2991
        %v2993 = vrot.slane %v2988, %v2992
        %v3019 = vunpack.c.l.b16 %v2963
        %v3020 = vunpack.c.l.b16 %v2964
        %v3021 = vunpack.c.l.b16 %v2965
        %v3022 = vunpack.c.l.b16 %v2966
        %v3023 = vunpack.c.l.b16 %v2967
        %v3024 = vunpack.c.l.b16 %v2968
        %v3025 = vunpack.c.l.b16 %v2969
        %v3026 = vunpack.c.l.b16 %v2970
        %v3027 = vunpack.c.l.b16 %v2971
        %v3028 = vunpack.c.l.b16 %v2972
        %v3029 = vunpack.c.l.b16 %v2973
        %v3030 = vunpack.c.l.b16 %v2974
        %v3031 = vunpack.c.l.b16 %v2975
        %v3032 = vunpack.c.l.b16 %v2976
        %v3033 = vunpack.c.l.b16 %v2977
        %v3034 = vunpack.c.l.b16 %v2978
        %v3035 = vunpack.c.l.b16 %v2979
        %v3036 = vunpack.c.l.b16 %v2980
        %v3037 = vunpack.c.l.b16 %v2981
        %v3038 = vunpack.c.l.b16 %v2982
        %v3039 = vunpack.c.l.b16 %v2983
        %v3040 = vunpack.c.l.b16 %v2984
        %v3041 = vunpack.c.l.b16 %v2985
        %v3042 = vunpack.c.l.b16 %v2986
        %v3043 = vpack.c.b16 %v3020, %v3019
        %v3044 = vpack.c.b16 %v3022, %v3021
        %v3045 = vpack.c.b16 %v3024, %v3023
        %v3046 = vpack.c.b16 %v3026, %v3025
        %v3047 = vpack.c.b16 %v3028, %v3027
        %v3048 = vpack.c.b16 %v3030, %v3029
        %v3049 = vpack.c.b16 %v3032, %v3031
        %v3050 = vpack.c.b16 %v3034, %v3033
        %v3051 = vpack.c.b16 %v3036, %v3035
        %v3052 = vpack.c.b16 %v3038, %v3037
        %v3053 = vpack.c.b16 %v3040, %v3039
        %v3054 = vpack.c.b16 %v3042, %v3041
        %v3068 = vsel %vm2725, %v2961, 0
        %3070 = vmatprep.subr.bf16.mxu0 0
        %3071 = vmatpush1.bf16.msra.mxu0 %v3043
        %3072 = vmatprep.subr.bf16.mxu0 0
        %3073 = vmatpush1.bf16.msra.mxu0 %v3044
        %3074 = vmatprep.subr.bf16.mxu0 0
        %3075 = vmatpush1.bf16.msra.mxu0 %v3045
        %3076 = vmatprep.subr.bf16.mxu0 0
        %3077 = vmatpush1.bf16.msra.mxu0 %v3046
        %3078 = vmatprep.subr.bf16.mxu0 0
        %3079 = vmatpush1.bf16.msra.mxu0 %v3047
        %3080 = vmatprep.subr.bf16.mxu0 0
        %3081 = vmatpush1.bf16.msra.mxu0 %v3048
        %3082 = vmatprep.subr.bf16.mxu0 0
        %3083 = vmatpush1.bf16.msra.mxu0 %v3049
        %3084 = vmatprep.subr.bf16.mxu0 0
        %3085 = vmatpush1.bf16.msra.mxu0 %v3050
        %3086 = vmatprep.subr.bf16.mxu0 0
        %3087 = vmatpush1.bf16.msra.mxu0 %v3051
        %3088 = vmatprep.subr.bf16.mxu0 0
        %3089 = vmatpush1.bf16.msra.mxu0 %v3052
        %3090 = vmatprep.subr.bf16.mxu0 0
        %3091 = vmatpush1.bf16.msra.mxu0 %v3053
        %3092 = vmatprep.subr.bf16.mxu0 0
        %3093 = vmatpush1.bf16.msra.mxu0 %v3054
        %3094 = vmatprep.subr.bf16.mxu0 0
        %3095 = vmatpush1.bf16.msra.mxu0 0
        %3096 = vmatprep.subr.bf16.mxu0 0
        %3097 = vmatpush1.bf16.msra.mxu0 0
        %3098 = vmatprep.subr.bf16.mxu0 0
        %3099 = vmatpush1.bf16.msra.mxu0 0
        %3100 = vmatprep.subr.bf16.mxu0 0
        %3101 = vmatpush1.bf16.msra.mxu0 0
        %3102 = vmatprep.mubr.bf16.mxu0 %v3068
        %3103 = vmatmul.mubr.bf16.gmra.mrb[0].mxu0 %v2960
        %v3104 = vpop.f32.mrb[0].mxu0
        %v3105 = vadd.f32 %v2993, %v3104
        %v3106 = vpop.f32.mrb[0].mxu0
        %v3107 = vpop.f32.mrb[0].mxu0
        %v3108 = vpop.f32.mrb[0].mxu0
        %3109 = vdwg.mxu0
        %v3110 = vadd.f32 %v3105, %v2777
        %v3111 = vmax.f32 %v3110, 0.0
        %v3112 = vpack.c.bf16 %v3111, %v3111
        %v3113 = vld [vmem:[%s9] sm:$0xf]
        %v3114 = vld [vmem:[%s9 + $0x4] sm:$0xf]
        %v3115 = vld [vmem:[%s9 + $0x8] sm:$0xf]
        %v3116 = vld [vmem:[%s9 + $0xc] sm:$0xf]
        %v3117 = vld [vmem:[%s9 + $0x10] sm:$0xf]
        %v3118 = vld [vmem:[%s9 + $0x14] sm:$0xf]
        %v3119 = vld [vmem:[%s9 + $0x18] sm:$0xf]
        %v3120 = vld [vmem:[%s9 + $0x1c] sm:$0xf]
        %v3129 = vunpack.c.l.b16 %v3113
        %v3130 = vunpack.c.l.b16 %v3114
        %v3131 = vunpack.c.l.b16 %v3115
        %v3132 = vunpack.c.l.b16 %v3116
        %v3133 = vunpack.c.l.b16 %v3117
        %v3134 = vunpack.c.l.b16 %v3118
        %v3135 = vunpack.c.l.b16 %v3119
        %v3136 = vunpack.c.l.b16 %v3120
        %v3137 = vpack.c.b16 %v3130, %v3129
        %v3138 = vpack.c.b16 %v3132, %v3131
        %v3139 = vpack.c.b16 %v3134, %v3133
        %v3140 = vpack.c.b16 %v3136, %v3135
        %v3146 = vsel %vm2725, %v3112, 0
        %3148 = vmatprep.subr.bf16.mxu0 0
        %3149 = vmatpush1.bf16.msra.mxu0 %v3137
        %3150 = vmatprep.subr.bf16.mxu0 0
        %3151 = vmatpush1.bf16.msra.mxu0 %v3138
        %3152 = vmatprep.subr.bf16.mxu0 0
        %3153 = vmatpush1.bf16.msra.mxu0 %v3139
        %3154 = vmatprep.subr.bf16.mxu0 0
        %3155 = vmatpush1.bf16.msra.mxu0 %v3140
        %3156 = vmatprep.subr.bf16.mxu0 0
        %3157 = vmatpush1.bf16.msra.mxu0 0
        %3158 = vmatprep.subr.bf16.mxu0 0
        %3159 = vmatpush1.bf16.msra.mxu0 0
        %3160 = vmatprep.subr.bf16.mxu0 0
        %3161 = vmatpush1.bf16.msra.mxu0 0
        %3162 = vmatprep.subr.bf16.mxu0 0
        %3163 = vmatpush1.bf16.msra.mxu0 0
        %3164 = vmatprep.subr.bf16.mxu0 0
        %3165 = vmatpush1.bf16.msra.mxu0 0
        %3166 = vmatprep.subr.bf16.mxu0 0
        %3167 = vmatpush1.bf16.msra.mxu0 0
        %3168 = vmatprep.subr.bf16.mxu0 0
        %3169 = vmatpush1.bf16.msra.mxu0 0
        %3170 = vmatprep.subr.bf16.mxu0 0
        %3171 = vmatpush1.bf16.msra.mxu0 0
        %3172 = vmatprep.subr.bf16.mxu0 0
        %3173 = vmatpush1.bf16.msra.mxu0 0
        %3174 = vmatprep.subr.bf16.mxu0 0
        %3175 = vmatpush1.bf16.msra.mxu0 0
        %3176 = vmatprep.subr.bf16.mxu0 0
        %3177 = vmatpush1.bf16.msra.mxu0 0
        %3178 = vmatprep.subr.bf16.mxu0 0
        %3179 = vmatpush1.bf16.msra.mxu0 0
        %3180 = vmatprep.mubr.bf16.mxu0 0
        %3181 = vmatmul.mubr.bf16.gmra.mrb[0].mxu0 %v3146
        %v3182 = vpop.f32.mrb[0].mxu0
        %v3183 = vadd.f32 0.0, %v3182
        %v3184 = vpop.f32.mrb[0].mxu0
        %v3185 = vpop.f32.mrb[0].mxu0
        %v3186 = vpop.f32.mrb[0].mxu0
        %3187 = vdwg.mxu0
        %v3188 = vsel %vm2694, %v3183, -3.4028235e+38
        %3190 = vrot.lane.b32.xlu0 %v3183, 96
        %v3191 = vpop.permute.xlu0 %3190
        %v3193 = vmax.f32 %v3183, %v3191
        %3195 = vrot.lane.b32.xlu0 %v3188, 32
        %v3196 = vpop.permute.xlu0 %3195
        %v3198 = vmax.f32 %v3193, %v3196
        %3200 = vrot.lane.b32.xlu0 %v3198, 96
        %v3201 = vpop.permute.xlu0 %3200
        %vm3203 = vcmask 261120
        %3204 = vst.msk [vmem:[#allocation8 + $0x1] sm:$0xff] %vm3203, %v3201
        %v3205 = vld [vmem:[#allocation8] sm:$0xff]
        %v3206 = vmax.f32 %v3205, %v3201
        %v3207 = vld [vmem:[#allocation8 + $0x2] sm:$0xff]
        %v3208 = vmax.f32 %v3206, %v3207
        %v3209 = vld [vmem:[%s10] sm:$0x3]
        %v3210 = vpack.c.bf16 %v3208, %v3208
        %vm3211 = vcmask 64512
        %v3213 = vsel %vm3211, %v3209, 0
        %vm3215 = vcmask 1043456
        %v3217 = vsel %vm3215, %v3210, 0
        %3219 = vmatprep.subr.bf16.mxu0 0
        %3220 = vmatpush1.bf16.msra.mxu0 %v3217
        %3221 = vmatprep.subr.bf16.mxu0 0
        %3222 = vmatpush1.bf16.msra.mxu0 0
        %3223 = vmatprep.subr.bf16.mxu0 0
        %3224 = vmatpush1.bf16.msra.mxu0 0
        %3225 = vmatprep.subr.bf16.mxu0 0
        %3226 = vmatpush1.bf16.msra.mxu0 0
        %3227 = vmatprep.subr.bf16.mxu0 0
        %3228 = vmatpush1.bf16.msra.mxu0 0
        %3229 = vmatprep.subr.bf16.mxu0 0
        %3230 = vmatpush1.bf16.msra.mxu0 0
        %3231 = vmatprep.subr.bf16.mxu0 0
        %3232 = vmatpush1.bf16.msra.mxu0 0
        %3233 = vmatprep.subr.bf16.mxu0 0
        %3234 = vmatpush1.bf16.msra.mxu0 0
        %3235 = vmatprep.subr.bf16.mxu0 0
        %3236 = vmatpush1.bf16.msra.mxu0 0
        %3237 = vmatprep.subr.bf16.mxu0 0
        %3238 = vmatpush1.bf16.msra.mxu0 0
        %3239 = vmatprep.subr.bf16.mxu0 0
        %3240 = vmatpush1.bf16.msra.mxu0 0
        %3241 = vmatprep.subr.bf16.mxu0 0
        %3242 = vmatpush1.bf16.msra.mxu0 0
        %3243 = vmatprep.subr.bf16.mxu0 0
        %3244 = vmatpush1.bf16.msra.mxu0 0
        %3245 = vmatprep.subr.bf16.mxu0 0
        %3246 = vmatpush1.bf16.msra.mxu0 0
        %3247 = vmatprep.subr.bf16.mxu0 0
        %3248 = vmatpush1.bf16.msra.mxu0 0
        %3249 = vmatprep.subr.bf16.mxu0 0
        %3250 = vmatpush1.bf16.msra.mxu0 0
        %3251 = vmatprep.mubr.bf16.mxu0 0
        %3252 = vmatmul.mubr.bf16.gmra.mrb[0].mxu0 %v3213
        %v3253 = vpop.f32.mrb[0].mxu0
        %v3254 = vadd.f32 0.0, %v3253
        %v3255 = vpop.f32.mrb[0].mxu0
        %v3256 = vpop.f32.mrb[0].mxu0
        %v3257 = vpop.f32.mrb[0].mxu0
        %3258 = vdwg.mxu0
        %3260 = vrot.lane.b32.xlu0 %v3254, 32
        %v3261 = vpop.permute.xlu0 %3260
        %vm3263 = vcmask 519424
        %3264 = vst.msk [vmem:[#allocation4] sm:$0xf] %vm3263, %v3261
        %vm3265 = vcmask 256000
        %3266 = vst.msk [vmem:[#allocation4 + $0x1] sm:$0x7] %vm3265, %v3254
        %3267 = vrot.lane.b32.xlu0 %v3254, 64
        %v3268 = vpop.permute.xlu0 %3267
        %vm3270 = vcmask 781825
        %3271 = vst.msk [vmem:[#allocation4 - $0x1] sm:$0xe] %vm3270, %v3268
        %v3272 = vld [vmem:[#allocation4] sm:$0xf]
        %v3273 = vpack.c.bf16 %v3272, %v3272
        %v3274 = vld [vmem:[%s5] sm:$0xf]
        %v3275 = vld [vmem:[%s5 + $0x4] sm:$0xf]
        %v3276 = vld [vmem:[%s5 + $0x8] sm:$0xf]
        %v3277 = vld [vmem:[%s5 + $0xc] sm:$0xf]
        %v3278 = vld [vmem:[%s5 + $0x10] sm:$0xf]
        %v3279 = vld [vmem:[%s5 + $0x14] sm:$0xf]
        %v3280 = vld [vmem:[%s5 + $0x18] sm:$0xf]
        %v3281 = vld [vmem:[%s5 + $0x1c] sm:$0xf]
        %v3282 = vld [vmem:[%s5 + $0x20] sm:$0xf]
        %v3283 = vld [vmem:[%s5 + $0x24] sm:$0xf]
        %v3284 = vld [vmem:[%s5 + $0x28] sm:$0xf]
        %v3285 = vld [vmem:[%s5 + $0x2c] sm:$0xf]
        %v3286 = vld [vmem:[%s6] sm:$0x1]
        %v3288 = vlaneseq
        %v3289 = vshrl.u32 %v3288, 7
        %v3290 = vsub.s32 0, %v3289
        %v3291 = vrot.slane %v3286, %v3290
        %v3305 = vunpack.c.l.b16 %v3274
        %v3306 = vunpack.c.l.b16 %v3275
        %v3307 = vunpack.c.l.b16 %v3276
        %v3308 = vunpack.c.l.b16 %v3277
        %v3309 = vunpack.c.l.b16 %v3278
        %v3310 = vunpack.c.l.b16 %v3279
        %v3311 = vunpack.c.l.b16 %v3280
        %v3312 = vunpack.c.l.b16 %v3281
        %v3313 = vunpack.c.l.b16 %v3282
        %v3314 = vunpack.c.l.b16 %v3283
        %v3315 = vunpack.c.l.b16 %v3284
        %v3316 = vunpack.c.l.b16 %v3285
        %v3317 = vpack.c.b16 %v3306, %v3305
        %v3318 = vpack.c.b16 %v3308, %v3307
        %v3319 = vpack.c.b16 %v3310, %v3309
        %v3320 = vpack.c.b16 %v3312, %v3311
        %v3321 = vpack.c.b16 %v3314, %v3313
        %v3322 = vpack.c.b16 %v3316, %v3315
        %vm3329 = vcmask 785408
        %v3331 = vsel %vm3329, %v3273, 0
        %3333 = vmatprep.subr.bf16.mxu0 0
        %3334 = vmatpush1.bf16.msra.mxu0 %v3317
        %3335 = vmatprep.subr.bf16.mxu0 0
        %3336 = vmatpush1.bf16.msra.mxu0 %v3318
        %3337 = vmatprep.subr.bf16.mxu0 0
        %3338 = vmatpush1.bf16.msra.mxu0 %v3319
        %3339 = vmatprep.subr.bf16.mxu0 0
        %3340 = vmatpush1.bf16.msra.mxu0 %v3320
        %3341 = vmatprep.subr.bf16.mxu0 0
        %3342 = vmatpush1.bf16.msra.mxu0 %v3321
        %3343 = vmatprep.subr.bf16.mxu0 0
        %3344 = vmatpush1.bf16.msra.mxu0 %v3322
        %3345 = vmatprep.subr.bf16.mxu0 0
        %3346 = vmatpush1.bf16.msra.mxu0 0
        %3347 = vmatprep.subr.bf16.mxu0 0
        %3348 = vmatpush1.bf16.msra.mxu0 0
        %3349 = vmatprep.subr.bf16.mxu0 0
        %3350 = vmatpush1.bf16.msra.mxu0 0
        %3351 = vmatprep.subr.bf16.mxu0 0
        %3352 = vmatpush1.bf16.msra.mxu0 0
        %3353 = vmatprep.subr.bf16.mxu0 0
        %3354 = vmatpush1.bf16.msra.mxu0 0
        %3355 = vmatprep.subr.bf16.mxu0 0
        %3356 = vmatpush1.bf16.msra.mxu0 0
        %3357 = vmatprep.subr.bf16.mxu0 0
        %3358 = vmatpush1.bf16.msra.mxu0 0
        %3359 = vmatprep.subr.bf16.mxu0 0
        %3360 = vmatpush1.bf16.msra.mxu0 0
        %3361 = vmatprep.subr.bf16.mxu0 0
        %3362 = vmatpush1.bf16.msra.mxu0 0
        %3363 = vmatprep.subr.bf16.mxu0 0
        %3364 = vmatpush1.bf16.msra.mxu0 0
        %3365 = vmatprep.mubr.bf16.mxu0 0
        %3366 = vmatmul.mubr.bf16.gmra.mrb[0].mxu0 %v3331
        %v3367 = vpop.f32.mrb[0].mxu0
        %v3368 = vadd.f32 %v3291, %v3367
        %v3369 = vpop.f32.mrb[0].mxu0
        %v3370 = vpop.f32.mrb[0].mxu0
        %v3371 = vpop.f32.mrb[0].mxu0
        %3372 = vdwg.mxu0
        %v3373 = vmax.f32 %v3368, 0.0
        %3375 = vrot.lane.b32.xlu0 %v3373, 32
        %v3376 = vpop.permute.xlu0 %3375
        %3378 = vst.msk [vmem:[#allocation4] sm:$0xf] %vm3263, %v3376
        %3379 = vst.msk [vmem:[#allocation4 + $0x1] sm:$0x7] %vm3265, %v3373
        %3380 = vrot.lane.b32.xlu0 %v3373, 64
        %v3381 = vpop.permute.xlu0 %3380
        %3383 = vst.msk [vmem:[#allocation4 - $0x1] sm:$0xe] %vm3270, %v3381
        %v3384 = vld [vmem:[#allocation4] sm:$0xf]
        %v3385 = vpack.c.bf16 %v3384, %v3384
        %s3386 = scalar_lea.vmem %s5, 48
        %v3387 = vld [vmem:[%s3386] sm:$0xf]
        %v3388 = vld [vmem:[%s3386 + $0x4] sm:$0xf]
        %v3389 = vld [vmem:[%s3386 + $0x8] sm:$0xf]
        %v3390 = vld [vmem:[%s3386 + $0xc] sm:$0xf]
        %v3391 = vld [vmem:[%s3386 + $0x10] sm:$0xf]
        %v3392 = vld [vmem:[%s3386 + $0x14] sm:$0xf]
        %v3393 = vld [vmem:[%s3386 + $0x18] sm:$0xf]
        %v3394 = vld [vmem:[%s3386 + $0x1c] sm:$0xf]
        %v3395 = vld [vmem:[%s3386 + $0x20] sm:$0xf]
        %v3396 = vld [vmem:[%s3386 + $0x24] sm:$0xf]
        %v3397 = vld [vmem:[%s3386 + $0x28] sm:$0xf]
        %v3398 = vld [vmem:[%s3386 + $0x2c] sm:$0xf]
        %s3399 = scalar_lea.vmem %s6, 1
        %v3400 = vld [vmem:[%s3399] sm:$0x1]
        %v3402 = vlaneseq
        %v3403 = vshrl.u32 %v3402, 7
        %v3404 = vsub.s32 0, %v3403
        %v3405 = vrot.slane %v3400, %v3404
        %v3419 = vunpack.c.l.b16 %v3387
        %v3420 = vunpack.c.l.b16 %v3388
        %v3421 = vunpack.c.l.b16 %v3389
        %v3422 = vunpack.c.l.b16 %v3390
        %v3423 = vunpack.c.l.b16 %v3391
        %v3424 = vunpack.c.l.b16 %v3392
        %v3425 = vunpack.c.l.b16 %v3393
        %v3426 = vunpack.c.l.b16 %v3394
        %v3427 = vunpack.c.l.b16 %v3395
        %v3428 = vunpack.c.l.b16 %v3396
        %v3429 = vunpack.c.l.b16 %v3397
        %v3430 = vunpack.c.l.b16 %v3398
        %v3431 = vpack.c.b16 %v3420, %v3419
        %v3432 = vpack.c.b16 %v3422, %v3421
        %v3433 = vpack.c.b16 %v3424, %v3423
        %v3434 = vpack.c.b16 %v3426, %v3425
        %v3435 = vpack.c.b16 %v3428, %v3427
        %v3436 = vpack.c.b16 %v3430, %v3429
        %v3444 = vsel %vm3329, %v3385, 0
        %3446 = vmatprep.subr.bf16.mxu0 0
        %3447 = vmatpush1.bf16.msra.mxu0 %v3431
        %3448 = vmatprep.subr.bf16.mxu0 0
        %3449 = vmatpush1.bf16.msra.mxu0 %v3432
        %3450 = vmatprep.subr.bf16.mxu0 0
        %3451 = vmatpush1.bf16.msra.mxu0 %v3433
        %3452 = vmatprep.subr.bf16.mxu0 0
        %3453 = vmatpush1.bf16.msra.mxu0 %v3434
        %3454 = vmatprep.subr.bf16.mxu0 0
        %3455 = vmatpush1.bf16.msra.mxu0 %v3435
        %3456 = vmatprep.subr.bf16.mxu0 0
        %3457 = vmatpush1.bf16.msra.mxu0 %v3436
        %3458 = vmatprep.subr.bf16.mxu0 0
        %3459 = vmatpush1.bf16.msra.mxu0 0
        %3460 = vmatprep.subr.bf16.mxu0 0
        %3461 = vmatpush1.bf16.msra.mxu0 0
        %3462 = vmatprep.subr.bf16.mxu0 0
        %3463 = vmatpush1.bf16.msra.mxu0 0
        %3464 = vmatprep.subr.bf16.mxu0 0
        %3465 = vmatpush1.bf16.msra.mxu0 0
        %3466 = vmatprep.subr.bf16.mxu0 0
        %3467 = vmatpush1.bf16.msra.mxu0 0
        %3468 = vmatprep.subr.bf16.mxu0 0
        %3469 = vmatpush1.bf16.msra.mxu0 0
        %3470 = vmatprep.subr.bf16.mxu0 0
        %3471 = vmatpush1.bf16.msra.mxu0 0
        %3472 = vmatprep.subr.bf16.mxu0 0
        %3473 = vmatpush1.bf16.msra.mxu0 0
        %3474 = vmatprep.subr.bf16.mxu0 0
        %3475 = vmatpush1.bf16.msra.mxu0 0
        %3476 = vmatprep.subr.bf16.mxu0 0
        %3477 = vmatpush1.bf16.msra.mxu0 0
        %3478 = vmatprep.mubr.bf16.mxu0 0
        %3479 = vmatmul.mubr.bf16.gmra.mrb[0].mxu0 %v3444
        %v3480 = vpop.f32.mrb[0].mxu0
        %v3481 = vadd.f32 %v3405, %v3480
        %v3482 = vpop.f32.mrb[0].mxu0
        %v3483 = vpop.f32.mrb[0].mxu0
        %v3484 = vpop.f32.mrb[0].mxu0
        %3485 = vdwg.mxu0
        %v3486 = vadd.f32 %v3481, %v3254
        %v3487 = vmax.f32 %v3486, 0.0
        %3489 = vrot.lane.b32.xlu0 %v3487, 32
        %v3490 = vpop.permute.xlu0 %3489
        %3492 = vst.msk [vmem:[#allocation4] sm:$0xf] %vm3263, %v3490
        %3493 = vst.msk [vmem:[#allocation4 + $0x1] sm:$0x7] %vm3265, %v3487
        %3494 = vrot.lane.b32.xlu0 %v3487, 64
        %v3495 = vpop.permute.xlu0 %3494
        %3497 = vst.msk [vmem:[#allocation4 - $0x1] sm:$0xe] %vm3270, %v3495
        %v3498 = vld [vmem:[#allocation4] sm:$0xf]
        %v3499 = vpack.c.bf16 %v3498, %v3498
        %s3500 = scalar_lea.vmem %s5, 96
        %v3501 = vld [vmem:[%s3500] sm:$0xf]
        %v3502 = vld [vmem:[%s3500 + $0x4] sm:$0xf]
        %v3503 = vld [vmem:[%s3500 + $0x8] sm:$0xf]
        %v3504 = vld [vmem:[%s3500 + $0xc] sm:$0xf]
        %v3505 = vld [vmem:[%s3500 + $0x10] sm:$0xf]
        %v3506 = vld [vmem:[%s3500 + $0x14] sm:$0xf]
        %v3507 = vld [vmem:[%s3500 + $0x18] sm:$0xf]
        %v3508 = vld [vmem:[%s3500 + $0x1c] sm:$0xf]
        %v3509 = vld [vmem:[%s3500 + $0x20] sm:$0xf]
        %v3510 = vld [vmem:[%s3500 + $0x24] sm:$0xf]
        %v3511 = vld [vmem:[%s3500 + $0x28] sm:$0xf]
        %v3512 = vld [vmem:[%s3500 + $0x2c] sm:$0xf]
        %s3513 = scalar_lea.vmem %s6, 2
        %v3514 = vld [vmem:[%s3513] sm:$0x1]
        %v3516 = vlaneseq
        %v3517 = vshrl.u32 %v3516, 7
        %v3518 = vsub.s32 0, %v3517
        %v3519 = vrot.slane %v3514, %v3518
        %v3533 = vunpack.c.l.b16 %v3501
        %v3534 = vunpack.c.l.b16 %v3502
        %v3535 = vunpack.c.l.b16 %v3503
        %v3536 = vunpack.c.l.b16 %v3504
        %v3537 = vunpack.c.l.b16 %v3505
        %v3538 = vunpack.c.l.b16 %v3506
        %v3539 = vunpack.c.l.b16 %v3507
        %v3540 = vunpack.c.l.b16 %v3508
        %v3541 = vunpack.c.l.b16 %v3509
        %v3542 = vunpack.c.l.b16 %v3510
        %v3543 = vunpack.c.l.b16 %v3511
        %v3544 = vunpack.c.l.b16 %v3512
        %v3545 = vpack.c.b16 %v3534, %v3533
        %v3546 = vpack.c.b16 %v3536, %v3535
        %v3547 = vpack.c.b16 %v3538, %v3537
        %v3548 = vpack.c.b16 %v3540, %v3539
        %v3549 = vpack.c.b16 %v3542, %v3541
        %v3550 = vpack.c.b16 %v3544, %v3543
        %v3558 = vsel %vm3329, %v3499, 0
        %3560 = vmatprep.subr.bf16.mxu0 0
        %3561 = vmatpush1.bf16.msra.mxu0 %v3545
        %3562 = vmatprep.subr.bf16.mxu0 0
        %3563 = vmatpush1.bf16.msra.mxu0 %v3546
        %3564 = vmatprep.subr.bf16.mxu0 0
        %3565 = vmatpush1.bf16.msra.mxu0 %v3547
        %3566 = vmatprep.subr.bf16.mxu0 0
        %3567 = vmatpush1.bf16.msra.mxu0 %v3548
        %3568 = vmatprep.subr.bf16.mxu0 0
        %3569 = vmatpush1.bf16.msra.mxu0 %v3549
        %3570 = vmatprep.subr.bf16.mxu0 0
        %3571 = vmatpush1.bf16.msra.mxu0 %v3550
        %3572 = vmatprep.subr.bf16.mxu0 0
        %3573 = vmatpush1.bf16.msra.mxu0 0
        %3574 = vmatprep.subr.bf16.mxu0 0
        %3575 = vmatpush1.bf16.msra.mxu0 0
        %3576 = vmatprep.subr.bf16.mxu0 0
        %3577 = vmatpush1.bf16.msra.mxu0 0
        %3578 = vmatprep.subr.bf16.mxu0 0
        %3579 = vmatpush1.bf16.msra.mxu0 0
        %3580 = vmatprep.subr.bf16.mxu0 0
        %3581 = vmatpush1.bf16.msra.mxu0 0
        %3582 = vmatprep.subr.bf16.mxu0 0
        %3583 = vmatpush1.bf16.msra.mxu0 0
        %3584 = vmatprep.subr.bf16.mxu0 0
        %3585 = vmatpush1.bf16.msra.mxu0 0
        %3586 = vmatprep.subr.bf16.mxu0 0
        %3587 = vmatpush1.bf16.msra.mxu0 0
        %3588 = vmatprep.subr.bf16.mxu0 0
        %3589 = vmatpush1.bf16.msra.mxu0 0
        %3590 = vmatprep.subr.bf16.mxu0 0
        %3591 = vmatpush1.bf16.msra.mxu0 0
        %3592 = vmatprep.mubr.bf16.mxu0 0
        %3593 = vmatmul.mubr.bf16.gmra.mrb[0].mxu0 %v3558
        %v3594 = vpop.f32.mrb[0].mxu0
        %v3595 = vadd.f32 %v3519, %v3594
        %v3596 = vpop.f32.mrb[0].mxu0
        %v3597 = vpop.f32.mrb[0].mxu0
        %v3598 = vpop.f32.mrb[0].mxu0
        %3599 = vdwg.mxu0
        %v3600 = vmax.f32 %v3595, 0.0
        %3602 = vrot.lane.b32.xlu0 %v3600, 32
        %v3603 = vpop.permute.xlu0 %3602
        %3605 = vst.msk [vmem:[#allocation4] sm:$0xf] %vm3263, %v3603
        %3606 = vst.msk [vmem:[#allocation4 + $0x1] sm:$0x7] %vm3265, %v3600
        %3607 = vrot.lane.b32.xlu0 %v3600, 64
        %v3608 = vpop.permute.xlu0 %3607
        %3610 = vst.msk [vmem:[#allocation4 - $0x1] sm:$0xe] %vm3270, %v3608
        %v3611 = vld [vmem:[#allocation4] sm:$0xf]
        %v3612 = vpack.c.bf16 %v3611, %v3611
        %s3613 = scalar_lea.vmem %s5, 144
        %v3614 = vld [vmem:[%s3613] sm:$0xf]
        %v3615 = vld [vmem:[%s3613 + $0x4] sm:$0xf]
        %v3616 = vld [vmem:[%s3613 + $0x8] sm:$0xf]
        %v3617 = vld [vmem:[%s3613 + $0xc] sm:$0xf]
        %v3618 = vld [vmem:[%s3613 + $0x10] sm:$0xf]
        %v3619 = vld [vmem:[%s3613 + $0x14] sm:$0xf]
        %v3620 = vld [vmem:[%s3613 + $0x18] sm:$0xf]
        %v3621 = vld [vmem:[%s3613 + $0x1c] sm:$0xf]
        %v3622 = vld [vmem:[%s3613 + $0x20] sm:$0xf]
        %v3623 = vld [vmem:[%s3613 + $0x24] sm:$0xf]
        %v3624 = vld [vmem:[%s3613 + $0x28] sm:$0xf]
        %v3625 = vld [vmem:[%s3613 + $0x2c] sm:$0xf]
        %s3626 = scalar_lea.vmem %s6, 3
        %v3627 = vld [vmem:[%s3626] sm:$0x1]
        %v3629 = vlaneseq
        %v3630 = vshrl.u32 %v3629, 7
        %v3631 = vsub.s32 0, %v3630
        %v3632 = vrot.slane %v3627, %v3631
        %v3646 = vunpack.c.l.b16 %v3614
        %v3647 = vunpack.c.l.b16 %v3615
        %v3648 = vunpack.c.l.b16 %v3616
        %v3649 = vunpack.c.l.b16 %v3617
        %v3650 = vunpack.c.l.b16 %v3618
        %v3651 = vunpack.c.l.b16 %v3619
        %v3652 = vunpack.c.l.b16 %v3620
        %v3653 = vunpack.c.l.b16 %v3621
        %v3654 = vunpack.c.l.b16 %v3622
        %v3655 = vunpack.c.l.b16 %v3623
        %v3656 = vunpack.c.l.b16 %v3624
        %v3657 = vunpack.c.l.b16 %v3625
        %v3658 = vpack.c.b16 %v3647, %v3646
        %v3659 = vpack.c.b16 %v3649, %v3648
        %v3660 = vpack.c.b16 %v3651, %v3650
        %v3661 = vpack.c.b16 %v3653, %v3652
        %v3662 = vpack.c.b16 %v3655, %v3654
        %v3663 = vpack.c.b16 %v3657, %v3656
        %v3671 = vsel %vm3329, %v3612, 0
        %3673 = vmatprep.subr.bf16.mxu0 0
        %3674 = vmatpush1.bf16.msra.mxu0 %v3658
        %3675 = vmatprep.subr.bf16.mxu0 0
        %3676 = vmatpush1.bf16.msra.mxu0 %v3659
        %3677 = vmatprep.subr.bf16.mxu0 0
        %3678 = vmatpush1.bf16.msra.mxu0 %v3660
        %3679 = vmatprep.subr.bf16.mxu0 0
        %3680 = vmatpush1.bf16.msra.mxu0 %v3661
        %3681 = vmatprep.subr.bf16.mxu0 0
        %3682 = vmatpush1.bf16.msra.mxu0 %v3662
        %3683 = vmatprep.subr.bf16.mxu0 0
        %3684 = vmatpush1.bf16.msra.mxu0 %v3663
        %3685 = vmatprep.subr.bf16.mxu0 0
        %3686 = vmatpush1.bf16.msra.mxu0 0
        %3687 = vmatprep.subr.bf16.mxu0 0
        %3688 = vmatpush1.bf16.msra.mxu0 0
        %3689 = vmatprep.subr.bf16.mxu0 0
        %3690 = vmatpush1.bf16.msra.mxu0 0
        %3691 = vmatprep.subr.bf16.mxu0 0
        %3692 = vmatpush1.bf16.msra.mxu0 0
        %3693 = vmatprep.subr.bf16.mxu0 0
        %3694 = vmatpush1.bf16.msra.mxu0 0
        %3695 = vmatprep.subr.bf16.mxu0 0
        %3696 = vmatpush1.bf16.msra.mxu0 0
        %3697 = vmatprep.subr.bf16.mxu0 0
        %3698 = vmatpush1.bf16.msra.mxu0 0
        %3699 = vmatprep.subr.bf16.mxu0 0
        %3700 = vmatpush1.bf16.msra.mxu0 0
        %3701 = vmatprep.subr.bf16.mxu0 0
        %3702 = vmatpush1.bf16.msra.mxu0 0
        %3703 = vmatprep.subr.bf16.mxu0 0
        %3704 = vmatpush1.bf16.msra.mxu0 0
        %3705 = vmatprep.mubr.bf16.mxu0 0
        %3706 = vmatmul.mubr.bf16.gmra.mrb[0].mxu0 %v3671
        %v3707 = vpop.f32.mrb[0].mxu0
        %v3708 = vadd.f32 %v3632, %v3707
        %v3709 = vpop.f32.mrb[0].mxu0
        %v3710 = vpop.f32.mrb[0].mxu0
        %v3711 = vpop.f32.mrb[0].mxu0
        %3712 = vdwg.mxu0
        %v3713 = vadd.f32 %v3708, %v3487
        %v3714 = vmax.f32 %v3713, 0.0
        %v3715 = vpack.c.bf16 %v3714, %v3714
        %v3716 = vld [vmem:[%s11] sm:$0xf]
        %v3717 = vld [vmem:[%s11 + $0x4] sm:$0xf]
        %v3718 = vld [vmem:[%s11 + $0x8] sm:$0xf]
        %v3719 = vld [vmem:[%s11 + $0xc] sm:$0xf]
        %v3720 = vld [vmem:[%s12] sm:$0x1]
        %v3722 = vlaneseq
        %v3723 = vshrl.u32 %v3722, 7
        %v3724 = vsub.s32 0, %v3723
        %v3725 = vrot.slane %v3720, %v3724
        %v3731 = vunpack.c.l.b16 %v3716
        %v3732 = vunpack.c.l.b16 %v3717
        %v3733 = vunpack.c.l.b16 %v3718
        %v3734 = vunpack.c.l.b16 %v3719
        %v3735 = vpack.c.b16 %v3732, %v3731
        %v3736 = vpack.c.b16 %v3734, %v3733
        %v3740 = vsel %vm3203, %v3715, 0
        %3742 = vmatprep.subr.bf16.mxu0 0
        %3743 = vmatpush1.bf16.msra.mxu0 %v3735
        %3744 = vmatprep.subr.bf16.mxu0 0
        %3745 = vmatpush1.bf16.msra.mxu0 %v3736
        %3746 = vmatprep.subr.bf16.mxu0 0
        %3747 = vmatpush1.bf16.msra.mxu0 0
        %3748 = vmatprep.subr.bf16.mxu0 0
        %3749 = vmatpush1.bf16.msra.mxu0 0
        %3750 = vmatprep.subr.bf16.mxu0 0
        %3751 = vmatpush1.bf16.msra.mxu0 0
        %3752 = vmatprep.subr.bf16.mxu0 0
        %3753 = vmatpush1.bf16.msra.mxu0 0
        %3754 = vmatprep.subr.bf16.mxu0 0
        %3755 = vmatpush1.bf16.msra.mxu0 0
        %3756 = vmatprep.subr.bf16.mxu0 0
        %3757 = vmatpush1.bf16.msra.mxu0 0
        %3758 = vmatprep.subr.bf16.mxu0 0
        %3759 = vmatpush1.bf16.msra.mxu0 0
        %3760 = vmatprep.subr.bf16.mxu0 0
        %3761 = vmatpush1.bf16.msra.mxu0 0
        %3762 = vmatprep.subr.bf16.mxu0 0
        %3763 = vmatpush1.bf16.msra.mxu0 0
        %3764 = vmatprep.subr.bf16.mxu0 0
        %3765 = vmatpush1.bf16.msra.mxu0 0
        %3766 = vmatprep.subr.bf16.mxu0 0
        %3767 = vmatpush1.bf16.msra.mxu0 0
        %3768 = vmatprep.subr.bf16.mxu0 0
        %3769 = vmatpush1.bf16.msra.mxu0 0
        %3770 = vmatprep.subr.bf16.mxu0 0
        %3771 = vmatpush1.bf16.msra.mxu0 0
        %3772 = vmatprep.subr.bf16.mxu0 0
        %3773 = vmatpush1.bf16.msra.mxu0 0
        %3774 = vmatprep.mubr.bf16.mxu0 0
        %3775 = vmatmul.mubr.bf16.gmra.mrb[0].mxu0 %v3740
        %v3776 = vpop.f32.mrb[0].mxu0
        %v3777 = vadd.f32 %v3725, %v3776
        %v3778 = vpop.f32.mrb[0].mxu0
        %v3779 = vpop.f32.mrb[0].mxu0
        %v3780 = vpop.f32.mrb[0].mxu0
        %3781 = vdwg.mxu0
        %v3782 = vmax.f32 %v3777, 0.0
        %s3783 = scalar_lea.vmem %s11, 16
        %v3784 = vld [vmem:[%s3783] sm:$0xf]
        %v3785 = vld [vmem:[%s3783 + $0x4] sm:$0xf]
        %v3786 = vld [vmem:[%s3783 + $0x8] sm:$0xf]
        %v3787 = vld [vmem:[%s3783 + $0xc] sm:$0xf]
        %v3792 = vunpack.c.l.b16 %v3784
        %v3793 = vunpack.c.l.b16 %v3785
        %v3794 = vunpack.c.l.b16 %v3786
        %v3795 = vunpack.c.l.b16 %v3787
        %v3796 = vpack.c.b16 %v3793, %v3792
        %v3797 = vpack.c.b16 %v3795, %v3794
        %3800 = vmatprep.subr.bf16.mxu0 0
        %3801 = vmatpush1.bf16.msra.mxu0 %v3796
        %3802 = vmatprep.subr.bf16.mxu0 0
        %3803 = vmatpush1.bf16.msra.mxu0 %v3797
        %3804 = vmatprep.subr.bf16.mxu0 0
        %3805 = vmatpush1.bf16.msra.mxu0 0
        %3806 = vmatprep.subr.bf16.mxu0 0
        %3807 = vmatpush1.bf16.msra.mxu0 0
        %3808 = vmatprep.subr.bf16.mxu0 0
        %3809 = vmatpush1.bf16.msra.mxu0 0
        %3810 = vmatprep.subr.bf16.mxu0 0
        %3811 = vmatpush1.bf16.msra.mxu0 0
        %3812 = vmatprep.subr.bf16.mxu0 0
        %3813 = vmatpush1.bf16.msra.mxu0 0
        %3814 = vmatprep.subr.bf16.mxu0 0
        %3815 = vmatpush1.bf16.msra.mxu0 0
        %3816 = vmatprep.subr.bf16.mxu0 0
        %3817 = vmatpush1.bf16.msra.mxu0 0
        %3818 = vmatprep.subr.bf16.mxu0 0
        %3819 = vmatpush1.bf16.msra.mxu0 0
        %3820 = vmatprep.subr.bf16.mxu0 0
        %3821 = vmatpush1.bf16.msra.mxu0 0
        %3822 = vmatprep.subr.bf16.mxu0 0
        %3823 = vmatpush1.bf16.msra.mxu0 0
        %3824 = vmatprep.subr.bf16.mxu0 0
        %3825 = vmatpush1.bf16.msra.mxu0 0
        %3826 = vmatprep.subr.bf16.mxu0 0
        %3827 = vmatpush1.bf16.msra.mxu0 0
        %3828 = vmatprep.subr.bf16.mxu0 0
        %3829 = vmatpush1.bf16.msra.mxu0 0
        %3830 = vmatprep.subr.bf16.mxu0 0
        %3831 = vmatpush1.bf16.msra.mxu0 0
        %3832 = vmatprep.mubr.bf16.mxu0 0
        %3833 = vmatmul.mubr.bf16.gmra.mrb[0].mxu0 %v3740
        %v3834 = vpop.f32.mrb[0].mxu0
        %v3835 = vadd.f32 %v3725, %v3834
        %v3836 = vpop.f32.mrb[0].mxu0
        %v3837 = vpop.f32.mrb[0].mxu0
        %v3838 = vpop.f32.mrb[0].mxu0
        %3839 = vdwg.mxu0
        %v3840 = vmax.f32 %v3835, 0.0
        %v3841 = vld [vmem:[%s13] sm:$0xf]
        %v3842 = vpack.c.bf16 %v3782, %v3782
        %s3843 = scalar_lea.vmem %s13, 4
        %v3844 = vld [vmem:[%s3843] sm:$0xf]
        %v3845 = vpack.c.bf16 %v3840, %v3840
        %vm3846 = vcmask 31744
        %v3848 = vsel %vm3846, %v3844, 0
        %vm3850 = vcmask 1041408
        %v3852 = vsel %vm3850, %v3845, 0
        %3854 = vmatprep.subr.bf16.mxu0 0
        %3855 = vmatpush1.bf16.msra.mxu0 %v3852
        %3856 = vmatprep.subr.bf16.mxu0 0
        %3857 = vmatpush1.bf16.msra.mxu0 0
        %3858 = vmatprep.subr.bf16.mxu0 0
        %3859 = vmatpush1.bf16.msra.mxu0 0
        %3860 = vmatprep.subr.bf16.mxu0 0
        %3861 = vmatpush1.bf16.msra.mxu0 0
        %3862 = vmatprep.subr.bf16.mxu0 0
        %3863 = vmatpush1.bf16.msra.mxu0 0
        %3864 = vmatprep.subr.bf16.mxu0 0
        %3865 = vmatpush1.bf16.msra.mxu0 0
        %3866 = vmatprep.subr.bf16.mxu0 0
        %3867 = vmatpush1.bf16.msra.mxu0 0
        %3868 = vmatprep.subr.bf16.mxu0 0
        %3869 = vmatpush1.bf16.msra.mxu0 0
        %3870 = vmatprep.subr.bf16.mxu0 0
        %3871 = vmatpush1.bf16.msra.mxu0 0
        %3872 = vmatprep.subr.bf16.mxu0 0
        %3873 = vmatpush1.bf16.msra.mxu0 0
        %3874 = vmatprep.subr.bf16.mxu0 0
        %3875 = vmatpush1.bf16.msra.mxu0 0
        %3876 = vmatprep.subr.bf16.mxu0 0
        %3877 = vmatpush1.bf16.msra.mxu0 0
        %3878 = vmatprep.subr.bf16.mxu0 0
        %3879 = vmatpush1.bf16.msra.mxu0 0
        %3880 = vmatprep.subr.bf16.mxu0 0
        %3881 = vmatpush1.bf16.msra.mxu0 0
        %3882 = vmatprep.subr.bf16.mxu0 0
        %3883 = vmatpush1.bf16.msra.mxu0 0
        %3884 = vmatprep.subr.bf16.mxu0 0
        %3885 = vmatpush1.bf16.msra.mxu0 0
        %3886 = vmatprep.mubr.bf16.mxu0 0
        %3887 = vmatmul.mubr.bf16.gmra.mrb[0].mxu0 %v3848
        %v3888 = vpop.f32.mrb[0].mxu0
        %v3889 = vadd.f32 0.0, %v3888
        %v3890 = vpop.f32.mrb[0].mxu0
        %v3891 = vpop.f32.mrb[0].mxu0
        %v3892 = vpop.f32.mrb[0].mxu0
        %3893 = vdwg.mxu0
        %v3895 = vsel %vm3846, %v3841, 0
        %v3898 = vsel %vm3850, %v3842, 0
        %3900 = vmatprep.subr.bf16.mxu0 0
        %3901 = vmatpush1.bf16.msra.mxu0 %v3898
        %3902 = vmatprep.subr.bf16.mxu0 0
        %3903 = vmatpush1.bf16.msra.mxu0 0
        %3904 = vmatprep.subr.bf16.mxu0 0
        %3905 = vmatpush1.bf16.msra.mxu0 0
        %3906 = vmatprep.subr.bf16.mxu0 0
        %3907 = vmatpush1.bf16.msra.mxu0 0
        %3908 = vmatprep.subr.bf16.mxu0 0
        %3909 = vmatpush1.bf16.msra.mxu0 0
        %3910 = vmatprep.subr.bf16.mxu0 0
        %3911 = vmatpush1.bf16.msra.mxu0 0
        %3912 = vmatprep.subr.bf16.mxu0 0
        %3913 = vmatpush1.bf16.msra.mxu0 0
        %3914 = vmatprep.subr.bf16.mxu0 0
        %3915 = vmatpush1.bf16.msra.mxu0 0
        %3916 = vmatprep.subr.bf16.mxu0 0
        %3917 = vmatpush1.bf16.msra.mxu0 0
        %3918 = vmatprep.subr.bf16.mxu0 0
        %3919 = vmatpush1.bf16.msra.mxu0 0
        %3920 = vmatprep.subr.bf16.mxu0 0
        %3921 = vmatpush1.bf16.msra.mxu0 0
        %3922 = vmatprep.subr.bf16.mxu0 0
        %3923 = vmatpush1.bf16.msra.mxu0 0
        %3924 = vmatprep.subr.bf16.mxu0 0
        %3925 = vmatpush1.bf16.msra.mxu0 0
        %3926 = vmatprep.subr.bf16.mxu0 0
        %3927 = vmatpush1.bf16.msra.mxu0 0
        %3928 = vmatprep.subr.bf16.mxu0 0
        %3929 = vmatpush1.bf16.msra.mxu0 0
        %3930 = vmatprep.subr.bf16.mxu0 0
        %3931 = vmatpush1.bf16.msra.mxu0 0
        %3932 = vmatprep.mubr.bf16.mxu0 0
        %3933 = vmatmul.mubr.bf16.gmra.mrb[0].mxu0 %v3895
        %v3934 = vpop.f32.mrb[0].mxu0
        %v3935 = vadd.f32 %v3889, %v3934
        %v3936 = vpop.f32.mrb[0].mxu0
        %v3937 = vpop.f32.mrb[0].mxu0
        %v3938 = vpop.f32.mrb[0].mxu0
        %3939 = vdwg.mxu0
        %3940 = vst.msk [vmem:[#allocation5] sm:$0xff] %vm2725, %v3111
        %3942 = vrot.lane.b32.xlu0 %v3935, 64
        %v3943 = vpop.permute.xlu0 %3942
        %3945 = vst.msk [vmem:[#allocation5] sm:$0xff] %vm2786, %v3943
        %v3946 = vld [vmem:[#allocation5] sm:$0xff]
        %v3947 = vpack.c.bf16 %v3946, %v3946
        %v3948 = vld [vmem:[%s14] sm:$0xf]
        %v3949 = vld [vmem:[%s14 + $0x4] sm:$0xf]
        %v3950 = vld [vmem:[%s14 + $0x8] sm:$0xf]
        %v3951 = vld [vmem:[%s14 + $0xc] sm:$0xf]
        %v3952 = vld [vmem:[%s14 + $0x10] sm:$0xf]
        %v3953 = vld [vmem:[%s14 + $0x14] sm:$0xf]
        %v3954 = vld [vmem:[%s14 + $0x18] sm:$0xf]
        %v3955 = vld [vmem:[%s14 + $0x1c] sm:$0xf]
        %v3956 = vld [vmem:[%s14 + $0x20] sm:$0xf]
        %v3957 = vld [vmem:[%s14 + $0x24] sm:$0xf]
        %v3958 = vld [vmem:[%s14 + $0x28] sm:$0xf]
        %v3959 = vld [vmem:[%s14 + $0x2c] sm:$0xf]
        %v3960 = vld [vmem:[%s14 + $0x30] sm:$0xf]
        %v3961 = vld [vmem:[%s14 + $0x34] sm:$0xf]
        %v3962 = vld [vmem:[%s14 + $0x38] sm:$0xf]
        %v3963 = vld [vmem:[%s14 + $0x3c] sm:$0xf]
        %v3964 = vld [vmem:[%s15] sm:$0x1]
        %v3966 = vlaneseq
        %v3967 = vshrl.u32 %v3966, 7
        %v3968 = vsub.s32 0, %v3967
        %v3969 = vrot.slane %v3964, %v3968
        %v3987 = vunpack.c.l.b16 %v3948
        %v3988 = vunpack.c.l.b16 %v3949
        %v3989 = vunpack.c.l.b16 %v3950
        %v3990 = vunpack.c.l.b16 %v3951
        %v3991 = vunpack.c.l.b16 %v3952
        %v3992 = vunpack.c.l.b16 %v3953
        %v3993 = vunpack.c.l.b16 %v3954
        %v3994 = vunpack.c.l.b16 %v3955
        %v3995 = vunpack.c.l.b16 %v3956
        %v3996 = vunpack.c.l.b16 %v3957
        %v3997 = vunpack.c.l.b16 %v3958
        %v3998 = vunpack.c.l.b16 %v3959
        %v3999 = vunpack.c.l.b16 %v3960
        %v4000 = vunpack.c.l.b16 %v3961
        %v4001 = vunpack.c.l.b16 %v3962
        %v4002 = vunpack.c.l.b16 %v3963
        %v4003 = vpack.c.b16 %v3988, %v3987
        %v4004 = vpack.c.b16 %v3990, %v3989
        %v4005 = vpack.c.b16 %v3992, %v3991
        %v4006 = vpack.c.b16 %v3994, %v3993
        %v4007 = vpack.c.b16 %v3996, %v3995
        %v4008 = vpack.c.b16 %v3998, %v3997
        %v4009 = vpack.c.b16 %v4000, %v3999
        %v4010 = vpack.c.b16 %v4002, %v4001
        %4019 = vmatprep.subr.bf16.mxu0 0
        %4020 = vmatpush1.bf16.msra.mxu0 %v4003
        %4021 = vmatprep.subr.bf16.mxu0 0
        %4022 = vmatpush1.bf16.msra.mxu0 %v4004
        %4023 = vmatprep.subr.bf16.mxu0 0
        %4024 = vmatpush1.bf16.msra.mxu0 %v4005
        %4025 = vmatprep.subr.bf16.mxu0 0
        %4026 = vmatpush1.bf16.msra.mxu0 %v4006
        %4027 = vmatprep.subr.bf16.mxu0 0
        %4028 = vmatpush1.bf16.msra.mxu0 %v4007
        %4029 = vmatprep.subr.bf16.mxu0 0
        %4030 = vmatpush1.bf16.msra.mxu0 %v4008
        %4031 = vmatprep.subr.bf16.mxu0 0
        %4032 = vmatpush1.bf16.msra.mxu0 %v4009
        %4033 = vmatprep.subr.bf16.mxu0 0
        %4034 = vmatpush1.bf16.msra.mxu0 %v4010
        %4035 = vmatprep.subr.bf16.mxu0 0
        %4036 = vmatpush1.bf16.msra.mxu0 0
        %4037 = vmatprep.subr.bf16.mxu0 0
        %4038 = vmatpush1.bf16.msra.mxu0 0
        %4039 = vmatprep.subr.bf16.mxu0 0
        %4040 = vmatpush1.bf16.msra.mxu0 0
        %4041 = vmatprep.subr.bf16.mxu0 0
        %4042 = vmatpush1.bf16.msra.mxu0 0
        %4043 = vmatprep.subr.bf16.mxu0 0
        %4044 = vmatpush1.bf16.msra.mxu0 0
        %4045 = vmatprep.subr.bf16.mxu0 0
        %4046 = vmatpush1.bf16.msra.mxu0 0
        %4047 = vmatprep.subr.bf16.mxu0 0
        %4048 = vmatpush1.bf16.msra.mxu0 0
        %4049 = vmatprep.subr.bf16.mxu0 0
        %4050 = vmatpush1.bf16.msra.mxu0 0
        %4051 = vmatprep.mubr.bf16.mxu0 0
        %4052 = vmatmul.mubr.bf16.gmra.mrb[0].mxu0 %v3947
        %v4053 = vpop.f32.mrb[0].mxu0
        %v4054 = vadd.f32 %v3969, %v4053
        %v4055 = vpop.f32.mrb[0].mxu0
        %v4056 = vpop.f32.mrb[0].mxu0
        %v4057 = vpop.f32.mrb[0].mxu0
        %4058 = vdwg.mxu0
        %v4059 = vmax.f32 %v4054, 0.0
        %4061 = vrot.lane.b32.xlu0 %v4059, 64
        %v4062 = vpop.permute.xlu0 %4061
        %4064 = vst.msk [vmem:[#allocation3] sm:$0xff] %vm2786, %v4062
        %v4065 = vrot.slane %v4059, 7
        %4067 = vst.msk [vmem:[#allocation3] sm:$0xfe] %vm2790, %v4065
        %v4068 = vrot.slane %v4059, 1
        %4070 = vst.msk [vmem:[#allocation3 + $0x8] sm:$0x7f] %vm2794, %v4068
        %v4071 = vld [vmem:[#allocation3] sm:$0xff]
        %v4072 = vld [vmem:[#allocation3 + $0x8] sm:$0xff]
        %v4073 = vpack.c.bf16 %v4071, %v4071
        %v4074 = vpack.c.bf16 %v4072, %v4072
        %s4075 = scalar_lea.vmem %s3, 192
        %v4076 = vld [vmem:[%s4075] sm:$0xf]
        %v4077 = vld [vmem:[%s4075 + $0x4] sm:$0xf]
        %v4078 = vld [vmem:[%s4075 + $0x8] sm:$0xf]
        %v4079 = vld [vmem:[%s4075 + $0xc] sm:$0xf]
        %v4080 = vld [vmem:[%s4075 + $0x10] sm:$0xf]
        %v4081 = vld [vmem:[%s4075 + $0x14] sm:$0xf]
        %v4082 = vld [vmem:[%s4075 + $0x18] sm:$0xf]
        %v4083 = vld [vmem:[%s4075 + $0x1c] sm:$0xf]
        %v4084 = vld [vmem:[%s4075 + $0x20] sm:$0xf]
        %v4085 = vld [vmem:[%s4075 + $0x24] sm:$0xf]
        %v4086 = vld [vmem:[%s4075 + $0x28] sm:$0xf]
        %v4087 = vld [vmem:[%s4075 + $0x2c] sm:$0xf]
        %v4088 = vld [vmem:[%s4075 + $0x30] sm:$0xf]
        %v4089 = vld [vmem:[%s4075 + $0x34] sm:$0xf]
        %v4090 = vld [vmem:[%s4075 + $0x38] sm:$0xf]
        %v4091 = vld [vmem:[%s4075 + $0x3c] sm:$0xf]
        %v4092 = vld [vmem:[%s4075 + $0x40] sm:$0xf]
        %v4093 = vld [vmem:[%s4075 + $0x44] sm:$0xf]
        %v4094 = vld [vmem:[%s4075 + $0x48] sm:$0xf]
        %v4095 = vld [vmem:[%s4075 + $0x4c] sm:$0xf]
        %v4096 = vld [vmem:[%s4075 + $0x50] sm:$0xf]
        %v4097 = vld [vmem:[%s4075 + $0x54] sm:$0xf]
        %v4098 = vld [vmem:[%s4075 + $0x58] sm:$0xf]
        %v4099 = vld [vmem:[%s4075 + $0x5c] sm:$0xf]
        %s4100 = scalar_lea.vmem %s4, 2
        %v4101 = vld [vmem:[%s4100] sm:$0x1]
        %v4103 = vlaneseq
        %v4104 = vshrl.u32 %v4103, 7
        %v4105 = vsub.s32 0, %v4104
        %v4106 = vrot.slane %v4101, %v4105
        %v4132 = vunpack.c.l.b16 %v4076
        %v4133 = vunpack.c.l.b16 %v4077
        %v4134 = vunpack.c.l.b16 %v4078
        %v4135 = vunpack.c.l.b16 %v4079
        %v4136 = vunpack.c.l.b16 %v4080
        %v4137 = vunpack.c.l.b16 %v4081
        %v4138 = vunpack.c.l.b16 %v4082
        %v4139 = vunpack.c.l.b16 %v4083
        %v4140 = vunpack.c.l.b16 %v4084
        %v4141 = vunpack.c.l.b16 %v4085
        %v4142 = vunpack.c.l.b16 %v4086
        %v4143 = vunpack.c.l.b16 %v4087
        %v4144 = vunpack.c.l.b16 %v4088
        %v4145 = vunpack.c.l.b16 %v4089
        %v4146 = vunpack.c.l.b16 %v4090
        %v4147 = vunpack.c.l.b16 %v4091
        %v4148 = vunpack.c.l.b16 %v4092
        %v4149 = vunpack.c.l.b16 %v4093
        %v4150 = vunpack.c.l.b16 %v4094
        %v4151 = vunpack.c.l.b16 %v4095
        %v4152 = vunpack.c.l.b16 %v4096
        %v4153 = vunpack.c.l.b16 %v4097
        %v4154 = vunpack.c.l.b16 %v4098
        %v4155 = vunpack.c.l.b16 %v4099
        %v4156 = vpack.c.b16 %v4133, %v4132
        %v4157 = vpack.c.b16 %v4135, %v4134
        %v4158 = vpack.c.b16 %v4137, %v4136
        %v4159 = vpack.c.b16 %v4139, %v4138
        %v4160 = vpack.c.b16 %v4141, %v4140
        %v4161 = vpack.c.b16 %v4143, %v4142
        %v4162 = vpack.c.b16 %v4145, %v4144
        %v4163 = vpack.c.b16 %v4147, %v4146
        %v4164 = vpack.c.b16 %v4149, %v4148
        %v4165 = vpack.c.b16 %v4151, %v4150
        %v4166 = vpack.c.b16 %v4153, %v4152
        %v4167 = vpack.c.b16 %v4155, %v4154
        %v4181 = vsel %vm2725, %v4074, 0
        %4183 = vmatprep.subr.bf16.mxu0 0
        %4184 = vmatpush1.bf16.msra.mxu0 %v4156
        %4185 = vmatprep.subr.bf16.mxu0 0
        %4186 = vmatpush1.bf16.msra.mxu0 %v4157
        %4187 = vmatprep.subr.bf16.mxu0 0
        %4188 = vmatpush1.bf16.msra.mxu0 %v4158
        %4189 = vmatprep.subr.bf16.mxu0 0
        %4190 = vmatpush1.bf16.msra.mxu0 %v4159
        %4191 = vmatprep.subr.bf16.mxu0 0
        %4192 = vmatpush1.bf16.msra.mxu0 %v4160
        %4193 = vmatprep.subr.bf16.mxu0 0
        %4194 = vmatpush1.bf16.msra.mxu0 %v4161
        %4195 = vmatprep.subr.bf16.mxu0 0
        %4196 = vmatpush1.bf16.msra.mxu0 %v4162
        %4197 = vmatprep.subr.bf16.mxu0 0
        %4198 = vmatpush1.bf16.msra.mxu0 %v4163
        %4199 = vmatprep.subr.bf16.mxu0 0
        %4200 = vmatpush1.bf16.msra.mxu0 %v4164
        %4201 = vmatprep.subr.bf16.mxu0 0
        %4202 = vmatpush1.bf16.msra.mxu0 %v4165
        %4203 = vmatprep.subr.bf16.mxu0 0
        %4204 = vmatpush1.bf16.msra.mxu0 %v4166
        %4205 = vmatprep.subr.bf16.mxu0 0
        %4206 = vmatpush1.bf16.msra.mxu0 %v4167
        %4207 = vmatprep.subr.bf16.mxu0 0
        %4208 = vmatpush1.bf16.msra.mxu0 0
        %4209 = vmatprep.subr.bf16.mxu0 0
        %4210 = vmatpush1.bf16.msra.mxu0 0
        %4211 = vmatprep.subr.bf16.mxu0 0
        %4212 = vmatpush1.bf16.msra.mxu0 0
        %4213 = vmatprep.subr.bf16.mxu0 0
        %4214 = vmatpush1.bf16.msra.mxu0 0
        %4215 = vmatprep.mubr.bf16.mxu0 %v4181
        %4216 = vmatmul.mubr.bf16.gmra.mrb[0].mxu0 %v4073
        %v4217 = vpop.f32.mrb[0].mxu0
        %v4218 = vadd.f32 %v4106, %v4217
        %v4219 = vpop.f32.mrb[0].mxu0
        %v4220 = vpop.f32.mrb[0].mxu0
        %v4221 = vpop.f32.mrb[0].mxu0
        %4222 = vdwg.mxu0
        %v4223 = vmax.f32 %v4218, 0.0
        %4225 = vrot.lane.b32.xlu0 %v4223, 64
        %v4226 = vpop.permute.xlu0 %4225
        %4228 = vst.msk [vmem:[#allocation3] sm:$0xff] %vm2786, %v4226
        %v4229 = vrot.slane %v4223, 7
        %4231 = vst.msk [vmem:[#allocation3] sm:$0xfe] %vm2790, %v4229
        %v4232 = vrot.slane %v4223, 1
        %4234 = vst.msk [vmem:[#allocation3 + $0x8] sm:$0x7f] %vm2794, %v4232
        %v4235 = vld [vmem:[#allocation3] sm:$0xff]
        %v4236 = vld [vmem:[#allocation3 + $0x8] sm:$0xff]
        %v4237 = vpack.c.bf16 %v4235, %v4235
        %v4238 = vpack.c.bf16 %v4236, %v4236
        %s4239 = scalar_lea.vmem %s3, 288
        %v4240 = vld [vmem:[%s4239] sm:$0xf]
        %v4241 = vld [vmem:[%s4239 + $0x4] sm:$0xf]
        %v4242 = vld [vmem:[%s4239 + $0x8] sm:$0xf]
        %v4243 = vld [vmem:[%s4239 + $0xc] sm:$0xf]
        %v4244 = vld [vmem:[%s4239 + $0x10] sm:$0xf]
        %v4245 = vld [vmem:[%s4239 + $0x14] sm:$0xf]
        %v4246 = vld [vmem:[%s4239 + $0x18] sm:$0xf]
        %v4247 = vld [vmem:[%s4239 + $0x1c] sm:$0xf]
        %v4248 = vld [vmem:[%s4239 + $0x20] sm:$0xf]
        %v4249 = vld [vmem:[%s4239 + $0x24] sm:$0xf]
        %v4250 = vld [vmem:[%s4239 + $0x28] sm:$0xf]
        %v4251 = vld [vmem:[%s4239 + $0x2c] sm:$0xf]
        %v4252 = vld [vmem:[%s4239 + $0x30] sm:$0xf]
        %v4253 = vld [vmem:[%s4239 + $0x34] sm:$0xf]
        %v4254 = vld [vmem:[%s4239 + $0x38] sm:$0xf]
        %v4255 = vld [vmem:[%s4239 + $0x3c] sm:$0xf]
        %v4256 = vld [vmem:[%s4239 + $0x40] sm:$0xf]
        %v4257 = vld [vmem:[%s4239 + $0x44] sm:$0xf]
        %v4258 = vld [vmem:[%s4239 + $0x48] sm:$0xf]
        %v4259 = vld [vmem:[%s4239 + $0x4c] sm:$0xf]
        %v4260 = vld [vmem:[%s4239 + $0x50] sm:$0xf]
        %v4261 = vld [vmem:[%s4239 + $0x54] sm:$0xf]
        %v4262 = vld [vmem:[%s4239 + $0x58] sm:$0xf]
        %v4263 = vld [vmem:[%s4239 + $0x5c] sm:$0xf]
        %s4264 = scalar_lea.vmem %s4, 3
        %v4265 = vld [vmem:[%s4264] sm:$0x1]
        %v4267 = vlaneseq
        %v4268 = vshrl.u32 %v4267, 7
        %v4269 = vsub.s32 0, %v4268
        %v4270 = vrot.slane %v4265, %v4269
        %v4296 = vunpack.c.l.b16 %v4240
        %v4297 = vunpack.c.l.b16 %v4241
        %v4298 = vunpack.c.l.b16 %v4242
        %v4299 = vunpack.c.l.b16 %v4243
        %v4300 = vunpack.c.l.b16 %v4244
        %v4301 = vunpack.c.l.b16 %v4245
        %v4302 = vunpack.c.l.b16 %v4246
        %v4303 = vunpack.c.l.b16 %v4247
        %v4304 = vunpack.c.l.b16 %v4248
        %v4305 = vunpack.c.l.b16 %v4249
        %v4306 = vunpack.c.l.b16 %v4250
        %v4307 = vunpack.c.l.b16 %v4251
        %v4308 = vunpack.c.l.b16 %v4252
        %v4309 = vunpack.c.l.b16 %v4253
        %v4310 = vunpack.c.l.b16 %v4254
        %v4311 = vunpack.c.l.b16 %v4255
        %v4312 = vunpack.c.l.b16 %v4256
        %v4313 = vunpack.c.l.b16 %v4257
        %v4314 = vunpack.c.l.b16 %v4258
        %v4315 = vunpack.c.l.b16 %v4259
        %v4316 = vunpack.c.l.b16 %v4260
        %v4317 = vunpack.c.l.b16 %v4261
        %v4318 = vunpack.c.l.b16 %v4262
        %v4319 = vunpack.c.l.b16 %v4263
        %v4320 = vpack.c.b16 %v4297, %v4296
        %v4321 = vpack.c.b16 %v4299, %v4298
        %v4322 = vpack.c.b16 %v4301, %v4300
        %v4323 = vpack.c.b16 %v4303, %v4302
        %v4324 = vpack.c.b16 %v4305, %v4304
        %v4325 = vpack.c.b16 %v4307, %v4306
        %v4326 = vpack.c.b16 %v4309, %v4308
        %v4327 = vpack.c.b16 %v4311, %v4310
        %v4328 = vpack.c.b16 %v4313, %v4312
        %v4329 = vpack.c.b16 %v4315, %v4314
        %v4330 = vpack.c.b16 %v4317, %v4316
        %v4331 = vpack.c.b16 %v4319, %v4318
        %v4345 = vsel %vm2725, %v4238, 0
        %4347 = vmatprep.subr.bf16.mxu0 0
        %4348 = vmatpush1.bf16.msra.mxu0 %v4320
        %4349 = vmatprep.subr.bf16.mxu0 0
        %4350 = vmatpush1.bf16.msra.mxu0 %v4321
        %4351 = vmatprep.subr.bf16.mxu0 0
        %4352 = vmatpush1.bf16.msra.mxu0 %v4322
        %4353 = vmatprep.subr.bf16.mxu0 0
        %4354 = vmatpush1.bf16.msra.mxu0 %v4323
        %4355 = vmatprep.subr.bf16.mxu0 0
        %4356 = vmatpush1.bf16.msra.mxu0 %v4324
        %4357 = vmatprep.subr.bf16.mxu0 0
        %4358 = vmatpush1.bf16.msra.mxu0 %v4325
        %4359 = vmatprep.subr.bf16.mxu0 0
        %4360 = vmatpush1.bf16.msra.mxu0 %v4326
        %4361 = vmatprep.subr.bf16.mxu0 0
        %4362 = vmatpush1.bf16.msra.mxu0 %v4327
        %4363 = vmatprep.subr.bf16.mxu0 0
        %4364 = vmatpush1.bf16.msra.mxu0 %v4328
        %4365 = vmatprep.subr.bf16.mxu0 0
        %4366 = vmatpush1.bf16.msra.mxu0 %v4329
        %4367 = vmatprep.subr.bf16.mxu0 0
        %4368 = vmatpush1.bf16.msra.mxu0 %v4330
        %4369 = vmatprep.subr.bf16.mxu0 0
        %4370 = vmatpush1.bf16.msra.mxu0 %v4331
        %4371 = vmatprep.subr.bf16.mxu0 0
        %4372 = vmatpush1.bf16.msra.mxu0 0
        %4373 = vmatprep.subr.bf16.mxu0 0
        %4374 = vmatpush1.bf16.msra.mxu0 0
        %4375 = vmatprep.subr.bf16.mxu0 0
        %4376 = vmatpush1.bf16.msra.mxu0 0
        %4377 = vmatprep.subr.bf16.mxu0 0
        %4378 = vmatpush1.bf16.msra.mxu0 0
        %4379 = vmatprep.mubr.bf16.mxu0 %v4345
        %4380 = vmatmul.mubr.bf16.gmra.mrb[0].mxu0 %v4237
        %v4381 = vpop.f32.mrb[0].mxu0
        %v4382 = vadd.f32 %v4270, %v4381
        %v4383 = vpop.f32.mrb[0].mxu0
        %v4384 = vpop.f32.mrb[0].mxu0
        %v4385 = vpop.f32.mrb[0].mxu0
        %4386 = vdwg.mxu0
        %v4387 = vadd.f32 %v4382, %v4059
        %v4388 = vmax.f32 %v4387, 0.0
        %v4389 = vpack.c.bf16 %v4388, %v4388
        %v4390 = vld [vmem:[%s16] sm:$0xf]
        %v4391 = vld [vmem:[%s16 + $0x4] sm:$0xf]
        %v4392 = vld [vmem:[%s16 + $0x8] sm:$0xf]
        %v4393 = vld [vmem:[%s16 + $0xc] sm:$0xf]
        %v4394 = vld [vmem:[%s16 + $0x10] sm:$0xf]
        %v4395 = vld [vmem:[%s16 + $0x14] sm:$0xf]
        %v4396 = vld [vmem:[%s16 + $0x18] sm:$0xf]
        %v4397 = vld [vmem:[%s16 + $0x1c] sm:$0xf]
        %v4398 = vld [vmem:[%s17] sm:$0x1]
        %v4400 = vlaneseq
        %v4401 = vshrl.u32 %v4400, 7
        %v4402 = vsub.s32 0, %v4401
        %v4403 = vrot.slane %v4398, %v4402
        %v4413 = vunpack.c.l.b16 %v4390
        %v4414 = vunpack.c.l.b16 %v4391
        %v4415 = vunpack.c.l.b16 %v4392
        %v4416 = vunpack.c.l.b16 %v4393
        %v4417 = vunpack.c.l.b16 %v4394
        %v4418 = vunpack.c.l.b16 %v4395
        %v4419 = vunpack.c.l.b16 %v4396
        %v4420 = vunpack.c.l.b16 %v4397
        %v4421 = vpack.c.b16 %v4414, %v4413
        %v4422 = vpack.c.b16 %v4416, %v4415
        %v4423 = vpack.c.b16 %v4418, %v4417
        %v4424 = vpack.c.b16 %v4420, %v4419
        %v4430 = vsel %vm2725, %v4389, 0
        %4432 = vmatprep.subr.bf16.mxu0 0
        %4433 = vmatpush1.bf16.msra.mxu0 %v4421
        %4434 = vmatprep.subr.bf16.mxu0 0
        %4435 = vmatpush1.bf16.msra.mxu0 %v4422
        %4436 = vmatprep.subr.bf16.mxu0 0
        %4437 = vmatpush1.bf16.msra.mxu0 %v4423
        %4438 = vmatprep.subr.bf16.mxu0 0
        %4439 = vmatpush1.bf16.msra.mxu0 %v4424
        %4440 = vmatprep.subr.bf16.mxu0 0
        %4441 = vmatpush1.bf16.msra.mxu0 0
        %4442 = vmatprep.subr.bf16.mxu0 0
        %4443 = vmatpush1.bf16.msra.mxu0 0
        %4444 = vmatprep.subr.bf16.mxu0 0
        %4445 = vmatpush1.bf16.msra.mxu0 0
        %4446 = vmatprep.subr.bf16.mxu0 0
        %4447 = vmatpush1.bf16.msra.mxu0 0
        %4448 = vmatprep.subr.bf16.mxu0 0
        %4449 = vmatpush1.bf16.msra.mxu0 0
        %4450 = vmatprep.subr.bf16.mxu0 0
        %4451 = vmatpush1.bf16.msra.mxu0 0
        %4452 = vmatprep.subr.bf16.mxu0 0
        %4453 = vmatpush1.bf16.msra.mxu0 0
        %4454 = vmatprep.subr.bf16.mxu0 0
        %4455 = vmatpush1.bf16.msra.mxu0 0
        %4456 = vmatprep.subr.bf16.mxu0 0
        %4457 = vmatpush1.bf16.msra.mxu0 0
        %4458 = vmatprep.subr.bf16.mxu0 0
        %4459 = vmatpush1.bf16.msra.mxu0 0
        %4460 = vmatprep.subr.bf16.mxu0 0
        %4461 = vmatpush1.bf16.msra.mxu0 0
        %4462 = vmatprep.subr.bf16.mxu0 0
        %4463 = vmatpush1.bf16.msra.mxu0 0
        %4464 = vmatprep.mubr.bf16.mxu0 0
        %4465 = vmatmul.mubr.bf16.gmra.mrb[0].mxu0 %v4430
        %v4466 = vpop.f32.mrb[0].mxu0
        %v4467 = vadd.f32 %v4403, %v4466
        %v4468 = vpop.f32.mrb[0].mxu0
        %v4469 = vpop.f32.mrb[0].mxu0
        %v4470 = vpop.f32.mrb[0].mxu0
        %4471 = vdwg.mxu0
        %v4472 = vmax.f32 %v4467, 0.0
        %s4473 = scalar_lea.vmem %s16, 32
        %v4474 = vld [vmem:[%s4473] sm:$0xf]
        %v4475 = vld [vmem:[%s4473 + $0x4] sm:$0xf]
        %v4476 = vld [vmem:[%s4473 + $0x8] sm:$0xf]
        %v4477 = vld [vmem:[%s4473 + $0xc] sm:$0xf]
        %v4478 = vld [vmem:[%s4473 + $0x10] sm:$0xf]
        %v4479 = vld [vmem:[%s4473 + $0x14] sm:$0xf]
        %v4480 = vld [vmem:[%s4473 + $0x18] sm:$0xf]
        %v4481 = vld [vmem:[%s4473 + $0x1c] sm:$0xf]
        %v4490 = vunpack.c.l.b16 %v4474
        %v4491 = vunpack.c.l.b16 %v4475
        %v4492 = vunpack.c.l.b16 %v4476
        %v4493 = vunpack.c.l.b16 %v4477
        %v4494 = vunpack.c.l.b16 %v4478
        %v4495 = vunpack.c.l.b16 %v4479
        %v4496 = vunpack.c.l.b16 %v4480
        %v4497 = vunpack.c.l.b16 %v4481
        %v4498 = vpack.c.b16 %v4491, %v4490
        %v4499 = vpack.c.b16 %v4493, %v4492
        %v4500 = vpack.c.b16 %v4495, %v4494
        %v4501 = vpack.c.b16 %v4497, %v4496
        %4506 = vmatprep.subr.bf16.mxu0 0
        %4507 = vmatpush1.bf16.msra.mxu0 %v4498
        %4508 = vmatprep.subr.bf16.mxu0 0
        %4509 = vmatpush1.bf16.msra.mxu0 %v4499
        %4510 = vmatprep.subr.bf16.mxu0 0
        %4511 = vmatpush1.bf16.msra.mxu0 %v4500
        %4512 = vmatprep.subr.bf16.mxu0 0
        %4513 = vmatpush1.bf16.msra.mxu0 %v4501
        %4514 = vmatprep.subr.bf16.mxu0 0
        %4515 = vmatpush1.bf16.msra.mxu0 0
        %4516 = vmatprep.subr.bf16.mxu0 0
        %4517 = vmatpush1.bf16.msra.mxu0 0
        %4518 = vmatprep.subr.bf16.mxu0 0
        %4519 = vmatpush1.bf16.msra.mxu0 0
        %4520 = vmatprep.subr.bf16.mxu0 0
        %4521 = vmatpush1.bf16.msra.mxu0 0
        %4522 = vmatprep.subr.bf16.mxu0 0
        %4523 = vmatpush1.bf16.msra.mxu0 0
        %4524 = vmatprep.subr.bf16.mxu0 0
        %4525 = vmatpush1.bf16.msra.mxu0 0
        %4526 = vmatprep.subr.bf16.mxu0 0
        %4527 = vmatpush1.bf16.msra.mxu0 0
        %4528 = vmatprep.subr.bf16.mxu0 0
        %4529 = vmatpush1.bf16.msra.mxu0 0
        %4530 = vmatprep.subr.bf16.mxu0 0
        %4531 = vmatpush1.bf16.msra.mxu0 0
        %4532 = vmatprep.subr.bf16.mxu0 0
        %4533 = vmatpush1.bf16.msra.mxu0 0
        %4534 = vmatprep.subr.bf16.mxu0 0
        %4535 = vmatpush1.bf16.msra.mxu0 0
        %4536 = vmatprep.subr.bf16.mxu0 0
        %4537 = vmatpush1.bf16.msra.mxu0 0
        %4538 = vmatprep.mubr.bf16.mxu0 0
        %4539 = vmatmul.mubr.bf16.gmra.mrb[0].mxu0 %v4430
        %v4540 = vpop.f32.mrb[0].mxu0
        %v4541 = vadd.f32 %v4403, %v4540
        %v4542 = vpop.f32.mrb[0].mxu0
        %v4543 = vpop.f32.mrb[0].mxu0
        %v4544 = vpop.f32.mrb[0].mxu0
        %4545 = vdwg.mxu0
        %v4546 = vmax.f32 %v4541, 0.0
        %v4547 = vld [vmem:[%s18] sm:$0xf]
        %v4548 = vld [vmem:[%s18 + $0x4] sm:$0xf]
        %v4549 = vpack.c.bf16 %v4472, %v4472
        %s4550 = scalar_lea.vmem %s18, 8
        %v4551 = vld [vmem:[%s4550] sm:$0xf]
        %v4552 = vld [vmem:[%s4550 + $0x4] sm:$0xf]
        %v4553 = vpack.c.bf16 %v4546, %v4546
        %v4556 = vunpack.c.l.b16 %v4551
        %v4557 = vunpack.c.l.b16 %v4552
        %v4558 = vpack.c.b16 %v4557, %v4556
        %v4560 = vsel %vm3211, %v4558, 0
        %v4563 = vsel %vm3215, %v4553, 0
        %4565 = vmatprep.subr.bf16.mxu0 0
        %4566 = vmatpush1.bf16.msra.mxu0 %v4563
        %4567 = vmatprep.subr.bf16.mxu0 0
        %4568 = vmatpush1.bf16.msra.mxu0 0
        %4569 = vmatprep.subr.bf16.mxu0 0
        %4570 = vmatpush1.bf16.msra.mxu0 0
        %4571 = vmatprep.subr.bf16.mxu0 0
        %4572 = vmatpush1.bf16.msra.mxu0 0
        %4573 = vmatprep.subr.bf16.mxu0 0
        %4574 = vmatpush1.bf16.msra.mxu0 0
        %4575 = vmatprep.subr.bf16.mxu0 0
        %4576 = vmatpush1.bf16.msra.mxu0 0
        %4577 = vmatprep.subr.bf16.mxu0 0
        %4578 = vmatpush1.bf16.msra.mxu0 0
        %4579 = vmatprep.subr.bf16.mxu0 0
        %4580 = vmatpush1.bf16.msra.mxu0 0
        %4581 = vmatprep.subr.bf16.mxu0 0
        %4582 = vmatpush1.bf16.msra.mxu0 0
        %4583 = vmatprep.subr.bf16.mxu0 0
        %4584 = vmatpush1.bf16.msra.mxu0 0
        %4585 = vmatprep.subr.bf16.mxu0 0
        %4586 = vmatpush1.bf16.msra.mxu0 0
        %4587 = vmatprep.subr.bf16.mxu0 0
        %4588 = vmatpush1.bf16.msra.mxu0 0
        %4589 = vmatprep.subr.bf16.mxu0 0
        %4590 = vmatpush1.bf16.msra.mxu0 0
        %4591 = vmatprep.subr.bf16.mxu0 0
        %4592 = vmatpush1.bf16.msra.mxu0 0
        %4593 = vmatprep.subr.bf16.mxu0 0
        %4594 = vmatpush1.bf16.msra.mxu0 0
        %4595 = vmatprep.subr.bf16.mxu0 0
        %4596 = vmatpush1.bf16.msra.mxu0 0
        %4597 = vmatprep.mubr.bf16.mxu0 0
        %4598 = vmatmul.mubr.bf16.gmra.mrb[0].mxu0 %v4560
        %v4599 = vpop.f32.mrb[0].mxu0
        %v4600 = vadd.f32 0.0, %v4599
        %v4601 = vpop.f32.mrb[0].mxu0
        %v4602 = vpop.f32.mrb[0].mxu0
        %v4603 = vadd.f32 0.0, %v4602
        %v4604 = vpop.f32.mrb[0].mxu0
        %4605 = vdwg.mxu0
        %v4608 = vunpack.c.l.b16 %v4547
        %v4609 = vunpack.c.l.b16 %v4548
        %v4610 = vpack.c.b16 %v4609, %v4608
        %v4612 = vsel %vm3211, %v4610, 0
        %v4615 = vsel %vm3215, %v4549, 0
        %4617 = vmatprep.subr.bf16.mxu0 0
        %4618 = vmatpush1.bf16.msra.mxu0 %v4615
        %4619 = vmatprep.subr.bf16.mxu0 0
        %4620 = vmatpush1.bf16.msra.mxu0 0
        %4621 = vmatprep.subr.bf16.mxu0 0
        %4622 = vmatpush1.bf16.msra.mxu0 0
        %4623 = vmatprep.subr.bf16.mxu0 0
        %4624 = vmatpush1.bf16.msra.mxu0 0
        %4625 = vmatprep.subr.bf16.mxu0 0
        %4626 = vmatpush1.bf16.msra.mxu0 0
        %4627 = vmatprep.subr.bf16.mxu0 0
        %4628 = vmatpush1.bf16.msra.mxu0 0
        %4629 = vmatprep.subr.bf16.mxu0 0
        %4630 = vmatpush1.bf16.msra.mxu0 0
        %4631 = vmatprep.subr.bf16.mxu0 0
        %4632 = vmatpush1.bf16.msra.mxu0 0
        %4633 = vmatprep.subr.bf16.mxu0 0
        %4634 = vmatpush1.bf16.msra.mxu0 0
        %4635 = vmatprep.subr.bf16.mxu0 0
        %4636 = vmatpush1.bf16.msra.mxu0 0
        %4637 = vmatprep.subr.bf16.mxu0 0
        %4638 = vmatpush1.bf16.msra.mxu0 0
        %4639 = vmatprep.subr.bf16.mxu0 0
        %4640 = vmatpush1.bf16.msra.mxu0 0
        %4641 = vmatprep.subr.bf16.mxu0 0
        %4642 = vmatpush1.bf16.msra.mxu0 0
        %4643 = vmatprep.subr.bf16.mxu0 0
        %4644 = vmatpush1.bf16.msra.mxu0 0
        %4645 = vmatprep.subr.bf16.mxu0 0
        %4646 = vmatpush1.bf16.msra.mxu0 0
        %4647 = vmatprep.subr.bf16.mxu0 0
        %4648 = vmatpush1.bf16.msra.mxu0 0
        %4649 = vmatprep.mubr.bf16.mxu0 0
        %4650 = vmatmul.mubr.bf16.gmra.mrb[0].mxu0 %v4612
        %v4651 = vpop.f32.mrb[0].mxu0
        %v4652 = vadd.f32 %v4600, %v4651
        %v4653 = vpop.f32.mrb[0].mxu0
        %v4654 = vpop.f32.mrb[0].mxu0
        %v4655 = vadd.f32 %v4603, %v4654
        %v4656 = vpop.f32.mrb[0].mxu0
        %4657 = vdwg.mxu0
        %4658 = vst [vmem:[#allocation6] sm:$0xff] %v2550
        %4659 = vst [vmem:[#allocation6 + $0x10] sm:$0xff] %v2551
        %4660 = vst [vmem:[#allocation6 + $0x8] sm:$0xff] %v4652
        %4661 = vst [vmem:[#allocation6 + $0x18] sm:$0xff] %v4655
        %v4662 = vld [vmem:[#allocation6] sm:$0xff]
        %v4663 = vld [vmem:[#allocation6 + $0x8] sm:$0xff]
        %v4664 = vld [vmem:[#allocation6 + $0x10] sm:$0xff]
        %v4665 = vld [vmem:[#allocation6 + $0x18] sm:$0xff]
        %v4666 = vpack.c.bf16 %v4664, %v4662
        %v4667 = vpack.c.bf16 %v4665, %v4663
        %v4668 = vld [vmem:[%s19] sm:$0xf]
        %v4669 = vld [vmem:[%s19 + $0x4] sm:$0xf]
        %v4670 = vld [vmem:[%s19 + $0x8] sm:$0xf]
        %v4671 = vld [vmem:[%s19 + $0xc] sm:$0xf]
        %v4672 = vld [vmem:[%s19 + $0x10] sm:$0xf]
        %v4673 = vld [vmem:[%s19 + $0x14] sm:$0xf]
        %v4674 = vld [vmem:[%s19 + $0x18] sm:$0xf]
        %v4675 = vld [vmem:[%s19 + $0x1c] sm:$0xf]
        %v4676 = vld [vmem:[%s19 + $0x20] sm:$0xf]
        %v4677 = vld [vmem:[%s19 + $0x24] sm:$0xf]
        %v4678 = vld [vmem:[%s19 + $0x28] sm:$0xf]
        %v4679 = vld [vmem:[%s19 + $0x2c] sm:$0xf]
        %v4680 = vld [vmem:[%s19 + $0x30] sm:$0xf]
        %v4681 = vld [vmem:[%s19 + $0x34] sm:$0xf]
        %v4682 = vld [vmem:[%s19 + $0x38] sm:$0xf]
        %v4683 = vld [vmem:[%s19 + $0x3c] sm:$0xf]
        %v4684 = vld [vmem:[%s19 + $0x40] sm:$0xf]
        %v4685 = vld [vmem:[%s19 + $0x44] sm:$0xf]
        %v4686 = vld [vmem:[%s19 + $0x48] sm:$0xf]
        %v4687 = vld [vmem:[%s19 + $0x4c] sm:$0xf]
        %v4688 = vld [vmem:[%s19 + $0x50] sm:$0xf]
        %v4689 = vld [vmem:[%s19 + $0x54] sm:$0xf]
        %v4690 = vld [vmem:[%s19 + $0x58] sm:$0xf]
        %v4691 = vld [vmem:[%s19 + $0x5c] sm:$0xf]
        %v4692 = vld [vmem:[%s19 + $0x60] sm:$0xf]
        %v4693 = vld [vmem:[%s19 + $0x64] sm:$0xf]
        %v4694 = vld [vmem:[%s19 + $0x68] sm:$0xf]
        %v4695 = vld [vmem:[%s19 + $0x6c] sm:$0xf]
        %v4696 = vld [vmem:[%s19 + $0x70] sm:$0xf]
        %v4697 = vld [vmem:[%s19 + $0x74] sm:$0xf]
        %v4698 = vld [vmem:[%s19 + $0x78] sm:$0xf]
        %v4699 = vld [vmem:[%s19 + $0x7c] sm:$0xf]
        %v4700 = vld [vmem:[%s20] sm:$0x1]
        %v4702 = vlaneseq
        %v4703 = vshrl.u32 %v4702, 7
        %v4704 = vsub.s32 0, %v4703
        %v4705 = vrot.slane %v4700, %v4704
        %v4739 = vunpack.c.l.b16 %v4668
        %v4740 = vunpack.c.l.b16 %v4669
        %v4741 = vunpack.c.l.b16 %v4670
        %v4742 = vunpack.c.l.b16 %v4671
        %v4743 = vunpack.c.l.b16 %v4672
        %v4744 = vunpack.c.l.b16 %v4673
        %v4745 = vunpack.c.l.b16 %v4674
        %v4746 = vunpack.c.l.b16 %v4675
        %v4747 = vunpack.c.l.b16 %v4676
        %v4748 = vunpack.c.l.b16 %v4677
        %v4749 = vunpack.c.l.b16 %v4678
        %v4750 = vunpack.c.l.b16 %v4679
        %v4751 = vunpack.c.l.b16 %v4680
        %v4752 = vunpack.c.l.b16 %v4681
        %v4753 = vunpack.c.l.b16 %v4682
        %v4754 = vunpack.c.l.b16 %v4683
        %v4755 = vunpack.c.l.b16 %v4684
        %v4756 = vunpack.c.l.b16 %v4685
        %v4757 = vunpack.c.l.b16 %v4686
        %v4758 = vunpack.c.l.b16 %v4687
        %v4759 = vunpack.c.l.b16 %v4688
        %v4760 = vunpack.c.l.b16 %v4689
        %v4761 = vunpack.c.l.b16 %v4690
        %v4762 = vunpack.c.l.b16 %v4691
        %v4763 = vunpack.c.l.b16 %v4692
        %v4764 = vunpack.c.l.b16 %v4693
        %v4765 = vunpack.c.l.b16 %v4694
        %v4766 = vunpack.c.l.b16 %v4695
        %v4767 = vunpack.c.l.b16 %v4696
        %v4768 = vunpack.c.l.b16 %v4697
        %v4769 = vunpack.c.l.b16 %v4698
        %v4770 = vunpack.c.l.b16 %v4699
        %v4771 = vpack.c.b16 %v4740, %v4739
        %v4772 = vpack.c.b16 %v4742, %v4741
        %v4773 = vpack.c.b16 %v4744, %v4743
        %v4774 = vpack.c.b16 %v4746, %v4745
        %v4775 = vpack.c.b16 %v4748, %v4747
        %v4776 = vpack.c.b16 %v4750, %v4749
        %v4777 = vpack.c.b16 %v4752, %v4751
        %v4778 = vpack.c.b16 %v4754, %v4753
        %v4779 = vpack.c.b16 %v4756, %v4755
        %v4780 = vpack.c.b16 %v4758, %v4757
        %v4781 = vpack.c.b16 %v4760, %v4759
        %v4782 = vpack.c.b16 %v4762, %v4761
        %v4783 = vpack.c.b16 %v4764, %v4763
        %v4784 = vpack.c.b16 %v4766, %v4765
        %v4785 = vpack.c.b16 %v4768, %v4767
        %v4786 = vpack.c.b16 %v4770, %v4769
        %4803 = vmatprep.subr.bf16.mxu0 0
        %4804 = vmatpush1.bf16.msra.mxu0 %v4771
        %4805 = vmatprep.subr.bf16.mxu0 0
        %4806 = vmatpush1.bf16.msra.mxu0 %v4772
        %4807 = vmatprep.subr.bf16.mxu0 0
        %4808 = vmatpush1.bf16.msra.mxu0 %v4773
        %4809 = vmatprep.subr.bf16.mxu0 0
        %4810 = vmatpush1.bf16.msra.mxu0 %v4774
        %4811 = vmatprep.subr.bf16.mxu0 0
        %4812 = vmatpush1.bf16.msra.mxu0 %v4775
        %4813 = vmatprep.subr.bf16.mxu0 0
        %4814 = vmatpush1.bf16.msra.mxu0 %v4776
        %4815 = vmatprep.subr.bf16.mxu0 0
        %4816 = vmatpush1.bf16.msra.mxu0 %v4777
        %4817 = vmatprep.subr.bf16.mxu0 0
        %4818 = vmatpush1.bf16.msra.mxu0 %v4778
        %4819 = vmatprep.subr.bf16.mxu0 0
        %4820 = vmatpush1.bf16.msra.mxu0 %v4779
        %4821 = vmatprep.subr.bf16.mxu0 0
        %4822 = vmatpush1.bf16.msra.mxu0 %v4780
        %4823 = vmatprep.subr.bf16.mxu0 0
        %4824 = vmatpush1.bf16.msra.mxu0 %v4781
        %4825 = vmatprep.subr.bf16.mxu0 0
        %4826 = vmatpush1.bf16.msra.mxu0 %v4782
        %4827 = vmatprep.subr.bf16.mxu0 0
        %4828 = vmatpush1.bf16.msra.mxu0 %v4783
        %4829 = vmatprep.subr.bf16.mxu0 0
        %4830 = vmatpush1.bf16.msra.mxu0 %v4784
        %4831 = vmatprep.subr.bf16.mxu0 0
        %4832 = vmatpush1.bf16.msra.mxu0 %v4785
        %4833 = vmatprep.subr.bf16.mxu0 0
        %4834 = vmatpush1.bf16.msra.mxu0 %v4786
        %4835 = vmatprep.mubr.bf16.mxu0 %v4667
        %4836 = vmatmul.mubr.bf16.gmra.mrb[0].mxu0 %v4666
        %v4837 = vpop.f32.mrb[0].mxu0
        %v4838 = vadd.f32 %v4705, %v4837
        %v4839 = vpop.f32.mrb[0].mxu0
        %v4840 = vpop.f32.mrb[0].mxu0
        %v4841 = vadd.f32 %v4705, %v4840
        %v4842 = vpop.f32.mrb[0].mxu0
        %4843 = vdwg.mxu0
        %v4844 = vmax.f32 %v4838, 0.0
        %v4845 = vmax.f32 %v4841, 0.0
        %4846 = vst [vmem:[#allocation2 + $0x8] sm:$0xff] %v4844
        %4847 = vst [vmem:[#allocation2 + $0x20] sm:$0xff] %v4845
        %v4850 = vrot.slane %v4844, 7
        %v4851 = vrot.slane %v4845, 7
        %v4852 = vsel %vm690, %v4850, %v4851
        %4855 = vst [vmem:[#allocation2] sm:$0xfe] %v4850
        %4856 = vst [vmem:[#allocation2 + $0x18] sm:$0xff] %v4852
        %v4857 = vrot.slane %v4844, 1
        %v4858 = vrot.slane %v4845, 1
        %v4859 = vsel %vm698, %v4857, %v4858
        %4862 = vst [vmem:[#allocation2 + $0x10] sm:$0xff] %v4859
        %4863 = vst [vmem:[#allocation2 + $0x28] sm:$0x7f] %v4858
        %v4864 = vld [vmem:[#allocation2] sm:$0xff]
        %v4865 = vld [vmem:[#allocation2 + $0x8] sm:$0xff]
        %v4866 = vld [vmem:[#allocation2 + $0x10] sm:$0xff]
        %v4867 = vld [vmem:[#allocation2 + $0x18] sm:$0xff]
        %v4868 = vld [vmem:[#allocation2 + $0x20] sm:$0xff]
        %v4869 = vld [vmem:[#allocation2 + $0x28] sm:$0xff]
        %v4870 = vpack.c.bf16 %v4867, %v4864
        %v4871 = vpack.c.bf16 %v4868, %v4865
        %v4872 = vpack.c.bf16 %v4869, %v4866
        %s4873 = scalar_lea.vmem [#allocation9], 1152
        %v4874 = vld [vmem:[%s4873] sm:$0xf]
        %v4875 = vld [vmem:[%s4873 + $0x4] sm:$0xf]
        %v4876 = vld [vmem:[%s4873 + $0x8] sm:$0xf]
        %v4877 = vld [vmem:[%s4873 + $0xc] sm:$0xf]
        %v4878 = vld [vmem:[%s4873 + $0x10] sm:$0xf]
        %v4879 = vld [vmem:[%s4873 + $0x14] sm:$0xf]
        %v4880 = vld [vmem:[%s4873 + $0x18] sm:$0xf]
        %v4881 = vld [vmem:[%s4873 + $0x1c] sm:$0xf]
        %v4882 = vld [vmem:[%s4873 + $0x20] sm:$0xf]
        %v4883 = vld [vmem:[%s4873 + $0x24] sm:$0xf]
        %v4884 = vld [vmem:[%s4873 + $0x28] sm:$0xf]
        %v4885 = vld [vmem:[%s4873 + $0x2c] sm:$0xf]
        %v4886 = vld [vmem:[%s4873 + $0x30] sm:$0xf]
        %v4887 = vld [vmem:[%s4873 + $0x34] sm:$0xf]
        %v4888 = vld [vmem:[%s4873 + $0x38] sm:$0xf]
        %v4889 = vld [vmem:[%s4873 + $0x3c] sm:$0xf]
        %v4890 = vld [vmem:[%s4873 + $0x40] sm:$0xf]
        %v4891 = vld [vmem:[%s4873 + $0x44] sm:$0xf]
        %v4892 = vld [vmem:[%s4873 + $0x48] sm:$0xf]
        %v4893 = vld [vmem:[%s4873 + $0x4c] sm:$0xf]
        %v4894 = vld [vmem:[%s4873 + $0x50] sm:$0xf]
        %v4895 = vld [vmem:[%s4873 + $0x54] sm:$0xf]
        %v4896 = vld [vmem:[%s4873 + $0x58] sm:$0xf]
        %v4897 = vld [vmem:[%s4873 + $0x5c] sm:$0xf]
        %v4898 = vld [vmem:[%s4873 + $0x60] sm:$0xf]
        %v4899 = vld [vmem:[%s4873 + $0x64] sm:$0xf]
        %v4900 = vld [vmem:[%s4873 + $0x68] sm:$0xf]
        %v4901 = vld [vmem:[%s4873 + $0x6c] sm:$0xf]
        %v4902 = vld [vmem:[%s4873 + $0x70] sm:$0xf]
        %v4903 = vld [vmem:[%s4873 + $0x74] sm:$0xf]
        %v4904 = vld [vmem:[%s4873 + $0x78] sm:$0xf]
        %v4905 = vld [vmem:[%s4873 + $0x7c] sm:$0xf]
        %v4906 = vld [vmem:[%s4873 + $0x80] sm:$0xf]
        %v4907 = vld [vmem:[%s4873 + $0x84] sm:$0xf]
        %v4908 = vld [vmem:[%s4873 + $0x88] sm:$0xf]
        %v4909 = vld [vmem:[%s4873 + $0x8c] sm:$0xf]
        %v4910 = vld [vmem:[%s4873 + $0x90] sm:$0xf]
        %v4911 = vld [vmem:[%s4873 + $0x94] sm:$0xf]
        %v4912 = vld [vmem:[%s4873 + $0x98] sm:$0xf]
        %v4913 = vld [vmem:[%s4873 + $0x9c] sm:$0xf]
        %v4914 = vld [vmem:[%s4873 + $0xa0] sm:$0xf]
        %v4915 = vld [vmem:[%s4873 + $0xa4] sm:$0xf]
        %v4916 = vld [vmem:[%s4873 + $0xa8] sm:$0xf]
        %v4917 = vld [vmem:[%s4873 + $0xac] sm:$0xf]
        %v4918 = vld [vmem:[%s4873 + $0xb0] sm:$0xf]
        %v4919 = vld [vmem:[%s4873 + $0xb4] sm:$0xf]
        %v4920 = vld [vmem:[%s4873 + $0xb8] sm:$0xf]
        %v4921 = vld [vmem:[%s4873 + $0xbc] sm:$0xf]
        %s4922 = scalar_lea.vmem %s2, 6
        %v4923 = vld [vmem:[%s4922] sm:$0x1]
        %v4925 = vlaneseq
        %v4926 = vshrl.u32 %v4925, 7
        %v4927 = vsub.s32 0, %v4926
        %v4928 = vrot.slane %v4923, %v4927
        %v4978 = vunpack.c.l.b16 %v4874
        %v4979 = vunpack.c.l.b16 %v4875
        %v4980 = vunpack.c.l.b16 %v4876
        %v4981 = vunpack.c.l.b16 %v4877
        %v4982 = vunpack.c.l.b16 %v4878
        %v4983 = vunpack.c.l.b16 %v4879
        %v4984 = vunpack.c.l.b16 %v4880
        %v4985 = vunpack.c.l.b16 %v4881
        %v4986 = vunpack.c.l.b16 %v4882
        %v4987 = vunpack.c.l.b16 %v4883
        %v4988 = vunpack.c.l.b16 %v4884
        %v4989 = vunpack.c.l.b16 %v4885
        %v4990 = vunpack.c.l.b16 %v4886
        %v4991 = vunpack.c.l.b16 %v4887
        %v4992 = vunpack.c.l.b16 %v4888
        %v4993 = vunpack.c.l.b16 %v4889
        %v4994 = vunpack.c.l.b16 %v4890
        %v4995 = vunpack.c.l.b16 %v4891
        %v4996 = vunpack.c.l.b16 %v4892
        %v4997 = vunpack.c.l.b16 %v4893
        %v4998 = vunpack.c.l.b16 %v4894
        %v4999 = vunpack.c.l.b16 %v4895
        %v5000 = vunpack.c.l.b16 %v4896
        %v5001 = vunpack.c.l.b16 %v4897
        %v5002 = vunpack.c.l.b16 %v4898
        %v5003 = vunpack.c.l.b16 %v4899
        %v5004 = vunpack.c.l.b16 %v4900
        %v5005 = vunpack.c.l.b16 %v4901
        %v5006 = vunpack.c.l.b16 %v4902
        %v5007 = vunpack.c.l.b16 %v4903
        %v5008 = vunpack.c.l.b16 %v4904
        %v5009 = vunpack.c.l.b16 %v4905
        %v5010 = vunpack.c.l.b16 %v4906
        %v5011 = vunpack.c.l.b16 %v4907
        %v5012 = vunpack.c.l.b16 %v4908
        %v5013 = vunpack.c.l.b16 %v4909
        %v5014 = vunpack.c.l.b16 %v4910
        %v5015 = vunpack.c.l.b16 %v4911
        %v5016 = vunpack.c.l.b16 %v4912
        %v5017 = vunpack.c.l.b16 %v4913
        %v5018 = vunpack.c.l.b16 %v4914
        %v5019 = vunpack.c.l.b16 %v4915
        %v5020 = vunpack.c.l.b16 %v4916
        %v5021 = vunpack.c.l.b16 %v4917
        %v5022 = vunpack.c.l.b16 %v4918
        %v5023 = vunpack.c.l.b16 %v4919
        %v5024 = vunpack.c.l.b16 %v4920
        %v5025 = vunpack.c.l.b16 %v4921
        %v5026 = vpack.c.b16 %v4979, %v4978
        %v5027 = vpack.c.b16 %v4981, %v4980
        %v5028 = vpack.c.b16 %v4983, %v4982
        %v5029 = vpack.c.b16 %v4985, %v4984
        %v5030 = vpack.c.b16 %v4987, %v4986
        %v5031 = vpack.c.b16 %v4989, %v4988
        %v5032 = vpack.c.b16 %v4991, %v4990
        %v5033 = vpack.c.b16 %v4993, %v4992
        %v5034 = vpack.c.b16 %v4995, %v4994
        %v5035 = vpack.c.b16 %v4997, %v4996
        %v5036 = vpack.c.b16 %v4999, %v4998
        %v5037 = vpack.c.b16 %v5001, %v5000
        %v5038 = vpack.c.b16 %v5003, %v5002
        %v5039 = vpack.c.b16 %v5005, %v5004
        %v5040 = vpack.c.b16 %v5007, %v5006
        %v5041 = vpack.c.b16 %v5009, %v5008
        %v5042 = vpack.c.b16 %v5011, %v5010
        %v5043 = vpack.c.b16 %v5013, %v5012
        %v5044 = vpack.c.b16 %v5015, %v5014
        %v5045 = vpack.c.b16 %v5017, %v5016
        %v5046 = vpack.c.b16 %v5019, %v5018
        %v5047 = vpack.c.b16 %v5021, %v5020
        %v5048 = vpack.c.b16 %v5023, %v5022
        %v5049 = vpack.c.b16 %v5025, %v5024
        %5074 = vmatprep.subr.bf16.mxu0 0
        %5075 = vmatpush1.bf16.msra.mxu0 %v5026
        %5076 = vmatprep.subr.bf16.mxu0 0
        %5077 = vmatpush1.bf16.msra.mxu0 %v5027
        %5078 = vmatprep.subr.bf16.mxu0 0
        %5079 = vmatpush1.bf16.msra.mxu0 %v5028
        %5080 = vmatprep.subr.bf16.mxu0 0
        %5081 = vmatpush1.bf16.msra.mxu0 %v5029
        %5082 = vmatprep.subr.bf16.mxu0 0
        %5083 = vmatpush1.bf16.msra.mxu0 %v5030
        %5084 = vmatprep.subr.bf16.mxu0 0
        %5085 = vmatpush1.bf16.msra.mxu0 %v5031
        %5086 = vmatprep.subr.bf16.mxu0 0
        %5087 = vmatpush1.bf16.msra.mxu0 %v5032
        %5088 = vmatprep.subr.bf16.mxu0 0
        %5089 = vmatpush1.bf16.msra.mxu0 %v5033
        %5090 = vmatprep.subr.bf16.mxu0 0
        %5091 = vmatpush1.bf16.msra.mxu0 %v5034
        %5092 = vmatprep.subr.bf16.mxu0 0
        %5093 = vmatpush1.bf16.msra.mxu0 %v5035
        %5094 = vmatprep.subr.bf16.mxu0 0
        %5095 = vmatpush1.bf16.msra.mxu0 %v5036
        %5096 = vmatprep.subr.bf16.mxu0 0
        %5097 = vmatpush1.bf16.msra.mxu0 %v5037
        %5098 = vmatprep.subr.bf16.mxu0 0
        %5099 = vmatpush1.bf16.msra.mxu0 %v5038
        %5100 = vmatprep.subr.bf16.mxu0 0
        %5101 = vmatpush1.bf16.msra.mxu0 %v5039
        %5102 = vmatprep.subr.bf16.mxu0 0
        %5103 = vmatpush1.bf16.msra.mxu0 %v5040
        %5104 = vmatprep.subr.bf16.mxu0 0
        %5105 = vmatpush1.bf16.msra.mxu0 %v5041
        %5106 = vmatprep.mubr.bf16.mxu0 %v4871
        %5107 = vmatmul.mubr.bf16.gmra.mrb[0].mxu0 %v4870
        %v5108 = vpop.f32.mrb[0].mxu0
        %v5109 = vadd.f32 %v4928, %v5108
        %v5110 = vpop.f32.mrb[0].mxu0
        %v5111 = vpop.f32.mrb[0].mxu0
        %v5112 = vadd.f32 %v4928, %v5111
        %v5113 = vpop.f32.mrb[0].mxu0
        %5114 = vdwg.mxu0
        %5115 = vmatprep.subr.bf16.mxu0 0
        %5116 = vmatpush1.bf16.msra.mxu0 %v5042
        %5117 = vmatprep.subr.bf16.mxu0 0
        %5118 = vmatpush1.bf16.msra.mxu0 %v5043
        %5119 = vmatprep.subr.bf16.mxu0 0
        %5120 = vmatpush1.bf16.msra.mxu0 %v5044
        %5121 = vmatprep.subr.bf16.mxu0 0
        %5122 = vmatpush1.bf16.msra.mxu0 %v5045
        %5123 = vmatprep.subr.bf16.mxu0 0
        %5124 = vmatpush1.bf16.msra.mxu0 %v5046
        %5125 = vmatprep.subr.bf16.mxu0 0
        %5126 = vmatpush1.bf16.msra.mxu0 %v5047
        %5127 = vmatprep.subr.bf16.mxu0 0
        %5128 = vmatpush1.bf16.msra.mxu0 %v5048
        %5129 = vmatprep.subr.bf16.mxu0 0
        %5130 = vmatpush1.bf16.msra.mxu0 %v5049
        %5131 = vmatprep.subr.bf16.mxu0 0
        %5132 = vmatpush1.bf16.msra.mxu0 0
        %5133 = vmatprep.subr.bf16.mxu0 0
        %5134 = vmatpush1.bf16.msra.mxu0 0
        %5135 = vmatprep.subr.bf16.mxu0 0
        %5136 = vmatpush1.bf16.msra.mxu0 0
        %5137 = vmatprep.subr.bf16.mxu0 0
        %5138 = vmatpush1.bf16.msra.mxu0 0
        %5139 = vmatprep.subr.bf16.mxu0 0
        %5140 = vmatpush1.bf16.msra.mxu0 0
        %5141 = vmatprep.subr.bf16.mxu0 0
        %5142 = vmatpush1.bf16.msra.mxu0 0
        %5143 = vmatprep.subr.bf16.mxu0 0
        %5144 = vmatpush1.bf16.msra.mxu0 0
        %5145 = vmatprep.subr.bf16.mxu0 0
        %5146 = vmatpush1.bf16.msra.mxu0 0
        %5147 = vmatprep.mubr.bf16.mxu0 0
        %5148 = vmatmul.mubr.bf16.gmra.mrb[0].mxu0 %v4872
        %v5149 = vpop.f32.mrb[0].mxu0
        %v5150 = vadd.f32 %v5109, %v5149
        %v5151 = vpop.f32.mrb[0].mxu0
        %v5152 = vpop.f32.mrb[0].mxu0
        %v5153 = vadd.f32 %v5112, %v5152
        %v5154 = vpop.f32.mrb[0].mxu0
        %5155 = vdwg.mxu0
        %v5156 = vmax.f32 %v5150, 0.0
        %v5157 = vmax.f32 %v5153, 0.0
        %5158 = vst [vmem:[#allocation2 + $0x8] sm:$0xff] %v5156
        %5159 = vst [vmem:[#allocation2 + $0x20] sm:$0xff] %v5157
        %v5162 = vrot.slane %v5156, 7
        %v5163 = vrot.slane %v5157, 7
        %v5164 = vsel %vm690, %v5162, %v5163
        %5167 = vst [vmem:[#allocation2] sm:$0xfe] %v5162
        %5168 = vst [vmem:[#allocation2 + $0x18] sm:$0xff] %v5164
        %v5169 = vrot.slane %v5156, 1
        %v5170 = vrot.slane %v5157, 1
        %v5171 = vsel %vm698, %v5169, %v5170
        %5174 = vst [vmem:[#allocation2 + $0x10] sm:$0xff] %v5171
        %5175 = vst [vmem:[#allocation2 + $0x28] sm:$0x7f] %v5170
        %v5176 = vld [vmem:[#allocation2] sm:$0xff]
        %v5177 = vld [vmem:[#allocation2 + $0x8] sm:$0xff]
        %v5178 = vld [vmem:[#allocation2 + $0x10] sm:$0xff]
        %v5179 = vld [vmem:[#allocation2 + $0x18] sm:$0xff]
        %v5180 = vld [vmem:[#allocation2 + $0x20] sm:$0xff]
        %v5181 = vld [vmem:[#allocation2 + $0x28] sm:$0xff]
        %v5182 = vpack.c.bf16 %v5179, %v5176
        %v5183 = vpack.c.bf16 %v5180, %v5177
        %v5184 = vpack.c.bf16 %v5181, %v5178
        %s5185 = scalar_lea.vmem [#allocation9], 1344
        %v5186 = vld [vmem:[%s5185] sm:$0xf]
        %v5187 = vld [vmem:[%s5185 + $0x4] sm:$0xf]
        %v5188 = vld [vmem:[%s5185 + $0x8] sm:$0xf]
        %v5189 = vld [vmem:[%s5185 + $0xc] sm:$0xf]
        %v5190 = vld [vmem:[%s5185 + $0x10] sm:$0xf]
        %v5191 = vld [vmem:[%s5185 + $0x14] sm:$0xf]
        %v5192 = vld [vmem:[%s5185 + $0x18] sm:$0xf]
        %v5193 = vld [vmem:[%s5185 + $0x1c] sm:$0xf]
        %v5194 = vld [vmem:[%s5185 + $0x20] sm:$0xf]
        %v5195 = vld [vmem:[%s5185 + $0x24] sm:$0xf]
        %v5196 = vld [vmem:[%s5185 + $0x28] sm:$0xf]
        %v5197 = vld [vmem:[%s5185 + $0x2c] sm:$0xf]
        %v5198 = vld [vmem:[%s5185 + $0x30] sm:$0xf]
        %v5199 = vld [vmem:[%s5185 + $0x34] sm:$0xf]
        %v5200 = vld [vmem:[%s5185 + $0x38] sm:$0xf]
        %v5201 = vld [vmem:[%s5185 + $0x3c] sm:$0xf]
        %v5202 = vld [vmem:[%s5185 + $0x40] sm:$0xf]
        %v5203 = vld [vmem:[%s5185 + $0x44] sm:$0xf]
        %v5204 = vld [vmem:[%s5185 + $0x48] sm:$0xf]
        %v5205 = vld [vmem:[%s5185 + $0x4c] sm:$0xf]
        %v5206 = vld [vmem:[%s5185 + $0x50] sm:$0xf]
        %v5207 = vld [vmem:[%s5185 + $0x54] sm:$0xf]
        %v5208 = vld [vmem:[%s5185 + $0x58] sm:$0xf]
        %v5209 = vld [vmem:[%s5185 + $0x5c] sm:$0xf]
        %v5210 = vld [vmem:[%s5185 + $0x60] sm:$0xf]
        %v5211 = vld [vmem:[%s5185 + $0x64] sm:$0xf]
        %v5212 = vld [vmem:[%s5185 + $0x68] sm:$0xf]
        %v5213 = vld [vmem:[%s5185 + $0x6c] sm:$0xf]
        %v5214 = vld [vmem:[%s5185 + $0x70] sm:$0xf]
        %v5215 = vld [vmem:[%s5185 + $0x74] sm:$0xf]
        %v5216 = vld [vmem:[%s5185 + $0x78] sm:$0xf]
        %v5217 = vld [vmem:[%s5185 + $0x7c] sm:$0xf]
        %v5218 = vld [vmem:[%s5185 + $0x80] sm:$0xf]
        %v5219 = vld [vmem:[%s5185 + $0x84] sm:$0xf]
        %v5220 = vld [vmem:[%s5185 + $0x88] sm:$0xf]
        %v5221 = vld [vmem:[%s5185 + $0x8c] sm:$0xf]
        %v5222 = vld [vmem:[%s5185 + $0x90] sm:$0xf]
        %v5223 = vld [vmem:[%s5185 + $0x94] sm:$0xf]
        %v5224 = vld [vmem:[%s5185 + $0x98] sm:$0xf]
        %v5225 = vld [vmem:[%s5185 + $0x9c] sm:$0xf]
        %v5226 = vld [vmem:[%s5185 + $0xa0] sm:$0xf]
        %v5227 = vld [vmem:[%s5185 + $0xa4] sm:$0xf]
        %v5228 = vld [vmem:[%s5185 + $0xa8] sm:$0xf]
        %v5229 = vld [vmem:[%s5185 + $0xac] sm:$0xf]
        %v5230 = vld [vmem:[%s5185 + $0xb0] sm:$0xf]
        %v5231 = vld [vmem:[%s5185 + $0xb4] sm:$0xf]
        %v5232 = vld [vmem:[%s5185 + $0xb8] sm:$0xf]
        %v5233 = vld [vmem:[%s5185 + $0xbc] sm:$0xf]
        %s5234 = scalar_lea.vmem %s2, 7
        %v5235 = vld [vmem:[%s5234] sm:$0x1]
        %v5237 = vlaneseq
        %v5238 = vshrl.u32 %v5237, 7
        %v5239 = vsub.s32 0, %v5238
        %v5240 = vrot.slane %v5235, %v5239
        %v5290 = vunpack.c.l.b16 %v5186
        %v5291 = vunpack.c.l.b16 %v5187
        %v5292 = vunpack.c.l.b16 %v5188
        %v5293 = vunpack.c.l.b16 %v5189
        %v5294 = vunpack.c.l.b16 %v5190
        %v5295 = vunpack.c.l.b16 %v5191
        %v5296 = vunpack.c.l.b16 %v5192
        %v5297 = vunpack.c.l.b16 %v5193
        %v5298 = vunpack.c.l.b16 %v5194
        %v5299 = vunpack.c.l.b16 %v5195
        %v5300 = vunpack.c.l.b16 %v5196
        %v5301 = vunpack.c.l.b16 %v5197
        %v5302 = vunpack.c.l.b16 %v5198
        %v5303 = vunpack.c.l.b16 %v5199
        %v5304 = vunpack.c.l.b16 %v5200
        %v5305 = vunpack.c.l.b16 %v5201
        %v5306 = vunpack.c.l.b16 %v5202
        %v5307 = vunpack.c.l.b16 %v5203
        %v5308 = vunpack.c.l.b16 %v5204
        %v5309 = vunpack.c.l.b16 %v5205
        %v5310 = vunpack.c.l.b16 %v5206
        %v5311 = vunpack.c.l.b16 %v5207
        %v5312 = vunpack.c.l.b16 %v5208
        %v5313 = vunpack.c.l.b16 %v5209
        %v5314 = vunpack.c.l.b16 %v5210
        %v5315 = vunpack.c.l.b16 %v5211
        %v5316 = vunpack.c.l.b16 %v5212
        %v5317 = vunpack.c.l.b16 %v5213
        %v5318 = vunpack.c.l.b16 %v5214
        %v5319 = vunpack.c.l.b16 %v5215
        %v5320 = vunpack.c.l.b16 %v5216
        %v5321 = vunpack.c.l.b16 %v5217
        %v5322 = vunpack.c.l.b16 %v5218
        %v5323 = vunpack.c.l.b16 %v5219
        %v5324 = vunpack.c.l.b16 %v5220
        %v5325 = vunpack.c.l.b16 %v5221
        %v5326 = vunpack.c.l.b16 %v5222
        %v5327 = vunpack.c.l.b16 %v5223
        %v5328 = vunpack.c.l.b16 %v5224
        %v5329 = vunpack.c.l.b16 %v5225
        %v5330 = vunpack.c.l.b16 %v5226
        %v5331 = vunpack.c.l.b16 %v5227
        %v5332 = vunpack.c.l.b16 %v5228
        %v5333 = vunpack.c.l.b16 %v5229
        %v5334 = vunpack.c.l.b16 %v5230
        %v5335 = vunpack.c.l.b16 %v5231
        %v5336 = vunpack.c.l.b16 %v5232
        %v5337 = vunpack.c.l.b16 %v5233
        %v5338 = vpack.c.b16 %v5291, %v5290
        %v5339 = vpack.c.b16 %v5293, %v5292
        %v5340 = vpack.c.b16 %v5295, %v5294
        %v5341 = vpack.c.b16 %v5297, %v5296
        %v5342 = vpack.c.b16 %v5299, %v5298
        %v5343 = vpack.c.b16 %v5301, %v5300
        %v5344 = vpack.c.b16 %v5303, %v5302
        %v5345 = vpack.c.b16 %v5305, %v5304
        %v5346 = vpack.c.b16 %v5307, %v5306
        %v5347 = vpack.c.b16 %v5309, %v5308
        %v5348 = vpack.c.b16 %v5311, %v5310
        %v5349 = vpack.c.b16 %v5313, %v5312
        %v5350 = vpack.c.b16 %v5315, %v5314
        %v5351 = vpack.c.b16 %v5317, %v5316
        %v5352 = vpack.c.b16 %v5319, %v5318
        %v5353 = vpack.c.b16 %v5321, %v5320
        %v5354 = vpack.c.b16 %v5323, %v5322
        %v5355 = vpack.c.b16 %v5325, %v5324
        %v5356 = vpack.c.b16 %v5327, %v5326
        %v5357 = vpack.c.b16 %v5329, %v5328
        %v5358 = vpack.c.b16 %v5331, %v5330
        %v5359 = vpack.c.b16 %v5333, %v5332
        %v5360 = vpack.c.b16 %v5335, %v5334
        %v5361 = vpack.c.b16 %v5337, %v5336
        %5386 = vmatprep.subr.bf16.mxu0 0
        %5387 = vmatpush1.bf16.msra.mxu0 %v5338
        %5388 = vmatprep.subr.bf16.mxu0 0
        %5389 = vmatpush1.bf16.msra.mxu0 %v5339
        %5390 = vmatprep.subr.bf16.mxu0 0
        %5391 = vmatpush1.bf16.msra.mxu0 %v5340
        %5392 = vmatprep.subr.bf16.mxu0 0
        %5393 = vmatpush1.bf16.msra.mxu0 %v5341
        %5394 = vmatprep.subr.bf16.mxu0 0
        %5395 = vmatpush1.bf16.msra.mxu0 %v5342
        %5396 = vmatprep.subr.bf16.mxu0 0
        %5397 = vmatpush1.bf16.msra.mxu0 %v5343
        %5398 = vmatprep.subr.bf16.mxu0 0
        %5399 = vmatpush1.bf16.msra.mxu0 %v5344
        %5400 = vmatprep.subr.bf16.mxu0 0
        %5401 = vmatpush1.bf16.msra.mxu0 %v5345
        %5402 = vmatprep.subr.bf16.mxu0 0
        %5403 = vmatpush1.bf16.msra.mxu0 %v5346
        %5404 = vmatprep.subr.bf16.mxu0 0
        %5405 = vmatpush1.bf16.msra.mxu0 %v5347
        %5406 = vmatprep.subr.bf16.mxu0 0
        %5407 = vmatpush1.bf16.msra.mxu0 %v5348
        %5408 = vmatprep.subr.bf16.mxu0 0
        %5409 = vmatpush1.bf16.msra.mxu0 %v5349
        %5410 = vmatprep.subr.bf16.mxu0 0
        %5411 = vmatpush1.bf16.msra.mxu0 %v5350
        %5412 = vmatprep.subr.bf16.mxu0 0
        %5413 = vmatpush1.bf16.msra.mxu0 %v5351
        %5414 = vmatprep.subr.bf16.mxu0 0
        %5415 = vmatpush1.bf16.msra.mxu0 %v5352
        %5416 = vmatprep.subr.bf16.mxu0 0
        %5417 = vmatpush1.bf16.msra.mxu0 %v5353
        %5418 = vmatprep.mubr.bf16.mxu0 %v5183
        %5419 = vmatmul.mubr.bf16.gmra.mrb[0].mxu0 %v5182
        %v5420 = vpop.f32.mrb[0].mxu0
        %v5421 = vadd.f32 %v5240, %v5420
        %v5422 = vpop.f32.mrb[0].mxu0
        %v5423 = vpop.f32.mrb[0].mxu0
        %v5424 = vadd.f32 %v5240, %v5423
        %v5425 = vpop.f32.mrb[0].mxu0
        %5426 = vdwg.mxu0
        %5427 = vmatprep.subr.bf16.mxu0 0
        %5428 = vmatpush1.bf16.msra.mxu0 %v5354
        %5429 = vmatprep.subr.bf16.mxu0 0
        %5430 = vmatpush1.bf16.msra.mxu0 %v5355
        %5431 = vmatprep.subr.bf16.mxu0 0
        %5432 = vmatpush1.bf16.msra.mxu0 %v5356
        %5433 = vmatprep.subr.bf16.mxu0 0
        %5434 = vmatpush1.bf16.msra.mxu0 %v5357
        %5435 = vmatprep.subr.bf16.mxu0 0
        %5436 = vmatpush1.bf16.msra.mxu0 %v5358
        %5437 = vmatprep.subr.bf16.mxu0 0
        %5438 = vmatpush1.bf16.msra.mxu0 %v5359
        %5439 = vmatprep.subr.bf16.mxu0 0
        %5440 = vmatpush1.bf16.msra.mxu0 %v5360
        %5441 = vmatprep.subr.bf16.mxu0 0
        %5442 = vmatpush1.bf16.msra.mxu0 %v5361
        %5443 = vmatprep.subr.bf16.mxu0 0
        %5444 = vmatpush1.bf16.msra.mxu0 0
        %5445 = vmatprep.subr.bf16.mxu0 0
        %5446 = vmatpush1.bf16.msra.mxu0 0
        %5447 = vmatprep.subr.bf16.mxu0 0
        %5448 = vmatpush1.bf16.msra.mxu0 0
        %5449 = vmatprep.subr.bf16.mxu0 0
        %5450 = vmatpush1.bf16.msra.mxu0 0
        %5451 = vmatprep.subr.bf16.mxu0 0
        %5452 = vmatpush1.bf16.msra.mxu0 0
        %5453 = vmatprep.subr.bf16.mxu0 0
        %5454 = vmatpush1.bf16.msra.mxu0 0
        %5455 = vmatprep.subr.bf16.mxu0 0
        %5456 = vmatpush1.bf16.msra.mxu0 0
        %5457 = vmatprep.subr.bf16.mxu0 0
        %5458 = vmatpush1.bf16.msra.mxu0 0
        %5459 = vmatprep.mubr.bf16.mxu0 0
        %5460 = vmatmul.mubr.bf16.gmra.mrb[0].mxu0 %v5184
        %v5461 = vpop.f32.mrb[0].mxu0
        %v5462 = vadd.f32 %v5421, %v5461
        %v5463 = vpop.f32.mrb[0].mxu0
        %v5464 = vpop.f32.mrb[0].mxu0
        %v5465 = vadd.f32 %v5424, %v5464
        %v5466 = vpop.f32.mrb[0].mxu0
        %5467 = vdwg.mxu0
        %v5468 = vadd.f32 %v5462, %v4844
        %v5469 = vadd.f32 %v5465, %v4845
        %v5470 = vmax.f32 %v5468, 0.0
        %v5471 = vmax.f32 %v5469, 0.0
        %v5472 = vxor.u32 %v5470, 2147483648
        %v5473 = vxor.u32 %v5471, 2147483648
        %v5474 = vmul.f32 %v5472, 1.442695
        %v5475 = vpow.pop %v5474
        %v5476 = vmul.f32 %v5473, 1.442695
        %v5477 = vpow.pop %v5476
        %v5478 = vadd.f32 %v5475, 1.0
        %v5479 = vadd.f32 %v5477, 1.0
        %v5480 = vrcp.pop %v5478
        %v5481 = vmul.f32 1.0, %v5480
        %v5482 = vrcp.pop %v5479
        %v5483 = vmul.f32 1.0, %v5482
        %v5484 = vadd.f32 %v5481, 1.0
        %v5485 = vadd.f32 %v5483, 1.0
        %v5486 = vmul.f32 %v5484, %v1936
        %v5487 = vmul.f32 %v5485, %v1937
        %5488 = vst [vmem:[%s664] sm:$0xff] %v5486
        %5489 = vst [vmem:[%s664 + $0x8] sm:$0xff] %v5487
        %s5490 = sand.u32 %s490, 1
        %s5491 = scalar_lea.sflag [#allocation11], %s5490
        %s5492 = sand.u32 %s490, 1
        %s5493 = smul.addr %s5492, 16
        %s5494 = scalar_lea.vmem [#allocation12], %s5493
        // Predicated region
        $region109: #{attention2_forward.1} parent=103 // pred_check
          %p5495 = pneg %p500
        $region110: #{attention2_forward.1} parent=103 // pred_check_branch
          %5497 = sbr.rel (%p5495) target = $region112
        $region111: #{attention2_forward.1} parent=103 // pred_region
          %s5499 = ssub.s32 256, 256
          %5500 = vsyncadd %s5491, %s5499
          %s5501 = smul.addr %s36, 2
          %s5502 = smul.addr %s5501, 128
          %s5503 = scalar_lea.hbm %s21, %s5502
          %s5504 = sshll.u32 %s5494, 4
          %s5505 = int_to_ptr.vmem [resolvable:$true] %s5504
          %5510 = dma.vmem_to_hbm [thread:$0]  %s5505, 256, %s5503, %s5491, 128, 128, 8
        $region112: #{attention2_forward.1} parent=103 // pred_fallthru
          _
      $region104: #{attention2_forward.1} parent=5 // pred_fallthru
        _
      %p5511 = scmp.le.s32.totalorder 2, %s31
      // Predicated region
      $region113: #{attention2_forward.1} parent=5 // pred_check
        %p5512 = pneg %p5511
      $region114: #{attention2_forward.1} parent=5 // pred_check_branch
        %5514 = sbr.rel (%p5512) target = $region116
      $region115: #{attention2_forward.1} parent=5 // pred_region
        %s5515 = ssub.s32 %s31, 2
        // Predicated region
        $region117: #{attention2_forward.1} parent=115 // pred_check
          %p5516 = pneg %p506
        $region118: #{attention2_forward.1} parent=115 // pred_check_branch
          %5518 = sbr.rel (%p5516) target = $region120
        $region119: #{attention2_forward.1} parent=115 // pred_region
          %s5519 = sand.u32 %s491, 1
          %s5520 = scalar_lea.sflag [#allocation11], %s5519
          %s5521 = sand.u32 %s491, 1
          %s5522 = smul.addr %s5521, 16
          %s5523 = scalar_lea.vmem [#allocation12], %s5522
          %5524 = dma.done %s5520, 256
        $region120: #{attention2_forward.1} parent=115 // pred_fallthru
          _
      $region116: #{attention2_forward.1} parent=5 // pred_fallthru
        _
    $region6: #{attention2_forward.1} parent=1 // loop_footer
      %s35 = sadd.s32 1, %s31
    $region7: #{attention2_forward.1} parent=1 // loop_footer_branch
      %30 = sbr.rel target = $region3
    $region8: #{attention2_forward.1} parent=1 // loop_exit
      _
    %5525 = vsyncpa [#allocation10], 1
    %s5526 = scalar_lea.sflag [#allocation10], 1
    %5527 = vsyncpa %s5526, 1
    %5528 = vsyncpa [#allocation11], 1
    %s5529 = scalar_lea.sflag [#allocation11], 1
    %5530 = vsyncpa %s5529, 1

</llo_original>
